<compile_context>
chip_gen: v7x
topology: tpu7x:2x2x1
jax: 0.10.0
libtpu: 0.0.40
codegen_flags: <defaults>
</compile_context>

<pallas_src>
import math

import jax
import jax.numpy as jnp
from jax.experimental import pallas as pl
from jax.experimental.pallas import tpu as pltpu

NUM_HEADS = 8


def _mha_kernel(xf_ref, wq_ref, bq_ref, wkv_ref, bkv_ref, ow_ref, ob_ref,
                o_ref, k_scr, v_scr, ctx_scr):
    # xf_ref : (1, C, L)   x, feature-major (pure reshape of NCHW)
    # wq_ref : (E, C) bf16 composed (Linear_Q o in_proj_q), q-scaling folded in
    # bq_ref : (E, 1) f32
    # wkv_ref: (2E, C) bf16 composed K/V projections, fused
    # bkv_ref: (2E, 1) f32
    # ow_ref : (E, E) bf16  out_proj.weight
    # ob_ref : (E, 1) f32   out_proj.bias
    # o_ref  : (1, E, tq)   feature-major output tile
    # k_scr  : (L, E)  bf16 K, sequence-major (persists across q tiles)
    # v_scr  : (E, L)  bf16 V, feature-major  (persists across q tiles)
    # ctx_scr: (E, tq) f32  stacked per-head context (pre out_proj)
    E = ow_ref.shape[0]
    hd = E // NUM_HEADS
    tq = o_ref.shape[-1]
    L = xf_ref.shape[-1]

    # ---- K/V projection: once per batch (q grid axis is "arbitrary") -------
    @pl.when(pl.program_id(1) == 0)
    def _():
        x_all = xf_ref[0].astype(jnp.bfloat16)                       # (C, L)
        kv = jnp.dot(wkv_ref[...], x_all,
                     preferred_element_type=jnp.float32) + bkv_ref[...]  # (2E, L)
        # Aligned (E, L) -> (L, E) f32 transpose, once per batch, so every
        # in-loop dot below is a plain (non-transposed) matmul.
        k_scr[...] = kv[:E].T.astype(jnp.bfloat16)                   # (L, E)
        v_scr[...] = kv[E:].astype(jnp.bfloat16)                     # (E, L)

    # ---- Q projection for this query tile, feature-major: (E, tq) ----------
    if tq == L:
        x_q = xf_ref[0]                                              # (C, L)
    else:
        q_off = pl.multiple_of(pl.program_id(1) * tq, 128)
        x_q = xf_ref[0, :, pl.ds(q_off, tq)]                         # (C, tq)
    x_q = x_q.astype(jnp.bfloat16)
    q_fm = jnp.dot(wq_ref[...], x_q,
                   preferred_element_type=jnp.float32) + bq_ref[...]
    q_fm = q_fm.astype(jnp.bfloat16)                                 # (E, tq)

    # ---- per-head attention; contexts stacked into ctx_scr ------------------
    for h in range(NUM_HEADS):
        r0 = h * hd
        qh = q_fm[r0:r0 + hd, :]          # (hd, tq) bf16, sublane slice
        kh = k_scr[:, r0:r0 + hd]         # (L, hd)  bf16
        vh = v_scr[r0:r0 + hd, :]         # (hd, L)  bf16

        # scores, keys on the sublane axis: (L, tq) = K_h @ Q_h
        s = jnp.dot(kh, qh, preferred_element_type=jnp.float32)
        s = s - jnp.max(s, axis=0, keepdims=True)
        p = jnp.exp(s)
        p = p * pl.reciprocal(jnp.sum(p, axis=0, keepdims=True), approx=True)

        # context, feature-major: (hd, tq) = V_h @ P   (plain matmul)
        ctx_scr[r0:r0 + hd, :] = jnp.dot(vh, p.astype(jnp.bfloat16),
                                         preferred_element_type=jnp.float32)

    # ---- single full-K out_proj: (E, E) @ (E, tq) + bias --------------------
    out = jnp.dot(ow_ref[...], ctx_scr[...].astype(jnp.bfloat16),
                  preferred_element_type=jnp.float32) + ob_ref[...]
    o_ref[0] = out.astype(o_ref.dtype)


def multihead_attn_forward(x, kparams, *, tq=256):
    """x: (B, C, H, W) float32.  Returns (B, E, H, W) float32.

    tq=256 fills the v6e/v7x MXU; use tq=128 on v5e. VMEM use at these shapes
    is far below the scoped default, so vmem_limit_bytes is left untouched.
    """
    B, C, H, W = x.shape
    L = H * W
    E = kparams["ow"].shape[0]
    assert E % NUM_HEADS == 0
    tq = min(tq, L)
    assert L % tq == 0, "H*W must be divisible by the query tile"
    assert tq == L or tq % 128 == 0, "query tile must be lane-aligned"
    n_q = L // tq

    x_fm = x.reshape(B, C, L)   # feature-major: pure reshape of NCHW, no copy

    out = pl.pallas_call(
        _mha_kernel,
        out_shape=jax.ShapeDtypeStruct((B, E, L), jnp.float32),
        grid=(B, n_q),
        in_specs=[
            pl.BlockSpec((1, C, L), lambda b, q: (b, 0, 0)),      # x (feature-major)
            pl.BlockSpec((E, C), lambda b, q: (0, 0)),            # wq (composed)
            pl.BlockSpec((E, 1), lambda b, q: (0, 0)),            # bq (composed)
            pl.BlockSpec((2 * E, C), lambda b, q: (0, 0)),        # w_kv (composed+fused)
            pl.BlockSpec((2 * E, 1), lambda b, q: (0, 0)),        # b_kv
            pl.BlockSpec((E, E), lambda b, q: (0, 0)),            # out_proj.weight (bf16)
            pl.BlockSpec((E, 1), lambda b, q: (0, 0)),            # out_proj.bias
        ],
        out_specs=pl.BlockSpec((1, E, tq), lambda b, q: (b, 0, q)),
        scratch_shapes=[
            pltpu.VMEM((L, E), jnp.bfloat16),    # K, sequence-major
            pltpu.VMEM((E, L), jnp.bfloat16),    # V, feature-major
            pltpu.VMEM((E, tq), jnp.float32),    # stacked per-head context
        ],
        compiler_params=pltpu.CompilerParams(
            dimension_semantics=("parallel", "arbitrary")),
    )(x_fm, kparams["wq"], kparams["bq"], kparams["wkv"], kparams["bkv"],
      kparams["ow"], kparams["ob"])

    # feature-major (B, E, L) -> (B, E, H, W): pure reshape, no transpose.
    return out.reshape(B, E, H, W)


def init_params(key, in_channels, hidden_dim):
    """Raw parameters in PyTorch layout (nn.Linear weights are (out, in))."""
    E, C = hidden_dim, in_channels
    ks = jax.random.split(key, 10)
    scale = 0.1

    def rnd(k, shape):
        return (scale * jax.random.normal(k, shape)).astype(jnp.float32)

    return {
        "wq": rnd(ks[0], (E, C)), "wk": rnd(ks[1], (E, C)), "wv": rnd(ks[2], (E, C)),
        "bq": rnd(ks[3], (E,)), "bk": rnd(ks[4], (E,)), "bv": rnd(ks[5], (E,)),
        "in_w": rnd(ks[6], (3 * E, E)), "in_b": rnd(ks[7], (3 * E,)),
        "out_w": rnd(ks[8], (E, E)), "out_b": rnd(ks[9], (E,)),
    }


def fold_params(raw):
    """Compose Linear(Q/K/V) with in_proj (+ q scaling) into kernel weights."""
    E = raw["out_w"].shape[0]
    hd = E // NUM_HEADS
    scaling = 1.0 / math.sqrt(hd)
    in_w, in_b = raw["in_w"], raw["in_b"]

    wq_eff = scaling * (in_w[0:E] @ raw["wq"])                      # (E, C)
    bq_eff = scaling * (in_w[0:E] @ raw["bq"] + in_b[0:E])          # (E,)
    wk_eff = in_w[E:2 * E] @ raw["wk"]
    bk_eff = in_w[E:2 * E] @ raw["bk"] + in_b[E:2 * E]
    wv_eff = in_w[2 * E:] @ raw["wv"]
    bv_eff = in_w[2 * E:] @ raw["bv"] + in_b[2 * E:]

    return {
        "wq": wq_eff.astype(jnp.bfloat16),                          # (E, C)
        "bq": bq_eff.reshape(E, 1).astype(jnp.float32),
        "wkv": jnp.concatenate([wk_eff, wv_eff], 0).astype(jnp.bfloat16),   # (2E, C)
        "bkv": jnp.concatenate([bk_eff, bv_eff], 0).reshape(2 * E, 1)
                  .astype(jnp.float32),
        "ow": raw["out_w"].astype(jnp.bfloat16),                    # (E, E)
        "ob": raw["out_b"].reshape(E, 1).astype(jnp.float32),
    }


def _reference_forward(x, raw):
    """Pure-JAX f32 reference matching PyTorch eval-mode semantics."""
    B, C, H, W = x.shape
    L = H * W
    E = raw["out_w"].shape[0]
    hd = E // NUM_HEADS
    v_seq = jnp.transpose(x.reshape(B, C, L), (2, 0, 1))             # (L, B, C)
    Q = v_seq @ raw["wq"].T + raw["bq"]
    K = v_seq @ raw["wk"].T + raw["bk"]
    V = v_seq @ raw["wv"].T + raw["bv"]
    q = (Q @ raw["in_w"][0:E].T + raw["in_b"][0:E]) / math.sqrt(hd)
    k = K @ raw["in_w"][E:2 * E].T + raw["in_b"][E:2 * E]
    v = V @ raw["in_w"][2 * E:].T + raw["in_b"][2 * E:]

    def split(t):  # (L, B, E) -> (B, nh, L, hd)
        return jnp.transpose(t.reshape(L, B, NUM_HEADS, hd), (1, 2, 0, 3))

    qh, kh, vh = split(q), split(k), split(v)
    s = jnp.einsum("bhqd,bhkd->bhqk", qh, kh)
    p = jax.nn.softmax(s, axis=-1)
    o = jnp.einsum("bhqk,bhkd->bhqd", p, vh)
    o = jnp.transpose(o, (2, 0, 1, 3)).reshape(L, B, E)
    o = o @ raw["out_w"].T + raw["out_b"]
    return jnp.transpose(o.reshape(H, W, B, E), (2, 3, 0, 1))


if __name__ == "__main__":
    key = jax.random.PRNGKey(0)
    k_x, k_p = jax.random.split(key)

    B, C, H, W = 2, 4, 16, 16
    HIDDEN = 32   # 8 heads -> head_dim = 4

    x = jax.random.normal(k_x, (B, C, H, W), dtype=jnp.float32)
    raw = init_params(k_p, C, HIDDEN)
    kparams = fold_params(raw)

    out = multihead_attn_forward(x, kparams)
    out = jax.block_until_ready(out)

    assert out.shape == (B, HIDDEN, H, W), out.shape
    assert bool(jnp.all(jnp.isfinite(out)))

    ref = _reference_forward(x, raw)
    max_err = float(jnp.max(jnp.abs(out - ref)))
    assert max_err < 3e-2, f"max abs error vs reference: {max_err}"

    print("KERNEL_OK")
</pallas_src>

<mosaic_0001>
module attributes {stable_mosaic.version = 11 : i64} {
  func.func @_mha_kernel(%arg0: i32, %arg1: i32, %arg2: memref<1x4x256xf32, #tpu.memory_space<vmem>>, %arg3: memref<32x4xbf16, #tpu.memory_space<vmem>>, %arg4: memref<32x1xf32, #tpu.memory_space<vmem>>, %arg5: memref<64x4xbf16, #tpu.memory_space<vmem>>, %arg6: memref<64x1xf32, #tpu.memory_space<vmem>>, %arg7: memref<32x32xbf16, #tpu.memory_space<vmem>>, %arg8: memref<32x1xf32, #tpu.memory_space<vmem>>, %arg9: memref<1x32x256xf32, #tpu.memory_space<vmem>>, %arg10: memref<256x32xbf16, #tpu.memory_space<vmem>>, %arg11: memref<32x256xbf16, #tpu.memory_space<vmem>>, %arg12: memref<32x256xf32, #tpu.memory_space<vmem>>) attributes {dimension_semantics = [#tpu.dimension_semantics<parallel>, #tpu.dimension_semantics<arbitrary>], iteration_bounds = array<i64: 2, 1>, scalar_prefetch = 0 : i64, scratch_operands = 3 : i64, tpu.core_type = #tpu.core_type<tc>, window_params = [{transform_indices = @transform_0, window_bounds = array<i64: 1, 4, 256>}, {pipeline_mode = #tpu.pipeline_mode<synchronous>, transform_indices = @transform_1, window_bounds = array<i64: 32, 4>}, {pipeline_mode = #tpu.pipeline_mode<synchronous>, transform_indices = @transform_2, window_bounds = array<i64: 32, 1>}, {pipeline_mode = #tpu.pipeline_mode<synchronous>, transform_indices = @transform_3, window_bounds = array<i64: 64, 4>}, {pipeline_mode = #tpu.pipeline_mode<synchronous>, transform_indices = @transform_4, window_bounds = array<i64: 64, 1>}, {pipeline_mode = #tpu.pipeline_mode<synchronous>, transform_indices = @transform_5, window_bounds = array<i64: 32, 32>}, {pipeline_mode = #tpu.pipeline_mode<synchronous>, transform_indices = @transform_6, window_bounds = array<i64: 32, 1>}, {transform_indices = @transform_7, window_bounds = array<i64: 1, 32, 256>}]} {
    %c0_i32 = arith.constant 0 : i32
    %0 = arith.cmpi eq, %arg1, %c0_i32 : i32
    %1 = arith.extui %0 : i1 to i32
    %c0_i32_0 = arith.constant 0 : i32
    %2 = arith.cmpi ne, %1, %c0_i32_0 : i32
    scf.if %2 {
      %c0_90 = arith.constant 0 : index
      %c0_91 = arith.constant 0 : index
      %c0_92 = arith.constant 0 : index
      %158 = vector.load %arg2[%c0_90, %c0_91, %c0_92] : memref<1x4x256xf32, #tpu.memory_space<vmem>>, vector<1x4x256xf32>
      %159 = vector.shape_cast %158 : vector<1x4x256xf32> to vector<4x256xf32>
      %160 = arith.truncf %159 : vector<4x256xf32> to vector<4x256xbf16>
      %c0_93 = arith.constant 0 : index
      %c0_94 = arith.constant 0 : index
      %161 = vector.load %arg5[%c0_93, %c0_94] : memref<64x4xbf16, #tpu.memory_space<vmem>>, vector<64x4xbf16>
      %cst_95 = arith.constant dense<0.000000e+00> : vector<64x256xf32>
      %162 = tpu.matmul %161, %160, %cst_95 {dimension_numbers = #tpu.dot_dimension_numbers<[1], [0], [0], [1], [0, 0, 1, 1], [], []>} : vector<64x4xbf16>, vector<4x256xbf16>, vector<64x256xf32> -> vector<64x256xf32>
      %c0_96 = arith.constant 0 : index
      %c0_97 = arith.constant 0 : index
      %163 = vector.load %arg6[%c0_96, %c0_97] : memref<64x1xf32, #tpu.memory_space<vmem>>, vector<64x1xf32>
      %164 = vector.broadcast %163 : vector<64x1xf32> to vector<64x256xf32>
      %165 = arith.addf %162, %164 : vector<64x256xf32>
      %166 = vector.extract_strided_slice %165 {offsets = [0, 0], sizes = [32, 256], strides = [1, 1]} : vector<64x256xf32> to vector<32x256xf32>
      %167 = tpu.transpose %166, [1, 0] : vector<32x256xf32> -> vector<256x32xf32>
      %168 = arith.truncf %167 : vector<256x32xf32> to vector<256x32xbf16>
      %c0_98 = arith.constant 0 : index
      %c0_99 = arith.constant 0 : index
      %169 = vector.load %arg10[%c0_98, %c0_99] : memref<256x32xbf16, #tpu.memory_space<vmem>>, vector<256x32xbf16>
      tpu.vector_store %arg10[%c0_98, %c0_99], %168 {strides = array<i32>} : memref<256x32xbf16, #tpu.memory_space<vmem>>, vector<256x32xbf16>,
      %170 = vector.extract_strided_slice %165 {offsets = [32, 0], sizes = [32, 256], strides = [1, 1]} : vector<64x256xf32> to vector<32x256xf32>
      %171 = arith.truncf %170 : vector<32x256xf32> to vector<32x256xbf16>
      %c0_100 = arith.constant 0 : index
      %c0_101 = arith.constant 0 : index
      %172 = vector.load %arg11[%c0_100, %c0_101] : memref<32x256xbf16, #tpu.memory_space<vmem>>, vector<32x256xbf16>
      tpu.vector_store %arg11[%c0_100, %c0_101], %171 {strides = array<i32>} : memref<32x256xbf16, #tpu.memory_space<vmem>>, vector<32x256xbf16>,
    } else {
    }
    %c0 = arith.constant 0 : index
    %c0_1 = arith.constant 0 : index
    %c0_2 = arith.constant 0 : index
    %3 = vector.load %arg2[%c0, %c0_1, %c0_2] : memref<1x4x256xf32, #tpu.memory_space<vmem>>, vector<1x4x256xf32>
    %4 = vector.shape_cast %3 : vector<1x4x256xf32> to vector<4x256xf32>
    %5 = arith.truncf %4 : vector<4x256xf32> to vector<4x256xbf16>
    %c0_3 = arith.constant 0 : index
    %c0_4 = arith.constant 0 : index
    %6 = vector.load %arg3[%c0_3, %c0_4] : memref<32x4xbf16, #tpu.memory_space<vmem>>, vector<32x4xbf16>
    %cst = arith.constant dense<0.000000e+00> : vector<32x256xf32>
    %7 = tpu.matmul %6, %5, %cst {dimension_numbers = #tpu.dot_dimension_numbers<[1], [0], [0], [1], [0, 0, 1, 1], [], []>} : vector<32x4xbf16>, vector<4x256xbf16>, vector<32x256xf32> -> vector<32x256xf32>
    %c0_5 = arith.constant 0 : index
    %c0_6 = arith.constant 0 : index
    %8 = vector.load %arg4[%c0_5, %c0_6] : memref<32x1xf32, #tpu.memory_space<vmem>>, vector<32x1xf32>
    %9 = vector.broadcast %8 : vector<32x1xf32> to vector<32x256xf32>
    %10 = arith.addf %7, %9 : vector<32x256xf32>
    %11 = arith.truncf %10 : vector<32x256xf32> to vector<32x256xbf16>
    %12 = vector.extract_strided_slice %11 {offsets = [0, 0], sizes = [4, 256], strides = [1, 1]} : vector<32x256xbf16> to vector<4x256xbf16>
    %c0_7 = arith.constant 0 : index
    %c0_8 = arith.constant 0 : index
    %13 = vector.load %arg10[%c0_7, %c0_8] : memref<256x32xbf16, #tpu.memory_space<vmem>>, vector<256x4xbf16>
    %c0_9 = arith.constant 0 : index
    %c0_10 = arith.constant 0 : index
    %14 = vector.load %arg11[%c0_9, %c0_10] : memref<32x256xbf16, #tpu.memory_space<vmem>>, vector<4x256xbf16>
    %cst_11 = arith.constant dense<0.000000e+00> : vector<256x256xf32>
    %15 = tpu.matmul %13, %12, %cst_11 {dimension_numbers = #tpu.dot_dimension_numbers<[1], [0], [0], [1], [0, 0, 1, 1], [], []>} : vector<256x4xbf16>, vector<4x256xbf16>, vector<256x256xf32> -> vector<256x256xf32>
    %cst_12 = arith.constant dense<0xFF800000> : vector<256xf32>
    %16 = vector.multi_reduction <maximumf>, %15, %cst_12 [0] : vector<256x256xf32> to vector<256xf32>
    %17 = vector.shape_cast %16 : vector<256xf32> to vector<1x256xf32>
    %18 = vector.broadcast %17 : vector<1x256xf32> to vector<256x256xf32>
    %19 = arith.subf %15, %18 : vector<256x256xf32>
    %20 = math.exp %19 : vector<256x256xf32>
    %cst_13 = arith.constant dense<0.000000e+00> : vector<256xf32>
    %21 = vector.multi_reduction <add>, %20, %cst_13 [0] : vector<256x256xf32> to vector<256xf32>
    %22 = vector.shape_cast %21 : vector<256xf32> to vector<1x256xf32>
    %23 = tpu.reciprocal %22 {approx = true} : vector<1x256xf32> -> vector<1x256xf32>
    %24 = vector.broadcast %23 : vector<1x256xf32> to vector<256x256xf32>
    %25 = arith.mulf %20, %24 : vector<256x256xf32>
    %26 = arith.truncf %25 : vector<256x256xf32> to vector<256x256xbf16>
    %cst_14 = arith.constant dense<0.000000e+00> : vector<4x256xf32>
    %27 = tpu.matmul %14, %26, %cst_14 {dimension_numbers = #tpu.dot_dimension_numbers<[1], [0], [0], [1], [0, 0, 1, 1], [], []>} : vector<4x256xbf16>, vector<256x256xbf16>, vector<4x256xf32> -> vector<4x256xf32>
    %c0_15 = arith.constant 0 : index
    %c0_16 = arith.constant 0 : index
    %28 = vector.load %arg12[%c0_15, %c0_16] : memref<32x256xf32, #tpu.memory_space<vmem>>, vector<4x256xf32>
    tpu.vector_store %arg12[%c0_15, %c0_16], %27 {strides = array<i32>} : memref<32x256xf32, #tpu.memory_space<vmem>>, vector<4x256xf32>,
    %29 = vector.extract_strided_slice %11 {offsets = [4, 0], sizes = [4, 256], strides = [1, 1]} : vector<32x256xbf16> to vector<4x256xbf16>
    %c0_17 = arith.constant 0 : index
    %c4 = arith.constant 4 : index
    %30 = vector.load %arg10[%c0_17, %c4] : memref<256x32xbf16, #tpu.memory_space<vmem>>, vector<256x4xbf16>
    %c4_18 = arith.constant 4 : index
    %c0_19 = arith.constant 0 : index
    %31 = vector.load %arg11[%c4_18, %c0_19] : memref<32x256xbf16, #tpu.memory_space<vmem>>, vector<4x256xbf16>
    %cst_20 = arith.constant dense<0.000000e+00> : vector<256x256xf32>
    %32 = tpu.matmul %30, %29, %cst_20 {dimension_numbers = #tpu.dot_dimension_numbers<[1], [0], [0], [1], [0, 0, 1, 1], [], []>} : vector<256x4xbf16>, vector<4x256xbf16>, vector<256x256xf32> -> vector<256x256xf32>
    %cst_21 = arith.constant dense<0xFF800000> : vector<256xf32>
    %33 = vector.multi_reduction <maximumf>, %32, %cst_21 [0] : vector<256x256xf32> to vector<256xf32>
    %34 = vector.shape_cast %33 : vector<256xf32> to vector<1x256xf32>
    %35 = vector.broadcast %34 : vector<1x256xf32> to vector<256x256xf32>
    %36 = arith.subf %32, %35 : vector<256x256xf32>
    %37 = math.exp %36 : vector<256x256xf32>
    %cst_22 = arith.constant dense<0.000000e+00> : vector<256xf32>
    %38 = vector.multi_reduction <add>, %37, %cst_22 [0] : vector<256x256xf32> to vector<256xf32>
    %39 = vector.shape_cast %38 : vector<256xf32> to vector<1x256xf32>
    %40 = tpu.reciprocal %39 {approx = true} : vector<1x256xf32> -> vector<1x256xf32>
    %41 = vector.broadcast %40 : vector<1x256xf32> to vector<256x256xf32>
    %42 = arith.mulf %37, %41 : vector<256x256xf32>
    %43 = arith.truncf %42 : vector<256x256xf32> to vector<256x256xbf16>
    %cst_23 = arith.constant dense<0.000000e+00> : vector<4x256xf32>
    %44 = tpu.matmul %31, %43, %cst_23 {dimension_numbers = #tpu.dot_dimension_numbers<[1], [0], [0], [1], [0, 0, 1, 1], [], []>} : vector<4x256xbf16>, vector<256x256xbf16>, vector<4x256xf32> -> vector<4x256xf32>
    %c4_24 = arith.constant 4 : index
    %c0_25 = arith.constant 0 : index
    %45 = vector.load %arg12[%c4_24, %c0_25] : memref<32x256xf32, #tpu.memory_space<vmem>>, vector<4x256xf32>
    tpu.vector_store %arg12[%c4_24, %c0_25], %44 {strides = array<i32>} : memref<32x256xf32, #tpu.memory_space<vmem>>, vector<4x256xf32>,
    %46 = vector.extract_strided_slice %11 {offsets = [8, 0], sizes = [4, 256], strides = [1, 1]} : vector<32x256xbf16> to vector<4x256xbf16>
    %c0_26 = arith.constant 0 : index
    %c8 = arith.constant 8 : index
    %47 = vector.load %arg10[%c0_26, %c8] : memref<256x32xbf16, #tpu.memory_space<vmem>>, vector<256x4xbf16>
    %c8_27 = arith.constant 8 : index
    %c0_28 = arith.constant 0 : index
    %48 = vector.load %arg11[%c8_27, %c0_28] : memref<32x256xbf16, #tpu.memory_space<vmem>>, vector<4x256xbf16>
    %cst_29 = arith.constant dense<0.000000e+00> : vector<256x256xf32>
    %49 = tpu.matmul %47, %46, %cst_29 {dimension_numbers = #tpu.dot_dimension_numbers<[1], [0], [0], [1], [0, 0, 1, 1], [], []>} : vector<256x4xbf16>, vector<4x256xbf16>, vector<256x256xf32> -> vector<256x256xf32>
    %cst_30 = arith.constant dense<0xFF800000> : vector<256xf32>
    %50 = vector.multi_reduction <maximumf>, %49, %cst_30 [0] : vector<256x256xf32> to vector<256xf32>
    %51 = vector.shape_cast %50 : vector<256xf32> to vector<1x256xf32>
    %52 = vector.broadcast %51 : vector<1x256xf32> to vector<256x256xf32>
    %53 = arith.subf %49, %52 : vector<256x256xf32>
    %54 = math.exp %53 : vector<256x256xf32>
    %cst_31 = arith.constant dense<0.000000e+00> : vector<256xf32>
    %55 = vector.multi_reduction <add>, %54, %cst_31 [0] : vector<256x256xf32> to vector<256xf32>
    %56 = vector.shape_cast %55 : vector<256xf32> to vector<1x256xf32>
    %57 = tpu.reciprocal %56 {approx = true} : vector<1x256xf32> -> vector<1x256xf32>
    %58 = vector.broadcast %57 : vector<1x256xf32> to vector<256x256xf32>
    %59 = arith.mulf %54, %58 : vector<256x256xf32>
    %60 = arith.truncf %59 : vector<256x256xf32> to vector<256x256xbf16>
    %cst_32 = arith.constant dense<0.000000e+00> : vector<4x256xf32>
    %61 = tpu.matmul %48, %60, %cst_32 {dimension_numbers = #tpu.dot_dimension_numbers<[1], [0], [0], [1], [0, 0, 1, 1], [], []>} : vector<4x256xbf16>, vector<256x256xbf16>, vector<4x256xf32> -> vector<4x256xf32>
    %c8_33 = arith.constant 8 : index
    %c0_34 = arith.constant 0 : index
    %62 = vector.load %arg12[%c8_33, %c0_34] : memref<32x256xf32, #tpu.memory_space<vmem>>, vector<4x256xf32>
    tpu.vector_store %arg12[%c8_33, %c0_34], %61 {strides = array<i32>} : memref<32x256xf32, #tpu.memory_space<vmem>>, vector<4x256xf32>,
    %63 = vector.extract_strided_slice %11 {offsets = [12, 0], sizes = [4, 256], strides = [1, 1]} : vector<32x256xbf16> to vector<4x256xbf16>
    %c0_35 = arith.constant 0 : index
    %c12 = arith.constant 12 : index
    %64 = vector.load %arg10[%c0_35, %c12] : memref<256x32xbf16, #tpu.memory_space<vmem>>, vector<256x4xbf16>
    %c12_36 = arith.constant 12 : index
    %c0_37 = arith.constant 0 : index
    %65 = vector.load %arg11[%c12_36, %c0_37] : memref<32x256xbf16, #tpu.memory_space<vmem>>, vector<4x256xbf16>
    %cst_38 = arith.constant dense<0.000000e+00> : vector<256x256xf32>
    %66 = tpu.matmul %64, %63, %cst_38 {dimension_numbers = #tpu.dot_dimension_numbers<[1], [0], [0], [1], [0, 0, 1, 1], [], []>} : vector<256x4xbf16>, vector<4x256xbf16>, vector<256x256xf32> -> vector<256x256xf32>
    %cst_39 = arith.constant dense<0xFF800000> : vector<256xf32>
    %67 = vector.multi_reduction <maximumf>, %66, %cst_39 [0] : vector<256x256xf32> to vector<256xf32>
    %68 = vector.shape_cast %67 : vector<256xf32> to vector<1x256xf32>
    %69 = vector.broadcast %68 : vector<1x256xf32> to vector<256x256xf32>
    %70 = arith.subf %66, %69 : vector<256x256xf32>
    %71 = math.exp %70 : vector<256x256xf32>
    %cst_40 = arith.constant dense<0.000000e+00> : vector<256xf32>
    %72 = vector.multi_reduction <add>, %71, %cst_40 [0] : vector<256x256xf32> to vector<256xf32>
    %73 = vector.shape_cast %72 : vector<256xf32> to vector<1x256xf32>
    %74 = tpu.reciprocal %73 {approx = true} : vector<1x256xf32> -> vector<1x256xf32>
    %75 = vector.broadcast %74 : vector<1x256xf32> to vector<256x256xf32>
    %76 = arith.mulf %71, %75 : vector<256x256xf32>
    %77 = arith.truncf %76 : vector<256x256xf32> to vector<256x256xbf16>
    %cst_41 = arith.constant dense<0.000000e+00> : vector<4x256xf32>
    %78 = tpu.matmul %65, %77, %cst_41 {dimension_numbers = #tpu.dot_dimension_numbers<[1], [0], [0], [1], [0, 0, 1, 1], [], []>} : vector<4x256xbf16>, vector<256x256xbf16>, vector<4x256xf32> -> vector<4x256xf32>
    %c12_42 = arith.constant 12 : index
    %c0_43 = arith.constant 0 : index
    %79 = vector.load %arg12[%c12_42, %c0_43] : memref<32x256xf32, #tpu.memory_space<vmem>>, vector<4x256xf32>
    tpu.vector_store %arg12[%c12_42, %c0_43], %78 {strides = array<i32>} : memref<32x256xf32, #tpu.memory_space<vmem>>, vector<4x256xf32>,
    %80 = vector.extract_strided_slice %11 {offsets = [16, 0], sizes = [4, 256], strides = [1, 1]} : vector<32x256xbf16> to vector<4x256xbf16>
    %c0_44 = arith.constant 0 : index
    %c16 = arith.constant 16 : index
    %81 = vector.load %arg10[%c0_44, %c16] : memref<256x32xbf16, #tpu.memory_space<vmem>>, vector<256x4xbf16>
    %c16_45 = arith.constant 16 : index
    %c0_46 = arith.constant 0 : index
    %82 = vector.load %arg11[%c16_45, %c0_46] : memref<32x256xbf16, #tpu.memory_space<vmem>>, vector<4x256xbf16>
    %cst_47 = arith.constant dense<0.000000e+00> : vector<256x256xf32>
    %83 = tpu.matmul %81, %80, %cst_47 {dimension_numbers = #tpu.dot_dimension_numbers<[1], [0], [0], [1], [0, 0, 1, 1], [], []>} : vector<256x4xbf16>, vector<4x256xbf16>, vector<256x256xf32> -> vector<256x256xf32>
    %cst_48 = arith.constant dense<0xFF800000> : vector<256xf32>
    %84 = vector.multi_reduction <maximumf>, %83, %cst_48 [0] : vector<256x256xf32> to vector<256xf32>
    %85 = vector.shape_cast %84 : vector<256xf32> to vector<1x256xf32>
    %86 = vector.broadcast %85 : vector<1x256xf32> to vector<256x256xf32>
    %87 = arith.subf %83, %86 : vector<256x256xf32>
    %88 = math.exp %87 : vector<256x256xf32>
    %cst_49 = arith.constant dense<0.000000e+00> : vector<256xf32>
    %89 = vector.multi_reduction <add>, %88, %cst_49 [0] : vector<256x256xf32> to vector<256xf32>
    %90 = vector.shape_cast %89 : vector<256xf32> to vector<1x256xf32>
    %91 = tpu.reciprocal %90 {approx = true} : vector<1x256xf32> -> vector<1x256xf32>
    %92 = vector.broadcast %91 : vector<1x256xf32> to vector<256x256xf32>
    %93 = arith.mulf %88, %92 : vector<256x256xf32>
    %94 = arith.truncf %93 : vector<256x256xf32> to vector<256x256xbf16>
    %cst_50 = arith.constant dense<0.000000e+00> : vector<4x256xf32>
    %95 = tpu.matmul %82, %94, %cst_50 {dimension_numbers = #tpu.dot_dimension_numbers<[1], [0], [0], [1], [0, 0, 1, 1], [], []>} : vector<4x256xbf16>, vector<256x256xbf16>, vector<4x256xf32> -> vector<4x256xf32>
    %c16_51 = arith.constant 16 : index
    %c0_52 = arith.constant 0 : index
    %96 = vector.load %arg12[%c16_51, %c0_52] : memref<32x256xf32, #tpu.memory_space<vmem>>, vector<4x256xf32>
    tpu.vector_store %arg12[%c16_51, %c0_52], %95 {strides = array<i32>} : memref<32x256xf32, #tpu.memory_space<vmem>>, vector<4x256xf32>,
    %97 = vector.extract_strided_slice %11 {offsets = [20, 0], sizes = [4, 256], strides = [1, 1]} : vector<32x256xbf16> to vector<4x256xbf16>
    %c0_53 = arith.constant 0 : index
    %c20 = arith.constant 20 : index
    %98 = vector.load %arg10[%c0_53, %c20] : memref<256x32xbf16, #tpu.memory_space<vmem>>, vector<256x4xbf16>
    %c20_54 = arith.constant 20 : index
    %c0_55 = arith.constant 0 : index
    %99 = vector.load %arg11[%c20_54, %c0_55] : memref<32x256xbf16, #tpu.memory_space<vmem>>, vector<4x256xbf16>
    %cst_56 = arith.constant dense<0.000000e+00> : vector<256x256xf32>
    %100 = tpu.matmul %98, %97, %cst_56 {dimension_numbers = #tpu.dot_dimension_numbers<[1], [0], [0], [1], [0, 0, 1, 1], [], []>} : vector<256x4xbf16>, vector<4x256xbf16>, vector<256x256xf32> -> vector<256x256xf32>
    %cst_57 = arith.constant dense<0xFF800000> : vector<256xf32>
    %101 = vector.multi_reduction <maximumf>, %100, %cst_57 [0] : vector<256x256xf32> to vector<256xf32>
    %102 = vector.shape_cast %101 : vector<256xf32> to vector<1x256xf32>
    %103 = vector.broadcast %102 : vector<1x256xf32> to vector<256x256xf32>
    %104 = arith.subf %100, %103 : vector<256x256xf32>
    %105 = math.exp %104 : vector<256x256xf32>
    %cst_58 = arith.constant dense<0.000000e+00> : vector<256xf32>
    %106 = vector.multi_reduction <add>, %105, %cst_58 [0] : vector<256x256xf32> to vector<256xf32>
    %107 = vector.shape_cast %106 : vector<256xf32> to vector<1x256xf32>
    %108 = tpu.reciprocal %107 {approx = true} : vector<1x256xf32> -> vector<1x256xf32>
    %109 = vector.broadcast %108 : vector<1x256xf32> to vector<256x256xf32>
    %110 = arith.mulf %105, %109 : vector<256x256xf32>
    %111 = arith.truncf %110 : vector<256x256xf32> to vector<256x256xbf16>
    %cst_59 = arith.constant dense<0.000000e+00> : vector<4x256xf32>
    %112 = tpu.matmul %99, %111, %cst_59 {dimension_numbers = #tpu.dot_dimension_numbers<[1], [0], [0], [1], [0, 0, 1, 1], [], []>} : vector<4x256xbf16>, vector<256x256xbf16>, vector<4x256xf32> -> vector<4x256xf32>
    %c20_60 = arith.constant 20 : index
    %c0_61 = arith.constant 0 : index
    %113 = vector.load %arg12[%c20_60, %c0_61] : memref<32x256xf32, #tpu.memory_space<vmem>>, vector<4x256xf32>
    tpu.vector_store %arg12[%c20_60, %c0_61], %112 {strides = array<i32>} : memref<32x256xf32, #tpu.memory_space<vmem>>, vector<4x256xf32>,
    %114 = vector.extract_strided_slice %11 {offsets = [24, 0], sizes = [4, 256], strides = [1, 1]} : vector<32x256xbf16> to vector<4x256xbf16>
    %c0_62 = arith.constant 0 : index
    %c24 = arith.constant 24 : index
    %115 = vector.load %arg10[%c0_62, %c24] : memref<256x32xbf16, #tpu.memory_space<vmem>>, vector<256x4xbf16>
    %c24_63 = arith.constant 24 : index
    %c0_64 = arith.constant 0 : index
    %116 = vector.load %arg11[%c24_63, %c0_64] : memref<32x256xbf16, #tpu.memory_space<vmem>>, vector<4x256xbf16>
    %cst_65 = arith.constant dense<0.000000e+00> : vector<256x256xf32>
    %117 = tpu.matmul %115, %114, %cst_65 {dimension_numbers = #tpu.dot_dimension_numbers<[1], [0], [0], [1], [0, 0, 1, 1], [], []>} : vector<256x4xbf16>, vector<4x256xbf16>, vector<256x256xf32> -> vector<256x256xf32>
    %cst_66 = arith.constant dense<0xFF800000> : vector<256xf32>
    %118 = vector.multi_reduction <maximumf>, %117, %cst_66 [0] : vector<256x256xf32> to vector<256xf32>
    %119 = vector.shape_cast %118 : vector<256xf32> to vector<1x256xf32>
    %120 = vector.broadcast %119 : vector<1x256xf32> to vector<256x256xf32>
    %121 = arith.subf %117, %120 : vector<256x256xf32>
    %122 = math.exp %121 : vector<256x256xf32>
    %cst_67 = arith.constant dense<0.000000e+00> : vector<256xf32>
    %123 = vector.multi_reduction <add>, %122, %cst_67 [0] : vector<256x256xf32> to vector<256xf32>
    %124 = vector.shape_cast %123 : vector<256xf32> to vector<1x256xf32>
    %125 = tpu.reciprocal %124 {approx = true} : vector<1x256xf32> -> vector<1x256xf32>
    %126 = vector.broadcast %125 : vector<1x256xf32> to vector<256x256xf32>
    %127 = arith.mulf %122, %126 : vector<256x256xf32>
    %128 = arith.truncf %127 : vector<256x256xf32> to vector<256x256xbf16>
    %cst_68 = arith.constant dense<0.000000e+00> : vector<4x256xf32>
    %129 = tpu.matmul %116, %128, %cst_68 {dimension_numbers = #tpu.dot_dimension_numbers<[1], [0], [0], [1], [0, 0, 1, 1], [], []>} : vector<4x256xbf16>, vector<256x256xbf16>, vector<4x256xf32> -> vector<4x256xf32>
    %c24_69 = arith.constant 24 : index
    %c0_70 = arith.constant 0 : index
    %130 = vector.load %arg12[%c24_69, %c0_70] : memref<32x256xf32, #tpu.memory_space<vmem>>, vector<4x256xf32>
    tpu.vector_store %arg12[%c24_69, %c0_70], %129 {strides = array<i32>} : memref<32x256xf32, #tpu.memory_space<vmem>>, vector<4x256xf32>,
    %131 = vector.extract_strided_slice %11 {offsets = [28, 0], sizes = [4, 256], strides = [1, 1]} : vector<32x256xbf16> to vector<4x256xbf16>
    %c0_71 = arith.constant 0 : index
    %c28 = arith.constant 28 : index
    %132 = vector.load %arg10[%c0_71, %c28] : memref<256x32xbf16, #tpu.memory_space<vmem>>, vector<256x4xbf16>
    %c28_72 = arith.constant 28 : index
    %c0_73 = arith.constant 0 : index
    %133 = vector.load %arg11[%c28_72, %c0_73] : memref<32x256xbf16, #tpu.memory_space<vmem>>, vector<4x256xbf16>
    %cst_74 = arith.constant dense<0.000000e+00> : vector<256x256xf32>
    %134 = tpu.matmul %132, %131, %cst_74 {dimension_numbers = #tpu.dot_dimension_numbers<[1], [0], [0], [1], [0, 0, 1, 1], [], []>} : vector<256x4xbf16>, vector<4x256xbf16>, vector<256x256xf32> -> vector<256x256xf32>
    %cst_75 = arith.constant dense<0xFF800000> : vector<256xf32>
    %135 = vector.multi_reduction <maximumf>, %134, %cst_75 [0] : vector<256x256xf32> to vector<256xf32>
    %136 = vector.shape_cast %135 : vector<256xf32> to vector<1x256xf32>
    %137 = vector.broadcast %136 : vector<1x256xf32> to vector<256x256xf32>
    %138 = arith.subf %134, %137 : vector<256x256xf32>
    %139 = math.exp %138 : vector<256x256xf32>
    %cst_76 = arith.constant dense<0.000000e+00> : vector<256xf32>
    %140 = vector.multi_reduction <add>, %139, %cst_76 [0] : vector<256x256xf32> to vector<256xf32>
    %141 = vector.shape_cast %140 : vector<256xf32> to vector<1x256xf32>
    %142 = tpu.reciprocal %141 {approx = true} : vector<1x256xf32> -> vector<1x256xf32>
    %143 = vector.broadcast %142 : vector<1x256xf32> to vector<256x256xf32>
    %144 = arith.mulf %139, %143 : vector<256x256xf32>
    %145 = arith.truncf %144 : vector<256x256xf32> to vector<256x256xbf16>
    %cst_77 = arith.constant dense<0.000000e+00> : vector<4x256xf32>
    %146 = tpu.matmul %133, %145, %cst_77 {dimension_numbers = #tpu.dot_dimension_numbers<[1], [0], [0], [1], [0, 0, 1, 1], [], []>} : vector<4x256xbf16>, vector<256x256xbf16>, vector<4x256xf32> -> vector<4x256xf32>
    %c28_78 = arith.constant 28 : index
    %c0_79 = arith.constant 0 : index
    %147 = vector.load %arg12[%c28_78, %c0_79] : memref<32x256xf32, #tpu.memory_space<vmem>>, vector<4x256xf32>
    tpu.vector_store %arg12[%c28_78, %c0_79], %146 {strides = array<i32>} : memref<32x256xf32, #tpu.memory_space<vmem>>, vector<4x256xf32>,
    %c0_80 = arith.constant 0 : index
    %c0_81 = arith.constant 0 : index
    %148 = vector.load %arg7[%c0_80, %c0_81] : memref<32x32xbf16, #tpu.memory_space<vmem>>, vector<32x32xbf16>
    %c0_82 = arith.constant 0 : index
    %c0_83 = arith.constant 0 : index
    %149 = vector.load %arg12[%c0_82, %c0_83] : memref<32x256xf32, #tpu.memory_space<vmem>>, vector<32x256xf32>
    %150 = arith.truncf %149 : vector<32x256xf32> to vector<32x256xbf16>
    %cst_84 = arith.constant dense<0.000000e+00> : vector<32x256xf32>
    %151 = tpu.matmul %148, %150, %cst_84 {dimension_numbers = #tpu.dot_dimension_numbers<[1], [0], [0], [1], [0, 0, 1, 1], [], []>} : vector<32x32xbf16>, vector<32x256xbf16>, vector<32x256xf32> -> vector<32x256xf32>
    %c0_85 = arith.constant 0 : index
    %c0_86 = arith.constant 0 : index
    %152 = vector.load %arg8[%c0_85, %c0_86] : memref<32x1xf32, #tpu.memory_space<vmem>>, vector<32x1xf32>
    %153 = vector.broadcast %152 : vector<32x1xf32> to vector<32x256xf32>
    %154 = arith.addf %151, %153 : vector<32x256xf32>
    %c0_87 = arith.constant 0 : index
    %c0_88 = arith.constant 0 : index
    %c0_89 = arith.constant 0 : index
    %155 = vector.load %arg9[%c0_87, %c0_88, %c0_89] : memref<1x32x256xf32, #tpu.memory_space<vmem>>, vector<1x32x256xf32>
    %156 = vector.shape_cast %155 : vector<1x32x256xf32> to vector<32x256xf32>
    %157 = vector.shape_cast %154 : vector<32x256xf32> to vector<1x32x256xf32>
    tpu.vector_store %arg9[%c0_87, %c0_88, %c0_89], %157 {strides = array<i32>} : memref<1x32x256xf32, #tpu.memory_space<vmem>>, vector<1x32x256xf32>,
    return
  }
  func.func @transform_0(%arg0: i32, %arg1: i32) -> (i32, i32, i32) {
    %c0_i32 = arith.constant 0 : i32
    %c0_i32_0 = arith.constant 0 : i32
    %c0_i32_1 = arith.constant 0 : i32
    return %arg0, %c0_i32, %c0_i32_0 : i32, i32, i32
  }
  func.func @transform_1(%arg0: i32, %arg1: i32) -> (i32, i32) {
    %c0_i32 = arith.constant 0 : i32
    %c0_i32_0 = arith.constant 0 : i32
    %c0_i32_1 = arith.constant 0 : i32
    return %c0_i32, %c0_i32_0 : i32, i32
  }
  func.func @transform_2(%arg0: i32, %arg1: i32) -> (i32, i32) {
    %c0_i32 = arith.constant 0 : i32
    %c0_i32_0 = arith.constant 0 : i32
    %c0_i32_1 = arith.constant 0 : i32
    return %c0_i32, %c0_i32_0 : i32, i32
  }
  func.func @transform_3(%arg0: i32, %arg1: i32) -> (i32, i32) {
    %c0_i32 = arith.constant 0 : i32
    %c0_i32_0 = arith.constant 0 : i32
    %c0_i32_1 = arith.constant 0 : i32
    return %c0_i32, %c0_i32_0 : i32, i32
  }
  func.func @transform_4(%arg0: i32, %arg1: i32) -> (i32, i32) {
    %c0_i32 = arith.constant 0 : i32
    %c0_i32_0 = arith.constant 0 : i32
    %c0_i32_1 = arith.constant 0 : i32
    return %c0_i32, %c0_i32_0 : i32, i32
  }
  func.func @transform_5(%arg0: i32, %arg1: i32) -> (i32, i32) {
    %c0_i32 = arith.constant 0 : i32
    %c0_i32_0 = arith.constant 0 : i32
    %c0_i32_1 = arith.constant 0 : i32
    return %c0_i32, %c0_i32_0 : i32, i32
  }
  func.func @transform_6(%arg0: i32, %arg1: i32) -> (i32, i32) {
    %c0_i32 = arith.constant 0 : i32
    %c0_i32_0 = arith.constant 0 : i32
    %c0_i32_1 = arith.constant 0 : i32
    return %c0_i32, %c0_i32_0 : i32, i32
  }
  func.func @transform_7(%arg0: i32, %arg1: i32) -> (i32, i32, i32) {
    %c0_i32 = arith.constant 0 : i32
    %c0_i32_0 = arith.constant 0 : i32
    return %arg0, %c0_i32, %arg1 : i32, i32, i32
  }
}

</mosaic_0001>

<llo_original>
// kernel: tpu_custom_call.1
$region0: #{tpu_custom_call.1}
  #allocation0 [shape = 'u32[]', space=smem, size = 0x4, offset = 0x4, fixed_abs, tag = 'smem constant byte address 0x4 - core index']
  #allocation1 [shape = 'u32[144,128]{1,0:T(1,128)}', space=vmem, size = 0x12000, scoped, tag = 'internal scratch']
  #allocation2 [shape = 'bf16[256,32]{1,0:T(16,128)(2,1)}', space=vmem, size = 0x10000, scoped, tag = 'scratch operand']
  #allocation3 [shape = 'bf16[32,256]{1,0:T(16,128)(2,1)}', space=vmem, size = 0x4000, scoped, tag = 'scratch operand']
  #allocation4 [shape = 'f32[32,256]{1,0:T(8,128)}', space=vmem, size = 0x8000, scoped, tag = 'scratch operand']
  %s0 = inlined_call_operand.vmem [shape: f32[2,4,256], index: 0, kind: input, shape index: {}]
  %s1 = inlined_call_operand.vmem [shape: bf16[32,4], index: 1, kind: input, shape index: {}]
  %s2 = inlined_call_operand.vmem [shape: f32[32,1], index: 2, kind: input, shape index: {}]
  %s3 = inlined_call_operand.vmem [shape: bf16[64,4], index: 3, kind: input, shape index: {}]
  %s4 = inlined_call_operand.vmem [shape: f32[64,1], index: 4, kind: input, shape index: {}]
  %s5 = inlined_call_operand.vmem [shape: bf16[32,32], index: 5, kind: input, shape index: {}]
  %s6 = inlined_call_operand.vmem [shape: f32[32,1], index: 6, kind: input, shape index: {}]
  %s7 = inlined_call_operand.hbm [shape: f32[2,32,256], index: 7, kind: output, shape index: {}]
  %s8 = sld [smem:[#allocation0]]
  $region65: #{tpu_custom_call.1} parent=0
    _
  %s10 = ssub.s32 1, %s8
  %s11 = scalar_select 0, %s10, %s8
  $region1: #{tpu_custom_call.1} parent=0
    #allocation5 [shape = 'u8[65536]{0}', space=vmem, size = 0x10000, scoped, tag = 'output window, operand 0']
    #allocation6 [shape = 's32[2]{0}', space=sflag, size = 0x8, scoped, tag = 'scoped memory for tpu_custom_call.1']
    %12 = vsyncpa [#allocation6], 0
    %s13 = scalar_lea.sflag [#allocation6], 1
    %14 = vsyncpa %s13, 0
    loop: start=0, step=1, limit=4
    $region2: #{tpu_custom_call.1} parent=1 // loop_pre_header
      _
    $region3: #{tpu_custom_call.1} parent=1 // loop_header
      %s16 = sphi 0, %s20
      %p17 = scmp.ge.s32.totalorder %s16, 4
      %s23 = sphi 0, %s35
      %s24 = sphi 0, %s31
      %s25 = sphi 0, %s23
      %s26 = sphi 0, %s24
      %s27 = sphi 0, %s25
      %s28 = sphi 0, %s26
      %s38 = sphi 0, %s40
      %s41 = sphi 0, %s38
      %s42 = sphi 0, %s41
      %s58 = sphi 0, %s42
      %s62 = sphi 0, %s62
      %s64 = sphi 0, %s62
      %s65 = sphi 0, %s64
      %s79 = sphi 0, %s65
      %s83 = sphi 0, %s83
      %s85 = sphi 0, %s83
      %s86 = sphi 0, %s85
      %s100 = sphi 0, %s86
      %s104 = sphi 0, %s104
      %s106 = sphi 0, %s104
      %s107 = sphi 0, %s106
      %s121 = sphi 0, %s107
      %s125 = sphi 0, %s125
      %s127 = sphi 0, %s125
      %s128 = sphi 0, %s127
      %s142 = sphi 0, %s128
      %s146 = sphi 0, %s146
      %s148 = sphi 0, %s146
      %s149 = sphi 0, %s148
      %s163 = sphi 0, %s149
      %s167 = sphi 0, %s167
      %s169 = sphi 0, %s167
      %s170 = sphi 0, %s169
      %s184 = sphi 0, %s170
      %s192 = sphi 0, %s194
      %s195 = sphi 0, %s192
      %s196 = sphi 0, %s195
      %s212 = sphi 0, %s196
    $region4: #{tpu_custom_call.1} parent=1 // loop_header_branch
      %19 = sbr.rel (%p17) target = $region8
    $region5: #{tpu_custom_call.1} parent=1 // loop_body
      %s21 = ssub.s32 %s16, 1
      %s22 = ssub.s32 %s16, 2
      %s29 = sadd.s32 1, %s24
      %p30 = scmp.ge.s32.totalorder %s29, 1
      %s31 = scalar_select %p30, 0, %s29
      %s32 = sadd.s32 1, %s23
      %s33 = scalar_select %p30, %s32, %s23
      %p34 = scmp.ge.s32.totalorder %s33, 2
      %s35 = scalar_select %p34, 0, %s33
      %s36 = ssub.s32 %s23, %s35
      %p37 = scmp.eq.s32.totalorder %s36, 0
      %s39 = sadd.s32 %s38, 1
      %s40 = scalar_select %p37, %s38, %s39
      %p43 = pneg %p37
      %p44 = scmp.eq.s32.totalorder %s16, 1
      %p45 = por %p43, %p44
      %p46 = scmp.ne.s32.totalorder %s38, %s41
      %p47 = scmp.eq.s32.totalorder %s16, 0
      %p48 = por %p46, %p47
      %p49 = scmp.ne.s32.totalorder %s38, %s41
      %p50 = scmp.eq.s32.totalorder %s21, 1
      %p51 = por %p49, %p50
      %p52 = scmp.ne.s32.totalorder %s41, %s42
      %p53 = scmp.eq.s32.totalorder %s21, 0
      %p54 = por %p52, %p53
      %p55 = scmp.ne.s32.totalorder %s41, %s42
      %p56 = scmp.eq.s32.totalorder %s22, 1
      %p57 = por %p55, %p56
      %p59 = scmp.ne.s32.totalorder %s42, %s58
      %p60 = scmp.eq.s32.totalorder %s22, 0
      %p61 = por %p59, %p60
      %s63 = sadd.s32 %s62, 1
      %p66 = scmp.eq.s32.totalorder %s16, 1
      %p67 = scmp.ne.s32.totalorder %s62, %s64
      %p68 = scmp.eq.s32.totalorder %s16, 0
      %p69 = por %p67, %p68
      %p70 = scmp.ne.s32.totalorder %s62, %s64
      %p71 = scmp.eq.s32.totalorder %s21, 1
      %p72 = por %p70, %p71
      %p73 = scmp.ne.s32.totalorder %s64, %s65
      %p74 = scmp.eq.s32.totalorder %s21, 0
      %p75 = por %p73, %p74
      %p76 = scmp.ne.s32.totalorder %s64, %s65
      %p77 = scmp.eq.s32.totalorder %s22, 1
      %p78 = por %p76, %p77
      %p80 = scmp.ne.s32.totalorder %s65, %s79
      %p81 = scmp.eq.s32.totalorder %s22, 0
      %p82 = por %p80, %p81
      %s84 = sadd.s32 %s83, 1
      %p87 = scmp.eq.s32.totalorder %s16, 1
      %p88 = scmp.ne.s32.totalorder %s83, %s85
      %p89 = scmp.eq.s32.totalorder %s16, 0
      %p90 = por %p88, %p89
      %p91 = scmp.ne.s32.totalorder %s83, %s85
      %p92 = scmp.eq.s32.totalorder %s21, 1
      %p93 = por %p91, %p92
      %p94 = scmp.ne.s32.totalorder %s85, %s86
      %p95 = scmp.eq.s32.totalorder %s21, 0
      %p96 = por %p94, %p95
      %p97 = scmp.ne.s32.totalorder %s85, %s86
      %p98 = scmp.eq.s32.totalorder %s22, 1
      %p99 = por %p97, %p98
      %p101 = scmp.ne.s32.totalorder %s86, %s100
      %p102 = scmp.eq.s32.totalorder %s22, 0
      %p103 = por %p101, %p102
      %s105 = sadd.s32 %s104, 1
      %p108 = scmp.eq.s32.totalorder %s16, 1
      %p109 = scmp.ne.s32.totalorder %s104, %s106
      %p110 = scmp.eq.s32.totalorder %s16, 0
      %p111 = por %p109, %p110
      %p112 = scmp.ne.s32.totalorder %s104, %s106
      %p113 = scmp.eq.s32.totalorder %s21, 1
      %p114 = por %p112, %p113
      %p115 = scmp.ne.s32.totalorder %s106, %s107
      %p116 = scmp.eq.s32.totalorder %s21, 0
      %p117 = por %p115, %p116
      %p118 = scmp.ne.s32.totalorder %s106, %s107
      %p119 = scmp.eq.s32.totalorder %s22, 1
      %p120 = por %p118, %p119
      %p122 = scmp.ne.s32.totalorder %s107, %s121
      %p123 = scmp.eq.s32.totalorder %s22, 0
      %p124 = por %p122, %p123
      %s126 = sadd.s32 %s125, 1
      %p129 = scmp.eq.s32.totalorder %s16, 1
      %p130 = scmp.ne.s32.totalorder %s125, %s127
      %p131 = scmp.eq.s32.totalorder %s16, 0
      %p132 = por %p130, %p131
      %p133 = scmp.ne.s32.totalorder %s125, %s127
      %p134 = scmp.eq.s32.totalorder %s21, 1
      %p135 = por %p133, %p134
      %p136 = scmp.ne.s32.totalorder %s127, %s128
      %p137 = scmp.eq.s32.totalorder %s21, 0
      %p138 = por %p136, %p137
      %p139 = scmp.ne.s32.totalorder %s127, %s128
      %p140 = scmp.eq.s32.totalorder %s22, 1
      %p141 = por %p139, %p140
      %p143 = scmp.ne.s32.totalorder %s128, %s142
      %p144 = scmp.eq.s32.totalorder %s22, 0
      %p145 = por %p143, %p144
      %s147 = sadd.s32 %s146, 1
      %p150 = scmp.eq.s32.totalorder %s16, 1
      %p151 = scmp.ne.s32.totalorder %s146, %s148
      %p152 = scmp.eq.s32.totalorder %s16, 0
      %p153 = por %p151, %p152
      %p154 = scmp.ne.s32.totalorder %s146, %s148
      %p155 = scmp.eq.s32.totalorder %s21, 1
      %p156 = por %p154, %p155
      %p157 = scmp.ne.s32.totalorder %s148, %s149
      %p158 = scmp.eq.s32.totalorder %s21, 0
      %p159 = por %p157, %p158
      %p160 = scmp.ne.s32.totalorder %s148, %s149
      %p161 = scmp.eq.s32.totalorder %s22, 1
      %p162 = por %p160, %p161
      %p164 = scmp.ne.s32.totalorder %s149, %s163
      %p165 = scmp.eq.s32.totalorder %s22, 0
      %p166 = por %p164, %p165
      %s168 = sadd.s32 %s167, 1
      %p171 = scmp.eq.s32.totalorder %s16, 1
      %p172 = scmp.ne.s32.totalorder %s167, %s169
      %p173 = scmp.eq.s32.totalorder %s16, 0
      %p174 = por %p172, %p173
      %p175 = scmp.ne.s32.totalorder %s167, %s169
      %p176 = scmp.eq.s32.totalorder %s21, 1
      %p177 = por %p175, %p176
      %p178 = scmp.ne.s32.totalorder %s169, %s170
      %p179 = scmp.eq.s32.totalorder %s21, 0
      %p180 = por %p178, %p179
      %p181 = scmp.ne.s32.totalorder %s169, %s170
      %p182 = scmp.eq.s32.totalorder %s22, 1
      %p183 = por %p181, %p182
      %p185 = scmp.ne.s32.totalorder %s170, %s184
      %p186 = scmp.eq.s32.totalorder %s22, 0
      %p187 = por %p185, %p186
      %s188 = ssub.s32 %s23, %s35
      %s189 = ssub.s32 %s24, %s31
      %s190 = sor.u32 %s188, %s189
      %p191 = scmp.eq.s32.totalorder %s190, 0
      %s193 = sadd.s32 %s192, 1
      %s194 = scalar_select %p191, %s192, %s193
      %p197 = pneg %p191
      %p198 = scmp.eq.s32.totalorder %s16, 1
      %p199 = por %p197, %p198
      %p200 = scmp.ne.s32.totalorder %s192, %s195
      %p201 = scmp.eq.s32.totalorder %s16, 0
      %p202 = por %p200, %p201
      %p203 = scmp.ne.s32.totalorder %s192, %s195
      %p204 = scmp.eq.s32.totalorder %s21, 1
      %p205 = por %p203, %p204
      %p206 = scmp.ne.s32.totalorder %s195, %s196
      %p207 = scmp.eq.s32.totalorder %s21, 0
      %p208 = por %p206, %p207
      %p209 = scmp.ne.s32.totalorder %s195, %s196
      %p210 = scmp.eq.s32.totalorder %s22, 1
      %p211 = por %p209, %p210
      %p213 = scmp.ne.s32.totalorder %s196, %s212
      %p214 = scmp.eq.s32.totalorder %s22, 0
      %p215 = por %p213, %p214
      %p216 = scmp.le.s32.totalorder 1, %s16
      %p217 = scmp.lt.s32.totalorder %s16, 3
      %p218 = pnand %p216, %p217
      %p219 = pneg %p218
      // Predicated region
      $region9: #{tpu_custom_call.1} parent=5 // pred_check
        _
      $region10: #{tpu_custom_call.1} parent=5 // pred_check_branch
        %221 = sbr.rel (%p218) target = $region12
      $region11: #{tpu_custom_call.1} parent=5 // pred_region
        %s222 = ssub.s32 %s16, 1
        // Predicated region
        $region13: #{tpu_custom_call.1} parent=11 // pred_check
          %p223 = pneg %p75
        $region14: #{tpu_custom_call.1} parent=11 // pred_check_branch
          %225 = sbr.rel (%p223) target = $region16
        $region15: #{tpu_custom_call.1} parent=11 // pred_region
          _
        $region16: #{tpu_custom_call.1} parent=11 // pred_fallthru
          _
        // Predicated region
        $region17: #{tpu_custom_call.1} parent=11 // pred_check
          %p226 = pneg %p96
        $region18: #{tpu_custom_call.1} parent=11 // pred_check_branch
          %228 = sbr.rel (%p226) target = $region20
        $region19: #{tpu_custom_call.1} parent=11 // pred_region
          _
        $region20: #{tpu_custom_call.1} parent=11 // pred_fallthru
          _
        // Predicated region
        $region21: #{tpu_custom_call.1} parent=11 // pred_check
          %p229 = pneg %p117
        $region22: #{tpu_custom_call.1} parent=11 // pred_check_branch
          %231 = sbr.rel (%p229) target = $region24
        $region23: #{tpu_custom_call.1} parent=11 // pred_region
          _
        $region24: #{tpu_custom_call.1} parent=11 // pred_fallthru
          _
        // Predicated region
        $region25: #{tpu_custom_call.1} parent=11 // pred_check
          %p232 = pneg %p138
        $region26: #{tpu_custom_call.1} parent=11 // pred_check_branch
          %234 = sbr.rel (%p232) target = $region28
        $region27: #{tpu_custom_call.1} parent=11 // pred_region
          _
        $region28: #{tpu_custom_call.1} parent=11 // pred_fallthru
          _
        // Predicated region
        $region29: #{tpu_custom_call.1} parent=11 // pred_check
          %p235 = pneg %p159
        $region30: #{tpu_custom_call.1} parent=11 // pred_check_branch
          %237 = sbr.rel (%p235) target = $region32
        $region31: #{tpu_custom_call.1} parent=11 // pred_region
          _
        $region32: #{tpu_custom_call.1} parent=11 // pred_fallthru
          _
        // Predicated region
        $region33: #{tpu_custom_call.1} parent=11 // pred_check
          %p238 = pneg %p180
        $region34: #{tpu_custom_call.1} parent=11 // pred_check_branch
          %240 = sbr.rel (%p238) target = $region36
        $region35: #{tpu_custom_call.1} parent=11 // pred_region
          _
        $region36: #{tpu_custom_call.1} parent=11 // pred_fallthru
          _
      $region12: #{tpu_custom_call.1} parent=5 // pred_fallthru
        _
      %p241 = scmp.lt.s32.totalorder %s16, 2
      // Predicated region
      $region37: #{tpu_custom_call.1} parent=5 // pred_check
        %p242 = pneg %p241
      $region38: #{tpu_custom_call.1} parent=5 // pred_check_branch
        %244 = sbr.rel (%p242) target = $region40
      $region39: #{tpu_custom_call.1} parent=5 // pred_region
        // Predicated region
        $region41: #{tpu_custom_call.1} parent=39 // pred_check
          %p245 = pneg %p48
        $region42: #{tpu_custom_call.1} parent=39 // pred_check_branch
          %247 = sbr.rel (%p245) target = $region44
        $region43: #{tpu_custom_call.1} parent=39 // pred_region
          %p248 = scmp.lt.s32.totalorder %s23, 1
          %s249 = scalar_select %p248, %s23, 1
          %s250 = smul.addr %s249, 2
          %s251 = smul.addr %s250, 4
          %s252 = scalar_lea.vmem %s0, %s251
        $region44: #{tpu_custom_call.1} parent=39 // pred_fallthru
          _
      $region40: #{tpu_custom_call.1} parent=5 // pred_fallthru
        _
      %p253 = scmp.le.s32.totalorder 1, %s16
      %p254 = scmp.lt.s32.totalorder %s16, 3
      %p255 = pnand %p253, %p254
      %p256 = pneg %p255
      // Predicated region
      $region45: #{tpu_custom_call.1} parent=5 // pred_check
        _
      $region46: #{tpu_custom_call.1} parent=5 // pred_check_branch
        %258 = sbr.rel (%p255) target = $region48
      $region47: #{tpu_custom_call.1} parent=5 // pred_region
        %s259 = ssub.s32 %s16, 1
        %p260 = scmp.lt.s32.totalorder %s25, 1
        %s261 = scalar_select %p260, %s25, 1
        %s262 = smul.addr %s261, 2
        %s263 = smul.addr %s262, 4
        %s264 = scalar_lea.vmem %s0, %s263
        %p265 = pneg %p54
        %p266 = pneg %p51
        %p267 = pneg %p75
        %p268 = pneg %p72
        %p269 = pneg %p96
        %p270 = pneg %p93
        %p271 = pneg %p117
        %p272 = pneg %p114
        %p273 = pneg %p138
        %p274 = pneg %p135
        %p275 = pneg %p159
        %p276 = pneg %p156
        %p277 = pneg %p180
        %p278 = pneg %p177
        %p279 = pneg %p208
        %p280 = pneg %p205
        %s281 = sand.u32 %s195, 1
        %s282 = scalar_lea.sflag [#allocation6], %s281
        %s283 = sand.u32 %s195, 1
        %s284 = smul.addr %s283, 64
        %s285 = scalar_lea.vmem [#allocation5], %s284
        %p286 = scmp.lt.s32.totalorder %s25, 1
        %s287 = scalar_select %p286, %s25, 1
        %s288 = smul.addr %s287, 2
        %s289 = smul.addr %s288, 4
        %s290 = scalar_lea.vmem %s0, %s289
        %s291 = smul.u32 2, %s26
        %p293 = scmp.eq.s32.totalorder %s26, 0
        // Predicated region
        $region49: #{tpu_custom_call.1} parent=47 // pred_check
          %p294 = pneg %p293
        $region50: #{tpu_custom_call.1} parent=47 // pred_check_branch
          %296 = sbr.rel (%p294) target = $region52
        $region51: #{tpu_custom_call.1} parent=47 // pred_region
          %v297 = vld [vmem:[%s290] sm:$0xff]
          %v299 = vcombine.high %v297, %v297
          %v301 = vpack.c.bf16 %v297, %v297
          %v302 = vpack.c.bf16 %v299, %v299
          %v303 = vld [vmem:[%s3] sm:$0xf]
          %v304 = vld [vmem:[%s3 + $0x4] sm:$0xf]
          %v305 = vld [vmem:[%s3 + $0x8] sm:$0xf]
          %v306 = vld [vmem:[%s3 + $0xc] sm:$0xf]
          %v307 = vld [vmem:[%s3 + $0x10] sm:$0xf]
          %v308 = vld [vmem:[%s3 + $0x14] sm:$0xf]
          %v309 = vld [vmem:[%s3 + $0x18] sm:$0xf]
          %v310 = vld [vmem:[%s3 + $0x1c] sm:$0xf]
          %v311 = vld [vmem:[%s4] sm:$0xff]
          %v312 = vld [vmem:[%s4 + $0x8] sm:$0xff]
          %v313 = vld [vmem:[%s4 + $0x10] sm:$0xff]
          %v314 = vld [vmem:[%s4 + $0x18] sm:$0xff]
          %v315 = vld [vmem:[%s4 + $0x20] sm:$0xff]
          %v316 = vld [vmem:[%s4 + $0x28] sm:$0xff]
          %v317 = vld [vmem:[%s4 + $0x30] sm:$0xff]
          %v318 = vld [vmem:[%s4 + $0x38] sm:$0xff]
          %320 = vset.pattern.permute.xlu0 0
          %321 = vperm.xlu0 %320, %v311
          %v322 = vpop.permute.xlu0 %321
          %325 = vset.pattern.permute.xlu0 0
          %326 = vperm.xlu0 %325, %v312
          %v327 = vpop.permute.xlu0 %326
          %330 = vset.pattern.permute.xlu0 0
          %331 = vperm.xlu0 %330, %v313
          %v332 = vpop.permute.xlu0 %331
          %335 = vset.pattern.permute.xlu0 0
          %336 = vperm.xlu0 %335, %v314
          %v337 = vpop.permute.xlu0 %336
          %340 = vset.pattern.permute.xlu0 0
          %341 = vperm.xlu0 %340, %v315
          %v342 = vpop.permute.xlu0 %341
          %345 = vset.pattern.permute.xlu0 0
          %346 = vperm.xlu0 %345, %v316
          %v347 = vpop.permute.xlu0 %346
          %350 = vset.pattern.permute.xlu0 0
          %351 = vperm.xlu0 %350, %v317
          %v352 = vpop.permute.xlu0 %351
          %355 = vset.pattern.permute.xlu0 0
          %356 = vperm.xlu0 %355, %v318
          %v357 = vpop.permute.xlu0 %356
          %v367 = vunpack.c.l.b16 %v303
          %v368 = vunpack.c.l.b16 %v304
          %v369 = vunpack.c.l.b16 %v305
          %v370 = vunpack.c.l.b16 %v306
          %v371 = vunpack.c.l.b16 %v307
          %v372 = vunpack.c.l.b16 %v308
          %v373 = vunpack.c.l.b16 %v309
          %v374 = vunpack.c.l.b16 %v310
          %v375 = vpack.c.b16 %v368, %v367
          %v376 = vpack.c.b16 %v370, %v369
          %v377 = vpack.c.b16 %v372, %v371
          %v378 = vpack.c.b16 %v374, %v373
          %vm379 = vcmask 31744
          %v381 = vsel %vm379, %v375, 0
          %v384 = vsel %vm379, %v376, 0
          %v387 = vsel %vm379, %v377, 0
          %v390 = vsel %vm379, %v378, 0
          %vm392 = vcmask 1041408
          %v394 = vsel %vm392, %v301, 0
          %v397 = vsel %vm392, %v302, 0
          %399 = vmatprep.subr.bf16.mxu0 %v397
          %400 = vmatpush1.bf16.msra.mxu0 %v394
          %401 = vmatprep.subr.bf16.mxu0 0
          %402 = vmatpush1.bf16.msra.mxu0 0
          %403 = vmatprep.subr.bf16.mxu0 0
          %404 = vmatpush1.bf16.msra.mxu0 0
          %405 = vmatprep.subr.bf16.mxu0 0
          %406 = vmatpush1.bf16.msra.mxu0 0
          %407 = vmatprep.subr.bf16.mxu0 0
          %408 = vmatpush1.bf16.msra.mxu0 0
          %409 = vmatprep.subr.bf16.mxu0 0
          %410 = vmatpush1.bf16.msra.mxu0 0
          %411 = vmatprep.subr.bf16.mxu0 0
          %412 = vmatpush1.bf16.msra.mxu0 0
          %413 = vmatprep.subr.bf16.mxu0 0
          %414 = vmatpush1.bf16.msra.mxu0 0
          %415 = vmatprep.subr.bf16.mxu0 0
          %416 = vmatpush1.bf16.msra.mxu0 0
          %417 = vmatprep.subr.bf16.mxu0 0
          %418 = vmatpush1.bf16.msra.mxu0 0
          %419 = vmatprep.subr.bf16.mxu0 0
          %420 = vmatpush1.bf16.msra.mxu0 0
          %421 = vmatprep.subr.bf16.mxu0 0
          %422 = vmatpush1.bf16.msra.mxu0 0
          %423 = vmatprep.subr.bf16.mxu0 0
          %424 = vmatpush1.bf16.msra.mxu0 0
          %425 = vmatprep.subr.bf16.mxu0 0
          %426 = vmatpush1.bf16.msra.mxu0 0
          %427 = vmatprep.subr.bf16.mxu0 0
          %428 = vmatpush1.bf16.msra.mxu0 0
          %429 = vmatprep.subr.bf16.mxu0 0
          %430 = vmatpush1.bf16.msra.mxu0 0
          %431 = vmatprep.mubr.bf16.mxu0 0
          %432 = vmatmul.mubr.bf16.gmra.mrb[0].mxu0 %v381
          %v433 = vpop.f32.mrb[0].mxu0
          %v434 = vadd.f32 %v322, %v433
          %v435 = vpop.f32.mrb[0].mxu0
          %v436 = vadd.f32 %v322, %v435
          %v437 = vpop.f32.mrb[0].mxu0
          %v438 = vadd.f32 %v327, %v437
          %v439 = vpop.f32.mrb[0].mxu0
          %v440 = vadd.f32 %v327, %v439
          %441 = vmatprep.mubr.bf16.mxu0 0
          %442 = vmatmul.mubr.bf16.gmra.mrb[0].mxu0 %v384
          %v443 = vpop.f32.mrb[0].mxu0
          %v444 = vadd.f32 %v332, %v443
          %v445 = vpop.f32.mrb[0].mxu0
          %v446 = vadd.f32 %v332, %v445
          %v447 = vpop.f32.mrb[0].mxu0
          %v448 = vadd.f32 %v337, %v447
          %v449 = vpop.f32.mrb[0].mxu0
          %v450 = vadd.f32 %v337, %v449
          %451 = vmatprep.mubr.bf16.mxu0 0
          %452 = vmatmul.mubr.bf16.gmra.mrb[0].mxu0 %v387
          %v453 = vpop.f32.mrb[0].mxu0
          %v454 = vadd.f32 %v342, %v453
          %v455 = vpop.f32.mrb[0].mxu0
          %v456 = vadd.f32 %v342, %v455
          %v457 = vpop.f32.mrb[0].mxu0
          %v458 = vadd.f32 %v347, %v457
          %v459 = vpop.f32.mrb[0].mxu0
          %v460 = vadd.f32 %v347, %v459
          %461 = vmatprep.mubr.bf16.mxu0 0
          %462 = vmatmul.mubr.bf16.gmra.mrb[0].mxu0 %v390
          %v463 = vpop.f32.mrb[0].mxu0
          %v464 = vadd.f32 %v352, %v463
          %v465 = vpop.f32.mrb[0].mxu0
          %v466 = vadd.f32 %v352, %v465
          %v467 = vpop.f32.mrb[0].mxu0
          %v468 = vadd.f32 %v357, %v467
          %v469 = vpop.f32.mrb[0].mxu0
          %v470 = vadd.f32 %v357, %v469
          %471 = vdwg.mxu0
          %472 = vxpose.xlu0.b32.start [1/16] %v434, 128
          %473 = vxpose.xlu0.b32.cont [2/16] %v438, 128
          %474 = vxpose.xlu0.b32.cont [3/16] %v444, 128
          %475 = vxpose.xlu0.b32.cont [4/16] %v448, 128
          %476 = vxpose.xlu0.b32.cont [5/16] 0.0, 128
          %477 = vxpose.xlu0.b32.cont [6/16] 0.0, 128
          %478 = vxpose.xlu0.b32.cont [7/16] 0.0, 128
          %479 = vxpose.xlu0.b32.cont [8/16] 0.0, 128
          %480 = vxpose.xlu0.b32.cont [9/16] 0.0, 128
          %481 = vxpose.xlu0.b32.cont [10/16] 0.0, 128
          %482 = vxpose.xlu0.b32.cont [11/16] 0.0, 128
          %483 = vxpose.xlu0.b32.cont [12/16] 0.0, 128
          %484 = vxpose.xlu0.b32.cont [13/16] 0.0, 128
          %485 = vxpose.xlu0.b32.cont [14/16] 0.0, 128
          %486 = vxpose.xlu0.b32.cont [15/16] 0.0, 128
          %487 = vxpose.xlu0.b32.end [16/16] 0.0, 128
          %v488 = vpop.trf.xlu0
          %v489 = vpop.trf.xlu0
          %v490 = vpop.trf.xlu0
          %v491 = vpop.trf.xlu0
          %v492 = vpop.trf.xlu0
          %v493 = vpop.trf.xlu0
          %v494 = vpop.trf.xlu0
          %v495 = vpop.trf.xlu0
          %v496 = vpop.trf.xlu0
          %v497 = vpop.trf.xlu0
          %v498 = vpop.trf.xlu0
          %v499 = vpop.trf.xlu0
          %v500 = vpop.trf.xlu0
          %v501 = vpop.trf.xlu0
          %v502 = vpop.trf.xlu0
          %v503 = vpop.trf.xlu0
          %504 = vxpose.xlu0.b32.start [1/16] %v436, 128
          %505 = vxpose.xlu0.b32.cont [2/16] %v440, 128
          %506 = vxpose.xlu0.b32.cont [3/16] %v446, 128
          %507 = vxpose.xlu0.b32.cont [4/16] %v450, 128
          %508 = vxpose.xlu0.b32.cont [5/16] 0.0, 128
          %509 = vxpose.xlu0.b32.cont [6/16] 0.0, 128
          %510 = vxpose.xlu0.b32.cont [7/16] 0.0, 128
          %511 = vxpose.xlu0.b32.cont [8/16] 0.0, 128
          %512 = vxpose.xlu0.b32.cont [9/16] 0.0, 128
          %513 = vxpose.xlu0.b32.cont [10/16] 0.0, 128
          %514 = vxpose.xlu0.b32.cont [11/16] 0.0, 128
          %515 = vxpose.xlu0.b32.cont [12/16] 0.0, 128
          %516 = vxpose.xlu0.b32.cont [13/16] 0.0, 128
          %517 = vxpose.xlu0.b32.cont [14/16] 0.0, 128
          %518 = vxpose.xlu0.b32.cont [15/16] 0.0, 128
          %519 = vxpose.xlu0.b32.end [16/16] 0.0, 128
          %v520 = vpop.trf.xlu0
          %v521 = vpop.trf.xlu0
          %v522 = vpop.trf.xlu0
          %v523 = vpop.trf.xlu0
          %v524 = vpop.trf.xlu0
          %v525 = vpop.trf.xlu0
          %v526 = vpop.trf.xlu0
          %v527 = vpop.trf.xlu0
          %v528 = vpop.trf.xlu0
          %v529 = vpop.trf.xlu0
          %v530 = vpop.trf.xlu0
          %v531 = vpop.trf.xlu0
          %v532 = vpop.trf.xlu0
          %v533 = vpop.trf.xlu0
          %v534 = vpop.trf.xlu0
          %v535 = vpop.trf.xlu0
          %v536 = vpack.c.bf16 %v489, %v488
          %v537 = vpack.c.bf16 %v491, %v490
          %v538 = vpack.c.bf16 %v493, %v492
          %v539 = vpack.c.bf16 %v495, %v494
          %v540 = vpack.c.bf16 %v497, %v496
          %v541 = vpack.c.bf16 %v499, %v498
          %v542 = vpack.c.bf16 %v501, %v500
          %v543 = vpack.c.bf16 %v503, %v502
          %v544 = vpack.c.bf16 %v521, %v520
          %v545 = vpack.c.bf16 %v523, %v522
          %v546 = vpack.c.bf16 %v525, %v524
          %v547 = vpack.c.bf16 %v527, %v526
          %v548 = vpack.c.bf16 %v529, %v528
          %v549 = vpack.c.bf16 %v531, %v530
          %v550 = vpack.c.bf16 %v533, %v532
          %v551 = vpack.c.bf16 %v535, %v534
          %vm552 = vcmask 261120
          %553 = vst.msk [vmem:[#allocation2] sm:$0xff] %vm552, %v536
          %554 = vst.msk [vmem:[#allocation2 + $0x8] sm:$0xff] %vm552, %v537
          %555 = vst.msk [vmem:[#allocation2 + $0x10] sm:$0xff] %vm552, %v538
          %556 = vst.msk [vmem:[#allocation2 + $0x18] sm:$0xff] %vm552, %v539
          %557 = vst.msk [vmem:[#allocation2 + $0x20] sm:$0xff] %vm552, %v540
          %558 = vst.msk [vmem:[#allocation2 + $0x28] sm:$0xff] %vm552, %v541
          %559 = vst.msk [vmem:[#allocation2 + $0x30] sm:$0xff] %vm552, %v542
          %560 = vst.msk [vmem:[#allocation2 + $0x38] sm:$0xff] %vm552, %v543
          %561 = vst.msk [vmem:[#allocation2 + $0x40] sm:$0xff] %vm552, %v544
          %562 = vst.msk [vmem:[#allocation2 + $0x48] sm:$0xff] %vm552, %v545
          %563 = vst.msk [vmem:[#allocation2 + $0x50] sm:$0xff] %vm552, %v546
          %564 = vst.msk [vmem:[#allocation2 + $0x58] sm:$0xff] %vm552, %v547
          %565 = vst.msk [vmem:[#allocation2 + $0x60] sm:$0xff] %vm552, %v548
          %566 = vst.msk [vmem:[#allocation2 + $0x68] sm:$0xff] %vm552, %v549
          %567 = vst.msk [vmem:[#allocation2 + $0x70] sm:$0xff] %vm552, %v550
          %568 = vst.msk [vmem:[#allocation2 + $0x78] sm:$0xff] %vm552, %v551
          %v569 = vpack.c.bf16 %v458, %v454
          %v570 = vpack.c.bf16 %v460, %v456
          %v571 = vpack.c.bf16 %v468, %v464
          %v572 = vpack.c.bf16 %v470, %v466
          %573 = vst [vmem:[#allocation3] sm:$0xff] %v569
          %574 = vst [vmem:[#allocation3 + $0x8] sm:$0xff] %v570
          %575 = vst [vmem:[#allocation3 + $0x10] sm:$0xff] %v571
          %576 = vst [vmem:[#allocation3 + $0x18] sm:$0xff] %v572
        $region52: #{tpu_custom_call.1} parent=47 // pred_fallthru
          _
        %v577 = vld [vmem:[%s290] sm:$0xff]
        %v579 = vcombine.high %v577, %v577
        %v581 = vpack.c.bf16 %v577, %v577
        %v582 = vpack.c.bf16 %v579, %v579
        %v583 = vld [vmem:[%s1] sm:$0xf]
        %v584 = vld [vmem:[%s1 + $0x4] sm:$0xf]
        %v585 = vld [vmem:[%s1 + $0x8] sm:$0xf]
        %v586 = vld [vmem:[%s1 + $0xc] sm:$0xf]
        %v587 = vld [vmem:[%s2] sm:$0xff]
        %v588 = vld [vmem:[%s2 + $0x8] sm:$0xff]
        %v589 = vld [vmem:[%s2 + $0x10] sm:$0xff]
        %v590 = vld [vmem:[%s2 + $0x18] sm:$0xff]
        %592 = vset.pattern.permute.xlu0 0
        %593 = vperm.xlu0 %592, %v587
        %v594 = vpop.permute.xlu0 %593
        %597 = vset.pattern.permute.xlu0 0
        %598 = vperm.xlu0 %597, %v588
        %v599 = vpop.permute.xlu0 %598
        %602 = vset.pattern.permute.xlu0 0
        %603 = vperm.xlu0 %602, %v589
        %v604 = vpop.permute.xlu0 %603
        %607 = vset.pattern.permute.xlu0 0
        %608 = vperm.xlu0 %607, %v590
        %v609 = vpop.permute.xlu0 %608
        %v615 = vunpack.c.l.b16 %v583
        %v616 = vunpack.c.l.b16 %v584
        %v617 = vunpack.c.l.b16 %v585
        %v618 = vunpack.c.l.b16 %v586
        %v619 = vpack.c.b16 %v616, %v615
        %v620 = vpack.c.b16 %v618, %v617
        %vm621 = vcmask 31744
        %v623 = vsel %vm621, %v619, 0
        %v626 = vsel %vm621, %v620, 0
        %vm628 = vcmask 1041408
        %v630 = vsel %vm628, %v581, 0
        %v633 = vsel %vm628, %v582, 0
        %635 = vmatprep.subr.bf16.mxu0 %v633
        %636 = vmatpush1.bf16.msra.mxu0 %v630
        %637 = vmatprep.subr.bf16.mxu0 0
        %638 = vmatpush1.bf16.msra.mxu0 0
        %639 = vmatprep.subr.bf16.mxu0 0
        %640 = vmatpush1.bf16.msra.mxu0 0
        %641 = vmatprep.subr.bf16.mxu0 0
        %642 = vmatpush1.bf16.msra.mxu0 0
        %643 = vmatprep.subr.bf16.mxu0 0
        %644 = vmatpush1.bf16.msra.mxu0 0
        %645 = vmatprep.subr.bf16.mxu0 0
        %646 = vmatpush1.bf16.msra.mxu0 0
        %647 = vmatprep.subr.bf16.mxu0 0
        %648 = vmatpush1.bf16.msra.mxu0 0
        %649 = vmatprep.subr.bf16.mxu0 0
        %650 = vmatpush1.bf16.msra.mxu0 0
        %651 = vmatprep.subr.bf16.mxu0 0
        %652 = vmatpush1.bf16.msra.mxu0 0
        %653 = vmatprep.subr.bf16.mxu0 0
        %654 = vmatpush1.bf16.msra.mxu0 0
        %655 = vmatprep.subr.bf16.mxu0 0
        %656 = vmatpush1.bf16.msra.mxu0 0
        %657 = vmatprep.subr.bf16.mxu0 0
        %658 = vmatpush1.bf16.msra.mxu0 0
        %659 = vmatprep.subr.bf16.mxu0 0
        %660 = vmatpush1.bf16.msra.mxu0 0
        %661 = vmatprep.subr.bf16.mxu0 0
        %662 = vmatpush1.bf16.msra.mxu0 0
        %663 = vmatprep.subr.bf16.mxu0 0
        %664 = vmatpush1.bf16.msra.mxu0 0
        %665 = vmatprep.subr.bf16.mxu0 0
        %666 = vmatpush1.bf16.msra.mxu0 0
        %667 = vmatprep.mubr.bf16.mxu0 0
        %668 = vmatmul.mubr.bf16.gmra.mrb[0].mxu0 %v623
        %v669 = vpop.f32.mrb[0].mxu0
        %v670 = vadd.f32 %v594, %v669
        %v671 = vpop.f32.mrb[0].mxu0
        %v672 = vadd.f32 %v594, %v671
        %v673 = vpop.f32.mrb[0].mxu0
        %v674 = vadd.f32 %v599, %v673
        %v675 = vpop.f32.mrb[0].mxu0
        %v676 = vadd.f32 %v599, %v675
        %677 = vmatprep.mubr.bf16.mxu0 0
        %678 = vmatmul.mubr.bf16.gmra.mrb[0].mxu0 %v626
        %v679 = vpop.f32.mrb[0].mxu0
        %v680 = vadd.f32 %v604, %v679
        %v681 = vpop.f32.mrb[0].mxu0
        %v682 = vadd.f32 %v604, %v681
        %v683 = vpop.f32.mrb[0].mxu0
        %v684 = vadd.f32 %v609, %v683
        %v685 = vpop.f32.mrb[0].mxu0
        %v686 = vadd.f32 %v609, %v685
        %687 = vdwg.mxu0
        %v688 = vpack.c.bf16 %v674, %v670
        %v689 = vpack.c.bf16 %v676, %v672
        %v690 = vpack.c.bf16 %v684, %v680
        %v691 = vpack.c.bf16 %v686, %v682
        %v692 = vld [vmem:[#allocation2] sm:$0xff]
        %v693 = vld [vmem:[#allocation2 + $0x8] sm:$0xff]
        %v694 = vld [vmem:[#allocation2 + $0x10] sm:$0xff]
        %v695 = vld [vmem:[#allocation2 + $0x18] sm:$0xff]
        %v696 = vld [vmem:[#allocation2 + $0x20] sm:$0xff]
        %v697 = vld [vmem:[#allocation2 + $0x28] sm:$0xff]
        %v698 = vld [vmem:[#allocation2 + $0x30] sm:$0xff]
        %v699 = vld [vmem:[#allocation2 + $0x38] sm:$0xff]
        %v700 = vld [vmem:[#allocation2 + $0x40] sm:$0xff]
        %v701 = vld [vmem:[#allocation2 + $0x48] sm:$0xff]
        %v702 = vld [vmem:[#allocation2 + $0x50] sm:$0xff]
        %v703 = vld [vmem:[#allocation2 + $0x58] sm:$0xff]
        %v704 = vld [vmem:[#allocation2 + $0x60] sm:$0xff]
        %v705 = vld [vmem:[#allocation2 + $0x68] sm:$0xff]
        %v706 = vld [vmem:[#allocation2 + $0x70] sm:$0xff]
        %v707 = vld [vmem:[#allocation2 + $0x78] sm:$0xff]
        %v708 = vld [vmem:[#allocation3] sm:$0x3]
        %v709 = vld [vmem:[#allocation3 + $0x8] sm:$0x3]
        %v711 = vsel %vm621, %v692, 0
        %v714 = vsel %vm621, %v693, 0
        %v717 = vsel %vm621, %v694, 0
        %v720 = vsel %vm621, %v695, 0
        %v723 = vsel %vm621, %v696, 0
        %v726 = vsel %vm621, %v697, 0
        %v729 = vsel %vm621, %v698, 0
        %v732 = vsel %vm621, %v699, 0
        %v735 = vsel %vm621, %v700, 0
        %v738 = vsel %vm621, %v701, 0
        %v741 = vsel %vm621, %v702, 0
        %v744 = vsel %vm621, %v703, 0
        %v747 = vsel %vm621, %v704, 0
        %v750 = vsel %vm621, %v705, 0
        %v753 = vsel %vm621, %v706, 0
        %v756 = vsel %vm621, %v707, 0
        %v759 = vsel %vm628, %v688, 0
        %v762 = vsel %vm628, %v689, 0
        %764 = vmatprep.subr.bf16.mxu0 %v762
        %765 = vmatpush1.bf16.msra.mxu0 %v759
        %766 = vmatprep.subr.bf16.mxu0 0
        %767 = vmatpush1.bf16.msra.mxu0 0
        %768 = vmatprep.subr.bf16.mxu0 0
        %769 = vmatpush1.bf16.msra.mxu0 0
        %770 = vmatprep.subr.bf16.mxu0 0
        %771 = vmatpush1.bf16.msra.mxu0 0
        %772 = vmatprep.subr.bf16.mxu0 0
        %773 = vmatpush1.bf16.msra.mxu0 0
        %774 = vmatprep.subr.bf16.mxu0 0
        %775 = vmatpush1.bf16.msra.mxu0 0
        %776 = vmatprep.subr.bf16.mxu0 0
        %777 = vmatpush1.bf16.msra.mxu0 0
        %778 = vmatprep.subr.bf16.mxu0 0
        %779 = vmatpush1.bf16.msra.mxu0 0
        %780 = vmatprep.subr.bf16.mxu0 0
        %781 = vmatpush1.bf16.msra.mxu0 0
        %782 = vmatprep.subr.bf16.mxu0 0
        %783 = vmatpush1.bf16.msra.mxu0 0
        %784 = vmatprep.subr.bf16.mxu0 0
        %785 = vmatpush1.bf16.msra.mxu0 0
        %786 = vmatprep.subr.bf16.mxu0 0
        %787 = vmatpush1.bf16.msra.mxu0 0
        %788 = vmatprep.subr.bf16.mxu0 0
        %789 = vmatpush1.bf16.msra.mxu0 0
        %790 = vmatprep.subr.bf16.mxu0 0
        %791 = vmatpush1.bf16.msra.mxu0 0
        %792 = vmatprep.subr.bf16.mxu0 0
        %793 = vmatpush1.bf16.msra.mxu0 0
        %794 = vmatprep.subr.bf16.mxu0 0
        %795 = vmatpush1.bf16.msra.mxu0 0
        %796 = vmatprep.mubr.bf16.mxu0 0
        %797 = vmatmul.mubr.bf16.gmra.mrb[0].mxu0 %v711
        %v798 = vpop.f32.mrb[0].mxu0
        %v799 = vadd.f32 0.0, %v798
        %v800 = vpop.f32.mrb[0].mxu0
        %v801 = vadd.f32 0.0, %v800
        %v802 = vpop.f32.mrb[0].mxu0
        %v803 = vadd.f32 0.0, %v802
        %v804 = vpop.f32.mrb[0].mxu0
        %v805 = vadd.f32 0.0, %v804
        %806 = vmatprep.mubr.bf16.mxu0 0
        %807 = vmatmul.mubr.bf16.gmra.mrb[0].mxu0 %v714
        %v808 = vpop.f32.mrb[0].mxu0
        %v809 = vadd.f32 0.0, %v808
        %v810 = vpop.f32.mrb[0].mxu0
        %v811 = vadd.f32 0.0, %v810
        %v812 = vpop.f32.mrb[0].mxu0
        %v813 = vadd.f32 0.0, %v812
        %v814 = vpop.f32.mrb[0].mxu0
        %v815 = vadd.f32 0.0, %v814
        %816 = vmatprep.mubr.bf16.mxu0 0
        %817 = vmatmul.mubr.bf16.gmra.mrb[0].mxu0 %v717
        %v818 = vpop.f32.mrb[0].mxu0
        %v819 = vadd.f32 0.0, %v818
        %v820 = vpop.f32.mrb[0].mxu0
        %v821 = vadd.f32 0.0, %v820
        %v822 = vpop.f32.mrb[0].mxu0
        %v823 = vadd.f32 0.0, %v822
        %v824 = vpop.f32.mrb[0].mxu0
        %v825 = vadd.f32 0.0, %v824
        %826 = vmatprep.mubr.bf16.mxu0 0
        %827 = vmatmul.mubr.bf16.gmra.mrb[0].mxu0 %v720
        %v828 = vpop.f32.mrb[0].mxu0
        %v829 = vadd.f32 0.0, %v828
        %v830 = vpop.f32.mrb[0].mxu0
        %v831 = vadd.f32 0.0, %v830
        %v832 = vpop.f32.mrb[0].mxu0
        %v833 = vadd.f32 0.0, %v832
        %v834 = vpop.f32.mrb[0].mxu0
        %v835 = vadd.f32 0.0, %v834
        %836 = vmatprep.mubr.bf16.mxu0 0
        %837 = vmatmul.mubr.bf16.gmra.mrb[0].mxu0 %v723
        %v838 = vpop.f32.mrb[0].mxu0
        %v839 = vadd.f32 0.0, %v838
        %v840 = vpop.f32.mrb[0].mxu0
        %v841 = vadd.f32 0.0, %v840
        %v842 = vpop.f32.mrb[0].mxu0
        %v843 = vadd.f32 0.0, %v842
        %v844 = vpop.f32.mrb[0].mxu0
        %v845 = vadd.f32 0.0, %v844
        %846 = vmatprep.mubr.bf16.mxu0 0
        %847 = vmatmul.mubr.bf16.gmra.mrb[0].mxu0 %v726
        %v848 = vpop.f32.mrb[0].mxu0
        %v849 = vadd.f32 0.0, %v848
        %v850 = vpop.f32.mrb[0].mxu0
        %v851 = vadd.f32 0.0, %v850
        %v852 = vpop.f32.mrb[0].mxu0
        %v853 = vadd.f32 0.0, %v852
        %v854 = vpop.f32.mrb[0].mxu0
        %v855 = vadd.f32 0.0, %v854
        %856 = vmatprep.mubr.bf16.mxu0 0
        %857 = vmatmul.mubr.bf16.gmra.mrb[0].mxu0 %v729
        %v858 = vpop.f32.mrb[0].mxu0
        %v859 = vadd.f32 0.0, %v858
        %v860 = vpop.f32.mrb[0].mxu0
        %v861 = vadd.f32 0.0, %v860
        %v862 = vpop.f32.mrb[0].mxu0
        %v863 = vadd.f32 0.0, %v862
        %v864 = vpop.f32.mrb[0].mxu0
        %v865 = vadd.f32 0.0, %v864
        %866 = vmatprep.mubr.bf16.mxu0 0
        %867 = vmatmul.mubr.bf16.gmra.mrb[0].mxu0 %v732
        %v868 = vpop.f32.mrb[0].mxu0
        %v869 = vadd.f32 0.0, %v868
        %v870 = vpop.f32.mrb[0].mxu0
        %v871 = vadd.f32 0.0, %v870
        %v872 = vpop.f32.mrb[0].mxu0
        %v873 = vadd.f32 0.0, %v872
        %v874 = vpop.f32.mrb[0].mxu0
        %v875 = vadd.f32 0.0, %v874
        %876 = vmatprep.mubr.bf16.mxu0 0
        %877 = vmatmul.mubr.bf16.gmra.mrb[0].mxu0 %v735
        %v878 = vpop.f32.mrb[0].mxu0
        %v879 = vadd.f32 0.0, %v878
        %v880 = vpop.f32.mrb[0].mxu0
        %v881 = vadd.f32 0.0, %v880
        %v882 = vpop.f32.mrb[0].mxu0
        %v883 = vadd.f32 0.0, %v882
        %v884 = vpop.f32.mrb[0].mxu0
        %v885 = vadd.f32 0.0, %v884
        %886 = vmatprep.mubr.bf16.mxu0 0
        %887 = vmatmul.mubr.bf16.gmra.mrb[0].mxu0 %v738
        %v888 = vpop.f32.mrb[0].mxu0
        %v889 = vadd.f32 0.0, %v888
        %v890 = vpop.f32.mrb[0].mxu0
        %v891 = vadd.f32 0.0, %v890
        %v892 = vpop.f32.mrb[0].mxu0
        %v893 = vadd.f32 0.0, %v892
        %v894 = vpop.f32.mrb[0].mxu0
        %v895 = vadd.f32 0.0, %v894
        %896 = vmatprep.mubr.bf16.mxu0 0
        %897 = vmatmul.mubr.bf16.gmra.mrb[0].mxu0 %v741
        %v898 = vpop.f32.mrb[0].mxu0
        %v899 = vadd.f32 0.0, %v898
        %v900 = vpop.f32.mrb[0].mxu0
        %v901 = vadd.f32 0.0, %v900
        %v902 = vpop.f32.mrb[0].mxu0
        %v903 = vadd.f32 0.0, %v902
        %v904 = vpop.f32.mrb[0].mxu0
        %v905 = vadd.f32 0.0, %v904
        %906 = vmatprep.mubr.bf16.mxu0 0
        %907 = vmatmul.mubr.bf16.gmra.mrb[0].mxu0 %v744
        %v908 = vpop.f32.mrb[0].mxu0
        %v909 = vadd.f32 0.0, %v908
        %v910 = vpop.f32.mrb[0].mxu0
        %v911 = vadd.f32 0.0, %v910
        %v912 = vpop.f32.mrb[0].mxu0
        %v913 = vadd.f32 0.0, %v912
        %v914 = vpop.f32.mrb[0].mxu0
        %v915 = vadd.f32 0.0, %v914
        %916 = vmatprep.mubr.bf16.mxu0 0
        %917 = vmatmul.mubr.bf16.gmra.mrb[0].mxu0 %v747
        %v918 = vpop.f32.mrb[0].mxu0
        %v919 = vadd.f32 0.0, %v918
        %v920 = vpop.f32.mrb[0].mxu0
        %v921 = vadd.f32 0.0, %v920
        %v922 = vpop.f32.mrb[0].mxu0
        %v923 = vadd.f32 0.0, %v922
        %v924 = vpop.f32.mrb[0].mxu0
        %v925 = vadd.f32 0.0, %v924
        %926 = vmatprep.mubr.bf16.mxu0 0
        %927 = vmatmul.mubr.bf16.gmra.mrb[0].mxu0 %v750
        %v928 = vpop.f32.mrb[0].mxu0
        %v929 = vadd.f32 0.0, %v928
        %v930 = vpop.f32.mrb[0].mxu0
        %v931 = vadd.f32 0.0, %v930
        %v932 = vpop.f32.mrb[0].mxu0
        %v933 = vadd.f32 0.0, %v932
        %v934 = vpop.f32.mrb[0].mxu0
        %v935 = vadd.f32 0.0, %v934
        %936 = vmatprep.mubr.bf16.mxu0 0
        %937 = vmatmul.mubr.bf16.gmra.mrb[0].mxu0 %v753
        %v938 = vpop.f32.mrb[0].mxu0
        %v939 = vadd.f32 0.0, %v938
        %v940 = vpop.f32.mrb[0].mxu0
        %v941 = vadd.f32 0.0, %v940
        %v942 = vpop.f32.mrb[0].mxu0
        %v943 = vadd.f32 0.0, %v942
        %v944 = vpop.f32.mrb[0].mxu0
        %v945 = vadd.f32 0.0, %v944
        %946 = vmatprep.mubr.bf16.mxu0 0
        %947 = vmatmul.mubr.bf16.gmra.mrb[0].mxu0 %v756
        %v948 = vpop.f32.mrb[0].mxu0
        %v949 = vadd.f32 0.0, %v948
        %v950 = vpop.f32.mrb[0].mxu0
        %v951 = vadd.f32 0.0, %v950
        %v952 = vpop.f32.mrb[0].mxu0
        %v953 = vadd.f32 0.0, %v952
        %v954 = vpop.f32.mrb[0].mxu0
        %v955 = vadd.f32 0.0, %v954
        %956 = vdwg.mxu0
        %v957 = vmax.f32 %v799, %v809
        %v958 = vmax.f32 %v803, %v813
        %v959 = vmax.f32 %v957, %v819
        %v960 = vmax.f32 %v958, %v823
        %v961 = vmax.f32 %v959, %v829
        %v962 = vmax.f32 %v960, %v833
        %v963 = vmax.f32 %v961, %v839
        %v964 = vmax.f32 %v962, %v843
        %v965 = vmax.f32 %v963, %v849
        %v966 = vmax.f32 %v964, %v853
        %v967 = vmax.f32 %v965, %v859
        %v968 = vmax.f32 %v966, %v863
        %v969 = vmax.f32 %v967, %v869
        %v970 = vmax.f32 %v968, %v873
        %v971 = vmax.f32 %v969, %v879
        %v972 = vmax.f32 %v970, %v883
        %v973 = vmax.f32 %v971, %v889
        %v974 = vmax.f32 %v972, %v893
        %v975 = vmax.f32 %v973, %v899
        %v976 = vmax.f32 %v974, %v903
        %v977 = vmax.f32 %v975, %v909
        %v978 = vmax.f32 %v976, %v913
        %v979 = vmax.f32 %v977, %v919
        %v980 = vmax.f32 %v978, %v923
        %v981 = vmax.f32 %v979, %v929
        %v982 = vmax.f32 %v980, %v933
        %v983 = vmax.f32 %v981, %v939
        %v984 = vmax.f32 %v982, %v943
        %v985 = vmax.f32 %v983, %v949
        %v986 = vmax.f32 %v984, %v953
        %v987 = vmax.f32 %v985, %v986
        %v988 = vrot.slane %v987, 4
        %v989 = vmax.f32 %v987, %v988
        %v990 = vrot.slane %v989, 2
        %v991 = vmax.f32 %v989, %v990
        %v992 = vrot.slane %v991, 1
        %v993 = vmax.f32 %v991, %v992
        %v994 = vmax.f32 %v801, %v811
        %v995 = vmax.f32 %v805, %v815
        %v996 = vmax.f32 %v994, %v821
        %v997 = vmax.f32 %v995, %v825
        %v998 = vmax.f32 %v996, %v831
        %v999 = vmax.f32 %v997, %v835
        %v1000 = vmax.f32 %v998, %v841
        %v1001 = vmax.f32 %v999, %v845
        %v1002 = vmax.f32 %v1000, %v851
        %v1003 = vmax.f32 %v1001, %v855
        %v1004 = vmax.f32 %v1002, %v861
        %v1005 = vmax.f32 %v1003, %v865
        %v1006 = vmax.f32 %v1004, %v871
        %v1007 = vmax.f32 %v1005, %v875
        %v1008 = vmax.f32 %v1006, %v881
        %v1009 = vmax.f32 %v1007, %v885
        %v1010 = vmax.f32 %v1008, %v891
        %v1011 = vmax.f32 %v1009, %v895
        %v1012 = vmax.f32 %v1010, %v901
        %v1013 = vmax.f32 %v1011, %v905
        %v1014 = vmax.f32 %v1012, %v911
        %v1015 = vmax.f32 %v1013, %v915
        %v1016 = vmax.f32 %v1014, %v921
        %v1017 = vmax.f32 %v1015, %v925
        %v1018 = vmax.f32 %v1016, %v931
        %v1019 = vmax.f32 %v1017, %v935
        %v1020 = vmax.f32 %v1018, %v941
        %v1021 = vmax.f32 %v1019, %v945
        %v1022 = vmax.f32 %v1020, %v951
        %v1023 = vmax.f32 %v1021, %v955
        %v1024 = vmax.f32 %v1022, %v1023
        %v1025 = vrot.slane %v1024, 4
        %v1026 = vmax.f32 %v1024, %v1025
        %v1027 = vrot.slane %v1026, 2
        %v1028 = vmax.f32 %v1026, %v1027
        %v1029 = vrot.slane %v1028, 1
        %v1030 = vmax.f32 %v1028, %v1029
        %v1031 = vsub.f32 %v799, %v993
        %v1032 = vsub.f32 %v801, %v1030
        %v1033 = vsub.f32 %v803, %v993
        %v1034 = vsub.f32 %v805, %v1030
        %v1035 = vsub.f32 %v809, %v993
        %v1036 = vsub.f32 %v811, %v1030
        %v1037 = vsub.f32 %v813, %v993
        %v1038 = vsub.f32 %v815, %v1030
        %v1039 = vsub.f32 %v819, %v993
        %v1040 = vsub.f32 %v821, %v1030
        %v1041 = vsub.f32 %v823, %v993
        %v1042 = vsub.f32 %v825, %v1030
        %v1043 = vsub.f32 %v829, %v993
        %v1044 = vsub.f32 %v831, %v1030
        %v1045 = vsub.f32 %v833, %v993
        %v1046 = vsub.f32 %v835, %v1030
        %v1047 = vsub.f32 %v839, %v993
        %v1048 = vsub.f32 %v841, %v1030
        %v1049 = vsub.f32 %v843, %v993
        %v1050 = vsub.f32 %v845, %v1030
        %v1051 = vsub.f32 %v849, %v993
        %v1052 = vsub.f32 %v851, %v1030
        %v1053 = vsub.f32 %v853, %v993
        %v1054 = vsub.f32 %v855, %v1030
        %v1055 = vsub.f32 %v859, %v993
        %v1056 = vsub.f32 %v861, %v1030
        %v1057 = vsub.f32 %v863, %v993
        %v1058 = vsub.f32 %v865, %v1030
        %v1059 = vsub.f32 %v869, %v993
        %v1060 = vsub.f32 %v871, %v1030
        %v1061 = vsub.f32 %v873, %v993
        %v1062 = vsub.f32 %v875, %v1030
        %v1063 = vsub.f32 %v879, %v993
        %v1064 = vsub.f32 %v881, %v1030
        %v1065 = vsub.f32 %v883, %v993
        %v1066 = vsub.f32 %v885, %v1030
        %v1067 = vsub.f32 %v889, %v993
        %v1068 = vsub.f32 %v891, %v1030
        %v1069 = vsub.f32 %v893, %v993
        %v1070 = vsub.f32 %v895, %v1030
        %v1071 = vsub.f32 %v899, %v993
        %v1072 = vsub.f32 %v901, %v1030
        %v1073 = vsub.f32 %v903, %v993
        %v1074 = vsub.f32 %v905, %v1030
        %v1075 = vsub.f32 %v909, %v993
        %v1076 = vsub.f32 %v911, %v1030
        %v1077 = vsub.f32 %v913, %v993
        %v1078 = vsub.f32 %v915, %v1030
        %v1079 = vsub.f32 %v919, %v993
        %v1080 = vsub.f32 %v921, %v1030
        %v1081 = vsub.f32 %v923, %v993
        %v1082 = vsub.f32 %v925, %v1030
        %v1083 = vsub.f32 %v929, %v993
        %v1084 = vsub.f32 %v931, %v1030
        %v1085 = vsub.f32 %v933, %v993
        %v1086 = vsub.f32 %v935, %v1030
        %v1087 = vsub.f32 %v939, %v993
        %v1088 = vsub.f32 %v941, %v1030
        %v1089 = vsub.f32 %v943, %v993
        %v1090 = vsub.f32 %v945, %v1030
        %v1091 = vsub.f32 %v949, %v993
        %v1092 = vsub.f32 %v951, %v1030
        %v1093 = vsub.f32 %v953, %v993
        %v1094 = vsub.f32 %v955, %v1030
        %v1095 = vmul.f32 %v1031, 1.442695
        %v1096 = vpow.pop %v1095
        %v1097 = vmul.f32 %v1032, 1.442695
        %v1098 = vpow.pop %v1097
        %v1099 = vmul.f32 %v1033, 1.442695
        %v1100 = vpow.pop %v1099
        %v1101 = vmul.f32 %v1034, 1.442695
        %v1102 = vpow.pop %v1101
        %v1103 = vmul.f32 %v1035, 1.442695
        %v1104 = vpow.pop %v1103
        %v1105 = vmul.f32 %v1036, 1.442695
        %v1106 = vpow.pop %v1105
        %v1107 = vmul.f32 %v1037, 1.442695
        %v1108 = vpow.pop %v1107
        %v1109 = vmul.f32 %v1038, 1.442695
        %v1110 = vpow.pop %v1109
        %v1111 = vmul.f32 %v1039, 1.442695
        %v1112 = vpow.pop %v1111
        %v1113 = vmul.f32 %v1040, 1.442695
        %v1114 = vpow.pop %v1113
        %v1115 = vmul.f32 %v1041, 1.442695
        %v1116 = vpow.pop %v1115
        %v1117 = vmul.f32 %v1042, 1.442695
        %v1118 = vpow.pop %v1117
        %v1119 = vmul.f32 %v1043, 1.442695
        %v1120 = vpow.pop %v1119
        %v1121 = vmul.f32 %v1044, 1.442695
        %v1122 = vpow.pop %v1121
        %v1123 = vmul.f32 %v1045, 1.442695
        %v1124 = vpow.pop %v1123
        %v1125 = vmul.f32 %v1046, 1.442695
        %v1126 = vpow.pop %v1125
        %v1127 = vmul.f32 %v1047, 1.442695
        %v1128 = vpow.pop %v1127
        %v1129 = vmul.f32 %v1048, 1.442695
        %v1130 = vpow.pop %v1129
        %v1131 = vmul.f32 %v1049, 1.442695
        %v1132 = vpow.pop %v1131
        %v1133 = vmul.f32 %v1050, 1.442695
        %v1134 = vpow.pop %v1133
        %v1135 = vmul.f32 %v1051, 1.442695
        %v1136 = vpow.pop %v1135
        %v1137 = vmul.f32 %v1052, 1.442695
        %v1138 = vpow.pop %v1137
        %v1139 = vmul.f32 %v1053, 1.442695
        %v1140 = vpow.pop %v1139
        %v1141 = vmul.f32 %v1054, 1.442695
        %v1142 = vpow.pop %v1141
        %v1143 = vmul.f32 %v1055, 1.442695
        %v1144 = vpow.pop %v1143
        %v1145 = vmul.f32 %v1056, 1.442695
        %v1146 = vpow.pop %v1145
        %v1147 = vmul.f32 %v1057, 1.442695
        %v1148 = vpow.pop %v1147
        %v1149 = vmul.f32 %v1058, 1.442695
        %v1150 = vpow.pop %v1149
        %v1151 = vmul.f32 %v1059, 1.442695
        %v1152 = vpow.pop %v1151
        %v1153 = vmul.f32 %v1060, 1.442695
        %v1154 = vpow.pop %v1153
        %v1155 = vmul.f32 %v1061, 1.442695
        %v1156 = vpow.pop %v1155
        %v1157 = vmul.f32 %v1062, 1.442695
        %v1158 = vpow.pop %v1157
        %v1159 = vmul.f32 %v1063, 1.442695
        %v1160 = vpow.pop %v1159
        %v1161 = vmul.f32 %v1064, 1.442695
        %v1162 = vpow.pop %v1161
        %v1163 = vmul.f32 %v1065, 1.442695
        %v1164 = vpow.pop %v1163
        %v1165 = vmul.f32 %v1066, 1.442695
        %v1166 = vpow.pop %v1165
        %v1167 = vmul.f32 %v1067, 1.442695
        %v1168 = vpow.pop %v1167
        %v1169 = vmul.f32 %v1068, 1.442695
        %v1170 = vpow.pop %v1169
        %v1171 = vmul.f32 %v1069, 1.442695
        %v1172 = vpow.pop %v1171
        %v1173 = vmul.f32 %v1070, 1.442695
        %v1174 = vpow.pop %v1173
        %v1175 = vmul.f32 %v1071, 1.442695
        %v1176 = vpow.pop %v1175
        %v1177 = vmul.f32 %v1072, 1.442695
        %v1178 = vpow.pop %v1177
        %v1179 = vmul.f32 %v1073, 1.442695
        %v1180 = vpow.pop %v1179
        %v1181 = vmul.f32 %v1074, 1.442695
        %v1182 = vpow.pop %v1181
        %v1183 = vmul.f32 %v1075, 1.442695
        %v1184 = vpow.pop %v1183
        %v1185 = vmul.f32 %v1076, 1.442695
        %v1186 = vpow.pop %v1185
        %v1187 = vmul.f32 %v1077, 1.442695
        %v1188 = vpow.pop %v1187
        %v1189 = vmul.f32 %v1078, 1.442695
        %v1190 = vpow.pop %v1189
        %v1191 = vmul.f32 %v1079, 1.442695
        %v1192 = vpow.pop %v1191
        %v1193 = vmul.f32 %v1080, 1.442695
        %v1194 = vpow.pop %v1193
        %v1195 = vmul.f32 %v1081, 1.442695
        %v1196 = vpow.pop %v1195
        %v1197 = vmul.f32 %v1082, 1.442695
        %v1198 = vpow.pop %v1197
        %v1199 = vmul.f32 %v1083, 1.442695
        %v1200 = vpow.pop %v1199
        %v1201 = vmul.f32 %v1084, 1.442695
        %v1202 = vpow.pop %v1201
        %v1203 = vmul.f32 %v1085, 1.442695
        %v1204 = vpow.pop %v1203
        %v1205 = vmul.f32 %v1086, 1.442695
        %v1206 = vpow.pop %v1205
        %v1207 = vmul.f32 %v1087, 1.442695
        %v1208 = vpow.pop %v1207
        %v1209 = vmul.f32 %v1088, 1.442695
        %v1210 = vpow.pop %v1209
        %v1211 = vmul.f32 %v1089, 1.442695
        %v1212 = vpow.pop %v1211
        %v1213 = vmul.f32 %v1090, 1.442695
        %v1214 = vpow.pop %v1213
        %v1215 = vmul.f32 %v1091, 1.442695
        %v1216 = vpow.pop %v1215
        %v1217 = vmul.f32 %v1092, 1.442695
        %v1218 = vpow.pop %v1217
        %v1219 = vmul.f32 %v1093, 1.442695
        %v1220 = vpow.pop %v1219
        %v1221 = vmul.f32 %v1094, 1.442695
        %v1222 = vpow.pop %v1221
        %v1223 = vadd.f32 %v1096, %v1100
        %v1224 = vadd.f32 %v1223, %v1104
        %v1225 = vadd.f32 %v1224, %v1108
        %v1226 = vadd.f32 %v1225, %v1112
        %v1227 = vadd.f32 %v1226, %v1116
        %v1228 = vadd.f32 %v1227, %v1120
        %v1229 = vadd.f32 %v1228, %v1124
        %v1230 = vadd.f32 %v1229, %v1128
        %v1231 = vadd.f32 %v1230, %v1132
        %v1232 = vadd.f32 %v1231, %v1136
        %v1233 = vadd.f32 %v1232, %v1140
        %v1234 = vadd.f32 %v1233, %v1144
        %v1235 = vadd.f32 %v1234, %v1148
        %v1236 = vadd.f32 %v1235, %v1152
        %v1237 = vadd.f32 %v1236, %v1156
        %v1238 = vadd.f32 %v1237, %v1160
        %v1239 = vadd.f32 %v1238, %v1164
        %v1240 = vadd.f32 %v1239, %v1168
        %v1241 = vadd.f32 %v1240, %v1172
        %v1242 = vadd.f32 %v1241, %v1176
        %v1243 = vadd.f32 %v1242, %v1180
        %v1244 = vadd.f32 %v1243, %v1184
        %v1245 = vadd.f32 %v1244, %v1188
        %v1246 = vadd.f32 %v1245, %v1192
        %v1247 = vadd.f32 %v1246, %v1196
        %v1248 = vadd.f32 %v1247, %v1200
        %v1249 = vadd.f32 %v1248, %v1204
        %v1250 = vadd.f32 %v1249, %v1208
        %v1251 = vadd.f32 %v1250, %v1212
        %v1252 = vadd.f32 %v1251, %v1216
        %v1253 = vadd.f32 %v1252, %v1220
        %v1254 = vrot.slane %v1253, 4
        %v1255 = vadd.f32 %v1253, %v1254
        %v1256 = vrot.slane %v1255, 2
        %v1257 = vadd.f32 %v1255, %v1256
        %v1258 = vrot.slane %v1257, 1
        %v1259 = vadd.f32 %v1257, %v1258
        %v1260 = vadd.f32 %v1098, %v1102
        %v1261 = vadd.f32 %v1260, %v1106
        %v1262 = vadd.f32 %v1261, %v1110
        %v1263 = vadd.f32 %v1262, %v1114
        %v1264 = vadd.f32 %v1263, %v1118
        %v1265 = vadd.f32 %v1264, %v1122
        %v1266 = vadd.f32 %v1265, %v1126
        %v1267 = vadd.f32 %v1266, %v1130
        %v1268 = vadd.f32 %v1267, %v1134
        %v1269 = vadd.f32 %v1268, %v1138
        %v1270 = vadd.f32 %v1269, %v1142
        %v1271 = vadd.f32 %v1270, %v1146
        %v1272 = vadd.f32 %v1271, %v1150
        %v1273 = vadd.f32 %v1272, %v1154
        %v1274 = vadd.f32 %v1273, %v1158
        %v1275 = vadd.f32 %v1274, %v1162
        %v1276 = vadd.f32 %v1275, %v1166
        %v1277 = vadd.f32 %v1276, %v1170
        %v1278 = vadd.f32 %v1277, %v1174
        %v1279 = vadd.f32 %v1278, %v1178
        %v1280 = vadd.f32 %v1279, %v1182
        %v1281 = vadd.f32 %v1280, %v1186
        %v1282 = vadd.f32 %v1281, %v1190
        %v1283 = vadd.f32 %v1282, %v1194
        %v1284 = vadd.f32 %v1283, %v1198
        %v1285 = vadd.f32 %v1284, %v1202
        %v1286 = vadd.f32 %v1285, %v1206
        %v1287 = vadd.f32 %v1286, %v1210
        %v1288 = vadd.f32 %v1287, %v1214
        %v1289 = vadd.f32 %v1288, %v1218
        %v1290 = vadd.f32 %v1289, %v1222
        %v1291 = vrot.slane %v1290, 4
        %v1292 = vadd.f32 %v1290, %v1291
        %v1293 = vrot.slane %v1292, 2
        %v1294 = vadd.f32 %v1292, %v1293
        %v1295 = vrot.slane %v1294, 1
        %v1296 = vadd.f32 %v1294, %v1295
        %v1297 = vrcp.pop %v1259
        %v1298 = vrcp.pop %v1296
        %v1299 = vmul.f32 %v1096, %v1297
        %v1300 = vmul.f32 %v1098, %v1298
        %v1301 = vmul.f32 %v1100, %v1297
        %v1302 = vmul.f32 %v1102, %v1298
        %v1303 = vmul.f32 %v1104, %v1297
        %v1304 = vmul.f32 %v1106, %v1298
        %v1305 = vmul.f32 %v1108, %v1297
        %v1306 = vmul.f32 %v1110, %v1298
        %v1307 = vmul.f32 %v1112, %v1297
        %v1308 = vmul.f32 %v1114, %v1298
        %v1309 = vmul.f32 %v1116, %v1297
        %v1310 = vmul.f32 %v1118, %v1298
        %v1311 = vmul.f32 %v1120, %v1297
        %v1312 = vmul.f32 %v1122, %v1298
        %v1313 = vmul.f32 %v1124, %v1297
        %v1314 = vmul.f32 %v1126, %v1298
        %v1315 = vmul.f32 %v1128, %v1297
        %v1316 = vmul.f32 %v1130, %v1298
        %v1317 = vmul.f32 %v1132, %v1297
        %v1318 = vmul.f32 %v1134, %v1298
        %v1319 = vmul.f32 %v1136, %v1297
        %v1320 = vmul.f32 %v1138, %v1298
        %v1321 = vmul.f32 %v1140, %v1297
        %v1322 = vmul.f32 %v1142, %v1298
        %v1323 = vmul.f32 %v1144, %v1297
        %v1324 = vmul.f32 %v1146, %v1298
        %v1325 = vmul.f32 %v1148, %v1297
        %v1326 = vmul.f32 %v1150, %v1298
        %v1327 = vmul.f32 %v1152, %v1297
        %v1328 = vmul.f32 %v1154, %v1298
        %v1329 = vmul.f32 %v1156, %v1297
        %v1330 = vmul.f32 %v1158, %v1298
        %v1331 = vmul.f32 %v1160, %v1297
        %v1332 = vmul.f32 %v1162, %v1298
        %v1333 = vmul.f32 %v1164, %v1297
        %v1334 = vmul.f32 %v1166, %v1298
        %v1335 = vmul.f32 %v1168, %v1297
        %v1336 = vmul.f32 %v1170, %v1298
        %v1337 = vmul.f32 %v1172, %v1297
        %v1338 = vmul.f32 %v1174, %v1298
        %v1339 = vmul.f32 %v1176, %v1297
        %v1340 = vmul.f32 %v1178, %v1298
        %v1341 = vmul.f32 %v1180, %v1297
        %v1342 = vmul.f32 %v1182, %v1298
        %v1343 = vmul.f32 %v1184, %v1297
        %v1344 = vmul.f32 %v1186, %v1298
        %v1345 = vmul.f32 %v1188, %v1297
        %v1346 = vmul.f32 %v1190, %v1298
        %v1347 = vmul.f32 %v1192, %v1297
        %v1348 = vmul.f32 %v1194, %v1298
        %v1349 = vmul.f32 %v1196, %v1297
        %v1350 = vmul.f32 %v1198, %v1298
        %v1351 = vmul.f32 %v1200, %v1297
        %v1352 = vmul.f32 %v1202, %v1298
        %v1353 = vmul.f32 %v1204, %v1297
        %v1354 = vmul.f32 %v1206, %v1298
        %v1355 = vmul.f32 %v1208, %v1297
        %v1356 = vmul.f32 %v1210, %v1298
        %v1357 = vmul.f32 %v1212, %v1297
        %v1358 = vmul.f32 %v1214, %v1298
        %v1359 = vmul.f32 %v1216, %v1297
        %v1360 = vmul.f32 %v1218, %v1298
        %v1361 = vmul.f32 %v1220, %v1297
        %v1362 = vmul.f32 %v1222, %v1298
        %v1363 = vpack.c.bf16 %v1301, %v1299
        %v1364 = vpack.c.bf16 %v1302, %v1300
        %v1365 = vpack.c.bf16 %v1305, %v1303
        %v1366 = vpack.c.bf16 %v1306, %v1304
        %v1367 = vpack.c.bf16 %v1309, %v1307
        %v1368 = vpack.c.bf16 %v1310, %v1308
        %v1369 = vpack.c.bf16 %v1313, %v1311
        %v1370 = vpack.c.bf16 %v1314, %v1312
        %v1371 = vpack.c.bf16 %v1317, %v1315
        %v1372 = vpack.c.bf16 %v1318, %v1316
        %v1373 = vpack.c.bf16 %v1321, %v1319
        %v1374 = vpack.c.bf16 %v1322, %v1320
        %v1375 = vpack.c.bf16 %v1325, %v1323
        %v1376 = vpack.c.bf16 %v1326, %v1324
        %v1377 = vpack.c.bf16 %v1329, %v1327
        %v1378 = vpack.c.bf16 %v1330, %v1328
        %v1379 = vpack.c.bf16 %v1333, %v1331
        %v1380 = vpack.c.bf16 %v1334, %v1332
        %v1381 = vpack.c.bf16 %v1337, %v1335
        %v1382 = vpack.c.bf16 %v1338, %v1336
        %v1383 = vpack.c.bf16 %v1341, %v1339
        %v1384 = vpack.c.bf16 %v1342, %v1340
        %v1385 = vpack.c.bf16 %v1345, %v1343
        %v1386 = vpack.c.bf16 %v1346, %v1344
        %v1387 = vpack.c.bf16 %v1349, %v1347
        %v1388 = vpack.c.bf16 %v1350, %v1348
        %v1389 = vpack.c.bf16 %v1353, %v1351
        %v1390 = vpack.c.bf16 %v1354, %v1352
        %v1391 = vpack.c.bf16 %v1357, %v1355
        %v1392 = vpack.c.bf16 %v1358, %v1356
        %v1393 = vpack.c.bf16 %v1361, %v1359
        %v1394 = vpack.c.bf16 %v1362, %v1360
        %1395 = vmatprep.subr.bf16.mxu0 %v1364
        %1396 = vmatpush1.bf16.msra.mxu0 %v1363
        %1397 = vmatprep.subr.bf16.mxu0 %v1366
        %1398 = vmatpush1.bf16.msra.mxu0 %v1365
        %1399 = vmatprep.subr.bf16.mxu0 %v1368
        %1400 = vmatpush1.bf16.msra.mxu0 %v1367
        %1401 = vmatprep.subr.bf16.mxu0 %v1370
        %1402 = vmatpush1.bf16.msra.mxu0 %v1369
        %1403 = vmatprep.subr.bf16.mxu0 %v1372
        %1404 = vmatpush1.bf16.msra.mxu0 %v1371
        %1405 = vmatprep.subr.bf16.mxu0 %v1374
        %1406 = vmatpush1.bf16.msra.mxu0 %v1373
        %1407 = vmatprep.subr.bf16.mxu0 %v1376
        %1408 = vmatpush1.bf16.msra.mxu0 %v1375
        %1409 = vmatprep.subr.bf16.mxu0 %v1378
        %1410 = vmatpush1.bf16.msra.mxu0 %v1377
        %1411 = vmatprep.subr.bf16.mxu0 %v1380
        %1412 = vmatpush1.bf16.msra.mxu0 %v1379
        %1413 = vmatprep.subr.bf16.mxu0 %v1382
        %1414 = vmatpush1.bf16.msra.mxu0 %v1381
        %1415 = vmatprep.subr.bf16.mxu0 %v1384
        %1416 = vmatpush1.bf16.msra.mxu0 %v1383
        %1417 = vmatprep.subr.bf16.mxu0 %v1386
        %1418 = vmatpush1.bf16.msra.mxu0 %v1385
        %1419 = vmatprep.subr.bf16.mxu0 %v1388
        %1420 = vmatpush1.bf16.msra.mxu0 %v1387
        %1421 = vmatprep.subr.bf16.mxu0 %v1390
        %1422 = vmatpush1.bf16.msra.mxu0 %v1389
        %1423 = vmatprep.subr.bf16.mxu0 %v1392
        %1424 = vmatpush1.bf16.msra.mxu0 %v1391
        %1425 = vmatprep.subr.bf16.mxu0 %v1394
        %1426 = vmatpush1.bf16.msra.mxu0 %v1393
        %1427 = vmatprep.mubr.bf16.mxu0 %v709
        %1428 = vmatmul.mubr.bf16.gmra.mrb[0].mxu0 %v708
        %v1429 = vpop.f32.mrb[0].mxu0
        %v1430 = vadd.f32 0.0, %v1429
        %v1431 = vpop.f32.mrb[0].mxu0
        %v1432 = vadd.f32 0.0, %v1431
        %v1433 = vpop.f32.mrb[0].mxu0
        %v1434 = vpop.f32.mrb[0].mxu0
        %1435 = vdwg.mxu0
        %1436 = vst [vmem:[#allocation4] sm:$0xf] %v1430
        %1437 = vst [vmem:[#allocation4 + $0x8] sm:$0xf] %v1432
        %v1438 = vld [vmem:[#allocation2] sm:$0xff]
        %v1439 = vld [vmem:[#allocation2 + $0x8] sm:$0xff]
        %v1440 = vld [vmem:[#allocation2 + $0x10] sm:$0xff]
        %v1441 = vld [vmem:[#allocation2 + $0x18] sm:$0xff]
        %v1442 = vld [vmem:[#allocation2 + $0x20] sm:$0xff]
        %v1443 = vld [vmem:[#allocation2 + $0x28] sm:$0xff]
        %v1444 = vld [vmem:[#allocation2 + $0x30] sm:$0xff]
        %v1445 = vld [vmem:[#allocation2 + $0x38] sm:$0xff]
        %v1446 = vld [vmem:[#allocation2 + $0x40] sm:$0xff]
        %v1447 = vld [vmem:[#allocation2 + $0x48] sm:$0xff]
        %v1448 = vld [vmem:[#allocation2 + $0x50] sm:$0xff]
        %v1449 = vld [vmem:[#allocation2 + $0x58] sm:$0xff]
        %v1450 = vld [vmem:[#allocation2 + $0x60] sm:$0xff]
        %v1451 = vld [vmem:[#allocation2 + $0x68] sm:$0xff]
        %v1452 = vld [vmem:[#allocation2 + $0x70] sm:$0xff]
        %v1453 = vld [vmem:[#allocation2 + $0x78] sm:$0xff]
        %v1454 = vld [vmem:[#allocation3] sm:$0xc]
        %v1455 = vld [vmem:[#allocation3 + $0x8] sm:$0xc]
        %1472 = vrot.lane.b32.xlu0 %v1438, 124
        %v1473 = vpop.permute.xlu0 %1472
        %1474 = vrot.lane.b32.xlu0 %v1439, 124
        %v1475 = vpop.permute.xlu0 %1474
        %1476 = vrot.lane.b32.xlu0 %v1440, 124
        %v1477 = vpop.permute.xlu0 %1476
        %1478 = vrot.lane.b32.xlu0 %v1441, 124
        %v1479 = vpop.permute.xlu0 %1478
        %1480 = vrot.lane.b32.xlu0 %v1442, 124
        %v1481 = vpop.permute.xlu0 %1480
        %1482 = vrot.lane.b32.xlu0 %v1443, 124
        %v1483 = vpop.permute.xlu0 %1482
        %1484 = vrot.lane.b32.xlu0 %v1444, 124
        %v1485 = vpop.permute.xlu0 %1484
        %1486 = vrot.lane.b32.xlu0 %v1445, 124
        %v1487 = vpop.permute.xlu0 %1486
        %1488 = vrot.lane.b32.xlu0 %v1446, 124
        %v1489 = vpop.permute.xlu0 %1488
        %1490 = vrot.lane.b32.xlu0 %v1447, 124
        %v1491 = vpop.permute.xlu0 %1490
        %1492 = vrot.lane.b32.xlu0 %v1448, 124
        %v1493 = vpop.permute.xlu0 %1492
        %1494 = vrot.lane.b32.xlu0 %v1449, 124
        %v1495 = vpop.permute.xlu0 %1494
        %1496 = vrot.lane.b32.xlu0 %v1450, 124
        %v1497 = vpop.permute.xlu0 %1496
        %1498 = vrot.lane.b32.xlu0 %v1451, 124
        %v1499 = vpop.permute.xlu0 %1498
        %1500 = vrot.lane.b32.xlu0 %v1452, 124
        %v1501 = vpop.permute.xlu0 %1500
        %1502 = vrot.lane.b32.xlu0 %v1453, 124
        %v1503 = vpop.permute.xlu0 %1502
        %v1506 = vrot.slane %v688, 2
        %v1507 = vrot.slane %v689, 2
        %v1509 = vsel %vm621, %v1473, 0
        %v1512 = vsel %vm621, %v1475, 0
        %v1515 = vsel %vm621, %v1477, 0
        %v1518 = vsel %vm621, %v1479, 0
        %v1521 = vsel %vm621, %v1481, 0
        %v1524 = vsel %vm621, %v1483, 0
        %v1527 = vsel %vm621, %v1485, 0
        %v1530 = vsel %vm621, %v1487, 0
        %v1533 = vsel %vm621, %v1489, 0
        %v1536 = vsel %vm621, %v1491, 0
        %v1539 = vsel %vm621, %v1493, 0
        %v1542 = vsel %vm621, %v1495, 0
        %v1545 = vsel %vm621, %v1497, 0
        %v1548 = vsel %vm621, %v1499, 0
        %v1551 = vsel %vm621, %v1501, 0
        %v1554 = vsel %vm621, %v1503, 0
        %v1557 = vsel %vm628, %v1506, 0
        %v1560 = vsel %vm628, %v1507, 0
        %1562 = vmatprep.subr.bf16.mxu0 %v1560
        %1563 = vmatpush1.bf16.msra.mxu0 %v1557
        %1564 = vmatprep.subr.bf16.mxu0 0
        %1565 = vmatpush1.bf16.msra.mxu0 0
        %1566 = vmatprep.subr.bf16.mxu0 0
        %1567 = vmatpush1.bf16.msra.mxu0 0
        %1568 = vmatprep.subr.bf16.mxu0 0
        %1569 = vmatpush1.bf16.msra.mxu0 0
        %1570 = vmatprep.subr.bf16.mxu0 0
        %1571 = vmatpush1.bf16.msra.mxu0 0
        %1572 = vmatprep.subr.bf16.mxu0 0
        %1573 = vmatpush1.bf16.msra.mxu0 0
        %1574 = vmatprep.subr.bf16.mxu0 0
        %1575 = vmatpush1.bf16.msra.mxu0 0
        %1576 = vmatprep.subr.bf16.mxu0 0
        %1577 = vmatpush1.bf16.msra.mxu0 0
        %1578 = vmatprep.subr.bf16.mxu0 0
        %1579 = vmatpush1.bf16.msra.mxu0 0
        %1580 = vmatprep.subr.bf16.mxu0 0
        %1581 = vmatpush1.bf16.msra.mxu0 0
        %1582 = vmatprep.subr.bf16.mxu0 0
        %1583 = vmatpush1.bf16.msra.mxu0 0
        %1584 = vmatprep.subr.bf16.mxu0 0
        %1585 = vmatpush1.bf16.msra.mxu0 0
        %1586 = vmatprep.subr.bf16.mxu0 0
        %1587 = vmatpush1.bf16.msra.mxu0 0
        %1588 = vmatprep.subr.bf16.mxu0 0
        %1589 = vmatpush1.bf16.msra.mxu0 0
        %1590 = vmatprep.subr.bf16.mxu0 0
        %1591 = vmatpush1.bf16.msra.mxu0 0
        %1592 = vmatprep.subr.bf16.mxu0 0
        %1593 = vmatpush1.bf16.msra.mxu0 0
        %1594 = vmatprep.mubr.bf16.mxu0 0
        %1595 = vmatmul.mubr.bf16.gmra.mrb[0].mxu0 %v1509
        %v1596 = vpop.f32.mrb[0].mxu0
        %v1597 = vadd.f32 0.0, %v1596
        %v1598 = vpop.f32.mrb[0].mxu0
        %v1599 = vadd.f32 0.0, %v1598
        %v1600 = vpop.f32.mrb[0].mxu0
        %v1601 = vadd.f32 0.0, %v1600
        %v1602 = vpop.f32.mrb[0].mxu0
        %v1603 = vadd.f32 0.0, %v1602
        %1604 = vmatprep.mubr.bf16.mxu0 0
        %1605 = vmatmul.mubr.bf16.gmra.mrb[0].mxu0 %v1512
        %v1606 = vpop.f32.mrb[0].mxu0
        %v1607 = vadd.f32 0.0, %v1606
        %v1608 = vpop.f32.mrb[0].mxu0
        %v1609 = vadd.f32 0.0, %v1608
        %v1610 = vpop.f32.mrb[0].mxu0
        %v1611 = vadd.f32 0.0, %v1610
        %v1612 = vpop.f32.mrb[0].mxu0
        %v1613 = vadd.f32 0.0, %v1612
        %1614 = vmatprep.mubr.bf16.mxu0 0
        %1615 = vmatmul.mubr.bf16.gmra.mrb[0].mxu0 %v1515
        %v1616 = vpop.f32.mrb[0].mxu0
        %v1617 = vadd.f32 0.0, %v1616
        %v1618 = vpop.f32.mrb[0].mxu0
        %v1619 = vadd.f32 0.0, %v1618
        %v1620 = vpop.f32.mrb[0].mxu0
        %v1621 = vadd.f32 0.0, %v1620
        %v1622 = vpop.f32.mrb[0].mxu0
        %v1623 = vadd.f32 0.0, %v1622
        %1624 = vmatprep.mubr.bf16.mxu0 0
        %1625 = vmatmul.mubr.bf16.gmra.mrb[0].mxu0 %v1518
        %v1626 = vpop.f32.mrb[0].mxu0
        %v1627 = vadd.f32 0.0, %v1626
        %v1628 = vpop.f32.mrb[0].mxu0
        %v1629 = vadd.f32 0.0, %v1628
        %v1630 = vpop.f32.mrb[0].mxu0
        %v1631 = vadd.f32 0.0, %v1630
        %v1632 = vpop.f32.mrb[0].mxu0
        %v1633 = vadd.f32 0.0, %v1632
        %1634 = vmatprep.mubr.bf16.mxu0 0
        %1635 = vmatmul.mubr.bf16.gmra.mrb[0].mxu0 %v1521
        %v1636 = vpop.f32.mrb[0].mxu0
        %v1637 = vadd.f32 0.0, %v1636
        %v1638 = vpop.f32.mrb[0].mxu0
        %v1639 = vadd.f32 0.0, %v1638
        %v1640 = vpop.f32.mrb[0].mxu0
        %v1641 = vadd.f32 0.0, %v1640
        %v1642 = vpop.f32.mrb[0].mxu0
        %v1643 = vadd.f32 0.0, %v1642
        %1644 = vmatprep.mubr.bf16.mxu0 0
        %1645 = vmatmul.mubr.bf16.gmra.mrb[0].mxu0 %v1524
        %v1646 = vpop.f32.mrb[0].mxu0
        %v1647 = vadd.f32 0.0, %v1646
        %v1648 = vpop.f32.mrb[0].mxu0
        %v1649 = vadd.f32 0.0, %v1648
        %v1650 = vpop.f32.mrb[0].mxu0
        %v1651 = vadd.f32 0.0, %v1650
        %v1652 = vpop.f32.mrb[0].mxu0
        %v1653 = vadd.f32 0.0, %v1652
        %1654 = vmatprep.mubr.bf16.mxu0 0
        %1655 = vmatmul.mubr.bf16.gmra.mrb[0].mxu0 %v1527
        %v1656 = vpop.f32.mrb[0].mxu0
        %v1657 = vadd.f32 0.0, %v1656
        %v1658 = vpop.f32.mrb[0].mxu0
        %v1659 = vadd.f32 0.0, %v1658
        %v1660 = vpop.f32.mrb[0].mxu0
        %v1661 = vadd.f32 0.0, %v1660
        %v1662 = vpop.f32.mrb[0].mxu0
        %v1663 = vadd.f32 0.0, %v1662
        %1664 = vmatprep.mubr.bf16.mxu0 0
        %1665 = vmatmul.mubr.bf16.gmra.mrb[0].mxu0 %v1530
        %v1666 = vpop.f32.mrb[0].mxu0
        %v1667 = vadd.f32 0.0, %v1666
        %v1668 = vpop.f32.mrb[0].mxu0
        %v1669 = vadd.f32 0.0, %v1668
        %v1670 = vpop.f32.mrb[0].mxu0
        %v1671 = vadd.f32 0.0, %v1670
        %v1672 = vpop.f32.mrb[0].mxu0
        %v1673 = vadd.f32 0.0, %v1672
        %1674 = vmatprep.mubr.bf16.mxu0 0
        %1675 = vmatmul.mubr.bf16.gmra.mrb[0].mxu0 %v1533
        %v1676 = vpop.f32.mrb[0].mxu0
        %v1677 = vadd.f32 0.0, %v1676
        %v1678 = vpop.f32.mrb[0].mxu0
        %v1679 = vadd.f32 0.0, %v1678
        %v1680 = vpop.f32.mrb[0].mxu0
        %v1681 = vadd.f32 0.0, %v1680
        %v1682 = vpop.f32.mrb[0].mxu0
        %v1683 = vadd.f32 0.0, %v1682
        %1684 = vmatprep.mubr.bf16.mxu0 0
        %1685 = vmatmul.mubr.bf16.gmra.mrb[0].mxu0 %v1536
        %v1686 = vpop.f32.mrb[0].mxu0
        %v1687 = vadd.f32 0.0, %v1686
        %v1688 = vpop.f32.mrb[0].mxu0
        %v1689 = vadd.f32 0.0, %v1688
        %v1690 = vpop.f32.mrb[0].mxu0
        %v1691 = vadd.f32 0.0, %v1690
        %v1692 = vpop.f32.mrb[0].mxu0
        %v1693 = vadd.f32 0.0, %v1692
        %1694 = vmatprep.mubr.bf16.mxu0 0
        %1695 = vmatmul.mubr.bf16.gmra.mrb[0].mxu0 %v1539
        %v1696 = vpop.f32.mrb[0].mxu0
        %v1697 = vadd.f32 0.0, %v1696
        %v1698 = vpop.f32.mrb[0].mxu0
        %v1699 = vadd.f32 0.0, %v1698
        %v1700 = vpop.f32.mrb[0].mxu0
        %v1701 = vadd.f32 0.0, %v1700
        %v1702 = vpop.f32.mrb[0].mxu0
        %v1703 = vadd.f32 0.0, %v1702
        %1704 = vmatprep.mubr.bf16.mxu0 0
        %1705 = vmatmul.mubr.bf16.gmra.mrb[0].mxu0 %v1542
        %v1706 = vpop.f32.mrb[0].mxu0
        %v1707 = vadd.f32 0.0, %v1706
        %v1708 = vpop.f32.mrb[0].mxu0
        %v1709 = vadd.f32 0.0, %v1708
        %v1710 = vpop.f32.mrb[0].mxu0
        %v1711 = vadd.f32 0.0, %v1710
        %v1712 = vpop.f32.mrb[0].mxu0
        %v1713 = vadd.f32 0.0, %v1712
        %1714 = vmatprep.mubr.bf16.mxu0 0
        %1715 = vmatmul.mubr.bf16.gmra.mrb[0].mxu0 %v1545
        %v1716 = vpop.f32.mrb[0].mxu0
        %v1717 = vadd.f32 0.0, %v1716
        %v1718 = vpop.f32.mrb[0].mxu0
        %v1719 = vadd.f32 0.0, %v1718
        %v1720 = vpop.f32.mrb[0].mxu0
        %v1721 = vadd.f32 0.0, %v1720
        %v1722 = vpop.f32.mrb[0].mxu0
        %v1723 = vadd.f32 0.0, %v1722
        %1724 = vmatprep.mubr.bf16.mxu0 0
        %1725 = vmatmul.mubr.bf16.gmra.mrb[0].mxu0 %v1548
        %v1726 = vpop.f32.mrb[0].mxu0
        %v1727 = vadd.f32 0.0, %v1726
        %v1728 = vpop.f32.mrb[0].mxu0
        %v1729 = vadd.f32 0.0, %v1728
        %v1730 = vpop.f32.mrb[0].mxu0
        %v1731 = vadd.f32 0.0, %v1730
        %v1732 = vpop.f32.mrb[0].mxu0
        %v1733 = vadd.f32 0.0, %v1732
        %1734 = vmatprep.mubr.bf16.mxu0 0
        %1735 = vmatmul.mubr.bf16.gmra.mrb[0].mxu0 %v1551
        %v1736 = vpop.f32.mrb[0].mxu0
        %v1737 = vadd.f32 0.0, %v1736
        %v1738 = vpop.f32.mrb[0].mxu0
        %v1739 = vadd.f32 0.0, %v1738
        %v1740 = vpop.f32.mrb[0].mxu0
        %v1741 = vadd.f32 0.0, %v1740
        %v1742 = vpop.f32.mrb[0].mxu0
        %v1743 = vadd.f32 0.0, %v1742
        %1744 = vmatprep.mubr.bf16.mxu0 0
        %1745 = vmatmul.mubr.bf16.gmra.mrb[0].mxu0 %v1554
        %v1746 = vpop.f32.mrb[0].mxu0
        %v1747 = vadd.f32 0.0, %v1746
        %v1748 = vpop.f32.mrb[0].mxu0
        %v1749 = vadd.f32 0.0, %v1748
        %v1750 = vpop.f32.mrb[0].mxu0
        %v1751 = vadd.f32 0.0, %v1750
        %v1752 = vpop.f32.mrb[0].mxu0
        %v1753 = vadd.f32 0.0, %v1752
        %1754 = vdwg.mxu0
        %v1755 = vmax.f32 %v1597, %v1607
        %v1756 = vmax.f32 %v1601, %v1611
        %v1757 = vmax.f32 %v1755, %v1617
        %v1758 = vmax.f32 %v1756, %v1621
        %v1759 = vmax.f32 %v1757, %v1627
        %v1760 = vmax.f32 %v1758, %v1631
        %v1761 = vmax.f32 %v1759, %v1637
        %v1762 = vmax.f32 %v1760, %v1641
        %v1763 = vmax.f32 %v1761, %v1647
        %v1764 = vmax.f32 %v1762, %v1651
        %v1765 = vmax.f32 %v1763, %v1657
        %v1766 = vmax.f32 %v1764, %v1661
        %v1767 = vmax.f32 %v1765, %v1667
        %v1768 = vmax.f32 %v1766, %v1671
        %v1769 = vmax.f32 %v1767, %v1677
        %v1770 = vmax.f32 %v1768, %v1681
        %v1771 = vmax.f32 %v1769, %v1687
        %v1772 = vmax.f32 %v1770, %v1691
        %v1773 = vmax.f32 %v1771, %v1697
        %v1774 = vmax.f32 %v1772, %v1701
        %v1775 = vmax.f32 %v1773, %v1707
        %v1776 = vmax.f32 %v1774, %v1711
        %v1777 = vmax.f32 %v1775, %v1717
        %v1778 = vmax.f32 %v1776, %v1721
        %v1779 = vmax.f32 %v1777, %v1727
        %v1780 = vmax.f32 %v1778, %v1731
        %v1781 = vmax.f32 %v1779, %v1737
        %v1782 = vmax.f32 %v1780, %v1741
        %v1783 = vmax.f32 %v1781, %v1747
        %v1784 = vmax.f32 %v1782, %v1751
        %v1785 = vmax.f32 %v1783, %v1784
        %v1786 = vrot.slane %v1785, 4
        %v1787 = vmax.f32 %v1785, %v1786
        %v1788 = vrot.slane %v1787, 2
        %v1789 = vmax.f32 %v1787, %v1788
        %v1790 = vrot.slane %v1789, 1
        %v1791 = vmax.f32 %v1789, %v1790
        %v1792 = vmax.f32 %v1599, %v1609
        %v1793 = vmax.f32 %v1603, %v1613
        %v1794 = vmax.f32 %v1792, %v1619
        %v1795 = vmax.f32 %v1793, %v1623
        %v1796 = vmax.f32 %v1794, %v1629
        %v1797 = vmax.f32 %v1795, %v1633
        %v1798 = vmax.f32 %v1796, %v1639
        %v1799 = vmax.f32 %v1797, %v1643
        %v1800 = vmax.f32 %v1798, %v1649
        %v1801 = vmax.f32 %v1799, %v1653
        %v1802 = vmax.f32 %v1800, %v1659
        %v1803 = vmax.f32 %v1801, %v1663
        %v1804 = vmax.f32 %v1802, %v1669
        %v1805 = vmax.f32 %v1803, %v1673
        %v1806 = vmax.f32 %v1804, %v1679
        %v1807 = vmax.f32 %v1805, %v1683
        %v1808 = vmax.f32 %v1806, %v1689
        %v1809 = vmax.f32 %v1807, %v1693
        %v1810 = vmax.f32 %v1808, %v1699
        %v1811 = vmax.f32 %v1809, %v1703
        %v1812 = vmax.f32 %v1810, %v1709
        %v1813 = vmax.f32 %v1811, %v1713
        %v1814 = vmax.f32 %v1812, %v1719
        %v1815 = vmax.f32 %v1813, %v1723
        %v1816 = vmax.f32 %v1814, %v1729
        %v1817 = vmax.f32 %v1815, %v1733
        %v1818 = vmax.f32 %v1816, %v1739
        %v1819 = vmax.f32 %v1817, %v1743
        %v1820 = vmax.f32 %v1818, %v1749
        %v1821 = vmax.f32 %v1819, %v1753
        %v1822 = vmax.f32 %v1820, %v1821
        %v1823 = vrot.slane %v1822, 4
        %v1824 = vmax.f32 %v1822, %v1823
        %v1825 = vrot.slane %v1824, 2
        %v1826 = vmax.f32 %v1824, %v1825
        %v1827 = vrot.slane %v1826, 1
        %v1828 = vmax.f32 %v1826, %v1827
        %v1829 = vsub.f32 %v1597, %v1791
        %v1830 = vsub.f32 %v1599, %v1828
        %v1831 = vsub.f32 %v1601, %v1791
        %v1832 = vsub.f32 %v1603, %v1828
        %v1833 = vsub.f32 %v1607, %v1791
        %v1834 = vsub.f32 %v1609, %v1828
        %v1835 = vsub.f32 %v1611, %v1791
        %v1836 = vsub.f32 %v1613, %v1828
        %v1837 = vsub.f32 %v1617, %v1791
        %v1838 = vsub.f32 %v1619, %v1828
        %v1839 = vsub.f32 %v1621, %v1791
        %v1840 = vsub.f32 %v1623, %v1828
        %v1841 = vsub.f32 %v1627, %v1791
        %v1842 = vsub.f32 %v1629, %v1828
        %v1843 = vsub.f32 %v1631, %v1791
        %v1844 = vsub.f32 %v1633, %v1828
        %v1845 = vsub.f32 %v1637, %v1791
        %v1846 = vsub.f32 %v1639, %v1828
        %v1847 = vsub.f32 %v1641, %v1791
        %v1848 = vsub.f32 %v1643, %v1828
        %v1849 = vsub.f32 %v1647, %v1791
        %v1850 = vsub.f32 %v1649, %v1828
        %v1851 = vsub.f32 %v1651, %v1791
        %v1852 = vsub.f32 %v1653, %v1828
        %v1853 = vsub.f32 %v1657, %v1791
        %v1854 = vsub.f32 %v1659, %v1828
        %v1855 = vsub.f32 %v1661, %v1791
        %v1856 = vsub.f32 %v1663, %v1828
        %v1857 = vsub.f32 %v1667, %v1791
        %v1858 = vsub.f32 %v1669, %v1828
        %v1859 = vsub.f32 %v1671, %v1791
        %v1860 = vsub.f32 %v1673, %v1828
        %v1861 = vsub.f32 %v1677, %v1791
        %v1862 = vsub.f32 %v1679, %v1828
        %v1863 = vsub.f32 %v1681, %v1791
        %v1864 = vsub.f32 %v1683, %v1828
        %v1865 = vsub.f32 %v1687, %v1791
        %v1866 = vsub.f32 %v1689, %v1828
        %v1867 = vsub.f32 %v1691, %v1791
        %v1868 = vsub.f32 %v1693, %v1828
        %v1869 = vsub.f32 %v1697, %v1791
        %v1870 = vsub.f32 %v1699, %v1828
        %v1871 = vsub.f32 %v1701, %v1791
        %v1872 = vsub.f32 %v1703, %v1828
        %v1873 = vsub.f32 %v1707, %v1791
        %v1874 = vsub.f32 %v1709, %v1828
        %v1875 = vsub.f32 %v1711, %v1791
        %v1876 = vsub.f32 %v1713, %v1828
        %v1877 = vsub.f32 %v1717, %v1791
        %v1878 = vsub.f32 %v1719, %v1828
        %v1879 = vsub.f32 %v1721, %v1791
        %v1880 = vsub.f32 %v1723, %v1828
        %v1881 = vsub.f32 %v1727, %v1791
        %v1882 = vsub.f32 %v1729, %v1828
        %v1883 = vsub.f32 %v1731, %v1791
        %v1884 = vsub.f32 %v1733, %v1828
        %v1885 = vsub.f32 %v1737, %v1791
        %v1886 = vsub.f32 %v1739, %v1828
        %v1887 = vsub.f32 %v1741, %v1791
        %v1888 = vsub.f32 %v1743, %v1828
        %v1889 = vsub.f32 %v1747, %v1791
        %v1890 = vsub.f32 %v1749, %v1828
        %v1891 = vsub.f32 %v1751, %v1791
        %v1892 = vsub.f32 %v1753, %v1828
        %v1893 = vmul.f32 %v1829, 1.442695
        %v1894 = vpow.pop %v1893
        %v1895 = vmul.f32 %v1830, 1.442695
        %v1896 = vpow.pop %v1895
        %v1897 = vmul.f32 %v1831, 1.442695
        %v1898 = vpow.pop %v1897
        %v1899 = vmul.f32 %v1832, 1.442695
        %v1900 = vpow.pop %v1899
        %v1901 = vmul.f32 %v1833, 1.442695
        %v1902 = vpow.pop %v1901
        %v1903 = vmul.f32 %v1834, 1.442695
        %v1904 = vpow.pop %v1903
        %v1905 = vmul.f32 %v1835, 1.442695
        %v1906 = vpow.pop %v1905
        %v1907 = vmul.f32 %v1836, 1.442695
        %v1908 = vpow.pop %v1907
        %v1909 = vmul.f32 %v1837, 1.442695
        %v1910 = vpow.pop %v1909
        %v1911 = vmul.f32 %v1838, 1.442695
        %v1912 = vpow.pop %v1911
        %v1913 = vmul.f32 %v1839, 1.442695
        %v1914 = vpow.pop %v1913
        %v1915 = vmul.f32 %v1840, 1.442695
        %v1916 = vpow.pop %v1915
        %v1917 = vmul.f32 %v1841, 1.442695
        %v1918 = vpow.pop %v1917
        %v1919 = vmul.f32 %v1842, 1.442695
        %v1920 = vpow.pop %v1919
        %v1921 = vmul.f32 %v1843, 1.442695
        %v1922 = vpow.pop %v1921
        %v1923 = vmul.f32 %v1844, 1.442695
        %v1924 = vpow.pop %v1923
        %v1925 = vmul.f32 %v1845, 1.442695
        %v1926 = vpow.pop %v1925
        %v1927 = vmul.f32 %v1846, 1.442695
        %v1928 = vpow.pop %v1927
        %v1929 = vmul.f32 %v1847, 1.442695
        %v1930 = vpow.pop %v1929
        %v1931 = vmul.f32 %v1848, 1.442695
        %v1932 = vpow.pop %v1931
        %v1933 = vmul.f32 %v1849, 1.442695
        %v1934 = vpow.pop %v1933
        %v1935 = vmul.f32 %v1850, 1.442695
        %v1936 = vpow.pop %v1935
        %v1937 = vmul.f32 %v1851, 1.442695
        %v1938 = vpow.pop %v1937
        %v1939 = vmul.f32 %v1852, 1.442695
        %v1940 = vpow.pop %v1939
        %v1941 = vmul.f32 %v1853, 1.442695
        %v1942 = vpow.pop %v1941
        %v1943 = vmul.f32 %v1854, 1.442695
        %v1944 = vpow.pop %v1943
        %v1945 = vmul.f32 %v1855, 1.442695
        %v1946 = vpow.pop %v1945
        %v1947 = vmul.f32 %v1856, 1.442695
        %v1948 = vpow.pop %v1947
        %v1949 = vmul.f32 %v1857, 1.442695
        %v1950 = vpow.pop %v1949
        %v1951 = vmul.f32 %v1858, 1.442695
        %v1952 = vpow.pop %v1951
        %v1953 = vmul.f32 %v1859, 1.442695
        %v1954 = vpow.pop %v1953
        %v1955 = vmul.f32 %v1860, 1.442695
        %v1956 = vpow.pop %v1955
        %v1957 = vmul.f32 %v1861, 1.442695
        %v1958 = vpow.pop %v1957
        %v1959 = vmul.f32 %v1862, 1.442695
        %v1960 = vpow.pop %v1959
        %v1961 = vmul.f32 %v1863, 1.442695
        %v1962 = vpow.pop %v1961
        %v1963 = vmul.f32 %v1864, 1.442695
        %v1964 = vpow.pop %v1963
        %v1965 = vmul.f32 %v1865, 1.442695
        %v1966 = vpow.pop %v1965
        %v1967 = vmul.f32 %v1866, 1.442695
        %v1968 = vpow.pop %v1967
        %v1969 = vmul.f32 %v1867, 1.442695
        %v1970 = vpow.pop %v1969
        %v1971 = vmul.f32 %v1868, 1.442695
        %v1972 = vpow.pop %v1971
        %v1973 = vmul.f32 %v1869, 1.442695
        %v1974 = vpow.pop %v1973
        %v1975 = vmul.f32 %v1870, 1.442695
        %v1976 = vpow.pop %v1975
        %v1977 = vmul.f32 %v1871, 1.442695
        %v1978 = vpow.pop %v1977
        %v1979 = vmul.f32 %v1872, 1.442695
        %v1980 = vpow.pop %v1979
        %v1981 = vmul.f32 %v1873, 1.442695
        %v1982 = vpow.pop %v1981
        %v1983 = vmul.f32 %v1874, 1.442695
        %v1984 = vpow.pop %v1983
        %v1985 = vmul.f32 %v1875, 1.442695
        %v1986 = vpow.pop %v1985
        %v1987 = vmul.f32 %v1876, 1.442695
        %v1988 = vpow.pop %v1987
        %v1989 = vmul.f32 %v1877, 1.442695
        %v1990 = vpow.pop %v1989
        %v1991 = vmul.f32 %v1878, 1.442695
        %v1992 = vpow.pop %v1991
        %v1993 = vmul.f32 %v1879, 1.442695
        %v1994 = vpow.pop %v1993
        %v1995 = vmul.f32 %v1880, 1.442695
        %v1996 = vpow.pop %v1995
        %v1997 = vmul.f32 %v1881, 1.442695
        %v1998 = vpow.pop %v1997
        %v1999 = vmul.f32 %v1882, 1.442695
        %v2000 = vpow.pop %v1999
        %v2001 = vmul.f32 %v1883, 1.442695
        %v2002 = vpow.pop %v2001
        %v2003 = vmul.f32 %v1884, 1.442695
        %v2004 = vpow.pop %v2003
        %v2005 = vmul.f32 %v1885, 1.442695
        %v2006 = vpow.pop %v2005
        %v2007 = vmul.f32 %v1886, 1.442695
        %v2008 = vpow.pop %v2007
        %v2009 = vmul.f32 %v1887, 1.442695
        %v2010 = vpow.pop %v2009
        %v2011 = vmul.f32 %v1888, 1.442695
        %v2012 = vpow.pop %v2011
        %v2013 = vmul.f32 %v1889, 1.442695
        %v2014 = vpow.pop %v2013
        %v2015 = vmul.f32 %v1890, 1.442695
        %v2016 = vpow.pop %v2015
        %v2017 = vmul.f32 %v1891, 1.442695
        %v2018 = vpow.pop %v2017
        %v2019 = vmul.f32 %v1892, 1.442695
        %v2020 = vpow.pop %v2019
        %v2021 = vadd.f32 %v1894, %v1898
        %v2022 = vadd.f32 %v2021, %v1902
        %v2023 = vadd.f32 %v2022, %v1906
        %v2024 = vadd.f32 %v2023, %v1910
        %v2025 = vadd.f32 %v2024, %v1914
        %v2026 = vadd.f32 %v2025, %v1918
        %v2027 = vadd.f32 %v2026, %v1922
        %v2028 = vadd.f32 %v2027, %v1926
        %v2029 = vadd.f32 %v2028, %v1930
        %v2030 = vadd.f32 %v2029, %v1934
        %v2031 = vadd.f32 %v2030, %v1938
        %v2032 = vadd.f32 %v2031, %v1942
        %v2033 = vadd.f32 %v2032, %v1946
        %v2034 = vadd.f32 %v2033, %v1950
        %v2035 = vadd.f32 %v2034, %v1954
        %v2036 = vadd.f32 %v2035, %v1958
        %v2037 = vadd.f32 %v2036, %v1962
        %v2038 = vadd.f32 %v2037, %v1966
        %v2039 = vadd.f32 %v2038, %v1970
        %v2040 = vadd.f32 %v2039, %v1974
        %v2041 = vadd.f32 %v2040, %v1978
        %v2042 = vadd.f32 %v2041, %v1982
        %v2043 = vadd.f32 %v2042, %v1986
        %v2044 = vadd.f32 %v2043, %v1990
        %v2045 = vadd.f32 %v2044, %v1994
        %v2046 = vadd.f32 %v2045, %v1998
        %v2047 = vadd.f32 %v2046, %v2002
        %v2048 = vadd.f32 %v2047, %v2006
        %v2049 = vadd.f32 %v2048, %v2010
        %v2050 = vadd.f32 %v2049, %v2014
        %v2051 = vadd.f32 %v2050, %v2018
        %v2052 = vrot.slane %v2051, 4
        %v2053 = vadd.f32 %v2051, %v2052
        %v2054 = vrot.slane %v2053, 2
        %v2055 = vadd.f32 %v2053, %v2054
        %v2056 = vrot.slane %v2055, 1
        %v2057 = vadd.f32 %v2055, %v2056
        %v2058 = vadd.f32 %v1896, %v1900
        %v2059 = vadd.f32 %v2058, %v1904
        %v2060 = vadd.f32 %v2059, %v1908
        %v2061 = vadd.f32 %v2060, %v1912
        %v2062 = vadd.f32 %v2061, %v1916
        %v2063 = vadd.f32 %v2062, %v1920
        %v2064 = vadd.f32 %v2063, %v1924
        %v2065 = vadd.f32 %v2064, %v1928
        %v2066 = vadd.f32 %v2065, %v1932
        %v2067 = vadd.f32 %v2066, %v1936
        %v2068 = vadd.f32 %v2067, %v1940
        %v2069 = vadd.f32 %v2068, %v1944
        %v2070 = vadd.f32 %v2069, %v1948
        %v2071 = vadd.f32 %v2070, %v1952
        %v2072 = vadd.f32 %v2071, %v1956
        %v2073 = vadd.f32 %v2072, %v1960
        %v2074 = vadd.f32 %v2073, %v1964
        %v2075 = vadd.f32 %v2074, %v1968
        %v2076 = vadd.f32 %v2075, %v1972
        %v2077 = vadd.f32 %v2076, %v1976
        %v2078 = vadd.f32 %v2077, %v1980
        %v2079 = vadd.f32 %v2078, %v1984
        %v2080 = vadd.f32 %v2079, %v1988
        %v2081 = vadd.f32 %v2080, %v1992
        %v2082 = vadd.f32 %v2081, %v1996
        %v2083 = vadd.f32 %v2082, %v2000
        %v2084 = vadd.f32 %v2083, %v2004
        %v2085 = vadd.f32 %v2084, %v2008
        %v2086 = vadd.f32 %v2085, %v2012
        %v2087 = vadd.f32 %v2086, %v2016
        %v2088 = vadd.f32 %v2087, %v2020
        %v2089 = vrot.slane %v2088, 4
        %v2090 = vadd.f32 %v2088, %v2089
        %v2091 = vrot.slane %v2090, 2
        %v2092 = vadd.f32 %v2090, %v2091
        %v2093 = vrot.slane %v2092, 1
        %v2094 = vadd.f32 %v2092, %v2093
        %v2095 = vrcp.pop %v2057
        %v2096 = vrcp.pop %v2094
        %v2097 = vmul.f32 %v1894, %v2095
        %v2098 = vmul.f32 %v1896, %v2096
        %v2099 = vmul.f32 %v1898, %v2095
        %v2100 = vmul.f32 %v1900, %v2096
        %v2101 = vmul.f32 %v1902, %v2095
        %v2102 = vmul.f32 %v1904, %v2096
        %v2103 = vmul.f32 %v1906, %v2095
        %v2104 = vmul.f32 %v1908, %v2096
        %v2105 = vmul.f32 %v1910, %v2095
        %v2106 = vmul.f32 %v1912, %v2096
        %v2107 = vmul.f32 %v1914, %v2095
        %v2108 = vmul.f32 %v1916, %v2096
        %v2109 = vmul.f32 %v1918, %v2095
        %v2110 = vmul.f32 %v1920, %v2096
        %v2111 = vmul.f32 %v1922, %v2095
        %v2112 = vmul.f32 %v1924, %v2096
        %v2113 = vmul.f32 %v1926, %v2095
        %v2114 = vmul.f32 %v1928, %v2096
        %v2115 = vmul.f32 %v1930, %v2095
        %v2116 = vmul.f32 %v1932, %v2096
        %v2117 = vmul.f32 %v1934, %v2095
        %v2118 = vmul.f32 %v1936, %v2096
        %v2119 = vmul.f32 %v1938, %v2095
        %v2120 = vmul.f32 %v1940, %v2096
        %v2121 = vmul.f32 %v1942, %v2095
        %v2122 = vmul.f32 %v1944, %v2096
        %v2123 = vmul.f32 %v1946, %v2095
        %v2124 = vmul.f32 %v1948, %v2096
        %v2125 = vmul.f32 %v1950, %v2095
        %v2126 = vmul.f32 %v1952, %v2096
        %v2127 = vmul.f32 %v1954, %v2095
        %v2128 = vmul.f32 %v1956, %v2096
        %v2129 = vmul.f32 %v1958, %v2095
        %v2130 = vmul.f32 %v1960, %v2096
        %v2131 = vmul.f32 %v1962, %v2095
        %v2132 = vmul.f32 %v1964, %v2096
        %v2133 = vmul.f32 %v1966, %v2095
        %v2134 = vmul.f32 %v1968, %v2096
        %v2135 = vmul.f32 %v1970, %v2095
        %v2136 = vmul.f32 %v1972, %v2096
        %v2137 = vmul.f32 %v1974, %v2095
        %v2138 = vmul.f32 %v1976, %v2096
        %v2139 = vmul.f32 %v1978, %v2095
        %v2140 = vmul.f32 %v1980, %v2096
        %v2141 = vmul.f32 %v1982, %v2095
        %v2142 = vmul.f32 %v1984, %v2096
        %v2143 = vmul.f32 %v1986, %v2095
        %v2144 = vmul.f32 %v1988, %v2096
        %v2145 = vmul.f32 %v1990, %v2095
        %v2146 = vmul.f32 %v1992, %v2096
        %v2147 = vmul.f32 %v1994, %v2095
        %v2148 = vmul.f32 %v1996, %v2096
        %v2149 = vmul.f32 %v1998, %v2095
        %v2150 = vmul.f32 %v2000, %v2096
        %v2151 = vmul.f32 %v2002, %v2095
        %v2152 = vmul.f32 %v2004, %v2096
        %v2153 = vmul.f32 %v2006, %v2095
        %v2154 = vmul.f32 %v2008, %v2096
        %v2155 = vmul.f32 %v2010, %v2095
        %v2156 = vmul.f32 %v2012, %v2096
        %v2157 = vmul.f32 %v2014, %v2095
        %v2158 = vmul.f32 %v2016, %v2096
        %v2159 = vmul.f32 %v2018, %v2095
        %v2160 = vmul.f32 %v2020, %v2096
        %v2161 = vpack.c.bf16 %v2099, %v2097
        %v2162 = vpack.c.bf16 %v2100, %v2098
        %v2163 = vpack.c.bf16 %v2103, %v2101
        %v2164 = vpack.c.bf16 %v2104, %v2102
        %v2165 = vpack.c.bf16 %v2107, %v2105
        %v2166 = vpack.c.bf16 %v2108, %v2106
        %v2167 = vpack.c.bf16 %v2111, %v2109
        %v2168 = vpack.c.bf16 %v2112, %v2110
        %v2169 = vpack.c.bf16 %v2115, %v2113
        %v2170 = vpack.c.bf16 %v2116, %v2114
        %v2171 = vpack.c.bf16 %v2119, %v2117
        %v2172 = vpack.c.bf16 %v2120, %v2118
        %v2173 = vpack.c.bf16 %v2123, %v2121
        %v2174 = vpack.c.bf16 %v2124, %v2122
        %v2175 = vpack.c.bf16 %v2127, %v2125
        %v2176 = vpack.c.bf16 %v2128, %v2126
        %v2177 = vpack.c.bf16 %v2131, %v2129
        %v2178 = vpack.c.bf16 %v2132, %v2130
        %v2179 = vpack.c.bf16 %v2135, %v2133
        %v2180 = vpack.c.bf16 %v2136, %v2134
        %v2181 = vpack.c.bf16 %v2139, %v2137
        %v2182 = vpack.c.bf16 %v2140, %v2138
        %v2183 = vpack.c.bf16 %v2143, %v2141
        %v2184 = vpack.c.bf16 %v2144, %v2142
        %v2185 = vpack.c.bf16 %v2147, %v2145
        %v2186 = vpack.c.bf16 %v2148, %v2146
        %v2187 = vpack.c.bf16 %v2151, %v2149
        %v2188 = vpack.c.bf16 %v2152, %v2150
        %v2189 = vpack.c.bf16 %v2155, %v2153
        %v2190 = vpack.c.bf16 %v2156, %v2154
        %v2191 = vpack.c.bf16 %v2159, %v2157
        %v2192 = vpack.c.bf16 %v2160, %v2158
        %v2195 = vrot.slane %v1454, 2
        %v2196 = vrot.slane %v1455, 2
        %2199 = vmatprep.subr.bf16.mxu0 %v2162
        %2200 = vmatpush1.bf16.msra.mxu0 %v2161
        %2201 = vmatprep.subr.bf16.mxu0 %v2164
        %2202 = vmatpush1.bf16.msra.mxu0 %v2163
        %2203 = vmatprep.subr.bf16.mxu0 %v2166
        %2204 = vmatpush1.bf16.msra.mxu0 %v2165
        %2205 = vmatprep.subr.bf16.mxu0 %v2168
        %2206 = vmatpush1.bf16.msra.mxu0 %v2167
        %2207 = vmatprep.subr.bf16.mxu0 %v2170
        %2208 = vmatpush1.bf16.msra.mxu0 %v2169
        %2209 = vmatprep.subr.bf16.mxu0 %v2172
        %2210 = vmatpush1.bf16.msra.mxu0 %v2171
        %2211 = vmatprep.subr.bf16.mxu0 %v2174
        %2212 = vmatpush1.bf16.msra.mxu0 %v2173
        %2213 = vmatprep.subr.bf16.mxu0 %v2176
        %2214 = vmatpush1.bf16.msra.mxu0 %v2175
        %2215 = vmatprep.subr.bf16.mxu0 %v2178
        %2216 = vmatpush1.bf16.msra.mxu0 %v2177
        %2217 = vmatprep.subr.bf16.mxu0 %v2180
        %2218 = vmatpush1.bf16.msra.mxu0 %v2179
        %2219 = vmatprep.subr.bf16.mxu0 %v2182
        %2220 = vmatpush1.bf16.msra.mxu0 %v2181
        %2221 = vmatprep.subr.bf16.mxu0 %v2184
        %2222 = vmatpush1.bf16.msra.mxu0 %v2183
        %2223 = vmatprep.subr.bf16.mxu0 %v2186
        %2224 = vmatpush1.bf16.msra.mxu0 %v2185
        %2225 = vmatprep.subr.bf16.mxu0 %v2188
        %2226 = vmatpush1.bf16.msra.mxu0 %v2187
        %2227 = vmatprep.subr.bf16.mxu0 %v2190
        %2228 = vmatpush1.bf16.msra.mxu0 %v2189
        %2229 = vmatprep.subr.bf16.mxu0 %v2192
        %2230 = vmatpush1.bf16.msra.mxu0 %v2191
        %2231 = vmatprep.mubr.bf16.mxu0 %v2196
        %2232 = vmatmul.mubr.bf16.gmra.mrb[0].mxu0 %v2195
        %v2233 = vpop.f32.mrb[0].mxu0
        %v2234 = vadd.f32 0.0, %v2233
        %v2235 = vpop.f32.mrb[0].mxu0
        %v2236 = vadd.f32 0.0, %v2235
        %v2237 = vpop.f32.mrb[0].mxu0
        %v2238 = vpop.f32.mrb[0].mxu0
        %2239 = vdwg.mxu0
        %v2242 = vrot.slane %v2234, 4
        %v2243 = vrot.slane %v2236, 4
        %2246 = vst [vmem:[#allocation4] sm:$0xf0] %v2242
        %2247 = vst [vmem:[#allocation4 + $0x8] sm:$0xf0] %v2243
        %v2248 = vld [vmem:[#allocation2] sm:$0xff]
        %v2249 = vld [vmem:[#allocation2 + $0x8] sm:$0xff]
        %v2250 = vld [vmem:[#allocation2 + $0x10] sm:$0xff]
        %v2251 = vld [vmem:[#allocation2 + $0x18] sm:$0xff]
        %v2252 = vld [vmem:[#allocation2 + $0x20] sm:$0xff]
        %v2253 = vld [vmem:[#allocation2 + $0x28] sm:$0xff]
        %v2254 = vld [vmem:[#allocation2 + $0x30] sm:$0xff]
        %v2255 = vld [vmem:[#allocation2 + $0x38] sm:$0xff]
        %v2256 = vld [vmem:[#allocation2 + $0x40] sm:$0xff]
        %v2257 = vld [vmem:[#allocation2 + $0x48] sm:$0xff]
        %v2258 = vld [vmem:[#allocation2 + $0x50] sm:$0xff]
        %v2259 = vld [vmem:[#allocation2 + $0x58] sm:$0xff]
        %v2260 = vld [vmem:[#allocation2 + $0x60] sm:$0xff]
        %v2261 = vld [vmem:[#allocation2 + $0x68] sm:$0xff]
        %v2262 = vld [vmem:[#allocation2 + $0x70] sm:$0xff]
        %v2263 = vld [vmem:[#allocation2 + $0x78] sm:$0xff]
        %v2264 = vld [vmem:[#allocation3] sm:$0x30]
        %v2265 = vld [vmem:[#allocation3 + $0x8] sm:$0x30]
        %2282 = vrot.lane.b32.xlu0 %v2248, 120
        %v2283 = vpop.permute.xlu0 %2282
        %2284 = vrot.lane.b32.xlu0 %v2249, 120
        %v2285 = vpop.permute.xlu0 %2284
        %2286 = vrot.lane.b32.xlu0 %v2250, 120
        %v2287 = vpop.permute.xlu0 %2286
        %2288 = vrot.lane.b32.xlu0 %v2251, 120
        %v2289 = vpop.permute.xlu0 %2288
        %2290 = vrot.lane.b32.xlu0 %v2252, 120
        %v2291 = vpop.permute.xlu0 %2290
        %2292 = vrot.lane.b32.xlu0 %v2253, 120
        %v2293 = vpop.permute.xlu0 %2292
        %2294 = vrot.lane.b32.xlu0 %v2254, 120
        %v2295 = vpop.permute.xlu0 %2294
        %2296 = vrot.lane.b32.xlu0 %v2255, 120
        %v2297 = vpop.permute.xlu0 %2296
        %2298 = vrot.lane.b32.xlu0 %v2256, 120
        %v2299 = vpop.permute.xlu0 %2298
        %2300 = vrot.lane.b32.xlu0 %v2257, 120
        %v2301 = vpop.permute.xlu0 %2300
        %2302 = vrot.lane.b32.xlu0 %v2258, 120
        %v2303 = vpop.permute.xlu0 %2302
        %2304 = vrot.lane.b32.xlu0 %v2259, 120
        %v2305 = vpop.permute.xlu0 %2304
        %2306 = vrot.lane.b32.xlu0 %v2260, 120
        %v2307 = vpop.permute.xlu0 %2306
        %2308 = vrot.lane.b32.xlu0 %v2261, 120
        %v2309 = vpop.permute.xlu0 %2308
        %2310 = vrot.lane.b32.xlu0 %v2262, 120
        %v2311 = vpop.permute.xlu0 %2310
        %2312 = vrot.lane.b32.xlu0 %v2263, 120
        %v2313 = vpop.permute.xlu0 %2312
        %v2314 = vrot.slane %v688, 4
        %v2315 = vrot.slane %v689, 4
        %v2317 = vsel %vm621, %v2283, 0
        %v2320 = vsel %vm621, %v2285, 0
        %v2323 = vsel %vm621, %v2287, 0
        %v2326 = vsel %vm621, %v2289, 0
        %v2329 = vsel %vm621, %v2291, 0
        %v2332 = vsel %vm621, %v2293, 0
        %v2335 = vsel %vm621, %v2295, 0
        %v2338 = vsel %vm621, %v2297, 0
        %v2341 = vsel %vm621, %v2299, 0
        %v2344 = vsel %vm621, %v2301, 0
        %v2347 = vsel %vm621, %v2303, 0
        %v2350 = vsel %vm621, %v2305, 0
        %v2353 = vsel %vm621, %v2307, 0
        %v2356 = vsel %vm621, %v2309, 0
        %v2359 = vsel %vm621, %v2311, 0
        %v2362 = vsel %vm621, %v2313, 0
        %v2365 = vsel %vm628, %v2314, 0
        %v2368 = vsel %vm628, %v2315, 0
        %2370 = vmatprep.subr.bf16.mxu0 %v2368
        %2371 = vmatpush1.bf16.msra.mxu0 %v2365
        %2372 = vmatprep.subr.bf16.mxu0 0
        %2373 = vmatpush1.bf16.msra.mxu0 0
        %2374 = vmatprep.subr.bf16.mxu0 0
        %2375 = vmatpush1.bf16.msra.mxu0 0
        %2376 = vmatprep.subr.bf16.mxu0 0
        %2377 = vmatpush1.bf16.msra.mxu0 0
        %2378 = vmatprep.subr.bf16.mxu0 0
        %2379 = vmatpush1.bf16.msra.mxu0 0
        %2380 = vmatprep.subr.bf16.mxu0 0
        %2381 = vmatpush1.bf16.msra.mxu0 0
        %2382 = vmatprep.subr.bf16.mxu0 0
        %2383 = vmatpush1.bf16.msra.mxu0 0
        %2384 = vmatprep.subr.bf16.mxu0 0
        %2385 = vmatpush1.bf16.msra.mxu0 0
        %2386 = vmatprep.subr.bf16.mxu0 0
        %2387 = vmatpush1.bf16.msra.mxu0 0
        %2388 = vmatprep.subr.bf16.mxu0 0
        %2389 = vmatpush1.bf16.msra.mxu0 0
        %2390 = vmatprep.subr.bf16.mxu0 0
        %2391 = vmatpush1.bf16.msra.mxu0 0
        %2392 = vmatprep.subr.bf16.mxu0 0
        %2393 = vmatpush1.bf16.msra.mxu0 0
        %2394 = vmatprep.subr.bf16.mxu0 0
        %2395 = vmatpush1.bf16.msra.mxu0 0
        %2396 = vmatprep.subr.bf16.mxu0 0
        %2397 = vmatpush1.bf16.msra.mxu0 0
        %2398 = vmatprep.subr.bf16.mxu0 0
        %2399 = vmatpush1.bf16.msra.mxu0 0
        %2400 = vmatprep.subr.bf16.mxu0 0
        %2401 = vmatpush1.bf16.msra.mxu0 0
        %2402 = vmatprep.mubr.bf16.mxu0 0
        %2403 = vmatmul.mubr.bf16.gmra.mrb[0].mxu0 %v2317
        %v2404 = vpop.f32.mrb[0].mxu0
        %v2405 = vadd.f32 0.0, %v2404
        %v2406 = vpop.f32.mrb[0].mxu0
        %v2407 = vadd.f32 0.0, %v2406
        %v2408 = vpop.f32.mrb[0].mxu0
        %v2409 = vadd.f32 0.0, %v2408
        %v2410 = vpop.f32.mrb[0].mxu0
        %v2411 = vadd.f32 0.0, %v2410
        %2412 = vmatprep.mubr.bf16.mxu0 0
        %2413 = vmatmul.mubr.bf16.gmra.mrb[0].mxu0 %v2320
        %v2414 = vpop.f32.mrb[0].mxu0
        %v2415 = vadd.f32 0.0, %v2414
        %v2416 = vpop.f32.mrb[0].mxu0
        %v2417 = vadd.f32 0.0, %v2416
        %v2418 = vpop.f32.mrb[0].mxu0
        %v2419 = vadd.f32 0.0, %v2418
        %v2420 = vpop.f32.mrb[0].mxu0
        %v2421 = vadd.f32 0.0, %v2420
        %2422 = vmatprep.mubr.bf16.mxu0 0
        %2423 = vmatmul.mubr.bf16.gmra.mrb[0].mxu0 %v2323
        %v2424 = vpop.f32.mrb[0].mxu0
        %v2425 = vadd.f32 0.0, %v2424
        %v2426 = vpop.f32.mrb[0].mxu0
        %v2427 = vadd.f32 0.0, %v2426
        %v2428 = vpop.f32.mrb[0].mxu0
        %v2429 = vadd.f32 0.0, %v2428
        %v2430 = vpop.f32.mrb[0].mxu0
        %v2431 = vadd.f32 0.0, %v2430
        %2432 = vmatprep.mubr.bf16.mxu0 0
        %2433 = vmatmul.mubr.bf16.gmra.mrb[0].mxu0 %v2326
        %v2434 = vpop.f32.mrb[0].mxu0
        %v2435 = vadd.f32 0.0, %v2434
        %v2436 = vpop.f32.mrb[0].mxu0
        %v2437 = vadd.f32 0.0, %v2436
        %v2438 = vpop.f32.mrb[0].mxu0
        %v2439 = vadd.f32 0.0, %v2438
        %v2440 = vpop.f32.mrb[0].mxu0
        %v2441 = vadd.f32 0.0, %v2440
        %2442 = vmatprep.mubr.bf16.mxu0 0
        %2443 = vmatmul.mubr.bf16.gmra.mrb[0].mxu0 %v2329
        %v2444 = vpop.f32.mrb[0].mxu0
        %v2445 = vadd.f32 0.0, %v2444
        %v2446 = vpop.f32.mrb[0].mxu0
        %v2447 = vadd.f32 0.0, %v2446
        %v2448 = vpop.f32.mrb[0].mxu0
        %v2449 = vadd.f32 0.0, %v2448
        %v2450 = vpop.f32.mrb[0].mxu0
        %v2451 = vadd.f32 0.0, %v2450
        %2452 = vmatprep.mubr.bf16.mxu0 0
        %2453 = vmatmul.mubr.bf16.gmra.mrb[0].mxu0 %v2332
        %v2454 = vpop.f32.mrb[0].mxu0
        %v2455 = vadd.f32 0.0, %v2454
        %v2456 = vpop.f32.mrb[0].mxu0
        %v2457 = vadd.f32 0.0, %v2456
        %v2458 = vpop.f32.mrb[0].mxu0
        %v2459 = vadd.f32 0.0, %v2458
        %v2460 = vpop.f32.mrb[0].mxu0
        %v2461 = vadd.f32 0.0, %v2460
        %2462 = vmatprep.mubr.bf16.mxu0 0
        %2463 = vmatmul.mubr.bf16.gmra.mrb[0].mxu0 %v2335
        %v2464 = vpop.f32.mrb[0].mxu0
        %v2465 = vadd.f32 0.0, %v2464
        %v2466 = vpop.f32.mrb[0].mxu0
        %v2467 = vadd.f32 0.0, %v2466
        %v2468 = vpop.f32.mrb[0].mxu0
        %v2469 = vadd.f32 0.0, %v2468
        %v2470 = vpop.f32.mrb[0].mxu0
        %v2471 = vadd.f32 0.0, %v2470
        %2472 = vmatprep.mubr.bf16.mxu0 0
        %2473 = vmatmul.mubr.bf16.gmra.mrb[0].mxu0 %v2338
        %v2474 = vpop.f32.mrb[0].mxu0
        %v2475 = vadd.f32 0.0, %v2474
        %v2476 = vpop.f32.mrb[0].mxu0
        %v2477 = vadd.f32 0.0, %v2476
        %v2478 = vpop.f32.mrb[0].mxu0
        %v2479 = vadd.f32 0.0, %v2478
        %v2480 = vpop.f32.mrb[0].mxu0
        %v2481 = vadd.f32 0.0, %v2480
        %2482 = vmatprep.mubr.bf16.mxu0 0
        %2483 = vmatmul.mubr.bf16.gmra.mrb[0].mxu0 %v2341
        %v2484 = vpop.f32.mrb[0].mxu0
        %v2485 = vadd.f32 0.0, %v2484
        %v2486 = vpop.f32.mrb[0].mxu0
        %v2487 = vadd.f32 0.0, %v2486
        %v2488 = vpop.f32.mrb[0].mxu0
        %v2489 = vadd.f32 0.0, %v2488
        %v2490 = vpop.f32.mrb[0].mxu0
        %v2491 = vadd.f32 0.0, %v2490
        %2492 = vmatprep.mubr.bf16.mxu0 0
        %2493 = vmatmul.mubr.bf16.gmra.mrb[0].mxu0 %v2344
        %v2494 = vpop.f32.mrb[0].mxu0
        %v2495 = vadd.f32 0.0, %v2494
        %v2496 = vpop.f32.mrb[0].mxu0
        %v2497 = vadd.f32 0.0, %v2496
        %v2498 = vpop.f32.mrb[0].mxu0
        %v2499 = vadd.f32 0.0, %v2498
        %v2500 = vpop.f32.mrb[0].mxu0
        %v2501 = vadd.f32 0.0, %v2500
        %2502 = vmatprep.mubr.bf16.mxu0 0
        %2503 = vmatmul.mubr.bf16.gmra.mrb[0].mxu0 %v2347
        %v2504 = vpop.f32.mrb[0].mxu0
        %v2505 = vadd.f32 0.0, %v2504
        %v2506 = vpop.f32.mrb[0].mxu0
        %v2507 = vadd.f32 0.0, %v2506
        %v2508 = vpop.f32.mrb[0].mxu0
        %v2509 = vadd.f32 0.0, %v2508
        %v2510 = vpop.f32.mrb[0].mxu0
        %v2511 = vadd.f32 0.0, %v2510
        %2512 = vmatprep.mubr.bf16.mxu0 0
        %2513 = vmatmul.mubr.bf16.gmra.mrb[0].mxu0 %v2350
        %v2514 = vpop.f32.mrb[0].mxu0
        %v2515 = vadd.f32 0.0, %v2514
        %v2516 = vpop.f32.mrb[0].mxu0
        %v2517 = vadd.f32 0.0, %v2516
        %v2518 = vpop.f32.mrb[0].mxu0
        %v2519 = vadd.f32 0.0, %v2518
        %v2520 = vpop.f32.mrb[0].mxu0
        %v2521 = vadd.f32 0.0, %v2520
        %2522 = vmatprep.mubr.bf16.mxu0 0
        %2523 = vmatmul.mubr.bf16.gmra.mrb[0].mxu0 %v2353
        %v2524 = vpop.f32.mrb[0].mxu0
        %v2525 = vadd.f32 0.0, %v2524
        %v2526 = vpop.f32.mrb[0].mxu0
        %v2527 = vadd.f32 0.0, %v2526
        %v2528 = vpop.f32.mrb[0].mxu0
        %v2529 = vadd.f32 0.0, %v2528
        %v2530 = vpop.f32.mrb[0].mxu0
        %v2531 = vadd.f32 0.0, %v2530
        %2532 = vmatprep.mubr.bf16.mxu0 0
        %2533 = vmatmul.mubr.bf16.gmra.mrb[0].mxu0 %v2356
        %v2534 = vpop.f32.mrb[0].mxu0
        %v2535 = vadd.f32 0.0, %v2534
        %v2536 = vpop.f32.mrb[0].mxu0
        %v2537 = vadd.f32 0.0, %v2536
        %v2538 = vpop.f32.mrb[0].mxu0
        %v2539 = vadd.f32 0.0, %v2538
        %v2540 = vpop.f32.mrb[0].mxu0
        %v2541 = vadd.f32 0.0, %v2540
        %2542 = vmatprep.mubr.bf16.mxu0 0
        %2543 = vmatmul.mubr.bf16.gmra.mrb[0].mxu0 %v2359
        %v2544 = vpop.f32.mrb[0].mxu0
        %v2545 = vadd.f32 0.0, %v2544
        %v2546 = vpop.f32.mrb[0].mxu0
        %v2547 = vadd.f32 0.0, %v2546
        %v2548 = vpop.f32.mrb[0].mxu0
        %v2549 = vadd.f32 0.0, %v2548
        %v2550 = vpop.f32.mrb[0].mxu0
        %v2551 = vadd.f32 0.0, %v2550
        %2552 = vmatprep.mubr.bf16.mxu0 0
        %2553 = vmatmul.mubr.bf16.gmra.mrb[0].mxu0 %v2362
        %v2554 = vpop.f32.mrb[0].mxu0
        %v2555 = vadd.f32 0.0, %v2554
        %v2556 = vpop.f32.mrb[0].mxu0
        %v2557 = vadd.f32 0.0, %v2556
        %v2558 = vpop.f32.mrb[0].mxu0
        %v2559 = vadd.f32 0.0, %v2558
        %v2560 = vpop.f32.mrb[0].mxu0
        %v2561 = vadd.f32 0.0, %v2560
        %2562 = vdwg.mxu0
        %v2563 = vmax.f32 %v2405, %v2415
        %v2564 = vmax.f32 %v2409, %v2419
        %v2565 = vmax.f32 %v2563, %v2425
        %v2566 = vmax.f32 %v2564, %v2429
        %v2567 = vmax.f32 %v2565, %v2435
        %v2568 = vmax.f32 %v2566, %v2439
        %v2569 = vmax.f32 %v2567, %v2445
        %v2570 = vmax.f32 %v2568, %v2449
        %v2571 = vmax.f32 %v2569, %v2455
        %v2572 = vmax.f32 %v2570, %v2459
        %v2573 = vmax.f32 %v2571, %v2465
        %v2574 = vmax.f32 %v2572, %v2469
        %v2575 = vmax.f32 %v2573, %v2475
        %v2576 = vmax.f32 %v2574, %v2479
        %v2577 = vmax.f32 %v2575, %v2485
        %v2578 = vmax.f32 %v2576, %v2489
        %v2579 = vmax.f32 %v2577, %v2495
        %v2580 = vmax.f32 %v2578, %v2499
        %v2581 = vmax.f32 %v2579, %v2505
        %v2582 = vmax.f32 %v2580, %v2509
        %v2583 = vmax.f32 %v2581, %v2515
        %v2584 = vmax.f32 %v2582, %v2519
        %v2585 = vmax.f32 %v2583, %v2525
        %v2586 = vmax.f32 %v2584, %v2529
        %v2587 = vmax.f32 %v2585, %v2535
        %v2588 = vmax.f32 %v2586, %v2539
        %v2589 = vmax.f32 %v2587, %v2545
        %v2590 = vmax.f32 %v2588, %v2549
        %v2591 = vmax.f32 %v2589, %v2555
        %v2592 = vmax.f32 %v2590, %v2559
        %v2593 = vmax.f32 %v2591, %v2592
        %v2594 = vrot.slane %v2593, 4
        %v2595 = vmax.f32 %v2593, %v2594
        %v2596 = vrot.slane %v2595, 2
        %v2597 = vmax.f32 %v2595, %v2596
        %v2598 = vrot.slane %v2597, 1
        %v2599 = vmax.f32 %v2597, %v2598
        %v2600 = vmax.f32 %v2407, %v2417
        %v2601 = vmax.f32 %v2411, %v2421
        %v2602 = vmax.f32 %v2600, %v2427
        %v2603 = vmax.f32 %v2601, %v2431
        %v2604 = vmax.f32 %v2602, %v2437
        %v2605 = vmax.f32 %v2603, %v2441
        %v2606 = vmax.f32 %v2604, %v2447
        %v2607 = vmax.f32 %v2605, %v2451
        %v2608 = vmax.f32 %v2606, %v2457
        %v2609 = vmax.f32 %v2607, %v2461
        %v2610 = vmax.f32 %v2608, %v2467
        %v2611 = vmax.f32 %v2609, %v2471
        %v2612 = vmax.f32 %v2610, %v2477
        %v2613 = vmax.f32 %v2611, %v2481
        %v2614 = vmax.f32 %v2612, %v2487
        %v2615 = vmax.f32 %v2613, %v2491
        %v2616 = vmax.f32 %v2614, %v2497
        %v2617 = vmax.f32 %v2615, %v2501
        %v2618 = vmax.f32 %v2616, %v2507
        %v2619 = vmax.f32 %v2617, %v2511
        %v2620 = vmax.f32 %v2618, %v2517
        %v2621 = vmax.f32 %v2619, %v2521
        %v2622 = vmax.f32 %v2620, %v2527
        %v2623 = vmax.f32 %v2621, %v2531
        %v2624 = vmax.f32 %v2622, %v2537
        %v2625 = vmax.f32 %v2623, %v2541
        %v2626 = vmax.f32 %v2624, %v2547
        %v2627 = vmax.f32 %v2625, %v2551
        %v2628 = vmax.f32 %v2626, %v2557
        %v2629 = vmax.f32 %v2627, %v2561
        %v2630 = vmax.f32 %v2628, %v2629
        %v2631 = vrot.slane %v2630, 4
        %v2632 = vmax.f32 %v2630, %v2631
        %v2633 = vrot.slane %v2632, 2
        %v2634 = vmax.f32 %v2632, %v2633
        %v2635 = vrot.slane %v2634, 1
        %v2636 = vmax.f32 %v2634, %v2635
        %v2637 = vsub.f32 %v2405, %v2599
        %v2638 = vsub.f32 %v2407, %v2636
        %v2639 = vsub.f32 %v2409, %v2599
        %v2640 = vsub.f32 %v2411, %v2636
        %v2641 = vsub.f32 %v2415, %v2599
        %v2642 = vsub.f32 %v2417, %v2636
        %v2643 = vsub.f32 %v2419, %v2599
        %v2644 = vsub.f32 %v2421, %v2636
        %v2645 = vsub.f32 %v2425, %v2599
        %v2646 = vsub.f32 %v2427, %v2636
        %v2647 = vsub.f32 %v2429, %v2599
        %v2648 = vsub.f32 %v2431, %v2636
        %v2649 = vsub.f32 %v2435, %v2599
        %v2650 = vsub.f32 %v2437, %v2636
        %v2651 = vsub.f32 %v2439, %v2599
        %v2652 = vsub.f32 %v2441, %v2636
        %v2653 = vsub.f32 %v2445, %v2599
        %v2654 = vsub.f32 %v2447, %v2636
        %v2655 = vsub.f32 %v2449, %v2599
        %v2656 = vsub.f32 %v2451, %v2636
        %v2657 = vsub.f32 %v2455, %v2599
        %v2658 = vsub.f32 %v2457, %v2636
        %v2659 = vsub.f32 %v2459, %v2599
        %v2660 = vsub.f32 %v2461, %v2636
        %v2661 = vsub.f32 %v2465, %v2599
        %v2662 = vsub.f32 %v2467, %v2636
        %v2663 = vsub.f32 %v2469, %v2599
        %v2664 = vsub.f32 %v2471, %v2636
        %v2665 = vsub.f32 %v2475, %v2599
        %v2666 = vsub.f32 %v2477, %v2636
        %v2667 = vsub.f32 %v2479, %v2599
        %v2668 = vsub.f32 %v2481, %v2636
        %v2669 = vsub.f32 %v2485, %v2599
        %v2670 = vsub.f32 %v2487, %v2636
        %v2671 = vsub.f32 %v2489, %v2599
        %v2672 = vsub.f32 %v2491, %v2636
        %v2673 = vsub.f32 %v2495, %v2599
        %v2674 = vsub.f32 %v2497, %v2636
        %v2675 = vsub.f32 %v2499, %v2599
        %v2676 = vsub.f32 %v2501, %v2636
        %v2677 = vsub.f32 %v2505, %v2599
        %v2678 = vsub.f32 %v2507, %v2636
        %v2679 = vsub.f32 %v2509, %v2599
        %v2680 = vsub.f32 %v2511, %v2636
        %v2681 = vsub.f32 %v2515, %v2599
        %v2682 = vsub.f32 %v2517, %v2636
        %v2683 = vsub.f32 %v2519, %v2599
        %v2684 = vsub.f32 %v2521, %v2636
        %v2685 = vsub.f32 %v2525, %v2599
        %v2686 = vsub.f32 %v2527, %v2636
        %v2687 = vsub.f32 %v2529, %v2599
        %v2688 = vsub.f32 %v2531, %v2636
        %v2689 = vsub.f32 %v2535, %v2599
        %v2690 = vsub.f32 %v2537, %v2636
        %v2691 = vsub.f32 %v2539, %v2599
        %v2692 = vsub.f32 %v2541, %v2636
        %v2693 = vsub.f32 %v2545, %v2599
        %v2694 = vsub.f32 %v2547, %v2636
        %v2695 = vsub.f32 %v2549, %v2599
        %v2696 = vsub.f32 %v2551, %v2636
        %v2697 = vsub.f32 %v2555, %v2599
        %v2698 = vsub.f32 %v2557, %v2636
        %v2699 = vsub.f32 %v2559, %v2599
        %v2700 = vsub.f32 %v2561, %v2636
        %v2701 = vmul.f32 %v2637, 1.442695
        %v2702 = vpow.pop %v2701
        %v2703 = vmul.f32 %v2638, 1.442695
        %v2704 = vpow.pop %v2703
        %v2705 = vmul.f32 %v2639, 1.442695
        %v2706 = vpow.pop %v2705
        %v2707 = vmul.f32 %v2640, 1.442695
        %v2708 = vpow.pop %v2707
        %v2709 = vmul.f32 %v2641, 1.442695
        %v2710 = vpow.pop %v2709
        %v2711 = vmul.f32 %v2642, 1.442695
        %v2712 = vpow.pop %v2711
        %v2713 = vmul.f32 %v2643, 1.442695
        %v2714 = vpow.pop %v2713
        %v2715 = vmul.f32 %v2644, 1.442695
        %v2716 = vpow.pop %v2715
        %v2717 = vmul.f32 %v2645, 1.442695
        %v2718 = vpow.pop %v2717
        %v2719 = vmul.f32 %v2646, 1.442695
        %v2720 = vpow.pop %v2719
        %v2721 = vmul.f32 %v2647, 1.442695
        %v2722 = vpow.pop %v2721
        %v2723 = vmul.f32 %v2648, 1.442695
        %v2724 = vpow.pop %v2723
        %v2725 = vmul.f32 %v2649, 1.442695
        %v2726 = vpow.pop %v2725
        %v2727 = vmul.f32 %v2650, 1.442695
        %v2728 = vpow.pop %v2727
        %v2729 = vmul.f32 %v2651, 1.442695
        %v2730 = vpow.pop %v2729
        %v2731 = vmul.f32 %v2652, 1.442695
        %v2732 = vpow.pop %v2731
        %v2733 = vmul.f32 %v2653, 1.442695
        %v2734 = vpow.pop %v2733
        %v2735 = vmul.f32 %v2654, 1.442695
        %v2736 = vpow.pop %v2735
        %v2737 = vmul.f32 %v2655, 1.442695
        %v2738 = vpow.pop %v2737
        %v2739 = vmul.f32 %v2656, 1.442695
        %v2740 = vpow.pop %v2739
        %v2741 = vmul.f32 %v2657, 1.442695
        %v2742 = vpow.pop %v2741
        %v2743 = vmul.f32 %v2658, 1.442695
        %v2744 = vpow.pop %v2743
        %v2745 = vmul.f32 %v2659, 1.442695
        %v2746 = vpow.pop %v2745
        %v2747 = vmul.f32 %v2660, 1.442695
        %v2748 = vpow.pop %v2747
        %v2749 = vmul.f32 %v2661, 1.442695
        %v2750 = vpow.pop %v2749
        %v2751 = vmul.f32 %v2662, 1.442695
        %v2752 = vpow.pop %v2751
        %v2753 = vmul.f32 %v2663, 1.442695
        %v2754 = vpow.pop %v2753
        %v2755 = vmul.f32 %v2664, 1.442695
        %v2756 = vpow.pop %v2755
        %v2757 = vmul.f32 %v2665, 1.442695
        %v2758 = vpow.pop %v2757
        %v2759 = vmul.f32 %v2666, 1.442695
        %v2760 = vpow.pop %v2759
        %v2761 = vmul.f32 %v2667, 1.442695
        %v2762 = vpow.pop %v2761
        %v2763 = vmul.f32 %v2668, 1.442695
        %v2764 = vpow.pop %v2763
        %v2765 = vmul.f32 %v2669, 1.442695
        %v2766 = vpow.pop %v2765
        %v2767 = vmul.f32 %v2670, 1.442695
        %v2768 = vpow.pop %v2767
        %v2769 = vmul.f32 %v2671, 1.442695
        %v2770 = vpow.pop %v2769
        %v2771 = vmul.f32 %v2672, 1.442695
        %v2772 = vpow.pop %v2771
        %v2773 = vmul.f32 %v2673, 1.442695
        %v2774 = vpow.pop %v2773
        %v2775 = vmul.f32 %v2674, 1.442695
        %v2776 = vpow.pop %v2775
        %v2777 = vmul.f32 %v2675, 1.442695
        %v2778 = vpow.pop %v2777
        %v2779 = vmul.f32 %v2676, 1.442695
        %v2780 = vpow.pop %v2779
        %v2781 = vmul.f32 %v2677, 1.442695
        %v2782 = vpow.pop %v2781
        %v2783 = vmul.f32 %v2678, 1.442695
        %v2784 = vpow.pop %v2783
        %v2785 = vmul.f32 %v2679, 1.442695
        %v2786 = vpow.pop %v2785
        %v2787 = vmul.f32 %v2680, 1.442695
        %v2788 = vpow.pop %v2787
        %v2789 = vmul.f32 %v2681, 1.442695
        %v2790 = vpow.pop %v2789
        %v2791 = vmul.f32 %v2682, 1.442695
        %v2792 = vpow.pop %v2791
        %v2793 = vmul.f32 %v2683, 1.442695
        %v2794 = vpow.pop %v2793
        %v2795 = vmul.f32 %v2684, 1.442695
        %v2796 = vpow.pop %v2795
        %v2797 = vmul.f32 %v2685, 1.442695
        %v2798 = vpow.pop %v2797
        %v2799 = vmul.f32 %v2686, 1.442695
        %v2800 = vpow.pop %v2799
        %v2801 = vmul.f32 %v2687, 1.442695
        %v2802 = vpow.pop %v2801
        %v2803 = vmul.f32 %v2688, 1.442695
        %v2804 = vpow.pop %v2803
        %v2805 = vmul.f32 %v2689, 1.442695
        %v2806 = vpow.pop %v2805
        %v2807 = vmul.f32 %v2690, 1.442695
        %v2808 = vpow.pop %v2807
        %v2809 = vmul.f32 %v2691, 1.442695
        %v2810 = vpow.pop %v2809
        %v2811 = vmul.f32 %v2692, 1.442695
        %v2812 = vpow.pop %v2811
        %v2813 = vmul.f32 %v2693, 1.442695
        %v2814 = vpow.pop %v2813
        %v2815 = vmul.f32 %v2694, 1.442695
        %v2816 = vpow.pop %v2815
        %v2817 = vmul.f32 %v2695, 1.442695
        %v2818 = vpow.pop %v2817
        %v2819 = vmul.f32 %v2696, 1.442695
        %v2820 = vpow.pop %v2819
        %v2821 = vmul.f32 %v2697, 1.442695
        %v2822 = vpow.pop %v2821
        %v2823 = vmul.f32 %v2698, 1.442695
        %v2824 = vpow.pop %v2823
        %v2825 = vmul.f32 %v2699, 1.442695
        %v2826 = vpow.pop %v2825
        %v2827 = vmul.f32 %v2700, 1.442695
        %v2828 = vpow.pop %v2827
        %v2829 = vadd.f32 %v2702, %v2706
        %v2830 = vadd.f32 %v2829, %v2710
        %v2831 = vadd.f32 %v2830, %v2714
        %v2832 = vadd.f32 %v2831, %v2718
        %v2833 = vadd.f32 %v2832, %v2722
        %v2834 = vadd.f32 %v2833, %v2726
        %v2835 = vadd.f32 %v2834, %v2730
        %v2836 = vadd.f32 %v2835, %v2734
        %v2837 = vadd.f32 %v2836, %v2738
        %v2838 = vadd.f32 %v2837, %v2742
        %v2839 = vadd.f32 %v2838, %v2746
        %v2840 = vadd.f32 %v2839, %v2750
        %v2841 = vadd.f32 %v2840, %v2754
        %v2842 = vadd.f32 %v2841, %v2758
        %v2843 = vadd.f32 %v2842, %v2762
        %v2844 = vadd.f32 %v2843, %v2766
        %v2845 = vadd.f32 %v2844, %v2770
        %v2846 = vadd.f32 %v2845, %v2774
        %v2847 = vadd.f32 %v2846, %v2778
        %v2848 = vadd.f32 %v2847, %v2782
        %v2849 = vadd.f32 %v2848, %v2786
        %v2850 = vadd.f32 %v2849, %v2790
        %v2851 = vadd.f32 %v2850, %v2794
        %v2852 = vadd.f32 %v2851, %v2798
        %v2853 = vadd.f32 %v2852, %v2802
        %v2854 = vadd.f32 %v2853, %v2806
        %v2855 = vadd.f32 %v2854, %v2810
        %v2856 = vadd.f32 %v2855, %v2814
        %v2857 = vadd.f32 %v2856, %v2818
        %v2858 = vadd.f32 %v2857, %v2822
        %v2859 = vadd.f32 %v2858, %v2826
        %v2860 = vrot.slane %v2859, 4
        %v2861 = vadd.f32 %v2859, %v2860
        %v2862 = vrot.slane %v2861, 2
        %v2863 = vadd.f32 %v2861, %v2862
        %v2864 = vrot.slane %v2863, 1
        %v2865 = vadd.f32 %v2863, %v2864
        %v2866 = vadd.f32 %v2704, %v2708
        %v2867 = vadd.f32 %v2866, %v2712
        %v2868 = vadd.f32 %v2867, %v2716
        %v2869 = vadd.f32 %v2868, %v2720
        %v2870 = vadd.f32 %v2869, %v2724
        %v2871 = vadd.f32 %v2870, %v2728
        %v2872 = vadd.f32 %v2871, %v2732
        %v2873 = vadd.f32 %v2872, %v2736
        %v2874 = vadd.f32 %v2873, %v2740
        %v2875 = vadd.f32 %v2874, %v2744
        %v2876 = vadd.f32 %v2875, %v2748
        %v2877 = vadd.f32 %v2876, %v2752
        %v2878 = vadd.f32 %v2877, %v2756
        %v2879 = vadd.f32 %v2878, %v2760
        %v2880 = vadd.f32 %v2879, %v2764
        %v2881 = vadd.f32 %v2880, %v2768
        %v2882 = vadd.f32 %v2881, %v2772
        %v2883 = vadd.f32 %v2882, %v2776
        %v2884 = vadd.f32 %v2883, %v2780
        %v2885 = vadd.f32 %v2884, %v2784
        %v2886 = vadd.f32 %v2885, %v2788
        %v2887 = vadd.f32 %v2886, %v2792
        %v2888 = vadd.f32 %v2887, %v2796
        %v2889 = vadd.f32 %v2888, %v2800
        %v2890 = vadd.f32 %v2889, %v2804
        %v2891 = vadd.f32 %v2890, %v2808
        %v2892 = vadd.f32 %v2891, %v2812
        %v2893 = vadd.f32 %v2892, %v2816
        %v2894 = vadd.f32 %v2893, %v2820
        %v2895 = vadd.f32 %v2894, %v2824
        %v2896 = vadd.f32 %v2895, %v2828
        %v2897 = vrot.slane %v2896, 4
        %v2898 = vadd.f32 %v2896, %v2897
        %v2899 = vrot.slane %v2898, 2
        %v2900 = vadd.f32 %v2898, %v2899
        %v2901 = vrot.slane %v2900, 1
        %v2902 = vadd.f32 %v2900, %v2901
        %v2903 = vrcp.pop %v2865
        %v2904 = vrcp.pop %v2902
        %v2905 = vmul.f32 %v2702, %v2903
        %v2906 = vmul.f32 %v2704, %v2904
        %v2907 = vmul.f32 %v2706, %v2903
        %v2908 = vmul.f32 %v2708, %v2904
        %v2909 = vmul.f32 %v2710, %v2903
        %v2910 = vmul.f32 %v2712, %v2904
        %v2911 = vmul.f32 %v2714, %v2903
        %v2912 = vmul.f32 %v2716, %v2904
        %v2913 = vmul.f32 %v2718, %v2903
        %v2914 = vmul.f32 %v2720, %v2904
        %v2915 = vmul.f32 %v2722, %v2903
        %v2916 = vmul.f32 %v2724, %v2904
        %v2917 = vmul.f32 %v2726, %v2903
        %v2918 = vmul.f32 %v2728, %v2904
        %v2919 = vmul.f32 %v2730, %v2903
        %v2920 = vmul.f32 %v2732, %v2904
        %v2921 = vmul.f32 %v2734, %v2903
        %v2922 = vmul.f32 %v2736, %v2904
        %v2923 = vmul.f32 %v2738, %v2903
        %v2924 = vmul.f32 %v2740, %v2904
        %v2925 = vmul.f32 %v2742, %v2903
        %v2926 = vmul.f32 %v2744, %v2904
        %v2927 = vmul.f32 %v2746, %v2903
        %v2928 = vmul.f32 %v2748, %v2904
        %v2929 = vmul.f32 %v2750, %v2903
        %v2930 = vmul.f32 %v2752, %v2904
        %v2931 = vmul.f32 %v2754, %v2903
        %v2932 = vmul.f32 %v2756, %v2904
        %v2933 = vmul.f32 %v2758, %v2903
        %v2934 = vmul.f32 %v2760, %v2904
        %v2935 = vmul.f32 %v2762, %v2903
        %v2936 = vmul.f32 %v2764, %v2904
        %v2937 = vmul.f32 %v2766, %v2903
        %v2938 = vmul.f32 %v2768, %v2904
        %v2939 = vmul.f32 %v2770, %v2903
        %v2940 = vmul.f32 %v2772, %v2904
        %v2941 = vmul.f32 %v2774, %v2903
        %v2942 = vmul.f32 %v2776, %v2904
        %v2943 = vmul.f32 %v2778, %v2903
        %v2944 = vmul.f32 %v2780, %v2904
        %v2945 = vmul.f32 %v2782, %v2903
        %v2946 = vmul.f32 %v2784, %v2904
        %v2947 = vmul.f32 %v2786, %v2903
        %v2948 = vmul.f32 %v2788, %v2904
        %v2949 = vmul.f32 %v2790, %v2903
        %v2950 = vmul.f32 %v2792, %v2904
        %v2951 = vmul.f32 %v2794, %v2903
        %v2952 = vmul.f32 %v2796, %v2904
        %v2953 = vmul.f32 %v2798, %v2903
        %v2954 = vmul.f32 %v2800, %v2904
        %v2955 = vmul.f32 %v2802, %v2903
        %v2956 = vmul.f32 %v2804, %v2904
        %v2957 = vmul.f32 %v2806, %v2903
        %v2958 = vmul.f32 %v2808, %v2904
        %v2959 = vmul.f32 %v2810, %v2903
        %v2960 = vmul.f32 %v2812, %v2904
        %v2961 = vmul.f32 %v2814, %v2903
        %v2962 = vmul.f32 %v2816, %v2904
        %v2963 = vmul.f32 %v2818, %v2903
        %v2964 = vmul.f32 %v2820, %v2904
        %v2965 = vmul.f32 %v2822, %v2903
        %v2966 = vmul.f32 %v2824, %v2904
        %v2967 = vmul.f32 %v2826, %v2903
        %v2968 = vmul.f32 %v2828, %v2904
        %v2969 = vpack.c.bf16 %v2907, %v2905
        %v2970 = vpack.c.bf16 %v2908, %v2906
        %v2971 = vpack.c.bf16 %v2911, %v2909
        %v2972 = vpack.c.bf16 %v2912, %v2910
        %v2973 = vpack.c.bf16 %v2915, %v2913
        %v2974 = vpack.c.bf16 %v2916, %v2914
        %v2975 = vpack.c.bf16 %v2919, %v2917
        %v2976 = vpack.c.bf16 %v2920, %v2918
        %v2977 = vpack.c.bf16 %v2923, %v2921
        %v2978 = vpack.c.bf16 %v2924, %v2922
        %v2979 = vpack.c.bf16 %v2927, %v2925
        %v2980 = vpack.c.bf16 %v2928, %v2926
        %v2981 = vpack.c.bf16 %v2931, %v2929
        %v2982 = vpack.c.bf16 %v2932, %v2930
        %v2983 = vpack.c.bf16 %v2935, %v2933
        %v2984 = vpack.c.bf16 %v2936, %v2934
        %v2985 = vpack.c.bf16 %v2939, %v2937
        %v2986 = vpack.c.bf16 %v2940, %v2938
        %v2987 = vpack.c.bf16 %v2943, %v2941
        %v2988 = vpack.c.bf16 %v2944, %v2942
        %v2989 = vpack.c.bf16 %v2947, %v2945
        %v2990 = vpack.c.bf16 %v2948, %v2946
        %v2991 = vpack.c.bf16 %v2951, %v2949
        %v2992 = vpack.c.bf16 %v2952, %v2950
        %v2993 = vpack.c.bf16 %v2955, %v2953
        %v2994 = vpack.c.bf16 %v2956, %v2954
        %v2995 = vpack.c.bf16 %v2959, %v2957
        %v2996 = vpack.c.bf16 %v2960, %v2958
        %v2997 = vpack.c.bf16 %v2963, %v2961
        %v2998 = vpack.c.bf16 %v2964, %v2962
        %v2999 = vpack.c.bf16 %v2967, %v2965
        %v3000 = vpack.c.bf16 %v2968, %v2966
        %v3003 = vrot.slane %v2264, 4
        %v3004 = vrot.slane %v2265, 4
        %3007 = vmatprep.subr.bf16.mxu0 %v2970
        %3008 = vmatpush1.bf16.msra.mxu0 %v2969
        %3009 = vmatprep.subr.bf16.mxu0 %v2972
        %3010 = vmatpush1.bf16.msra.mxu0 %v2971
        %3011 = vmatprep.subr.bf16.mxu0 %v2974
        %3012 = vmatpush1.bf16.msra.mxu0 %v2973
        %3013 = vmatprep.subr.bf16.mxu0 %v2976
        %3014 = vmatpush1.bf16.msra.mxu0 %v2975
        %3015 = vmatprep.subr.bf16.mxu0 %v2978
        %3016 = vmatpush1.bf16.msra.mxu0 %v2977
        %3017 = vmatprep.subr.bf16.mxu0 %v2980
        %3018 = vmatpush1.bf16.msra.mxu0 %v2979
        %3019 = vmatprep.subr.bf16.mxu0 %v2982
        %3020 = vmatpush1.bf16.msra.mxu0 %v2981
        %3021 = vmatprep.subr.bf16.mxu0 %v2984
        %3022 = vmatpush1.bf16.msra.mxu0 %v2983
        %3023 = vmatprep.subr.bf16.mxu0 %v2986
        %3024 = vmatpush1.bf16.msra.mxu0 %v2985
        %3025 = vmatprep.subr.bf16.mxu0 %v2988
        %3026 = vmatpush1.bf16.msra.mxu0 %v2987
        %3027 = vmatprep.subr.bf16.mxu0 %v2990
        %3028 = vmatpush1.bf16.msra.mxu0 %v2989
        %3029 = vmatprep.subr.bf16.mxu0 %v2992
        %3030 = vmatpush1.bf16.msra.mxu0 %v2991
        %3031 = vmatprep.subr.bf16.mxu0 %v2994
        %3032 = vmatpush1.bf16.msra.mxu0 %v2993
        %3033 = vmatprep.subr.bf16.mxu0 %v2996
        %3034 = vmatpush1.bf16.msra.mxu0 %v2995
        %3035 = vmatprep.subr.bf16.mxu0 %v2998
        %3036 = vmatpush1.bf16.msra.mxu0 %v2997
        %3037 = vmatprep.subr.bf16.mxu0 %v3000
        %3038 = vmatpush1.bf16.msra.mxu0 %v2999
        %3039 = vmatprep.mubr.bf16.mxu0 %v3004
        %3040 = vmatmul.mubr.bf16.gmra.mrb[0].mxu0 %v3003
        %v3041 = vpop.f32.mrb[0].mxu0
        %v3042 = vadd.f32 0.0, %v3041
        %v3043 = vpop.f32.mrb[0].mxu0
        %v3044 = vadd.f32 0.0, %v3043
        %v3045 = vpop.f32.mrb[0].mxu0
        %v3046 = vpop.f32.mrb[0].mxu0
        %3047 = vdwg.mxu0
        %3048 = vst [vmem:[#allocation4 + $0x10] sm:$0xf] %v3042
        %3049 = vst [vmem:[#allocation4 + $0x18] sm:$0xf] %v3044
        %v3050 = vld [vmem:[#allocation2] sm:$0xff]
        %v3051 = vld [vmem:[#allocation2 + $0x8] sm:$0xff]
        %v3052 = vld [vmem:[#allocation2 + $0x10] sm:$0xff]
        %v3053 = vld [vmem:[#allocation2 + $0x18] sm:$0xff]
        %v3054 = vld [vmem:[#allocation2 + $0x20] sm:$0xff]
        %v3055 = vld [vmem:[#allocation2 + $0x28] sm:$0xff]
        %v3056 = vld [vmem:[#allocation2 + $0x30] sm:$0xff]
        %v3057 = vld [vmem:[#allocation2 + $0x38] sm:$0xff]
        %v3058 = vld [vmem:[#allocation2 + $0x40] sm:$0xff]
        %v3059 = vld [vmem:[#allocation2 + $0x48] sm:$0xff]
        %v3060 = vld [vmem:[#allocation2 + $0x50] sm:$0xff]
        %v3061 = vld [vmem:[#allocation2 + $0x58] sm:$0xff]
        %v3062 = vld [vmem:[#allocation2 + $0x60] sm:$0xff]
        %v3063 = vld [vmem:[#allocation2 + $0x68] sm:$0xff]
        %v3064 = vld [vmem:[#allocation2 + $0x70] sm:$0xff]
        %v3065 = vld [vmem:[#allocation2 + $0x78] sm:$0xff]
        %v3066 = vld [vmem:[#allocation3] sm:$0xc0]
        %v3067 = vld [vmem:[#allocation3 + $0x8] sm:$0xc0]
        %3084 = vrot.lane.b32.xlu0 %v3050, 116
        %v3085 = vpop.permute.xlu0 %3084
        %3086 = vrot.lane.b32.xlu0 %v3051, 116
        %v3087 = vpop.permute.xlu0 %3086
        %3088 = vrot.lane.b32.xlu0 %v3052, 116
        %v3089 = vpop.permute.xlu0 %3088
        %3090 = vrot.lane.b32.xlu0 %v3053, 116
        %v3091 = vpop.permute.xlu0 %3090
        %3092 = vrot.lane.b32.xlu0 %v3054, 116
        %v3093 = vpop.permute.xlu0 %3092
        %3094 = vrot.lane.b32.xlu0 %v3055, 116
        %v3095 = vpop.permute.xlu0 %3094
        %3096 = vrot.lane.b32.xlu0 %v3056, 116
        %v3097 = vpop.permute.xlu0 %3096
        %3098 = vrot.lane.b32.xlu0 %v3057, 116
        %v3099 = vpop.permute.xlu0 %3098
        %3100 = vrot.lane.b32.xlu0 %v3058, 116
        %v3101 = vpop.permute.xlu0 %3100
        %3102 = vrot.lane.b32.xlu0 %v3059, 116
        %v3103 = vpop.permute.xlu0 %3102
        %3104 = vrot.lane.b32.xlu0 %v3060, 116
        %v3105 = vpop.permute.xlu0 %3104
        %3106 = vrot.lane.b32.xlu0 %v3061, 116
        %v3107 = vpop.permute.xlu0 %3106
        %3108 = vrot.lane.b32.xlu0 %v3062, 116
        %v3109 = vpop.permute.xlu0 %3108
        %3110 = vrot.lane.b32.xlu0 %v3063, 116
        %v3111 = vpop.permute.xlu0 %3110
        %3112 = vrot.lane.b32.xlu0 %v3064, 116
        %v3113 = vpop.permute.xlu0 %3112
        %3114 = vrot.lane.b32.xlu0 %v3065, 116
        %v3115 = vpop.permute.xlu0 %3114
        %v3116 = vrot.slane %v688, 6
        %v3117 = vrot.slane %v689, 6
        %v3119 = vsel %vm621, %v3085, 0
        %v3122 = vsel %vm621, %v3087, 0
        %v3125 = vsel %vm621, %v3089, 0
        %v3128 = vsel %vm621, %v3091, 0
        %v3131 = vsel %vm621, %v3093, 0
        %v3134 = vsel %vm621, %v3095, 0
        %v3137 = vsel %vm621, %v3097, 0
        %v3140 = vsel %vm621, %v3099, 0
        %v3143 = vsel %vm621, %v3101, 0
        %v3146 = vsel %vm621, %v3103, 0
        %v3149 = vsel %vm621, %v3105, 0
        %v3152 = vsel %vm621, %v3107, 0
        %v3155 = vsel %vm621, %v3109, 0
        %v3158 = vsel %vm621, %v3111, 0
        %v3161 = vsel %vm621, %v3113, 0
        %v3164 = vsel %vm621, %v3115, 0
        %v3167 = vsel %vm628, %v3116, 0
        %v3170 = vsel %vm628, %v3117, 0
        %3172 = vmatprep.subr.bf16.mxu0 %v3170
        %3173 = vmatpush1.bf16.msra.mxu0 %v3167
        %3174 = vmatprep.subr.bf16.mxu0 0
        %3175 = vmatpush1.bf16.msra.mxu0 0
        %3176 = vmatprep.subr.bf16.mxu0 0
        %3177 = vmatpush1.bf16.msra.mxu0 0
        %3178 = vmatprep.subr.bf16.mxu0 0
        %3179 = vmatpush1.bf16.msra.mxu0 0
        %3180 = vmatprep.subr.bf16.mxu0 0
        %3181 = vmatpush1.bf16.msra.mxu0 0
        %3182 = vmatprep.subr.bf16.mxu0 0
        %3183 = vmatpush1.bf16.msra.mxu0 0
        %3184 = vmatprep.subr.bf16.mxu0 0
        %3185 = vmatpush1.bf16.msra.mxu0 0
        %3186 = vmatprep.subr.bf16.mxu0 0
        %3187 = vmatpush1.bf16.msra.mxu0 0
        %3188 = vmatprep.subr.bf16.mxu0 0
        %3189 = vmatpush1.bf16.msra.mxu0 0
        %3190 = vmatprep.subr.bf16.mxu0 0
        %3191 = vmatpush1.bf16.msra.mxu0 0
        %3192 = vmatprep.subr.bf16.mxu0 0
        %3193 = vmatpush1.bf16.msra.mxu0 0
        %3194 = vmatprep.subr.bf16.mxu0 0
        %3195 = vmatpush1.bf16.msra.mxu0 0
        %3196 = vmatprep.subr.bf16.mxu0 0
        %3197 = vmatpush1.bf16.msra.mxu0 0
        %3198 = vmatprep.subr.bf16.mxu0 0
        %3199 = vmatpush1.bf16.msra.mxu0 0
        %3200 = vmatprep.subr.bf16.mxu0 0
        %3201 = vmatpush1.bf16.msra.mxu0 0
        %3202 = vmatprep.subr.bf16.mxu0 0
        %3203 = vmatpush1.bf16.msra.mxu0 0
        %3204 = vmatprep.mubr.bf16.mxu0 0
        %3205 = vmatmul.mubr.bf16.gmra.mrb[0].mxu0 %v3119
        %v3206 = vpop.f32.mrb[0].mxu0
        %v3207 = vadd.f32 0.0, %v3206
        %v3208 = vpop.f32.mrb[0].mxu0
        %v3209 = vadd.f32 0.0, %v3208
        %v3210 = vpop.f32.mrb[0].mxu0
        %v3211 = vadd.f32 0.0, %v3210
        %v3212 = vpop.f32.mrb[0].mxu0
        %v3213 = vadd.f32 0.0, %v3212
        %3214 = vmatprep.mubr.bf16.mxu0 0
        %3215 = vmatmul.mubr.bf16.gmra.mrb[0].mxu0 %v3122
        %v3216 = vpop.f32.mrb[0].mxu0
        %v3217 = vadd.f32 0.0, %v3216
        %v3218 = vpop.f32.mrb[0].mxu0
        %v3219 = vadd.f32 0.0, %v3218
        %v3220 = vpop.f32.mrb[0].mxu0
        %v3221 = vadd.f32 0.0, %v3220
        %v3222 = vpop.f32.mrb[0].mxu0
        %v3223 = vadd.f32 0.0, %v3222
        %3224 = vmatprep.mubr.bf16.mxu0 0
        %3225 = vmatmul.mubr.bf16.gmra.mrb[0].mxu0 %v3125
        %v3226 = vpop.f32.mrb[0].mxu0
        %v3227 = vadd.f32 0.0, %v3226
        %v3228 = vpop.f32.mrb[0].mxu0
        %v3229 = vadd.f32 0.0, %v3228
        %v3230 = vpop.f32.mrb[0].mxu0
        %v3231 = vadd.f32 0.0, %v3230
        %v3232 = vpop.f32.mrb[0].mxu0
        %v3233 = vadd.f32 0.0, %v3232
        %3234 = vmatprep.mubr.bf16.mxu0 0
        %3235 = vmatmul.mubr.bf16.gmra.mrb[0].mxu0 %v3128
        %v3236 = vpop.f32.mrb[0].mxu0
        %v3237 = vadd.f32 0.0, %v3236
        %v3238 = vpop.f32.mrb[0].mxu0
        %v3239 = vadd.f32 0.0, %v3238
        %v3240 = vpop.f32.mrb[0].mxu0
        %v3241 = vadd.f32 0.0, %v3240
        %v3242 = vpop.f32.mrb[0].mxu0
        %v3243 = vadd.f32 0.0, %v3242
        %3244 = vmatprep.mubr.bf16.mxu0 0
        %3245 = vmatmul.mubr.bf16.gmra.mrb[0].mxu0 %v3131
        %v3246 = vpop.f32.mrb[0].mxu0
        %v3247 = vadd.f32 0.0, %v3246
        %v3248 = vpop.f32.mrb[0].mxu0
        %v3249 = vadd.f32 0.0, %v3248
        %v3250 = vpop.f32.mrb[0].mxu0
        %v3251 = vadd.f32 0.0, %v3250
        %v3252 = vpop.f32.mrb[0].mxu0
        %v3253 = vadd.f32 0.0, %v3252
        %3254 = vmatprep.mubr.bf16.mxu0 0
        %3255 = vmatmul.mubr.bf16.gmra.mrb[0].mxu0 %v3134
        %v3256 = vpop.f32.mrb[0].mxu0
        %v3257 = vadd.f32 0.0, %v3256
        %v3258 = vpop.f32.mrb[0].mxu0
        %v3259 = vadd.f32 0.0, %v3258
        %v3260 = vpop.f32.mrb[0].mxu0
        %v3261 = vadd.f32 0.0, %v3260
        %v3262 = vpop.f32.mrb[0].mxu0
        %v3263 = vadd.f32 0.0, %v3262
        %3264 = vmatprep.mubr.bf16.mxu0 0
        %3265 = vmatmul.mubr.bf16.gmra.mrb[0].mxu0 %v3137
        %v3266 = vpop.f32.mrb[0].mxu0
        %v3267 = vadd.f32 0.0, %v3266
        %v3268 = vpop.f32.mrb[0].mxu0
        %v3269 = vadd.f32 0.0, %v3268
        %v3270 = vpop.f32.mrb[0].mxu0
        %v3271 = vadd.f32 0.0, %v3270
        %v3272 = vpop.f32.mrb[0].mxu0
        %v3273 = vadd.f32 0.0, %v3272
        %3274 = vmatprep.mubr.bf16.mxu0 0
        %3275 = vmatmul.mubr.bf16.gmra.mrb[0].mxu0 %v3140
        %v3276 = vpop.f32.mrb[0].mxu0
        %v3277 = vadd.f32 0.0, %v3276
        %v3278 = vpop.f32.mrb[0].mxu0
        %v3279 = vadd.f32 0.0, %v3278
        %v3280 = vpop.f32.mrb[0].mxu0
        %v3281 = vadd.f32 0.0, %v3280
        %v3282 = vpop.f32.mrb[0].mxu0
        %v3283 = vadd.f32 0.0, %v3282
        %3284 = vmatprep.mubr.bf16.mxu0 0
        %3285 = vmatmul.mubr.bf16.gmra.mrb[0].mxu0 %v3143
        %v3286 = vpop.f32.mrb[0].mxu0
        %v3287 = vadd.f32 0.0, %v3286
        %v3288 = vpop.f32.mrb[0].mxu0
        %v3289 = vadd.f32 0.0, %v3288
        %v3290 = vpop.f32.mrb[0].mxu0
        %v3291 = vadd.f32 0.0, %v3290
        %v3292 = vpop.f32.mrb[0].mxu0
        %v3293 = vadd.f32 0.0, %v3292
        %3294 = vmatprep.mubr.bf16.mxu0 0
        %3295 = vmatmul.mubr.bf16.gmra.mrb[0].mxu0 %v3146
        %v3296 = vpop.f32.mrb[0].mxu0
        %v3297 = vadd.f32 0.0, %v3296
        %v3298 = vpop.f32.mrb[0].mxu0
        %v3299 = vadd.f32 0.0, %v3298
        %v3300 = vpop.f32.mrb[0].mxu0
        %v3301 = vadd.f32 0.0, %v3300
        %v3302 = vpop.f32.mrb[0].mxu0
        %v3303 = vadd.f32 0.0, %v3302
        %3304 = vmatprep.mubr.bf16.mxu0 0
        %3305 = vmatmul.mubr.bf16.gmra.mrb[0].mxu0 %v3149
        %v3306 = vpop.f32.mrb[0].mxu0
        %v3307 = vadd.f32 0.0, %v3306
        %v3308 = vpop.f32.mrb[0].mxu0
        %v3309 = vadd.f32 0.0, %v3308
        %v3310 = vpop.f32.mrb[0].mxu0
        %v3311 = vadd.f32 0.0, %v3310
        %v3312 = vpop.f32.mrb[0].mxu0
        %v3313 = vadd.f32 0.0, %v3312
        %3314 = vmatprep.mubr.bf16.mxu0 0
        %3315 = vmatmul.mubr.bf16.gmra.mrb[0].mxu0 %v3152
        %v3316 = vpop.f32.mrb[0].mxu0
        %v3317 = vadd.f32 0.0, %v3316
        %v3318 = vpop.f32.mrb[0].mxu0
        %v3319 = vadd.f32 0.0, %v3318
        %v3320 = vpop.f32.mrb[0].mxu0
        %v3321 = vadd.f32 0.0, %v3320
        %v3322 = vpop.f32.mrb[0].mxu0
        %v3323 = vadd.f32 0.0, %v3322
        %3324 = vmatprep.mubr.bf16.mxu0 0
        %3325 = vmatmul.mubr.bf16.gmra.mrb[0].mxu0 %v3155
        %v3326 = vpop.f32.mrb[0].mxu0
        %v3327 = vadd.f32 0.0, %v3326
        %v3328 = vpop.f32.mrb[0].mxu0
        %v3329 = vadd.f32 0.0, %v3328
        %v3330 = vpop.f32.mrb[0].mxu0
        %v3331 = vadd.f32 0.0, %v3330
        %v3332 = vpop.f32.mrb[0].mxu0
        %v3333 = vadd.f32 0.0, %v3332
        %3334 = vmatprep.mubr.bf16.mxu0 0
        %3335 = vmatmul.mubr.bf16.gmra.mrb[0].mxu0 %v3158
        %v3336 = vpop.f32.mrb[0].mxu0
        %v3337 = vadd.f32 0.0, %v3336
        %v3338 = vpop.f32.mrb[0].mxu0
        %v3339 = vadd.f32 0.0, %v3338
        %v3340 = vpop.f32.mrb[0].mxu0
        %v3341 = vadd.f32 0.0, %v3340
        %v3342 = vpop.f32.mrb[0].mxu0
        %v3343 = vadd.f32 0.0, %v3342
        %3344 = vmatprep.mubr.bf16.mxu0 0
        %3345 = vmatmul.mubr.bf16.gmra.mrb[0].mxu0 %v3161
        %v3346 = vpop.f32.mrb[0].mxu0
        %v3347 = vadd.f32 0.0, %v3346
        %v3348 = vpop.f32.mrb[0].mxu0
        %v3349 = vadd.f32 0.0, %v3348
        %v3350 = vpop.f32.mrb[0].mxu0
        %v3351 = vadd.f32 0.0, %v3350
        %v3352 = vpop.f32.mrb[0].mxu0
        %v3353 = vadd.f32 0.0, %v3352
        %3354 = vmatprep.mubr.bf16.mxu0 0
        %3355 = vmatmul.mubr.bf16.gmra.mrb[0].mxu0 %v3164
        %v3356 = vpop.f32.mrb[0].mxu0
        %v3357 = vadd.f32 0.0, %v3356
        %v3358 = vpop.f32.mrb[0].mxu0
        %v3359 = vadd.f32 0.0, %v3358
        %v3360 = vpop.f32.mrb[0].mxu0
        %v3361 = vadd.f32 0.0, %v3360
        %v3362 = vpop.f32.mrb[0].mxu0
        %v3363 = vadd.f32 0.0, %v3362
        %3364 = vdwg.mxu0
        %v3365 = vmax.f32 %v3207, %v3217
        %v3366 = vmax.f32 %v3211, %v3221
        %v3367 = vmax.f32 %v3365, %v3227
        %v3368 = vmax.f32 %v3366, %v3231
        %v3369 = vmax.f32 %v3367, %v3237
        %v3370 = vmax.f32 %v3368, %v3241
        %v3371 = vmax.f32 %v3369, %v3247
        %v3372 = vmax.f32 %v3370, %v3251
        %v3373 = vmax.f32 %v3371, %v3257
        %v3374 = vmax.f32 %v3372, %v3261
        %v3375 = vmax.f32 %v3373, %v3267
        %v3376 = vmax.f32 %v3374, %v3271
        %v3377 = vmax.f32 %v3375, %v3277
        %v3378 = vmax.f32 %v3376, %v3281
        %v3379 = vmax.f32 %v3377, %v3287
        %v3380 = vmax.f32 %v3378, %v3291
        %v3381 = vmax.f32 %v3379, %v3297
        %v3382 = vmax.f32 %v3380, %v3301
        %v3383 = vmax.f32 %v3381, %v3307
        %v3384 = vmax.f32 %v3382, %v3311
        %v3385 = vmax.f32 %v3383, %v3317
        %v3386 = vmax.f32 %v3384, %v3321
        %v3387 = vmax.f32 %v3385, %v3327
        %v3388 = vmax.f32 %v3386, %v3331
        %v3389 = vmax.f32 %v3387, %v3337
        %v3390 = vmax.f32 %v3388, %v3341
        %v3391 = vmax.f32 %v3389, %v3347
        %v3392 = vmax.f32 %v3390, %v3351
        %v3393 = vmax.f32 %v3391, %v3357
        %v3394 = vmax.f32 %v3392, %v3361
        %v3395 = vmax.f32 %v3393, %v3394
        %v3396 = vrot.slane %v3395, 4
        %v3397 = vmax.f32 %v3395, %v3396
        %v3398 = vrot.slane %v3397, 2
        %v3399 = vmax.f32 %v3397, %v3398
        %v3400 = vrot.slane %v3399, 1
        %v3401 = vmax.f32 %v3399, %v3400
        %v3402 = vmax.f32 %v3209, %v3219
        %v3403 = vmax.f32 %v3213, %v3223
        %v3404 = vmax.f32 %v3402, %v3229
        %v3405 = vmax.f32 %v3403, %v3233
        %v3406 = vmax.f32 %v3404, %v3239
        %v3407 = vmax.f32 %v3405, %v3243
        %v3408 = vmax.f32 %v3406, %v3249
        %v3409 = vmax.f32 %v3407, %v3253
        %v3410 = vmax.f32 %v3408, %v3259
        %v3411 = vmax.f32 %v3409, %v3263
        %v3412 = vmax.f32 %v3410, %v3269
        %v3413 = vmax.f32 %v3411, %v3273
        %v3414 = vmax.f32 %v3412, %v3279
        %v3415 = vmax.f32 %v3413, %v3283
        %v3416 = vmax.f32 %v3414, %v3289
        %v3417 = vmax.f32 %v3415, %v3293
        %v3418 = vmax.f32 %v3416, %v3299
        %v3419 = vmax.f32 %v3417, %v3303
        %v3420 = vmax.f32 %v3418, %v3309
        %v3421 = vmax.f32 %v3419, %v3313
        %v3422 = vmax.f32 %v3420, %v3319
        %v3423 = vmax.f32 %v3421, %v3323
        %v3424 = vmax.f32 %v3422, %v3329
        %v3425 = vmax.f32 %v3423, %v3333
        %v3426 = vmax.f32 %v3424, %v3339
        %v3427 = vmax.f32 %v3425, %v3343
        %v3428 = vmax.f32 %v3426, %v3349
        %v3429 = vmax.f32 %v3427, %v3353
        %v3430 = vmax.f32 %v3428, %v3359
        %v3431 = vmax.f32 %v3429, %v3363
        %v3432 = vmax.f32 %v3430, %v3431
        %v3433 = vrot.slane %v3432, 4
        %v3434 = vmax.f32 %v3432, %v3433
        %v3435 = vrot.slane %v3434, 2
        %v3436 = vmax.f32 %v3434, %v3435
        %v3437 = vrot.slane %v3436, 1
        %v3438 = vmax.f32 %v3436, %v3437
        %v3439 = vsub.f32 %v3207, %v3401
        %v3440 = vsub.f32 %v3209, %v3438
        %v3441 = vsub.f32 %v3211, %v3401
        %v3442 = vsub.f32 %v3213, %v3438
        %v3443 = vsub.f32 %v3217, %v3401
        %v3444 = vsub.f32 %v3219, %v3438
        %v3445 = vsub.f32 %v3221, %v3401
        %v3446 = vsub.f32 %v3223, %v3438
        %v3447 = vsub.f32 %v3227, %v3401
        %v3448 = vsub.f32 %v3229, %v3438
        %v3449 = vsub.f32 %v3231, %v3401
        %v3450 = vsub.f32 %v3233, %v3438
        %v3451 = vsub.f32 %v3237, %v3401
        %v3452 = vsub.f32 %v3239, %v3438
        %v3453 = vsub.f32 %v3241, %v3401
        %v3454 = vsub.f32 %v3243, %v3438
        %v3455 = vsub.f32 %v3247, %v3401
        %v3456 = vsub.f32 %v3249, %v3438
        %v3457 = vsub.f32 %v3251, %v3401
        %v3458 = vsub.f32 %v3253, %v3438
        %v3459 = vsub.f32 %v3257, %v3401
        %v3460 = vsub.f32 %v3259, %v3438
        %v3461 = vsub.f32 %v3261, %v3401
        %v3462 = vsub.f32 %v3263, %v3438
        %v3463 = vsub.f32 %v3267, %v3401
        %v3464 = vsub.f32 %v3269, %v3438
        %v3465 = vsub.f32 %v3271, %v3401
        %v3466 = vsub.f32 %v3273, %v3438
        %v3467 = vsub.f32 %v3277, %v3401
        %v3468 = vsub.f32 %v3279, %v3438
        %v3469 = vsub.f32 %v3281, %v3401
        %v3470 = vsub.f32 %v3283, %v3438
        %v3471 = vsub.f32 %v3287, %v3401
        %v3472 = vsub.f32 %v3289, %v3438
        %v3473 = vsub.f32 %v3291, %v3401
        %v3474 = vsub.f32 %v3293, %v3438
        %v3475 = vsub.f32 %v3297, %v3401
        %v3476 = vsub.f32 %v3299, %v3438
        %v3477 = vsub.f32 %v3301, %v3401
        %v3478 = vsub.f32 %v3303, %v3438
        %v3479 = vsub.f32 %v3307, %v3401
        %v3480 = vsub.f32 %v3309, %v3438
        %v3481 = vsub.f32 %v3311, %v3401
        %v3482 = vsub.f32 %v3313, %v3438
        %v3483 = vsub.f32 %v3317, %v3401
        %v3484 = vsub.f32 %v3319, %v3438
        %v3485 = vsub.f32 %v3321, %v3401
        %v3486 = vsub.f32 %v3323, %v3438
        %v3487 = vsub.f32 %v3327, %v3401
        %v3488 = vsub.f32 %v3329, %v3438
        %v3489 = vsub.f32 %v3331, %v3401
        %v3490 = vsub.f32 %v3333, %v3438
        %v3491 = vsub.f32 %v3337, %v3401
        %v3492 = vsub.f32 %v3339, %v3438
        %v3493 = vsub.f32 %v3341, %v3401
        %v3494 = vsub.f32 %v3343, %v3438
        %v3495 = vsub.f32 %v3347, %v3401
        %v3496 = vsub.f32 %v3349, %v3438
        %v3497 = vsub.f32 %v3351, %v3401
        %v3498 = vsub.f32 %v3353, %v3438
        %v3499 = vsub.f32 %v3357, %v3401
        %v3500 = vsub.f32 %v3359, %v3438
        %v3501 = vsub.f32 %v3361, %v3401
        %v3502 = vsub.f32 %v3363, %v3438
        %v3503 = vmul.f32 %v3439, 1.442695
        %v3504 = vpow.pop %v3503
        %v3505 = vmul.f32 %v3440, 1.442695
        %v3506 = vpow.pop %v3505
        %v3507 = vmul.f32 %v3441, 1.442695
        %v3508 = vpow.pop %v3507
        %v3509 = vmul.f32 %v3442, 1.442695
        %v3510 = vpow.pop %v3509
        %v3511 = vmul.f32 %v3443, 1.442695
        %v3512 = vpow.pop %v3511
        %v3513 = vmul.f32 %v3444, 1.442695
        %v3514 = vpow.pop %v3513
        %v3515 = vmul.f32 %v3445, 1.442695
        %v3516 = vpow.pop %v3515
        %v3517 = vmul.f32 %v3446, 1.442695
        %v3518 = vpow.pop %v3517
        %v3519 = vmul.f32 %v3447, 1.442695
        %v3520 = vpow.pop %v3519
        %v3521 = vmul.f32 %v3448, 1.442695
        %v3522 = vpow.pop %v3521
        %v3523 = vmul.f32 %v3449, 1.442695
        %v3524 = vpow.pop %v3523
        %v3525 = vmul.f32 %v3450, 1.442695
        %v3526 = vpow.pop %v3525
        %v3527 = vmul.f32 %v3451, 1.442695
        %v3528 = vpow.pop %v3527
        %v3529 = vmul.f32 %v3452, 1.442695
        %v3530 = vpow.pop %v3529
        %v3531 = vmul.f32 %v3453, 1.442695
        %v3532 = vpow.pop %v3531
        %v3533 = vmul.f32 %v3454, 1.442695
        %v3534 = vpow.pop %v3533
        %v3535 = vmul.f32 %v3455, 1.442695
        %v3536 = vpow.pop %v3535
        %v3537 = vmul.f32 %v3456, 1.442695
        %v3538 = vpow.pop %v3537
        %v3539 = vmul.f32 %v3457, 1.442695
        %v3540 = vpow.pop %v3539
        %v3541 = vmul.f32 %v3458, 1.442695
        %v3542 = vpow.pop %v3541
        %v3543 = vmul.f32 %v3459, 1.442695
        %v3544 = vpow.pop %v3543
        %v3545 = vmul.f32 %v3460, 1.442695
        %v3546 = vpow.pop %v3545
        %v3547 = vmul.f32 %v3461, 1.442695
        %v3548 = vpow.pop %v3547
        %v3549 = vmul.f32 %v3462, 1.442695
        %v3550 = vpow.pop %v3549
        %v3551 = vmul.f32 %v3463, 1.442695
        %v3552 = vpow.pop %v3551
        %v3553 = vmul.f32 %v3464, 1.442695
        %v3554 = vpow.pop %v3553
        %v3555 = vmul.f32 %v3465, 1.442695
        %v3556 = vpow.pop %v3555
        %v3557 = vmul.f32 %v3466, 1.442695
        %v3558 = vpow.pop %v3557
        %v3559 = vmul.f32 %v3467, 1.442695
        %v3560 = vpow.pop %v3559
        %v3561 = vmul.f32 %v3468, 1.442695
        %v3562 = vpow.pop %v3561
        %v3563 = vmul.f32 %v3469, 1.442695
        %v3564 = vpow.pop %v3563
        %v3565 = vmul.f32 %v3470, 1.442695
        %v3566 = vpow.pop %v3565
        %v3567 = vmul.f32 %v3471, 1.442695
        %v3568 = vpow.pop %v3567
        %v3569 = vmul.f32 %v3472, 1.442695
        %v3570 = vpow.pop %v3569
        %v3571 = vmul.f32 %v3473, 1.442695
        %v3572 = vpow.pop %v3571
        %v3573 = vmul.f32 %v3474, 1.442695
        %v3574 = vpow.pop %v3573
        %v3575 = vmul.f32 %v3475, 1.442695
        %v3576 = vpow.pop %v3575
        %v3577 = vmul.f32 %v3476, 1.442695
        %v3578 = vpow.pop %v3577
        %v3579 = vmul.f32 %v3477, 1.442695
        %v3580 = vpow.pop %v3579
        %v3581 = vmul.f32 %v3478, 1.442695
        %v3582 = vpow.pop %v3581
        %v3583 = vmul.f32 %v3479, 1.442695
        %v3584 = vpow.pop %v3583
        %v3585 = vmul.f32 %v3480, 1.442695
        %v3586 = vpow.pop %v3585
        %v3587 = vmul.f32 %v3481, 1.442695
        %v3588 = vpow.pop %v3587
        %v3589 = vmul.f32 %v3482, 1.442695
        %v3590 = vpow.pop %v3589
        %v3591 = vmul.f32 %v3483, 1.442695
        %v3592 = vpow.pop %v3591
        %v3593 = vmul.f32 %v3484, 1.442695
        %v3594 = vpow.pop %v3593
        %v3595 = vmul.f32 %v3485, 1.442695
        %v3596 = vpow.pop %v3595
        %v3597 = vmul.f32 %v3486, 1.442695
        %v3598 = vpow.pop %v3597
        %v3599 = vmul.f32 %v3487, 1.442695
        %v3600 = vpow.pop %v3599
        %v3601 = vmul.f32 %v3488, 1.442695
        %v3602 = vpow.pop %v3601
        %v3603 = vmul.f32 %v3489, 1.442695
        %v3604 = vpow.pop %v3603
        %v3605 = vmul.f32 %v3490, 1.442695
        %v3606 = vpow.pop %v3605
        %v3607 = vmul.f32 %v3491, 1.442695
        %v3608 = vpow.pop %v3607
        %v3609 = vmul.f32 %v3492, 1.442695
        %v3610 = vpow.pop %v3609
        %v3611 = vmul.f32 %v3493, 1.442695
        %v3612 = vpow.pop %v3611
        %v3613 = vmul.f32 %v3494, 1.442695
        %v3614 = vpow.pop %v3613
        %v3615 = vmul.f32 %v3495, 1.442695
        %v3616 = vpow.pop %v3615
        %v3617 = vmul.f32 %v3496, 1.442695
        %v3618 = vpow.pop %v3617
        %v3619 = vmul.f32 %v3497, 1.442695
        %v3620 = vpow.pop %v3619
        %v3621 = vmul.f32 %v3498, 1.442695
        %v3622 = vpow.pop %v3621
        %v3623 = vmul.f32 %v3499, 1.442695
        %v3624 = vpow.pop %v3623
        %v3625 = vmul.f32 %v3500, 1.442695
        %v3626 = vpow.pop %v3625
        %v3627 = vmul.f32 %v3501, 1.442695
        %v3628 = vpow.pop %v3627
        %v3629 = vmul.f32 %v3502, 1.442695
        %v3630 = vpow.pop %v3629
        %v3631 = vadd.f32 %v3504, %v3508
        %v3632 = vadd.f32 %v3631, %v3512
        %v3633 = vadd.f32 %v3632, %v3516
        %v3634 = vadd.f32 %v3633, %v3520
        %v3635 = vadd.f32 %v3634, %v3524
        %v3636 = vadd.f32 %v3635, %v3528
        %v3637 = vadd.f32 %v3636, %v3532
        %v3638 = vadd.f32 %v3637, %v3536
        %v3639 = vadd.f32 %v3638, %v3540
        %v3640 = vadd.f32 %v3639, %v3544
        %v3641 = vadd.f32 %v3640, %v3548
        %v3642 = vadd.f32 %v3641, %v3552
        %v3643 = vadd.f32 %v3642, %v3556
        %v3644 = vadd.f32 %v3643, %v3560
        %v3645 = vadd.f32 %v3644, %v3564
        %v3646 = vadd.f32 %v3645, %v3568
        %v3647 = vadd.f32 %v3646, %v3572
        %v3648 = vadd.f32 %v3647, %v3576
        %v3649 = vadd.f32 %v3648, %v3580
        %v3650 = vadd.f32 %v3649, %v3584
        %v3651 = vadd.f32 %v3650, %v3588
        %v3652 = vadd.f32 %v3651, %v3592
        %v3653 = vadd.f32 %v3652, %v3596
        %v3654 = vadd.f32 %v3653, %v3600
        %v3655 = vadd.f32 %v3654, %v3604
        %v3656 = vadd.f32 %v3655, %v3608
        %v3657 = vadd.f32 %v3656, %v3612
        %v3658 = vadd.f32 %v3657, %v3616
        %v3659 = vadd.f32 %v3658, %v3620
        %v3660 = vadd.f32 %v3659, %v3624
        %v3661 = vadd.f32 %v3660, %v3628
        %v3662 = vrot.slane %v3661, 4
        %v3663 = vadd.f32 %v3661, %v3662
        %v3664 = vrot.slane %v3663, 2
        %v3665 = vadd.f32 %v3663, %v3664
        %v3666 = vrot.slane %v3665, 1
        %v3667 = vadd.f32 %v3665, %v3666
        %v3668 = vadd.f32 %v3506, %v3510
        %v3669 = vadd.f32 %v3668, %v3514
        %v3670 = vadd.f32 %v3669, %v3518
        %v3671 = vadd.f32 %v3670, %v3522
        %v3672 = vadd.f32 %v3671, %v3526
        %v3673 = vadd.f32 %v3672, %v3530
        %v3674 = vadd.f32 %v3673, %v3534
        %v3675 = vadd.f32 %v3674, %v3538
        %v3676 = vadd.f32 %v3675, %v3542
        %v3677 = vadd.f32 %v3676, %v3546
        %v3678 = vadd.f32 %v3677, %v3550
        %v3679 = vadd.f32 %v3678, %v3554
        %v3680 = vadd.f32 %v3679, %v3558
        %v3681 = vadd.f32 %v3680, %v3562
        %v3682 = vadd.f32 %v3681, %v3566
        %v3683 = vadd.f32 %v3682, %v3570
        %v3684 = vadd.f32 %v3683, %v3574
        %v3685 = vadd.f32 %v3684, %v3578
        %v3686 = vadd.f32 %v3685, %v3582
        %v3687 = vadd.f32 %v3686, %v3586
        %v3688 = vadd.f32 %v3687, %v3590
        %v3689 = vadd.f32 %v3688, %v3594
        %v3690 = vadd.f32 %v3689, %v3598
        %v3691 = vadd.f32 %v3690, %v3602
        %v3692 = vadd.f32 %v3691, %v3606
        %v3693 = vadd.f32 %v3692, %v3610
        %v3694 = vadd.f32 %v3693, %v3614
        %v3695 = vadd.f32 %v3694, %v3618
        %v3696 = vadd.f32 %v3695, %v3622
        %v3697 = vadd.f32 %v3696, %v3626
        %v3698 = vadd.f32 %v3697, %v3630
        %v3699 = vrot.slane %v3698, 4
        %v3700 = vadd.f32 %v3698, %v3699
        %v3701 = vrot.slane %v3700, 2
        %v3702 = vadd.f32 %v3700, %v3701
        %v3703 = vrot.slane %v3702, 1
        %v3704 = vadd.f32 %v3702, %v3703
        %v3705 = vrcp.pop %v3667
        %v3706 = vrcp.pop %v3704
        %v3707 = vmul.f32 %v3504, %v3705
        %v3708 = vmul.f32 %v3506, %v3706
        %v3709 = vmul.f32 %v3508, %v3705
        %v3710 = vmul.f32 %v3510, %v3706
        %v3711 = vmul.f32 %v3512, %v3705
        %v3712 = vmul.f32 %v3514, %v3706
        %v3713 = vmul.f32 %v3516, %v3705
        %v3714 = vmul.f32 %v3518, %v3706
        %v3715 = vmul.f32 %v3520, %v3705
        %v3716 = vmul.f32 %v3522, %v3706
        %v3717 = vmul.f32 %v3524, %v3705
        %v3718 = vmul.f32 %v3526, %v3706
        %v3719 = vmul.f32 %v3528, %v3705
        %v3720 = vmul.f32 %v3530, %v3706
        %v3721 = vmul.f32 %v3532, %v3705
        %v3722 = vmul.f32 %v3534, %v3706
        %v3723 = vmul.f32 %v3536, %v3705
        %v3724 = vmul.f32 %v3538, %v3706
        %v3725 = vmul.f32 %v3540, %v3705
        %v3726 = vmul.f32 %v3542, %v3706
        %v3727 = vmul.f32 %v3544, %v3705
        %v3728 = vmul.f32 %v3546, %v3706
        %v3729 = vmul.f32 %v3548, %v3705
        %v3730 = vmul.f32 %v3550, %v3706
        %v3731 = vmul.f32 %v3552, %v3705
        %v3732 = vmul.f32 %v3554, %v3706
        %v3733 = vmul.f32 %v3556, %v3705
        %v3734 = vmul.f32 %v3558, %v3706
        %v3735 = vmul.f32 %v3560, %v3705
        %v3736 = vmul.f32 %v3562, %v3706
        %v3737 = vmul.f32 %v3564, %v3705
        %v3738 = vmul.f32 %v3566, %v3706
        %v3739 = vmul.f32 %v3568, %v3705
        %v3740 = vmul.f32 %v3570, %v3706
        %v3741 = vmul.f32 %v3572, %v3705
        %v3742 = vmul.f32 %v3574, %v3706
        %v3743 = vmul.f32 %v3576, %v3705
        %v3744 = vmul.f32 %v3578, %v3706
        %v3745 = vmul.f32 %v3580, %v3705
        %v3746 = vmul.f32 %v3582, %v3706
        %v3747 = vmul.f32 %v3584, %v3705
        %v3748 = vmul.f32 %v3586, %v3706
        %v3749 = vmul.f32 %v3588, %v3705
        %v3750 = vmul.f32 %v3590, %v3706
        %v3751 = vmul.f32 %v3592, %v3705
        %v3752 = vmul.f32 %v3594, %v3706
        %v3753 = vmul.f32 %v3596, %v3705
        %v3754 = vmul.f32 %v3598, %v3706
        %v3755 = vmul.f32 %v3600, %v3705
        %v3756 = vmul.f32 %v3602, %v3706
        %v3757 = vmul.f32 %v3604, %v3705
        %v3758 = vmul.f32 %v3606, %v3706
        %v3759 = vmul.f32 %v3608, %v3705
        %v3760 = vmul.f32 %v3610, %v3706
        %v3761 = vmul.f32 %v3612, %v3705
        %v3762 = vmul.f32 %v3614, %v3706
        %v3763 = vmul.f32 %v3616, %v3705
        %v3764 = vmul.f32 %v3618, %v3706
        %v3765 = vmul.f32 %v3620, %v3705
        %v3766 = vmul.f32 %v3622, %v3706
        %v3767 = vmul.f32 %v3624, %v3705
        %v3768 = vmul.f32 %v3626, %v3706
        %v3769 = vmul.f32 %v3628, %v3705
        %v3770 = vmul.f32 %v3630, %v3706
        %v3771 = vpack.c.bf16 %v3709, %v3707
        %v3772 = vpack.c.bf16 %v3710, %v3708
        %v3773 = vpack.c.bf16 %v3713, %v3711
        %v3774 = vpack.c.bf16 %v3714, %v3712
        %v3775 = vpack.c.bf16 %v3717, %v3715
        %v3776 = vpack.c.bf16 %v3718, %v3716
        %v3777 = vpack.c.bf16 %v3721, %v3719
        %v3778 = vpack.c.bf16 %v3722, %v3720
        %v3779 = vpack.c.bf16 %v3725, %v3723
        %v3780 = vpack.c.bf16 %v3726, %v3724
        %v3781 = vpack.c.bf16 %v3729, %v3727
        %v3782 = vpack.c.bf16 %v3730, %v3728
        %v3783 = vpack.c.bf16 %v3733, %v3731
        %v3784 = vpack.c.bf16 %v3734, %v3732
        %v3785 = vpack.c.bf16 %v3737, %v3735
        %v3786 = vpack.c.bf16 %v3738, %v3736
        %v3787 = vpack.c.bf16 %v3741, %v3739
        %v3788 = vpack.c.bf16 %v3742, %v3740
        %v3789 = vpack.c.bf16 %v3745, %v3743
        %v3790 = vpack.c.bf16 %v3746, %v3744
        %v3791 = vpack.c.bf16 %v3749, %v3747
        %v3792 = vpack.c.bf16 %v3750, %v3748
        %v3793 = vpack.c.bf16 %v3753, %v3751
        %v3794 = vpack.c.bf16 %v3754, %v3752
        %v3795 = vpack.c.bf16 %v3757, %v3755
        %v3796 = vpack.c.bf16 %v3758, %v3756
        %v3797 = vpack.c.bf16 %v3761, %v3759
        %v3798 = vpack.c.bf16 %v3762, %v3760
        %v3799 = vpack.c.bf16 %v3765, %v3763
        %v3800 = vpack.c.bf16 %v3766, %v3764
        %v3801 = vpack.c.bf16 %v3769, %v3767
        %v3802 = vpack.c.bf16 %v3770, %v3768
        %v3805 = vrot.slane %v3066, 6
        %v3806 = vrot.slane %v3067, 6
        %3809 = vmatprep.subr.bf16.mxu0 %v3772
        %3810 = vmatpush1.bf16.msra.mxu0 %v3771
        %3811 = vmatprep.subr.bf16.mxu0 %v3774
        %3812 = vmatpush1.bf16.msra.mxu0 %v3773
        %3813 = vmatprep.subr.bf16.mxu0 %v3776
        %3814 = vmatpush1.bf16.msra.mxu0 %v3775
        %3815 = vmatprep.subr.bf16.mxu0 %v3778
        %3816 = vmatpush1.bf16.msra.mxu0 %v3777
        %3817 = vmatprep.subr.bf16.mxu0 %v3780
        %3818 = vmatpush1.bf16.msra.mxu0 %v3779
        %3819 = vmatprep.subr.bf16.mxu0 %v3782
        %3820 = vmatpush1.bf16.msra.mxu0 %v3781
        %3821 = vmatprep.subr.bf16.mxu0 %v3784
        %3822 = vmatpush1.bf16.msra.mxu0 %v3783
        %3823 = vmatprep.subr.bf16.mxu0 %v3786
        %3824 = vmatpush1.bf16.msra.mxu0 %v3785
        %3825 = vmatprep.subr.bf16.mxu0 %v3788
        %3826 = vmatpush1.bf16.msra.mxu0 %v3787
        %3827 = vmatprep.subr.bf16.mxu0 %v3790
        %3828 = vmatpush1.bf16.msra.mxu0 %v3789
        %3829 = vmatprep.subr.bf16.mxu0 %v3792
        %3830 = vmatpush1.bf16.msra.mxu0 %v3791
        %3831 = vmatprep.subr.bf16.mxu0 %v3794
        %3832 = vmatpush1.bf16.msra.mxu0 %v3793
        %3833 = vmatprep.subr.bf16.mxu0 %v3796
        %3834 = vmatpush1.bf16.msra.mxu0 %v3795
        %3835 = vmatprep.subr.bf16.mxu0 %v3798
        %3836 = vmatpush1.bf16.msra.mxu0 %v3797
        %3837 = vmatprep.subr.bf16.mxu0 %v3800
        %3838 = vmatpush1.bf16.msra.mxu0 %v3799
        %3839 = vmatprep.subr.bf16.mxu0 %v3802
        %3840 = vmatpush1.bf16.msra.mxu0 %v3801
        %3841 = vmatprep.mubr.bf16.mxu0 %v3806
        %3842 = vmatmul.mubr.bf16.gmra.mrb[0].mxu0 %v3805
        %v3843 = vpop.f32.mrb[0].mxu0
        %v3844 = vadd.f32 0.0, %v3843
        %v3845 = vpop.f32.mrb[0].mxu0
        %v3846 = vadd.f32 0.0, %v3845
        %v3847 = vpop.f32.mrb[0].mxu0
        %v3848 = vpop.f32.mrb[0].mxu0
        %3849 = vdwg.mxu0
        %v3852 = vrot.slane %v3844, 4
        %v3853 = vrot.slane %v3846, 4
        %3856 = vst [vmem:[#allocation4 + $0x10] sm:$0xf0] %v3852
        %3857 = vst [vmem:[#allocation4 + $0x18] sm:$0xf0] %v3853
        %v3858 = vld [vmem:[#allocation2] sm:$0xff]
        %v3859 = vld [vmem:[#allocation2 + $0x8] sm:$0xff]
        %v3860 = vld [vmem:[#allocation2 + $0x10] sm:$0xff]
        %v3861 = vld [vmem:[#allocation2 + $0x18] sm:$0xff]
        %v3862 = vld [vmem:[#allocation2 + $0x20] sm:$0xff]
        %v3863 = vld [vmem:[#allocation2 + $0x28] sm:$0xff]
        %v3864 = vld [vmem:[#allocation2 + $0x30] sm:$0xff]
        %v3865 = vld [vmem:[#allocation2 + $0x38] sm:$0xff]
        %v3866 = vld [vmem:[#allocation2 + $0x40] sm:$0xff]
        %v3867 = vld [vmem:[#allocation2 + $0x48] sm:$0xff]
        %v3868 = vld [vmem:[#allocation2 + $0x50] sm:$0xff]
        %v3869 = vld [vmem:[#allocation2 + $0x58] sm:$0xff]
        %v3870 = vld [vmem:[#allocation2 + $0x60] sm:$0xff]
        %v3871 = vld [vmem:[#allocation2 + $0x68] sm:$0xff]
        %v3872 = vld [vmem:[#allocation2 + $0x70] sm:$0xff]
        %v3873 = vld [vmem:[#allocation2 + $0x78] sm:$0xff]
        %v3874 = vld [vmem:[#allocation3 + $0x10] sm:$0x3]
        %v3875 = vld [vmem:[#allocation3 + $0x18] sm:$0x3]
        %3892 = vrot.lane.b32.xlu0 %v3858, 112
        %v3893 = vpop.permute.xlu0 %3892
        %3894 = vrot.lane.b32.xlu0 %v3859, 112
        %v3895 = vpop.permute.xlu0 %3894
        %3896 = vrot.lane.b32.xlu0 %v3860, 112
        %v3897 = vpop.permute.xlu0 %3896
        %3898 = vrot.lane.b32.xlu0 %v3861, 112
        %v3899 = vpop.permute.xlu0 %3898
        %3900 = vrot.lane.b32.xlu0 %v3862, 112
        %v3901 = vpop.permute.xlu0 %3900
        %3902 = vrot.lane.b32.xlu0 %v3863, 112
        %v3903 = vpop.permute.xlu0 %3902
        %3904 = vrot.lane.b32.xlu0 %v3864, 112
        %v3905 = vpop.permute.xlu0 %3904
        %3906 = vrot.lane.b32.xlu0 %v3865, 112
        %v3907 = vpop.permute.xlu0 %3906
        %3908 = vrot.lane.b32.xlu0 %v3866, 112
        %v3909 = vpop.permute.xlu0 %3908
        %3910 = vrot.lane.b32.xlu0 %v3867, 112
        %v3911 = vpop.permute.xlu0 %3910
        %3912 = vrot.lane.b32.xlu0 %v3868, 112
        %v3913 = vpop.permute.xlu0 %3912
        %3914 = vrot.lane.b32.xlu0 %v3869, 112
        %v3915 = vpop.permute.xlu0 %3914
        %3916 = vrot.lane.b32.xlu0 %v3870, 112
        %v3917 = vpop.permute.xlu0 %3916
        %3918 = vrot.lane.b32.xlu0 %v3871, 112
        %v3919 = vpop.permute.xlu0 %3918
        %3920 = vrot.lane.b32.xlu0 %v3872, 112
        %v3921 = vpop.permute.xlu0 %3920
        %3922 = vrot.lane.b32.xlu0 %v3873, 112
        %v3923 = vpop.permute.xlu0 %3922
        %v3925 = vsel %vm621, %v3893, 0
        %v3928 = vsel %vm621, %v3895, 0
        %v3931 = vsel %vm621, %v3897, 0
        %v3934 = vsel %vm621, %v3899, 0
        %v3937 = vsel %vm621, %v3901, 0
        %v3940 = vsel %vm621, %v3903, 0
        %v3943 = vsel %vm621, %v3905, 0
        %v3946 = vsel %vm621, %v3907, 0
        %v3949 = vsel %vm621, %v3909, 0
        %v3952 = vsel %vm621, %v3911, 0
        %v3955 = vsel %vm621, %v3913, 0
        %v3958 = vsel %vm621, %v3915, 0
        %v3961 = vsel %vm621, %v3917, 0
        %v3964 = vsel %vm621, %v3919, 0
        %v3967 = vsel %vm621, %v3921, 0
        %v3970 = vsel %vm621, %v3923, 0
        %v3973 = vsel %vm628, %v690, 0
        %v3976 = vsel %vm628, %v691, 0
        %3978 = vmatprep.subr.bf16.mxu0 %v3976
        %3979 = vmatpush1.bf16.msra.mxu0 %v3973
        %3980 = vmatprep.subr.bf16.mxu0 0
        %3981 = vmatpush1.bf16.msra.mxu0 0
        %3982 = vmatprep.subr.bf16.mxu0 0
        %3983 = vmatpush1.bf16.msra.mxu0 0
        %3984 = vmatprep.subr.bf16.mxu0 0
        %3985 = vmatpush1.bf16.msra.mxu0 0
        %3986 = vmatprep.subr.bf16.mxu0 0
        %3987 = vmatpush1.bf16.msra.mxu0 0
        %3988 = vmatprep.subr.bf16.mxu0 0
        %3989 = vmatpush1.bf16.msra.mxu0 0
        %3990 = vmatprep.subr.bf16.mxu0 0
        %3991 = vmatpush1.bf16.msra.mxu0 0
        %3992 = vmatprep.subr.bf16.mxu0 0
        %3993 = vmatpush1.bf16.msra.mxu0 0
        %3994 = vmatprep.subr.bf16.mxu0 0
        %3995 = vmatpush1.bf16.msra.mxu0 0
        %3996 = vmatprep.subr.bf16.mxu0 0
        %3997 = vmatpush1.bf16.msra.mxu0 0
        %3998 = vmatprep.subr.bf16.mxu0 0
        %3999 = vmatpush1.bf16.msra.mxu0 0
        %4000 = vmatprep.subr.bf16.mxu0 0
        %4001 = vmatpush1.bf16.msra.mxu0 0
        %4002 = vmatprep.subr.bf16.mxu0 0
        %4003 = vmatpush1.bf16.msra.mxu0 0
        %4004 = vmatprep.subr.bf16.mxu0 0
        %4005 = vmatpush1.bf16.msra.mxu0 0
        %4006 = vmatprep.subr.bf16.mxu0 0
        %4007 = vmatpush1.bf16.msra.mxu0 0
        %4008 = vmatprep.subr.bf16.mxu0 0
        %4009 = vmatpush1.bf16.msra.mxu0 0
        %4010 = vmatprep.mubr.bf16.mxu0 0
        %4011 = vmatmul.mubr.bf16.gmra.mrb[0].mxu0 %v3925
        %v4012 = vpop.f32.mrb[0].mxu0
        %v4013 = vadd.f32 0.0, %v4012
        %v4014 = vpop.f32.mrb[0].mxu0
        %v4015 = vadd.f32 0.0, %v4014
        %v4016 = vpop.f32.mrb[0].mxu0
        %v4017 = vadd.f32 0.0, %v4016
        %v4018 = vpop.f32.mrb[0].mxu0
        %v4019 = vadd.f32 0.0, %v4018
        %4020 = vmatprep.mubr.bf16.mxu0 0
        %4021 = vmatmul.mubr.bf16.gmra.mrb[0].mxu0 %v3928
        %v4022 = vpop.f32.mrb[0].mxu0
        %v4023 = vadd.f32 0.0, %v4022
        %v4024 = vpop.f32.mrb[0].mxu0
        %v4025 = vadd.f32 0.0, %v4024
        %v4026 = vpop.f32.mrb[0].mxu0
        %v4027 = vadd.f32 0.0, %v4026
        %v4028 = vpop.f32.mrb[0].mxu0
        %v4029 = vadd.f32 0.0, %v4028
        %4030 = vmatprep.mubr.bf16.mxu0 0
        %4031 = vmatmul.mubr.bf16.gmra.mrb[0].mxu0 %v3931
        %v4032 = vpop.f32.mrb[0].mxu0
        %v4033 = vadd.f32 0.0, %v4032
        %v4034 = vpop.f32.mrb[0].mxu0
        %v4035 = vadd.f32 0.0, %v4034
        %v4036 = vpop.f32.mrb[0].mxu0
        %v4037 = vadd.f32 0.0, %v4036
        %v4038 = vpop.f32.mrb[0].mxu0
        %v4039 = vadd.f32 0.0, %v4038
        %4040 = vmatprep.mubr.bf16.mxu0 0
        %4041 = vmatmul.mubr.bf16.gmra.mrb[0].mxu0 %v3934
        %v4042 = vpop.f32.mrb[0].mxu0
        %v4043 = vadd.f32 0.0, %v4042
        %v4044 = vpop.f32.mrb[0].mxu0
        %v4045 = vadd.f32 0.0, %v4044
        %v4046 = vpop.f32.mrb[0].mxu0
        %v4047 = vadd.f32 0.0, %v4046
        %v4048 = vpop.f32.mrb[0].mxu0
        %v4049 = vadd.f32 0.0, %v4048
        %4050 = vmatprep.mubr.bf16.mxu0 0
        %4051 = vmatmul.mubr.bf16.gmra.mrb[0].mxu0 %v3937
        %v4052 = vpop.f32.mrb[0].mxu0
        %v4053 = vadd.f32 0.0, %v4052
        %v4054 = vpop.f32.mrb[0].mxu0
        %v4055 = vadd.f32 0.0, %v4054
        %v4056 = vpop.f32.mrb[0].mxu0
        %v4057 = vadd.f32 0.0, %v4056
        %v4058 = vpop.f32.mrb[0].mxu0
        %v4059 = vadd.f32 0.0, %v4058
        %4060 = vmatprep.mubr.bf16.mxu0 0
        %4061 = vmatmul.mubr.bf16.gmra.mrb[0].mxu0 %v3940
        %v4062 = vpop.f32.mrb[0].mxu0
        %v4063 = vadd.f32 0.0, %v4062
        %v4064 = vpop.f32.mrb[0].mxu0
        %v4065 = vadd.f32 0.0, %v4064
        %v4066 = vpop.f32.mrb[0].mxu0
        %v4067 = vadd.f32 0.0, %v4066
        %v4068 = vpop.f32.mrb[0].mxu0
        %v4069 = vadd.f32 0.0, %v4068
        %4070 = vmatprep.mubr.bf16.mxu0 0
        %4071 = vmatmul.mubr.bf16.gmra.mrb[0].mxu0 %v3943
        %v4072 = vpop.f32.mrb[0].mxu0
        %v4073 = vadd.f32 0.0, %v4072
        %v4074 = vpop.f32.mrb[0].mxu0
        %v4075 = vadd.f32 0.0, %v4074
        %v4076 = vpop.f32.mrb[0].mxu0
        %v4077 = vadd.f32 0.0, %v4076
        %v4078 = vpop.f32.mrb[0].mxu0
        %v4079 = vadd.f32 0.0, %v4078
        %4080 = vmatprep.mubr.bf16.mxu0 0
        %4081 = vmatmul.mubr.bf16.gmra.mrb[0].mxu0 %v3946
        %v4082 = vpop.f32.mrb[0].mxu0
        %v4083 = vadd.f32 0.0, %v4082
        %v4084 = vpop.f32.mrb[0].mxu0
        %v4085 = vadd.f32 0.0, %v4084
        %v4086 = vpop.f32.mrb[0].mxu0
        %v4087 = vadd.f32 0.0, %v4086
        %v4088 = vpop.f32.mrb[0].mxu0
        %v4089 = vadd.f32 0.0, %v4088
        %4090 = vmatprep.mubr.bf16.mxu0 0
        %4091 = vmatmul.mubr.bf16.gmra.mrb[0].mxu0 %v3949
        %v4092 = vpop.f32.mrb[0].mxu0
        %v4093 = vadd.f32 0.0, %v4092
        %v4094 = vpop.f32.mrb[0].mxu0
        %v4095 = vadd.f32 0.0, %v4094
        %v4096 = vpop.f32.mrb[0].mxu0
        %v4097 = vadd.f32 0.0, %v4096
        %v4098 = vpop.f32.mrb[0].mxu0
        %v4099 = vadd.f32 0.0, %v4098
        %4100 = vmatprep.mubr.bf16.mxu0 0
        %4101 = vmatmul.mubr.bf16.gmra.mrb[0].mxu0 %v3952
        %v4102 = vpop.f32.mrb[0].mxu0
        %v4103 = vadd.f32 0.0, %v4102
        %v4104 = vpop.f32.mrb[0].mxu0
        %v4105 = vadd.f32 0.0, %v4104
        %v4106 = vpop.f32.mrb[0].mxu0
        %v4107 = vadd.f32 0.0, %v4106
        %v4108 = vpop.f32.mrb[0].mxu0
        %v4109 = vadd.f32 0.0, %v4108
        %4110 = vmatprep.mubr.bf16.mxu0 0
        %4111 = vmatmul.mubr.bf16.gmra.mrb[0].mxu0 %v3955
        %v4112 = vpop.f32.mrb[0].mxu0
        %v4113 = vadd.f32 0.0, %v4112
        %v4114 = vpop.f32.mrb[0].mxu0
        %v4115 = vadd.f32 0.0, %v4114
        %v4116 = vpop.f32.mrb[0].mxu0
        %v4117 = vadd.f32 0.0, %v4116
        %v4118 = vpop.f32.mrb[0].mxu0
        %v4119 = vadd.f32 0.0, %v4118
        %4120 = vmatprep.mubr.bf16.mxu0 0
        %4121 = vmatmul.mubr.bf16.gmra.mrb[0].mxu0 %v3958
        %v4122 = vpop.f32.mrb[0].mxu0
        %v4123 = vadd.f32 0.0, %v4122
        %v4124 = vpop.f32.mrb[0].mxu0
        %v4125 = vadd.f32 0.0, %v4124
        %v4126 = vpop.f32.mrb[0].mxu0
        %v4127 = vadd.f32 0.0, %v4126
        %v4128 = vpop.f32.mrb[0].mxu0
        %v4129 = vadd.f32 0.0, %v4128
        %4130 = vmatprep.mubr.bf16.mxu0 0
        %4131 = vmatmul.mubr.bf16.gmra.mrb[0].mxu0 %v3961
        %v4132 = vpop.f32.mrb[0].mxu0
        %v4133 = vadd.f32 0.0, %v4132
        %v4134 = vpop.f32.mrb[0].mxu0
        %v4135 = vadd.f32 0.0, %v4134
        %v4136 = vpop.f32.mrb[0].mxu0
        %v4137 = vadd.f32 0.0, %v4136
        %v4138 = vpop.f32.mrb[0].mxu0
        %v4139 = vadd.f32 0.0, %v4138
        %4140 = vmatprep.mubr.bf16.mxu0 0
        %4141 = vmatmul.mubr.bf16.gmra.mrb[0].mxu0 %v3964
        %v4142 = vpop.f32.mrb[0].mxu0
        %v4143 = vadd.f32 0.0, %v4142
        %v4144 = vpop.f32.mrb[0].mxu0
        %v4145 = vadd.f32 0.0, %v4144
        %v4146 = vpop.f32.mrb[0].mxu0
        %v4147 = vadd.f32 0.0, %v4146
        %v4148 = vpop.f32.mrb[0].mxu0
        %v4149 = vadd.f32 0.0, %v4148
        %4150 = vmatprep.mubr.bf16.mxu0 0
        %4151 = vmatmul.mubr.bf16.gmra.mrb[0].mxu0 %v3967
        %v4152 = vpop.f32.mrb[0].mxu0
        %v4153 = vadd.f32 0.0, %v4152
        %v4154 = vpop.f32.mrb[0].mxu0
        %v4155 = vadd.f32 0.0, %v4154
        %v4156 = vpop.f32.mrb[0].mxu0
        %v4157 = vadd.f32 0.0, %v4156
        %v4158 = vpop.f32.mrb[0].mxu0
        %v4159 = vadd.f32 0.0, %v4158
        %4160 = vmatprep.mubr.bf16.mxu0 0
        %4161 = vmatmul.mubr.bf16.gmra.mrb[0].mxu0 %v3970
        %v4162 = vpop.f32.mrb[0].mxu0
        %v4163 = vadd.f32 0.0, %v4162
        %v4164 = vpop.f32.mrb[0].mxu0
        %v4165 = vadd.f32 0.0, %v4164
        %v4166 = vpop.f32.mrb[0].mxu0
        %v4167 = vadd.f32 0.0, %v4166
        %v4168 = vpop.f32.mrb[0].mxu0
        %v4169 = vadd.f32 0.0, %v4168
        %4170 = vdwg.mxu0
        %v4171 = vmax.f32 %v4013, %v4023
        %v4172 = vmax.f32 %v4017, %v4027
        %v4173 = vmax.f32 %v4171, %v4033
        %v4174 = vmax.f32 %v4172, %v4037
        %v4175 = vmax.f32 %v4173, %v4043
        %v4176 = vmax.f32 %v4174, %v4047
        %v4177 = vmax.f32 %v4175, %v4053
        %v4178 = vmax.f32 %v4176, %v4057
        %v4179 = vmax.f32 %v4177, %v4063
        %v4180 = vmax.f32 %v4178, %v4067
        %v4181 = vmax.f32 %v4179, %v4073
        %v4182 = vmax.f32 %v4180, %v4077
        %v4183 = vmax.f32 %v4181, %v4083
        %v4184 = vmax.f32 %v4182, %v4087
        %v4185 = vmax.f32 %v4183, %v4093
        %v4186 = vmax.f32 %v4184, %v4097
        %v4187 = vmax.f32 %v4185, %v4103
        %v4188 = vmax.f32 %v4186, %v4107
        %v4189 = vmax.f32 %v4187, %v4113
        %v4190 = vmax.f32 %v4188, %v4117
        %v4191 = vmax.f32 %v4189, %v4123
        %v4192 = vmax.f32 %v4190, %v4127
        %v4193 = vmax.f32 %v4191, %v4133
        %v4194 = vmax.f32 %v4192, %v4137
        %v4195 = vmax.f32 %v4193, %v4143
        %v4196 = vmax.f32 %v4194, %v4147
        %v4197 = vmax.f32 %v4195, %v4153
        %v4198 = vmax.f32 %v4196, %v4157
        %v4199 = vmax.f32 %v4197, %v4163
        %v4200 = vmax.f32 %v4198, %v4167
        %v4201 = vmax.f32 %v4199, %v4200
        %v4202 = vrot.slane %v4201, 4
        %v4203 = vmax.f32 %v4201, %v4202
        %v4204 = vrot.slane %v4203, 2
        %v4205 = vmax.f32 %v4203, %v4204
        %v4206 = vrot.slane %v4205, 1
        %v4207 = vmax.f32 %v4205, %v4206
        %v4208 = vmax.f32 %v4015, %v4025
        %v4209 = vmax.f32 %v4019, %v4029
        %v4210 = vmax.f32 %v4208, %v4035
        %v4211 = vmax.f32 %v4209, %v4039
        %v4212 = vmax.f32 %v4210, %v4045
        %v4213 = vmax.f32 %v4211, %v4049
        %v4214 = vmax.f32 %v4212, %v4055
        %v4215 = vmax.f32 %v4213, %v4059
        %v4216 = vmax.f32 %v4214, %v4065
        %v4217 = vmax.f32 %v4215, %v4069
        %v4218 = vmax.f32 %v4216, %v4075
        %v4219 = vmax.f32 %v4217, %v4079
        %v4220 = vmax.f32 %v4218, %v4085
        %v4221 = vmax.f32 %v4219, %v4089
        %v4222 = vmax.f32 %v4220, %v4095
        %v4223 = vmax.f32 %v4221, %v4099
        %v4224 = vmax.f32 %v4222, %v4105
        %v4225 = vmax.f32 %v4223, %v4109
        %v4226 = vmax.f32 %v4224, %v4115
        %v4227 = vmax.f32 %v4225, %v4119
        %v4228 = vmax.f32 %v4226, %v4125
        %v4229 = vmax.f32 %v4227, %v4129
        %v4230 = vmax.f32 %v4228, %v4135
        %v4231 = vmax.f32 %v4229, %v4139
        %v4232 = vmax.f32 %v4230, %v4145
        %v4233 = vmax.f32 %v4231, %v4149
        %v4234 = vmax.f32 %v4232, %v4155
        %v4235 = vmax.f32 %v4233, %v4159
        %v4236 = vmax.f32 %v4234, %v4165
        %v4237 = vmax.f32 %v4235, %v4169
        %v4238 = vmax.f32 %v4236, %v4237
        %v4239 = vrot.slane %v4238, 4
        %v4240 = vmax.f32 %v4238, %v4239
        %v4241 = vrot.slane %v4240, 2
        %v4242 = vmax.f32 %v4240, %v4241
        %v4243 = vrot.slane %v4242, 1
        %v4244 = vmax.f32 %v4242, %v4243
        %v4245 = vsub.f32 %v4013, %v4207
        %v4246 = vsub.f32 %v4015, %v4244
        %v4247 = vsub.f32 %v4017, %v4207
        %v4248 = vsub.f32 %v4019, %v4244
        %v4249 = vsub.f32 %v4023, %v4207
        %v4250 = vsub.f32 %v4025, %v4244
        %v4251 = vsub.f32 %v4027, %v4207
        %v4252 = vsub.f32 %v4029, %v4244
        %v4253 = vsub.f32 %v4033, %v4207
        %v4254 = vsub.f32 %v4035, %v4244
        %v4255 = vsub.f32 %v4037, %v4207
        %v4256 = vsub.f32 %v4039, %v4244
        %v4257 = vsub.f32 %v4043, %v4207
        %v4258 = vsub.f32 %v4045, %v4244
        %v4259 = vsub.f32 %v4047, %v4207
        %v4260 = vsub.f32 %v4049, %v4244
        %v4261 = vsub.f32 %v4053, %v4207
        %v4262 = vsub.f32 %v4055, %v4244
        %v4263 = vsub.f32 %v4057, %v4207
        %v4264 = vsub.f32 %v4059, %v4244
        %v4265 = vsub.f32 %v4063, %v4207
        %v4266 = vsub.f32 %v4065, %v4244
        %v4267 = vsub.f32 %v4067, %v4207
        %v4268 = vsub.f32 %v4069, %v4244
        %v4269 = vsub.f32 %v4073, %v4207
        %v4270 = vsub.f32 %v4075, %v4244
        %v4271 = vsub.f32 %v4077, %v4207
        %v4272 = vsub.f32 %v4079, %v4244
        %v4273 = vsub.f32 %v4083, %v4207
        %v4274 = vsub.f32 %v4085, %v4244
        %v4275 = vsub.f32 %v4087, %v4207
        %v4276 = vsub.f32 %v4089, %v4244
        %v4277 = vsub.f32 %v4093, %v4207
        %v4278 = vsub.f32 %v4095, %v4244
        %v4279 = vsub.f32 %v4097, %v4207
        %v4280 = vsub.f32 %v4099, %v4244
        %v4281 = vsub.f32 %v4103, %v4207
        %v4282 = vsub.f32 %v4105, %v4244
        %v4283 = vsub.f32 %v4107, %v4207
        %v4284 = vsub.f32 %v4109, %v4244
        %v4285 = vsub.f32 %v4113, %v4207
        %v4286 = vsub.f32 %v4115, %v4244
        %v4287 = vsub.f32 %v4117, %v4207
        %v4288 = vsub.f32 %v4119, %v4244
        %v4289 = vsub.f32 %v4123, %v4207
        %v4290 = vsub.f32 %v4125, %v4244
        %v4291 = vsub.f32 %v4127, %v4207
        %v4292 = vsub.f32 %v4129, %v4244
        %v4293 = vsub.f32 %v4133, %v4207
        %v4294 = vsub.f32 %v4135, %v4244
        %v4295 = vsub.f32 %v4137, %v4207
        %v4296 = vsub.f32 %v4139, %v4244
        %v4297 = vsub.f32 %v4143, %v4207
        %v4298 = vsub.f32 %v4145, %v4244
        %v4299 = vsub.f32 %v4147, %v4207
        %v4300 = vsub.f32 %v4149, %v4244
        %v4301 = vsub.f32 %v4153, %v4207
        %v4302 = vsub.f32 %v4155, %v4244
        %v4303 = vsub.f32 %v4157, %v4207
        %v4304 = vsub.f32 %v4159, %v4244
        %v4305 = vsub.f32 %v4163, %v4207
        %v4306 = vsub.f32 %v4165, %v4244
        %v4307 = vsub.f32 %v4167, %v4207
        %v4308 = vsub.f32 %v4169, %v4244
        %v4309 = vmul.f32 %v4245, 1.442695
        %v4310 = vpow.pop %v4309
        %v4311 = vmul.f32 %v4246, 1.442695
        %v4312 = vpow.pop %v4311
        %v4313 = vmul.f32 %v4247, 1.442695
        %v4314 = vpow.pop %v4313
        %v4315 = vmul.f32 %v4248, 1.442695
        %v4316 = vpow.pop %v4315
        %v4317 = vmul.f32 %v4249, 1.442695
        %v4318 = vpow.pop %v4317
        %v4319 = vmul.f32 %v4250, 1.442695
        %v4320 = vpow.pop %v4319
        %v4321 = vmul.f32 %v4251, 1.442695
        %v4322 = vpow.pop %v4321
        %v4323 = vmul.f32 %v4252, 1.442695
        %v4324 = vpow.pop %v4323
        %v4325 = vmul.f32 %v4253, 1.442695
        %v4326 = vpow.pop %v4325
        %v4327 = vmul.f32 %v4254, 1.442695
        %v4328 = vpow.pop %v4327
        %v4329 = vmul.f32 %v4255, 1.442695
        %v4330 = vpow.pop %v4329
        %v4331 = vmul.f32 %v4256, 1.442695
        %v4332 = vpow.pop %v4331
        %v4333 = vmul.f32 %v4257, 1.442695
        %v4334 = vpow.pop %v4333
        %v4335 = vmul.f32 %v4258, 1.442695
        %v4336 = vpow.pop %v4335
        %v4337 = vmul.f32 %v4259, 1.442695
        %v4338 = vpow.pop %v4337
        %v4339 = vmul.f32 %v4260, 1.442695
        %v4340 = vpow.pop %v4339
        %v4341 = vmul.f32 %v4261, 1.442695
        %v4342 = vpow.pop %v4341
        %v4343 = vmul.f32 %v4262, 1.442695
        %v4344 = vpow.pop %v4343
        %v4345 = vmul.f32 %v4263, 1.442695
        %v4346 = vpow.pop %v4345
        %v4347 = vmul.f32 %v4264, 1.442695
        %v4348 = vpow.pop %v4347
        %v4349 = vmul.f32 %v4265, 1.442695
        %v4350 = vpow.pop %v4349
        %v4351 = vmul.f32 %v4266, 1.442695
        %v4352 = vpow.pop %v4351
        %v4353 = vmul.f32 %v4267, 1.442695
        %v4354 = vpow.pop %v4353
        %v4355 = vmul.f32 %v4268, 1.442695
        %v4356 = vpow.pop %v4355
        %v4357 = vmul.f32 %v4269, 1.442695
        %v4358 = vpow.pop %v4357
        %v4359 = vmul.f32 %v4270, 1.442695
        %v4360 = vpow.pop %v4359
        %v4361 = vmul.f32 %v4271, 1.442695
        %v4362 = vpow.pop %v4361
        %v4363 = vmul.f32 %v4272, 1.442695
        %v4364 = vpow.pop %v4363
        %v4365 = vmul.f32 %v4273, 1.442695
        %v4366 = vpow.pop %v4365
        %v4367 = vmul.f32 %v4274, 1.442695
        %v4368 = vpow.pop %v4367
        %v4369 = vmul.f32 %v4275, 1.442695
        %v4370 = vpow.pop %v4369
        %v4371 = vmul.f32 %v4276, 1.442695
        %v4372 = vpow.pop %v4371
        %v4373 = vmul.f32 %v4277, 1.442695
        %v4374 = vpow.pop %v4373
        %v4375 = vmul.f32 %v4278, 1.442695
        %v4376 = vpow.pop %v4375
        %v4377 = vmul.f32 %v4279, 1.442695
        %v4378 = vpow.pop %v4377
        %v4379 = vmul.f32 %v4280, 1.442695
        %v4380 = vpow.pop %v4379
        %v4381 = vmul.f32 %v4281, 1.442695
        %v4382 = vpow.pop %v4381
        %v4383 = vmul.f32 %v4282, 1.442695
        %v4384 = vpow.pop %v4383
        %v4385 = vmul.f32 %v4283, 1.442695
        %v4386 = vpow.pop %v4385
        %v4387 = vmul.f32 %v4284, 1.442695
        %v4388 = vpow.pop %v4387
        %v4389 = vmul.f32 %v4285, 1.442695
        %v4390 = vpow.pop %v4389
        %v4391 = vmul.f32 %v4286, 1.442695
        %v4392 = vpow.pop %v4391
        %v4393 = vmul.f32 %v4287, 1.442695
        %v4394 = vpow.pop %v4393
        %v4395 = vmul.f32 %v4288, 1.442695
        %v4396 = vpow.pop %v4395
        %v4397 = vmul.f32 %v4289, 1.442695
        %v4398 = vpow.pop %v4397
        %v4399 = vmul.f32 %v4290, 1.442695
        %v4400 = vpow.pop %v4399
        %v4401 = vmul.f32 %v4291, 1.442695
        %v4402 = vpow.pop %v4401
        %v4403 = vmul.f32 %v4292, 1.442695
        %v4404 = vpow.pop %v4403
        %v4405 = vmul.f32 %v4293, 1.442695
        %v4406 = vpow.pop %v4405
        %v4407 = vmul.f32 %v4294, 1.442695
        %v4408 = vpow.pop %v4407
        %v4409 = vmul.f32 %v4295, 1.442695
        %v4410 = vpow.pop %v4409
        %v4411 = vmul.f32 %v4296, 1.442695
        %v4412 = vpow.pop %v4411
        %v4413 = vmul.f32 %v4297, 1.442695
        %v4414 = vpow.pop %v4413
        %v4415 = vmul.f32 %v4298, 1.442695
        %v4416 = vpow.pop %v4415
        %v4417 = vmul.f32 %v4299, 1.442695
        %v4418 = vpow.pop %v4417
        %v4419 = vmul.f32 %v4300, 1.442695
        %v4420 = vpow.pop %v4419
        %v4421 = vmul.f32 %v4301, 1.442695
        %v4422 = vpow.pop %v4421
        %v4423 = vmul.f32 %v4302, 1.442695
        %v4424 = vpow.pop %v4423
        %v4425 = vmul.f32 %v4303, 1.442695
        %v4426 = vpow.pop %v4425
        %v4427 = vmul.f32 %v4304, 1.442695
        %v4428 = vpow.pop %v4427
        %v4429 = vmul.f32 %v4305, 1.442695
        %v4430 = vpow.pop %v4429
        %v4431 = vmul.f32 %v4306, 1.442695
        %v4432 = vpow.pop %v4431
        %v4433 = vmul.f32 %v4307, 1.442695
        %v4434 = vpow.pop %v4433
        %v4435 = vmul.f32 %v4308, 1.442695
        %v4436 = vpow.pop %v4435
        %v4437 = vadd.f32 %v4310, %v4314
        %v4438 = vadd.f32 %v4437, %v4318
        %v4439 = vadd.f32 %v4438, %v4322
        %v4440 = vadd.f32 %v4439, %v4326
        %v4441 = vadd.f32 %v4440, %v4330
        %v4442 = vadd.f32 %v4441, %v4334
        %v4443 = vadd.f32 %v4442, %v4338
        %v4444 = vadd.f32 %v4443, %v4342
        %v4445 = vadd.f32 %v4444, %v4346
        %v4446 = vadd.f32 %v4445, %v4350
        %v4447 = vadd.f32 %v4446, %v4354
        %v4448 = vadd.f32 %v4447, %v4358
        %v4449 = vadd.f32 %v4448, %v4362
        %v4450 = vadd.f32 %v4449, %v4366
        %v4451 = vadd.f32 %v4450, %v4370
        %v4452 = vadd.f32 %v4451, %v4374
        %v4453 = vadd.f32 %v4452, %v4378
        %v4454 = vadd.f32 %v4453, %v4382
        %v4455 = vadd.f32 %v4454, %v4386
        %v4456 = vadd.f32 %v4455, %v4390
        %v4457 = vadd.f32 %v4456, %v4394
        %v4458 = vadd.f32 %v4457, %v4398
        %v4459 = vadd.f32 %v4458, %v4402
        %v4460 = vadd.f32 %v4459, %v4406
        %v4461 = vadd.f32 %v4460, %v4410
        %v4462 = vadd.f32 %v4461, %v4414
        %v4463 = vadd.f32 %v4462, %v4418
        %v4464 = vadd.f32 %v4463, %v4422
        %v4465 = vadd.f32 %v4464, %v4426
        %v4466 = vadd.f32 %v4465, %v4430
        %v4467 = vadd.f32 %v4466, %v4434
        %v4468 = vrot.slane %v4467, 4
        %v4469 = vadd.f32 %v4467, %v4468
        %v4470 = vrot.slane %v4469, 2
        %v4471 = vadd.f32 %v4469, %v4470
        %v4472 = vrot.slane %v4471, 1
        %v4473 = vadd.f32 %v4471, %v4472
        %v4474 = vadd.f32 %v4312, %v4316
        %v4475 = vadd.f32 %v4474, %v4320
        %v4476 = vadd.f32 %v4475, %v4324
        %v4477 = vadd.f32 %v4476, %v4328
        %v4478 = vadd.f32 %v4477, %v4332
        %v4479 = vadd.f32 %v4478, %v4336
        %v4480 = vadd.f32 %v4479, %v4340
        %v4481 = vadd.f32 %v4480, %v4344
        %v4482 = vadd.f32 %v4481, %v4348
        %v4483 = vadd.f32 %v4482, %v4352
        %v4484 = vadd.f32 %v4483, %v4356
        %v4485 = vadd.f32 %v4484, %v4360
        %v4486 = vadd.f32 %v4485, %v4364
        %v4487 = vadd.f32 %v4486, %v4368
        %v4488 = vadd.f32 %v4487, %v4372
        %v4489 = vadd.f32 %v4488, %v4376
        %v4490 = vadd.f32 %v4489, %v4380
        %v4491 = vadd.f32 %v4490, %v4384
        %v4492 = vadd.f32 %v4491, %v4388
        %v4493 = vadd.f32 %v4492, %v4392
        %v4494 = vadd.f32 %v4493, %v4396
        %v4495 = vadd.f32 %v4494, %v4400
        %v4496 = vadd.f32 %v4495, %v4404
        %v4497 = vadd.f32 %v4496, %v4408
        %v4498 = vadd.f32 %v4497, %v4412
        %v4499 = vadd.f32 %v4498, %v4416
        %v4500 = vadd.f32 %v4499, %v4420
        %v4501 = vadd.f32 %v4500, %v4424
        %v4502 = vadd.f32 %v4501, %v4428
        %v4503 = vadd.f32 %v4502, %v4432
        %v4504 = vadd.f32 %v4503, %v4436
        %v4505 = vrot.slane %v4504, 4
        %v4506 = vadd.f32 %v4504, %v4505
        %v4507 = vrot.slane %v4506, 2
        %v4508 = vadd.f32 %v4506, %v4507
        %v4509 = vrot.slane %v4508, 1
        %v4510 = vadd.f32 %v4508, %v4509
        %v4511 = vrcp.pop %v4473
        %v4512 = vrcp.pop %v4510
        %v4513 = vmul.f32 %v4310, %v4511
        %v4514 = vmul.f32 %v4312, %v4512
        %v4515 = vmul.f32 %v4314, %v4511
        %v4516 = vmul.f32 %v4316, %v4512
        %v4517 = vmul.f32 %v4318, %v4511
        %v4518 = vmul.f32 %v4320, %v4512
        %v4519 = vmul.f32 %v4322, %v4511
        %v4520 = vmul.f32 %v4324, %v4512
        %v4521 = vmul.f32 %v4326, %v4511
        %v4522 = vmul.f32 %v4328, %v4512
        %v4523 = vmul.f32 %v4330, %v4511
        %v4524 = vmul.f32 %v4332, %v4512
        %v4525 = vmul.f32 %v4334, %v4511
        %v4526 = vmul.f32 %v4336, %v4512
        %v4527 = vmul.f32 %v4338, %v4511
        %v4528 = vmul.f32 %v4340, %v4512
        %v4529 = vmul.f32 %v4342, %v4511
        %v4530 = vmul.f32 %v4344, %v4512
        %v4531 = vmul.f32 %v4346, %v4511
        %v4532 = vmul.f32 %v4348, %v4512
        %v4533 = vmul.f32 %v4350, %v4511
        %v4534 = vmul.f32 %v4352, %v4512
        %v4535 = vmul.f32 %v4354, %v4511
        %v4536 = vmul.f32 %v4356, %v4512
        %v4537 = vmul.f32 %v4358, %v4511
        %v4538 = vmul.f32 %v4360, %v4512
        %v4539 = vmul.f32 %v4362, %v4511
        %v4540 = vmul.f32 %v4364, %v4512
        %v4541 = vmul.f32 %v4366, %v4511
        %v4542 = vmul.f32 %v4368, %v4512
        %v4543 = vmul.f32 %v4370, %v4511
        %v4544 = vmul.f32 %v4372, %v4512
        %v4545 = vmul.f32 %v4374, %v4511
        %v4546 = vmul.f32 %v4376, %v4512
        %v4547 = vmul.f32 %v4378, %v4511
        %v4548 = vmul.f32 %v4380, %v4512
        %v4549 = vmul.f32 %v4382, %v4511
        %v4550 = vmul.f32 %v4384, %v4512
        %v4551 = vmul.f32 %v4386, %v4511
        %v4552 = vmul.f32 %v4388, %v4512
        %v4553 = vmul.f32 %v4390, %v4511
        %v4554 = vmul.f32 %v4392, %v4512
        %v4555 = vmul.f32 %v4394, %v4511
        %v4556 = vmul.f32 %v4396, %v4512
        %v4557 = vmul.f32 %v4398, %v4511
        %v4558 = vmul.f32 %v4400, %v4512
        %v4559 = vmul.f32 %v4402, %v4511
        %v4560 = vmul.f32 %v4404, %v4512
        %v4561 = vmul.f32 %v4406, %v4511
        %v4562 = vmul.f32 %v4408, %v4512
        %v4563 = vmul.f32 %v4410, %v4511
        %v4564 = vmul.f32 %v4412, %v4512
        %v4565 = vmul.f32 %v4414, %v4511
        %v4566 = vmul.f32 %v4416, %v4512
        %v4567 = vmul.f32 %v4418, %v4511
        %v4568 = vmul.f32 %v4420, %v4512
        %v4569 = vmul.f32 %v4422, %v4511
        %v4570 = vmul.f32 %v4424, %v4512
        %v4571 = vmul.f32 %v4426, %v4511
        %v4572 = vmul.f32 %v4428, %v4512
        %v4573 = vmul.f32 %v4430, %v4511
        %v4574 = vmul.f32 %v4432, %v4512
        %v4575 = vmul.f32 %v4434, %v4511
        %v4576 = vmul.f32 %v4436, %v4512
        %v4577 = vpack.c.bf16 %v4515, %v4513
        %v4578 = vpack.c.bf16 %v4516, %v4514
        %v4579 = vpack.c.bf16 %v4519, %v4517
        %v4580 = vpack.c.bf16 %v4520, %v4518
        %v4581 = vpack.c.bf16 %v4523, %v4521
        %v4582 = vpack.c.bf16 %v4524, %v4522
        %v4583 = vpack.c.bf16 %v4527, %v4525
        %v4584 = vpack.c.bf16 %v4528, %v4526
        %v4585 = vpack.c.bf16 %v4531, %v4529
        %v4586 = vpack.c.bf16 %v4532, %v4530
        %v4587 = vpack.c.bf16 %v4535, %v4533
        %v4588 = vpack.c.bf16 %v4536, %v4534
        %v4589 = vpack.c.bf16 %v4539, %v4537
        %v4590 = vpack.c.bf16 %v4540, %v4538
        %v4591 = vpack.c.bf16 %v4543, %v4541
        %v4592 = vpack.c.bf16 %v4544, %v4542
        %v4593 = vpack.c.bf16 %v4547, %v4545
        %v4594 = vpack.c.bf16 %v4548, %v4546
        %v4595 = vpack.c.bf16 %v4551, %v4549
        %v4596 = vpack.c.bf16 %v4552, %v4550
        %v4597 = vpack.c.bf16 %v4555, %v4553
        %v4598 = vpack.c.bf16 %v4556, %v4554
        %v4599 = vpack.c.bf16 %v4559, %v4557
        %v4600 = vpack.c.bf16 %v4560, %v4558
        %v4601 = vpack.c.bf16 %v4563, %v4561
        %v4602 = vpack.c.bf16 %v4564, %v4562
        %v4603 = vpack.c.bf16 %v4567, %v4565
        %v4604 = vpack.c.bf16 %v4568, %v4566
        %v4605 = vpack.c.bf16 %v4571, %v4569
        %v4606 = vpack.c.bf16 %v4572, %v4570
        %v4607 = vpack.c.bf16 %v4575, %v4573
        %v4608 = vpack.c.bf16 %v4576, %v4574
        %4609 = vmatprep.subr.bf16.mxu0 %v4578
        %4610 = vmatpush1.bf16.msra.mxu0 %v4577
        %4611 = vmatprep.subr.bf16.mxu0 %v4580
        %4612 = vmatpush1.bf16.msra.mxu0 %v4579
        %4613 = vmatprep.subr.bf16.mxu0 %v4582
        %4614 = vmatpush1.bf16.msra.mxu0 %v4581
        %4615 = vmatprep.subr.bf16.mxu0 %v4584
        %4616 = vmatpush1.bf16.msra.mxu0 %v4583
        %4617 = vmatprep.subr.bf16.mxu0 %v4586
        %4618 = vmatpush1.bf16.msra.mxu0 %v4585
        %4619 = vmatprep.subr.bf16.mxu0 %v4588
        %4620 = vmatpush1.bf16.msra.mxu0 %v4587
        %4621 = vmatprep.subr.bf16.mxu0 %v4590
        %4622 = vmatpush1.bf16.msra.mxu0 %v4589
        %4623 = vmatprep.subr.bf16.mxu0 %v4592
        %4624 = vmatpush1.bf16.msra.mxu0 %v4591
        %4625 = vmatprep.subr.bf16.mxu0 %v4594
        %4626 = vmatpush1.bf16.msra.mxu0 %v4593
        %4627 = vmatprep.subr.bf16.mxu0 %v4596
        %4628 = vmatpush1.bf16.msra.mxu0 %v4595
        %4629 = vmatprep.subr.bf16.mxu0 %v4598
        %4630 = vmatpush1.bf16.msra.mxu0 %v4597
        %4631 = vmatprep.subr.bf16.mxu0 %v4600
        %4632 = vmatpush1.bf16.msra.mxu0 %v4599
        %4633 = vmatprep.subr.bf16.mxu0 %v4602
        %4634 = vmatpush1.bf16.msra.mxu0 %v4601
        %4635 = vmatprep.subr.bf16.mxu0 %v4604
        %4636 = vmatpush1.bf16.msra.mxu0 %v4603
        %4637 = vmatprep.subr.bf16.mxu0 %v4606
        %4638 = vmatpush1.bf16.msra.mxu0 %v4605
        %4639 = vmatprep.subr.bf16.mxu0 %v4608
        %4640 = vmatpush1.bf16.msra.mxu0 %v4607
        %4641 = vmatprep.mubr.bf16.mxu0 %v3875
        %4642 = vmatmul.mubr.bf16.gmra.mrb[0].mxu0 %v3874
        %v4643 = vpop.f32.mrb[0].mxu0
        %v4644 = vadd.f32 0.0, %v4643
        %v4645 = vpop.f32.mrb[0].mxu0
        %v4646 = vadd.f32 0.0, %v4645
        %v4647 = vpop.f32.mrb[0].mxu0
        %v4648 = vpop.f32.mrb[0].mxu0
        %4649 = vdwg.mxu0
        %4650 = vst [vmem:[#allocation4 + $0x20] sm:$0xf] %v4644
        %4651 = vst [vmem:[#allocation4 + $0x28] sm:$0xf] %v4646
        %v4652 = vld [vmem:[#allocation2] sm:$0xff]
        %v4653 = vld [vmem:[#allocation2 + $0x8] sm:$0xff]
        %v4654 = vld [vmem:[#allocation2 + $0x10] sm:$0xff]
        %v4655 = vld [vmem:[#allocation2 + $0x18] sm:$0xff]
        %v4656 = vld [vmem:[#allocation2 + $0x20] sm:$0xff]
        %v4657 = vld [vmem:[#allocation2 + $0x28] sm:$0xff]
        %v4658 = vld [vmem:[#allocation2 + $0x30] sm:$0xff]
        %v4659 = vld [vmem:[#allocation2 + $0x38] sm:$0xff]
        %v4660 = vld [vmem:[#allocation2 + $0x40] sm:$0xff]
        %v4661 = vld [vmem:[#allocation2 + $0x48] sm:$0xff]
        %v4662 = vld [vmem:[#allocation2 + $0x50] sm:$0xff]
        %v4663 = vld [vmem:[#allocation2 + $0x58] sm:$0xff]
        %v4664 = vld [vmem:[#allocation2 + $0x60] sm:$0xff]
        %v4665 = vld [vmem:[#allocation2 + $0x68] sm:$0xff]
        %v4666 = vld [vmem:[#allocation2 + $0x70] sm:$0xff]
        %v4667 = vld [vmem:[#allocation2 + $0x78] sm:$0xff]
        %v4668 = vld [vmem:[#allocation3 + $0x10] sm:$0xc]
        %v4669 = vld [vmem:[#allocation3 + $0x18] sm:$0xc]
        %4686 = vrot.lane.b32.xlu0 %v4652, 108
        %v4687 = vpop.permute.xlu0 %4686
        %4688 = vrot.lane.b32.xlu0 %v4653, 108
        %v4689 = vpop.permute.xlu0 %4688
        %4690 = vrot.lane.b32.xlu0 %v4654, 108
        %v4691 = vpop.permute.xlu0 %4690
        %4692 = vrot.lane.b32.xlu0 %v4655, 108
        %v4693 = vpop.permute.xlu0 %4692
        %4694 = vrot.lane.b32.xlu0 %v4656, 108
        %v4695 = vpop.permute.xlu0 %4694
        %4696 = vrot.lane.b32.xlu0 %v4657, 108
        %v4697 = vpop.permute.xlu0 %4696
        %4698 = vrot.lane.b32.xlu0 %v4658, 108
        %v4699 = vpop.permute.xlu0 %4698
        %4700 = vrot.lane.b32.xlu0 %v4659, 108
        %v4701 = vpop.permute.xlu0 %4700
        %4702 = vrot.lane.b32.xlu0 %v4660, 108
        %v4703 = vpop.permute.xlu0 %4702
        %4704 = vrot.lane.b32.xlu0 %v4661, 108
        %v4705 = vpop.permute.xlu0 %4704
        %4706 = vrot.lane.b32.xlu0 %v4662, 108
        %v4707 = vpop.permute.xlu0 %4706
        %4708 = vrot.lane.b32.xlu0 %v4663, 108
        %v4709 = vpop.permute.xlu0 %4708
        %4710 = vrot.lane.b32.xlu0 %v4664, 108
        %v4711 = vpop.permute.xlu0 %4710
        %4712 = vrot.lane.b32.xlu0 %v4665, 108
        %v4713 = vpop.permute.xlu0 %4712
        %4714 = vrot.lane.b32.xlu0 %v4666, 108
        %v4715 = vpop.permute.xlu0 %4714
        %4716 = vrot.lane.b32.xlu0 %v4667, 108
        %v4717 = vpop.permute.xlu0 %4716
        %v4720 = vrot.slane %v690, 2
        %v4721 = vrot.slane %v691, 2
        %v4723 = vsel %vm621, %v4687, 0
        %v4726 = vsel %vm621, %v4689, 0
        %v4729 = vsel %vm621, %v4691, 0
        %v4732 = vsel %vm621, %v4693, 0
        %v4735 = vsel %vm621, %v4695, 0
        %v4738 = vsel %vm621, %v4697, 0
        %v4741 = vsel %vm621, %v4699, 0
        %v4744 = vsel %vm621, %v4701, 0
        %v4747 = vsel %vm621, %v4703, 0
        %v4750 = vsel %vm621, %v4705, 0
        %v4753 = vsel %vm621, %v4707, 0
        %v4756 = vsel %vm621, %v4709, 0
        %v4759 = vsel %vm621, %v4711, 0
        %v4762 = vsel %vm621, %v4713, 0
        %v4765 = vsel %vm621, %v4715, 0
        %v4768 = vsel %vm621, %v4717, 0
        %v4771 = vsel %vm628, %v4720, 0
        %v4774 = vsel %vm628, %v4721, 0
        %4776 = vmatprep.subr.bf16.mxu0 %v4774
        %4777 = vmatpush1.bf16.msra.mxu0 %v4771
        %4778 = vmatprep.subr.bf16.mxu0 0
        %4779 = vmatpush1.bf16.msra.mxu0 0
        %4780 = vmatprep.subr.bf16.mxu0 0
        %4781 = vmatpush1.bf16.msra.mxu0 0
        %4782 = vmatprep.subr.bf16.mxu0 0
        %4783 = vmatpush1.bf16.msra.mxu0 0
        %4784 = vmatprep.subr.bf16.mxu0 0
        %4785 = vmatpush1.bf16.msra.mxu0 0
        %4786 = vmatprep.subr.bf16.mxu0 0
        %4787 = vmatpush1.bf16.msra.mxu0 0
        %4788 = vmatprep.subr.bf16.mxu0 0
        %4789 = vmatpush1.bf16.msra.mxu0 0
        %4790 = vmatprep.subr.bf16.mxu0 0
        %4791 = vmatpush1.bf16.msra.mxu0 0
        %4792 = vmatprep.subr.bf16.mxu0 0
        %4793 = vmatpush1.bf16.msra.mxu0 0
        %4794 = vmatprep.subr.bf16.mxu0 0
        %4795 = vmatpush1.bf16.msra.mxu0 0
        %4796 = vmatprep.subr.bf16.mxu0 0
        %4797 = vmatpush1.bf16.msra.mxu0 0
        %4798 = vmatprep.subr.bf16.mxu0 0
        %4799 = vmatpush1.bf16.msra.mxu0 0
        %4800 = vmatprep.subr.bf16.mxu0 0
        %4801 = vmatpush1.bf16.msra.mxu0 0
        %4802 = vmatprep.subr.bf16.mxu0 0
        %4803 = vmatpush1.bf16.msra.mxu0 0
        %4804 = vmatprep.subr.bf16.mxu0 0
        %4805 = vmatpush1.bf16.msra.mxu0 0
        %4806 = vmatprep.subr.bf16.mxu0 0
        %4807 = vmatpush1.bf16.msra.mxu0 0
        %4808 = vmatprep.mubr.bf16.mxu0 0
        %4809 = vmatmul.mubr.bf16.gmra.mrb[0].mxu0 %v4723
        %v4810 = vpop.f32.mrb[0].mxu0
        %v4811 = vadd.f32 0.0, %v4810
        %v4812 = vpop.f32.mrb[0].mxu0
        %v4813 = vadd.f32 0.0, %v4812
        %v4814 = vpop.f32.mrb[0].mxu0
        %v4815 = vadd.f32 0.0, %v4814
        %v4816 = vpop.f32.mrb[0].mxu0
        %v4817 = vadd.f32 0.0, %v4816
        %4818 = vmatprep.mubr.bf16.mxu0 0
        %4819 = vmatmul.mubr.bf16.gmra.mrb[0].mxu0 %v4726
        %v4820 = vpop.f32.mrb[0].mxu0
        %v4821 = vadd.f32 0.0, %v4820
        %v4822 = vpop.f32.mrb[0].mxu0
        %v4823 = vadd.f32 0.0, %v4822
        %v4824 = vpop.f32.mrb[0].mxu0
        %v4825 = vadd.f32 0.0, %v4824
        %v4826 = vpop.f32.mrb[0].mxu0
        %v4827 = vadd.f32 0.0, %v4826
        %4828 = vmatprep.mubr.bf16.mxu0 0
        %4829 = vmatmul.mubr.bf16.gmra.mrb[0].mxu0 %v4729
        %v4830 = vpop.f32.mrb[0].mxu0
        %v4831 = vadd.f32 0.0, %v4830
        %v4832 = vpop.f32.mrb[0].mxu0
        %v4833 = vadd.f32 0.0, %v4832
        %v4834 = vpop.f32.mrb[0].mxu0
        %v4835 = vadd.f32 0.0, %v4834
        %v4836 = vpop.f32.mrb[0].mxu0
        %v4837 = vadd.f32 0.0, %v4836
        %4838 = vmatprep.mubr.bf16.mxu0 0
        %4839 = vmatmul.mubr.bf16.gmra.mrb[0].mxu0 %v4732
        %v4840 = vpop.f32.mrb[0].mxu0
        %v4841 = vadd.f32 0.0, %v4840
        %v4842 = vpop.f32.mrb[0].mxu0
        %v4843 = vadd.f32 0.0, %v4842
        %v4844 = vpop.f32.mrb[0].mxu0
        %v4845 = vadd.f32 0.0, %v4844
        %v4846 = vpop.f32.mrb[0].mxu0
        %v4847 = vadd.f32 0.0, %v4846
        %4848 = vmatprep.mubr.bf16.mxu0 0
        %4849 = vmatmul.mubr.bf16.gmra.mrb[0].mxu0 %v4735
        %v4850 = vpop.f32.mrb[0].mxu0
        %v4851 = vadd.f32 0.0, %v4850
        %v4852 = vpop.f32.mrb[0].mxu0
        %v4853 = vadd.f32 0.0, %v4852
        %v4854 = vpop.f32.mrb[0].mxu0
        %v4855 = vadd.f32 0.0, %v4854
        %v4856 = vpop.f32.mrb[0].mxu0
        %v4857 = vadd.f32 0.0, %v4856
        %4858 = vmatprep.mubr.bf16.mxu0 0
        %4859 = vmatmul.mubr.bf16.gmra.mrb[0].mxu0 %v4738
        %v4860 = vpop.f32.mrb[0].mxu0
        %v4861 = vadd.f32 0.0, %v4860
        %v4862 = vpop.f32.mrb[0].mxu0
        %v4863 = vadd.f32 0.0, %v4862
        %v4864 = vpop.f32.mrb[0].mxu0
        %v4865 = vadd.f32 0.0, %v4864
        %v4866 = vpop.f32.mrb[0].mxu0
        %v4867 = vadd.f32 0.0, %v4866
        %4868 = vmatprep.mubr.bf16.mxu0 0
        %4869 = vmatmul.mubr.bf16.gmra.mrb[0].mxu0 %v4741
        %v4870 = vpop.f32.mrb[0].mxu0
        %v4871 = vadd.f32 0.0, %v4870
        %v4872 = vpop.f32.mrb[0].mxu0
        %v4873 = vadd.f32 0.0, %v4872
        %v4874 = vpop.f32.mrb[0].mxu0
        %v4875 = vadd.f32 0.0, %v4874
        %v4876 = vpop.f32.mrb[0].mxu0
        %v4877 = vadd.f32 0.0, %v4876
        %4878 = vmatprep.mubr.bf16.mxu0 0
        %4879 = vmatmul.mubr.bf16.gmra.mrb[0].mxu0 %v4744
        %v4880 = vpop.f32.mrb[0].mxu0
        %v4881 = vadd.f32 0.0, %v4880
        %v4882 = vpop.f32.mrb[0].mxu0
        %v4883 = vadd.f32 0.0, %v4882
        %v4884 = vpop.f32.mrb[0].mxu0
        %v4885 = vadd.f32 0.0, %v4884
        %v4886 = vpop.f32.mrb[0].mxu0
        %v4887 = vadd.f32 0.0, %v4886
        %4888 = vmatprep.mubr.bf16.mxu0 0
        %4889 = vmatmul.mubr.bf16.gmra.mrb[0].mxu0 %v4747
        %v4890 = vpop.f32.mrb[0].mxu0
        %v4891 = vadd.f32 0.0, %v4890
        %v4892 = vpop.f32.mrb[0].mxu0
        %v4893 = vadd.f32 0.0, %v4892
        %v4894 = vpop.f32.mrb[0].mxu0
        %v4895 = vadd.f32 0.0, %v4894
        %v4896 = vpop.f32.mrb[0].mxu0
        %v4897 = vadd.f32 0.0, %v4896
        %4898 = vmatprep.mubr.bf16.mxu0 0
        %4899 = vmatmul.mubr.bf16.gmra.mrb[0].mxu0 %v4750
        %v4900 = vpop.f32.mrb[0].mxu0
        %v4901 = vadd.f32 0.0, %v4900
        %v4902 = vpop.f32.mrb[0].mxu0
        %v4903 = vadd.f32 0.0, %v4902
        %v4904 = vpop.f32.mrb[0].mxu0
        %v4905 = vadd.f32 0.0, %v4904
        %v4906 = vpop.f32.mrb[0].mxu0
        %v4907 = vadd.f32 0.0, %v4906
        %4908 = vmatprep.mubr.bf16.mxu0 0
        %4909 = vmatmul.mubr.bf16.gmra.mrb[0].mxu0 %v4753
        %v4910 = vpop.f32.mrb[0].mxu0
        %v4911 = vadd.f32 0.0, %v4910
        %v4912 = vpop.f32.mrb[0].mxu0
        %v4913 = vadd.f32 0.0, %v4912
        %v4914 = vpop.f32.mrb[0].mxu0
        %v4915 = vadd.f32 0.0, %v4914
        %v4916 = vpop.f32.mrb[0].mxu0
        %v4917 = vadd.f32 0.0, %v4916
        %4918 = vmatprep.mubr.bf16.mxu0 0
        %4919 = vmatmul.mubr.bf16.gmra.mrb[0].mxu0 %v4756
        %v4920 = vpop.f32.mrb[0].mxu0
        %v4921 = vadd.f32 0.0, %v4920
        %v4922 = vpop.f32.mrb[0].mxu0
        %v4923 = vadd.f32 0.0, %v4922
        %v4924 = vpop.f32.mrb[0].mxu0
        %v4925 = vadd.f32 0.0, %v4924
        %v4926 = vpop.f32.mrb[0].mxu0
        %v4927 = vadd.f32 0.0, %v4926
        %4928 = vmatprep.mubr.bf16.mxu0 0
        %4929 = vmatmul.mubr.bf16.gmra.mrb[0].mxu0 %v4759
        %v4930 = vpop.f32.mrb[0].mxu0
        %v4931 = vadd.f32 0.0, %v4930
        %v4932 = vpop.f32.mrb[0].mxu0
        %v4933 = vadd.f32 0.0, %v4932
        %v4934 = vpop.f32.mrb[0].mxu0
        %v4935 = vadd.f32 0.0, %v4934
        %v4936 = vpop.f32.mrb[0].mxu0
        %v4937 = vadd.f32 0.0, %v4936
        %4938 = vmatprep.mubr.bf16.mxu0 0
        %4939 = vmatmul.mubr.bf16.gmra.mrb[0].mxu0 %v4762
        %v4940 = vpop.f32.mrb[0].mxu0
        %v4941 = vadd.f32 0.0, %v4940
        %v4942 = vpop.f32.mrb[0].mxu0
        %v4943 = vadd.f32 0.0, %v4942
        %v4944 = vpop.f32.mrb[0].mxu0
        %v4945 = vadd.f32 0.0, %v4944
        %v4946 = vpop.f32.mrb[0].mxu0
        %v4947 = vadd.f32 0.0, %v4946
        %4948 = vmatprep.mubr.bf16.mxu0 0
        %4949 = vmatmul.mubr.bf16.gmra.mrb[0].mxu0 %v4765
        %v4950 = vpop.f32.mrb[0].mxu0
        %v4951 = vadd.f32 0.0, %v4950
        %v4952 = vpop.f32.mrb[0].mxu0
        %v4953 = vadd.f32 0.0, %v4952
        %v4954 = vpop.f32.mrb[0].mxu0
        %v4955 = vadd.f32 0.0, %v4954
        %v4956 = vpop.f32.mrb[0].mxu0
        %v4957 = vadd.f32 0.0, %v4956
        %4958 = vmatprep.mubr.bf16.mxu0 0
        %4959 = vmatmul.mubr.bf16.gmra.mrb[0].mxu0 %v4768
        %v4960 = vpop.f32.mrb[0].mxu0
        %v4961 = vadd.f32 0.0, %v4960
        %v4962 = vpop.f32.mrb[0].mxu0
        %v4963 = vadd.f32 0.0, %v4962
        %v4964 = vpop.f32.mrb[0].mxu0
        %v4965 = vadd.f32 0.0, %v4964
        %v4966 = vpop.f32.mrb[0].mxu0
        %v4967 = vadd.f32 0.0, %v4966
        %4968 = vdwg.mxu0
        %v4969 = vmax.f32 %v4811, %v4821
        %v4970 = vmax.f32 %v4815, %v4825
        %v4971 = vmax.f32 %v4969, %v4831
        %v4972 = vmax.f32 %v4970, %v4835
        %v4973 = vmax.f32 %v4971, %v4841
        %v4974 = vmax.f32 %v4972, %v4845
        %v4975 = vmax.f32 %v4973, %v4851
        %v4976 = vmax.f32 %v4974, %v4855
        %v4977 = vmax.f32 %v4975, %v4861
        %v4978 = vmax.f32 %v4976, %v4865
        %v4979 = vmax.f32 %v4977, %v4871
        %v4980 = vmax.f32 %v4978, %v4875
        %v4981 = vmax.f32 %v4979, %v4881
        %v4982 = vmax.f32 %v4980, %v4885
        %v4983 = vmax.f32 %v4981, %v4891
        %v4984 = vmax.f32 %v4982, %v4895
        %v4985 = vmax.f32 %v4983, %v4901
        %v4986 = vmax.f32 %v4984, %v4905
        %v4987 = vmax.f32 %v4985, %v4911
        %v4988 = vmax.f32 %v4986, %v4915
        %v4989 = vmax.f32 %v4987, %v4921
        %v4990 = vmax.f32 %v4988, %v4925
        %v4991 = vmax.f32 %v4989, %v4931
        %v4992 = vmax.f32 %v4990, %v4935
        %v4993 = vmax.f32 %v4991, %v4941
        %v4994 = vmax.f32 %v4992, %v4945
        %v4995 = vmax.f32 %v4993, %v4951
        %v4996 = vmax.f32 %v4994, %v4955
        %v4997 = vmax.f32 %v4995, %v4961
        %v4998 = vmax.f32 %v4996, %v4965
        %v4999 = vmax.f32 %v4997, %v4998
        %v5000 = vrot.slane %v4999, 4
        %v5001 = vmax.f32 %v4999, %v5000
        %v5002 = vrot.slane %v5001, 2
        %v5003 = vmax.f32 %v5001, %v5002
        %v5004 = vrot.slane %v5003, 1
        %v5005 = vmax.f32 %v5003, %v5004
        %v5006 = vmax.f32 %v4813, %v4823
        %v5007 = vmax.f32 %v4817, %v4827
        %v5008 = vmax.f32 %v5006, %v4833
        %v5009 = vmax.f32 %v5007, %v4837
        %v5010 = vmax.f32 %v5008, %v4843
        %v5011 = vmax.f32 %v5009, %v4847
        %v5012 = vmax.f32 %v5010, %v4853
        %v5013 = vmax.f32 %v5011, %v4857
        %v5014 = vmax.f32 %v5012, %v4863
        %v5015 = vmax.f32 %v5013, %v4867
        %v5016 = vmax.f32 %v5014, %v4873
        %v5017 = vmax.f32 %v5015, %v4877
        %v5018 = vmax.f32 %v5016, %v4883
        %v5019 = vmax.f32 %v5017, %v4887
        %v5020 = vmax.f32 %v5018, %v4893
        %v5021 = vmax.f32 %v5019, %v4897
        %v5022 = vmax.f32 %v5020, %v4903
        %v5023 = vmax.f32 %v5021, %v4907
        %v5024 = vmax.f32 %v5022, %v4913
        %v5025 = vmax.f32 %v5023, %v4917
        %v5026 = vmax.f32 %v5024, %v4923
        %v5027 = vmax.f32 %v5025, %v4927
        %v5028 = vmax.f32 %v5026, %v4933
        %v5029 = vmax.f32 %v5027, %v4937
        %v5030 = vmax.f32 %v5028, %v4943
        %v5031 = vmax.f32 %v5029, %v4947
        %v5032 = vmax.f32 %v5030, %v4953
        %v5033 = vmax.f32 %v5031, %v4957
        %v5034 = vmax.f32 %v5032, %v4963
        %v5035 = vmax.f32 %v5033, %v4967
        %v5036 = vmax.f32 %v5034, %v5035
        %v5037 = vrot.slane %v5036, 4
        %v5038 = vmax.f32 %v5036, %v5037
        %v5039 = vrot.slane %v5038, 2
        %v5040 = vmax.f32 %v5038, %v5039
        %v5041 = vrot.slane %v5040, 1
        %v5042 = vmax.f32 %v5040, %v5041
        %v5043 = vsub.f32 %v4811, %v5005
        %v5044 = vsub.f32 %v4813, %v5042
        %v5045 = vsub.f32 %v4815, %v5005
        %v5046 = vsub.f32 %v4817, %v5042
        %v5047 = vsub.f32 %v4821, %v5005
        %v5048 = vsub.f32 %v4823, %v5042
        %v5049 = vsub.f32 %v4825, %v5005
        %v5050 = vsub.f32 %v4827, %v5042
        %v5051 = vsub.f32 %v4831, %v5005
        %v5052 = vsub.f32 %v4833, %v5042
        %v5053 = vsub.f32 %v4835, %v5005
        %v5054 = vsub.f32 %v4837, %v5042
        %v5055 = vsub.f32 %v4841, %v5005
        %v5056 = vsub.f32 %v4843, %v5042
        %v5057 = vsub.f32 %v4845, %v5005
        %v5058 = vsub.f32 %v4847, %v5042
        %v5059 = vsub.f32 %v4851, %v5005
        %v5060 = vsub.f32 %v4853, %v5042
        %v5061 = vsub.f32 %v4855, %v5005
        %v5062 = vsub.f32 %v4857, %v5042
        %v5063 = vsub.f32 %v4861, %v5005
        %v5064 = vsub.f32 %v4863, %v5042
        %v5065 = vsub.f32 %v4865, %v5005
        %v5066 = vsub.f32 %v4867, %v5042
        %v5067 = vsub.f32 %v4871, %v5005
        %v5068 = vsub.f32 %v4873, %v5042
        %v5069 = vsub.f32 %v4875, %v5005
        %v5070 = vsub.f32 %v4877, %v5042
        %v5071 = vsub.f32 %v4881, %v5005
        %v5072 = vsub.f32 %v4883, %v5042
        %v5073 = vsub.f32 %v4885, %v5005
        %v5074 = vsub.f32 %v4887, %v5042
        %v5075 = vsub.f32 %v4891, %v5005
        %v5076 = vsub.f32 %v4893, %v5042
        %v5077 = vsub.f32 %v4895, %v5005
        %v5078 = vsub.f32 %v4897, %v5042
        %v5079 = vsub.f32 %v4901, %v5005
        %v5080 = vsub.f32 %v4903, %v5042
        %v5081 = vsub.f32 %v4905, %v5005
        %v5082 = vsub.f32 %v4907, %v5042
        %v5083 = vsub.f32 %v4911, %v5005
        %v5084 = vsub.f32 %v4913, %v5042
        %v5085 = vsub.f32 %v4915, %v5005
        %v5086 = vsub.f32 %v4917, %v5042
        %v5087 = vsub.f32 %v4921, %v5005
        %v5088 = vsub.f32 %v4923, %v5042
        %v5089 = vsub.f32 %v4925, %v5005
        %v5090 = vsub.f32 %v4927, %v5042
        %v5091 = vsub.f32 %v4931, %v5005
        %v5092 = vsub.f32 %v4933, %v5042
        %v5093 = vsub.f32 %v4935, %v5005
        %v5094 = vsub.f32 %v4937, %v5042
        %v5095 = vsub.f32 %v4941, %v5005
        %v5096 = vsub.f32 %v4943, %v5042
        %v5097 = vsub.f32 %v4945, %v5005
        %v5098 = vsub.f32 %v4947, %v5042
        %v5099 = vsub.f32 %v4951, %v5005
        %v5100 = vsub.f32 %v4953, %v5042
        %v5101 = vsub.f32 %v4955, %v5005
        %v5102 = vsub.f32 %v4957, %v5042
        %v5103 = vsub.f32 %v4961, %v5005
        %v5104 = vsub.f32 %v4963, %v5042
        %v5105 = vsub.f32 %v4965, %v5005
        %v5106 = vsub.f32 %v4967, %v5042
        %v5107 = vmul.f32 %v5043, 1.442695
        %v5108 = vpow.pop %v5107
        %v5109 = vmul.f32 %v5044, 1.442695
        %v5110 = vpow.pop %v5109
        %v5111 = vmul.f32 %v5045, 1.442695
        %v5112 = vpow.pop %v5111
        %v5113 = vmul.f32 %v5046, 1.442695
        %v5114 = vpow.pop %v5113
        %v5115 = vmul.f32 %v5047, 1.442695
        %v5116 = vpow.pop %v5115
        %v5117 = vmul.f32 %v5048, 1.442695
        %v5118 = vpow.pop %v5117
        %v5119 = vmul.f32 %v5049, 1.442695
        %v5120 = vpow.pop %v5119
        %v5121 = vmul.f32 %v5050, 1.442695
        %v5122 = vpow.pop %v5121
        %v5123 = vmul.f32 %v5051, 1.442695
        %v5124 = vpow.pop %v5123
        %v5125 = vmul.f32 %v5052, 1.442695
        %v5126 = vpow.pop %v5125
        %v5127 = vmul.f32 %v5053, 1.442695
        %v5128 = vpow.pop %v5127
        %v5129 = vmul.f32 %v5054, 1.442695
        %v5130 = vpow.pop %v5129
        %v5131 = vmul.f32 %v5055, 1.442695
        %v5132 = vpow.pop %v5131
        %v5133 = vmul.f32 %v5056, 1.442695
        %v5134 = vpow.pop %v5133
        %v5135 = vmul.f32 %v5057, 1.442695
        %v5136 = vpow.pop %v5135
        %v5137 = vmul.f32 %v5058, 1.442695
        %v5138 = vpow.pop %v5137
        %v5139 = vmul.f32 %v5059, 1.442695
        %v5140 = vpow.pop %v5139
        %v5141 = vmul.f32 %v5060, 1.442695
        %v5142 = vpow.pop %v5141
        %v5143 = vmul.f32 %v5061, 1.442695
        %v5144 = vpow.pop %v5143
        %v5145 = vmul.f32 %v5062, 1.442695
        %v5146 = vpow.pop %v5145
        %v5147 = vmul.f32 %v5063, 1.442695
        %v5148 = vpow.pop %v5147
        %v5149 = vmul.f32 %v5064, 1.442695
        %v5150 = vpow.pop %v5149
        %v5151 = vmul.f32 %v5065, 1.442695
        %v5152 = vpow.pop %v5151
        %v5153 = vmul.f32 %v5066, 1.442695
        %v5154 = vpow.pop %v5153
        %v5155 = vmul.f32 %v5067, 1.442695
        %v5156 = vpow.pop %v5155
        %v5157 = vmul.f32 %v5068, 1.442695
        %v5158 = vpow.pop %v5157
        %v5159 = vmul.f32 %v5069, 1.442695
        %v5160 = vpow.pop %v5159
        %v5161 = vmul.f32 %v5070, 1.442695
        %v5162 = vpow.pop %v5161
        %v5163 = vmul.f32 %v5071, 1.442695
        %v5164 = vpow.pop %v5163
        %v5165 = vmul.f32 %v5072, 1.442695
        %v5166 = vpow.pop %v5165
        %v5167 = vmul.f32 %v5073, 1.442695
        %v5168 = vpow.pop %v5167
        %v5169 = vmul.f32 %v5074, 1.442695
        %v5170 = vpow.pop %v5169
        %v5171 = vmul.f32 %v5075, 1.442695
        %v5172 = vpow.pop %v5171
        %v5173 = vmul.f32 %v5076, 1.442695
        %v5174 = vpow.pop %v5173
        %v5175 = vmul.f32 %v5077, 1.442695
        %v5176 = vpow.pop %v5175
        %v5177 = vmul.f32 %v5078, 1.442695
        %v5178 = vpow.pop %v5177
        %v5179 = vmul.f32 %v5079, 1.442695
        %v5180 = vpow.pop %v5179
        %v5181 = vmul.f32 %v5080, 1.442695
        %v5182 = vpow.pop %v5181
        %v5183 = vmul.f32 %v5081, 1.442695
        %v5184 = vpow.pop %v5183
        %v5185 = vmul.f32 %v5082, 1.442695
        %v5186 = vpow.pop %v5185
        %v5187 = vmul.f32 %v5083, 1.442695
        %v5188 = vpow.pop %v5187
        %v5189 = vmul.f32 %v5084, 1.442695
        %v5190 = vpow.pop %v5189
        %v5191 = vmul.f32 %v5085, 1.442695
        %v5192 = vpow.pop %v5191
        %v5193 = vmul.f32 %v5086, 1.442695
        %v5194 = vpow.pop %v5193
        %v5195 = vmul.f32 %v5087, 1.442695
        %v5196 = vpow.pop %v5195
        %v5197 = vmul.f32 %v5088, 1.442695
        %v5198 = vpow.pop %v5197
        %v5199 = vmul.f32 %v5089, 1.442695
        %v5200 = vpow.pop %v5199
        %v5201 = vmul.f32 %v5090, 1.442695
        %v5202 = vpow.pop %v5201
        %v5203 = vmul.f32 %v5091, 1.442695
        %v5204 = vpow.pop %v5203
        %v5205 = vmul.f32 %v5092, 1.442695
        %v5206 = vpow.pop %v5205
        %v5207 = vmul.f32 %v5093, 1.442695
        %v5208 = vpow.pop %v5207
        %v5209 = vmul.f32 %v5094, 1.442695
        %v5210 = vpow.pop %v5209
        %v5211 = vmul.f32 %v5095, 1.442695
        %v5212 = vpow.pop %v5211
        %v5213 = vmul.f32 %v5096, 1.442695
        %v5214 = vpow.pop %v5213
        %v5215 = vmul.f32 %v5097, 1.442695
        %v5216 = vpow.pop %v5215
        %v5217 = vmul.f32 %v5098, 1.442695
        %v5218 = vpow.pop %v5217
        %v5219 = vmul.f32 %v5099, 1.442695
        %v5220 = vpow.pop %v5219
        %v5221 = vmul.f32 %v5100, 1.442695
        %v5222 = vpow.pop %v5221
        %v5223 = vmul.f32 %v5101, 1.442695
        %v5224 = vpow.pop %v5223
        %v5225 = vmul.f32 %v5102, 1.442695
        %v5226 = vpow.pop %v5225
        %v5227 = vmul.f32 %v5103, 1.442695
        %v5228 = vpow.pop %v5227
        %v5229 = vmul.f32 %v5104, 1.442695
        %v5230 = vpow.pop %v5229
        %v5231 = vmul.f32 %v5105, 1.442695
        %v5232 = vpow.pop %v5231
        %v5233 = vmul.f32 %v5106, 1.442695
        %v5234 = vpow.pop %v5233
        %v5235 = vadd.f32 %v5108, %v5112
        %v5236 = vadd.f32 %v5235, %v5116
        %v5237 = vadd.f32 %v5236, %v5120
        %v5238 = vadd.f32 %v5237, %v5124
        %v5239 = vadd.f32 %v5238, %v5128
        %v5240 = vadd.f32 %v5239, %v5132
        %v5241 = vadd.f32 %v5240, %v5136
        %v5242 = vadd.f32 %v5241, %v5140
        %v5243 = vadd.f32 %v5242, %v5144
        %v5244 = vadd.f32 %v5243, %v5148
        %v5245 = vadd.f32 %v5244, %v5152
        %v5246 = vadd.f32 %v5245, %v5156
        %v5247 = vadd.f32 %v5246, %v5160
        %v5248 = vadd.f32 %v5247, %v5164
        %v5249 = vadd.f32 %v5248, %v5168
        %v5250 = vadd.f32 %v5249, %v5172
        %v5251 = vadd.f32 %v5250, %v5176
        %v5252 = vadd.f32 %v5251, %v5180
        %v5253 = vadd.f32 %v5252, %v5184
        %v5254 = vadd.f32 %v5253, %v5188
        %v5255 = vadd.f32 %v5254, %v5192
        %v5256 = vadd.f32 %v5255, %v5196
        %v5257 = vadd.f32 %v5256, %v5200
        %v5258 = vadd.f32 %v5257, %v5204
        %v5259 = vadd.f32 %v5258, %v5208
        %v5260 = vadd.f32 %v5259, %v5212
        %v5261 = vadd.f32 %v5260, %v5216
        %v5262 = vadd.f32 %v5261, %v5220
        %v5263 = vadd.f32 %v5262, %v5224
        %v5264 = vadd.f32 %v5263, %v5228
        %v5265 = vadd.f32 %v5264, %v5232
        %v5266 = vrot.slane %v5265, 4
        %v5267 = vadd.f32 %v5265, %v5266
        %v5268 = vrot.slane %v5267, 2
        %v5269 = vadd.f32 %v5267, %v5268
        %v5270 = vrot.slane %v5269, 1
        %v5271 = vadd.f32 %v5269, %v5270
        %v5272 = vadd.f32 %v5110, %v5114
        %v5273 = vadd.f32 %v5272, %v5118
        %v5274 = vadd.f32 %v5273, %v5122
        %v5275 = vadd.f32 %v5274, %v5126
        %v5276 = vadd.f32 %v5275, %v5130
        %v5277 = vadd.f32 %v5276, %v5134
        %v5278 = vadd.f32 %v5277, %v5138
        %v5279 = vadd.f32 %v5278, %v5142
        %v5280 = vadd.f32 %v5279, %v5146
        %v5281 = vadd.f32 %v5280, %v5150
        %v5282 = vadd.f32 %v5281, %v5154
        %v5283 = vadd.f32 %v5282, %v5158
        %v5284 = vadd.f32 %v5283, %v5162
        %v5285 = vadd.f32 %v5284, %v5166
        %v5286 = vadd.f32 %v5285, %v5170
        %v5287 = vadd.f32 %v5286, %v5174
        %v5288 = vadd.f32 %v5287, %v5178
        %v5289 = vadd.f32 %v5288, %v5182
        %v5290 = vadd.f32 %v5289, %v5186
        %v5291 = vadd.f32 %v5290, %v5190
        %v5292 = vadd.f32 %v5291, %v5194
        %v5293 = vadd.f32 %v5292, %v5198
        %v5294 = vadd.f32 %v5293, %v5202
        %v5295 = vadd.f32 %v5294, %v5206
        %v5296 = vadd.f32 %v5295, %v5210
        %v5297 = vadd.f32 %v5296, %v5214
        %v5298 = vadd.f32 %v5297, %v5218
        %v5299 = vadd.f32 %v5298, %v5222
        %v5300 = vadd.f32 %v5299, %v5226
        %v5301 = vadd.f32 %v5300, %v5230
        %v5302 = vadd.f32 %v5301, %v5234
        %v5303 = vrot.slane %v5302, 4
        %v5304 = vadd.f32 %v5302, %v5303
        %v5305 = vrot.slane %v5304, 2
        %v5306 = vadd.f32 %v5304, %v5305
        %v5307 = vrot.slane %v5306, 1
        %v5308 = vadd.f32 %v5306, %v5307
        %v5309 = vrcp.pop %v5271
        %v5310 = vrcp.pop %v5308
        %v5311 = vmul.f32 %v5108, %v5309
        %v5312 = vmul.f32 %v5110, %v5310
        %v5313 = vmul.f32 %v5112, %v5309
        %v5314 = vmul.f32 %v5114, %v5310
        %v5315 = vmul.f32 %v5116, %v5309
        %v5316 = vmul.f32 %v5118, %v5310
        %v5317 = vmul.f32 %v5120, %v5309
        %v5318 = vmul.f32 %v5122, %v5310
        %v5319 = vmul.f32 %v5124, %v5309
        %v5320 = vmul.f32 %v5126, %v5310
        %v5321 = vmul.f32 %v5128, %v5309
        %v5322 = vmul.f32 %v5130, %v5310
        %v5323 = vmul.f32 %v5132, %v5309
        %v5324 = vmul.f32 %v5134, %v5310
        %v5325 = vmul.f32 %v5136, %v5309
        %v5326 = vmul.f32 %v5138, %v5310
        %v5327 = vmul.f32 %v5140, %v5309
        %v5328 = vmul.f32 %v5142, %v5310
        %v5329 = vmul.f32 %v5144, %v5309
        %v5330 = vmul.f32 %v5146, %v5310
        %v5331 = vmul.f32 %v5148, %v5309
        %v5332 = vmul.f32 %v5150, %v5310
        %v5333 = vmul.f32 %v5152, %v5309
        %v5334 = vmul.f32 %v5154, %v5310
        %v5335 = vmul.f32 %v5156, %v5309
        %v5336 = vmul.f32 %v5158, %v5310
        %v5337 = vmul.f32 %v5160, %v5309
        %v5338 = vmul.f32 %v5162, %v5310
        %v5339 = vmul.f32 %v5164, %v5309
        %v5340 = vmul.f32 %v5166, %v5310
        %v5341 = vmul.f32 %v5168, %v5309
        %v5342 = vmul.f32 %v5170, %v5310
        %v5343 = vmul.f32 %v5172, %v5309
        %v5344 = vmul.f32 %v5174, %v5310
        %v5345 = vmul.f32 %v5176, %v5309
        %v5346 = vmul.f32 %v5178, %v5310
        %v5347 = vmul.f32 %v5180, %v5309
        %v5348 = vmul.f32 %v5182, %v5310
        %v5349 = vmul.f32 %v5184, %v5309
        %v5350 = vmul.f32 %v5186, %v5310
        %v5351 = vmul.f32 %v5188, %v5309
        %v5352 = vmul.f32 %v5190, %v5310
        %v5353 = vmul.f32 %v5192, %v5309
        %v5354 = vmul.f32 %v5194, %v5310
        %v5355 = vmul.f32 %v5196, %v5309
        %v5356 = vmul.f32 %v5198, %v5310
        %v5357 = vmul.f32 %v5200, %v5309
        %v5358 = vmul.f32 %v5202, %v5310
        %v5359 = vmul.f32 %v5204, %v5309
        %v5360 = vmul.f32 %v5206, %v5310
        %v5361 = vmul.f32 %v5208, %v5309
        %v5362 = vmul.f32 %v5210, %v5310
        %v5363 = vmul.f32 %v5212, %v5309
        %v5364 = vmul.f32 %v5214, %v5310
        %v5365 = vmul.f32 %v5216, %v5309
        %v5366 = vmul.f32 %v5218, %v5310
        %v5367 = vmul.f32 %v5220, %v5309
        %v5368 = vmul.f32 %v5222, %v5310
        %v5369 = vmul.f32 %v5224, %v5309
        %v5370 = vmul.f32 %v5226, %v5310
        %v5371 = vmul.f32 %v5228, %v5309
        %v5372 = vmul.f32 %v5230, %v5310
        %v5373 = vmul.f32 %v5232, %v5309
        %v5374 = vmul.f32 %v5234, %v5310
        %v5375 = vpack.c.bf16 %v5313, %v5311
        %v5376 = vpack.c.bf16 %v5314, %v5312
        %v5377 = vpack.c.bf16 %v5317, %v5315
        %v5378 = vpack.c.bf16 %v5318, %v5316
        %v5379 = vpack.c.bf16 %v5321, %v5319
        %v5380 = vpack.c.bf16 %v5322, %v5320
        %v5381 = vpack.c.bf16 %v5325, %v5323
        %v5382 = vpack.c.bf16 %v5326, %v5324
        %v5383 = vpack.c.bf16 %v5329, %v5327
        %v5384 = vpack.c.bf16 %v5330, %v5328
        %v5385 = vpack.c.bf16 %v5333, %v5331
        %v5386 = vpack.c.bf16 %v5334, %v5332
        %v5387 = vpack.c.bf16 %v5337, %v5335
        %v5388 = vpack.c.bf16 %v5338, %v5336
        %v5389 = vpack.c.bf16 %v5341, %v5339
        %v5390 = vpack.c.bf16 %v5342, %v5340
        %v5391 = vpack.c.bf16 %v5345, %v5343
        %v5392 = vpack.c.bf16 %v5346, %v5344
        %v5393 = vpack.c.bf16 %v5349, %v5347
        %v5394 = vpack.c.bf16 %v5350, %v5348
        %v5395 = vpack.c.bf16 %v5353, %v5351
        %v5396 = vpack.c.bf16 %v5354, %v5352
        %v5397 = vpack.c.bf16 %v5357, %v5355
        %v5398 = vpack.c.bf16 %v5358, %v5356
        %v5399 = vpack.c.bf16 %v5361, %v5359
        %v5400 = vpack.c.bf16 %v5362, %v5360
        %v5401 = vpack.c.bf16 %v5365, %v5363
        %v5402 = vpack.c.bf16 %v5366, %v5364
        %v5403 = vpack.c.bf16 %v5369, %v5367
        %v5404 = vpack.c.bf16 %v5370, %v5368
        %v5405 = vpack.c.bf16 %v5373, %v5371
        %v5406 = vpack.c.bf16 %v5374, %v5372
        %v5409 = vrot.slane %v4668, 2
        %v5410 = vrot.slane %v4669, 2
        %5413 = vmatprep.subr.bf16.mxu0 %v5376
        %5414 = vmatpush1.bf16.msra.mxu0 %v5375
        %5415 = vmatprep.subr.bf16.mxu0 %v5378
        %5416 = vmatpush1.bf16.msra.mxu0 %v5377
        %5417 = vmatprep.subr.bf16.mxu0 %v5380
        %5418 = vmatpush1.bf16.msra.mxu0 %v5379
        %5419 = vmatprep.subr.bf16.mxu0 %v5382
        %5420 = vmatpush1.bf16.msra.mxu0 %v5381
        %5421 = vmatprep.subr.bf16.mxu0 %v5384
        %5422 = vmatpush1.bf16.msra.mxu0 %v5383
        %5423 = vmatprep.subr.bf16.mxu0 %v5386
        %5424 = vmatpush1.bf16.msra.mxu0 %v5385
        %5425 = vmatprep.subr.bf16.mxu0 %v5388
        %5426 = vmatpush1.bf16.msra.mxu0 %v5387
        %5427 = vmatprep.subr.bf16.mxu0 %v5390
        %5428 = vmatpush1.bf16.msra.mxu0 %v5389
        %5429 = vmatprep.subr.bf16.mxu0 %v5392
        %5430 = vmatpush1.bf16.msra.mxu0 %v5391
        %5431 = vmatprep.subr.bf16.mxu0 %v5394
        %5432 = vmatpush1.bf16.msra.mxu0 %v5393
        %5433 = vmatprep.subr.bf16.mxu0 %v5396
        %5434 = vmatpush1.bf16.msra.mxu0 %v5395
        %5435 = vmatprep.subr.bf16.mxu0 %v5398
        %5436 = vmatpush1.bf16.msra.mxu0 %v5397
        %5437 = vmatprep.subr.bf16.mxu0 %v5400
        %5438 = vmatpush1.bf16.msra.mxu0 %v5399
        %5439 = vmatprep.subr.bf16.mxu0 %v5402
        %5440 = vmatpush1.bf16.msra.mxu0 %v5401
        %5441 = vmatprep.subr.bf16.mxu0 %v5404
        %5442 = vmatpush1.bf16.msra.mxu0 %v5403
        %5443 = vmatprep.subr.bf16.mxu0 %v5406
        %5444 = vmatpush1.bf16.msra.mxu0 %v5405
        %5445 = vmatprep.mubr.bf16.mxu0 %v5410
        %5446 = vmatmul.mubr.bf16.gmra.mrb[0].mxu0 %v5409
        %v5447 = vpop.f32.mrb[0].mxu0
        %v5448 = vadd.f32 0.0, %v5447
        %v5449 = vpop.f32.mrb[0].mxu0
        %v5450 = vadd.f32 0.0, %v5449
        %v5451 = vpop.f32.mrb[0].mxu0
        %v5452 = vpop.f32.mrb[0].mxu0
        %5453 = vdwg.mxu0
        %v5456 = vrot.slane %v5448, 4
        %v5457 = vrot.slane %v5450, 4
        %5460 = vst [vmem:[#allocation4 + $0x20] sm:$0xf0] %v5456
        %5461 = vst [vmem:[#allocation4 + $0x28] sm:$0xf0] %v5457
        %v5462 = vld [vmem:[#allocation2] sm:$0xff]
        %v5463 = vld [vmem:[#allocation2 + $0x8] sm:$0xff]
        %v5464 = vld [vmem:[#allocation2 + $0x10] sm:$0xff]
        %v5465 = vld [vmem:[#allocation2 + $0x18] sm:$0xff]
        %v5466 = vld [vmem:[#allocation2 + $0x20] sm:$0xff]
        %v5467 = vld [vmem:[#allocation2 + $0x28] sm:$0xff]
        %v5468 = vld [vmem:[#allocation2 + $0x30] sm:$0xff]
        %v5469 = vld [vmem:[#allocation2 + $0x38] sm:$0xff]
        %v5470 = vld [vmem:[#allocation2 + $0x40] sm:$0xff]
        %v5471 = vld [vmem:[#allocation2 + $0x48] sm:$0xff]
        %v5472 = vld [vmem:[#allocation2 + $0x50] sm:$0xff]
        %v5473 = vld [vmem:[#allocation2 + $0x58] sm:$0xff]
        %v5474 = vld [vmem:[#allocation2 + $0x60] sm:$0xff]
        %v5475 = vld [vmem:[#allocation2 + $0x68] sm:$0xff]
        %v5476 = vld [vmem:[#allocation2 + $0x70] sm:$0xff]
        %v5477 = vld [vmem:[#allocation2 + $0x78] sm:$0xff]
        %v5478 = vld [vmem:[#allocation3 + $0x10] sm:$0x30]
        %v5479 = vld [vmem:[#allocation3 + $0x18] sm:$0x30]
        %5496 = vrot.lane.b32.xlu0 %v5462, 104
        %v5497 = vpop.permute.xlu0 %5496
        %5498 = vrot.lane.b32.xlu0 %v5463, 104
        %v5499 = vpop.permute.xlu0 %5498
        %5500 = vrot.lane.b32.xlu0 %v5464, 104
        %v5501 = vpop.permute.xlu0 %5500
        %5502 = vrot.lane.b32.xlu0 %v5465, 104
        %v5503 = vpop.permute.xlu0 %5502
        %5504 = vrot.lane.b32.xlu0 %v5466, 104
        %v5505 = vpop.permute.xlu0 %5504
        %5506 = vrot.lane.b32.xlu0 %v5467, 104
        %v5507 = vpop.permute.xlu0 %5506
        %5508 = vrot.lane.b32.xlu0 %v5468, 104
        %v5509 = vpop.permute.xlu0 %5508
        %5510 = vrot.lane.b32.xlu0 %v5469, 104
        %v5511 = vpop.permute.xlu0 %5510
        %5512 = vrot.lane.b32.xlu0 %v5470, 104
        %v5513 = vpop.permute.xlu0 %5512
        %5514 = vrot.lane.b32.xlu0 %v5471, 104
        %v5515 = vpop.permute.xlu0 %5514
        %5516 = vrot.lane.b32.xlu0 %v5472, 104
        %v5517 = vpop.permute.xlu0 %5516
        %5518 = vrot.lane.b32.xlu0 %v5473, 104
        %v5519 = vpop.permute.xlu0 %5518
        %5520 = vrot.lane.b32.xlu0 %v5474, 104
        %v5521 = vpop.permute.xlu0 %5520
        %5522 = vrot.lane.b32.xlu0 %v5475, 104
        %v5523 = vpop.permute.xlu0 %5522
        %5524 = vrot.lane.b32.xlu0 %v5476, 104
        %v5525 = vpop.permute.xlu0 %5524
        %5526 = vrot.lane.b32.xlu0 %v5477, 104
        %v5527 = vpop.permute.xlu0 %5526
        %v5528 = vrot.slane %v690, 4
        %v5529 = vrot.slane %v691, 4
        %v5531 = vsel %vm621, %v5497, 0
        %v5534 = vsel %vm621, %v5499, 0
        %v5537 = vsel %vm621, %v5501, 0
        %v5540 = vsel %vm621, %v5503, 0
        %v5543 = vsel %vm621, %v5505, 0
        %v5546 = vsel %vm621, %v5507, 0
        %v5549 = vsel %vm621, %v5509, 0
        %v5552 = vsel %vm621, %v5511, 0
        %v5555 = vsel %vm621, %v5513, 0
        %v5558 = vsel %vm621, %v5515, 0
        %v5561 = vsel %vm621, %v5517, 0
        %v5564 = vsel %vm621, %v5519, 0
        %v5567 = vsel %vm621, %v5521, 0
        %v5570 = vsel %vm621, %v5523, 0
        %v5573 = vsel %vm621, %v5525, 0
        %v5576 = vsel %vm621, %v5527, 0
        %v5579 = vsel %vm628, %v5528, 0
        %v5582 = vsel %vm628, %v5529, 0
        %5584 = vmatprep.subr.bf16.mxu0 %v5582
        %5585 = vmatpush1.bf16.msra.mxu0 %v5579
        %5586 = vmatprep.subr.bf16.mxu0 0
        %5587 = vmatpush1.bf16.msra.mxu0 0
        %5588 = vmatprep.subr.bf16.mxu0 0
        %5589 = vmatpush1.bf16.msra.mxu0 0
        %5590 = vmatprep.subr.bf16.mxu0 0
        %5591 = vmatpush1.bf16.msra.mxu0 0
        %5592 = vmatprep.subr.bf16.mxu0 0
        %5593 = vmatpush1.bf16.msra.mxu0 0
        %5594 = vmatprep.subr.bf16.mxu0 0
        %5595 = vmatpush1.bf16.msra.mxu0 0
        %5596 = vmatprep.subr.bf16.mxu0 0
        %5597 = vmatpush1.bf16.msra.mxu0 0
        %5598 = vmatprep.subr.bf16.mxu0 0
        %5599 = vmatpush1.bf16.msra.mxu0 0
        %5600 = vmatprep.subr.bf16.mxu0 0
        %5601 = vmatpush1.bf16.msra.mxu0 0
        %5602 = vmatprep.subr.bf16.mxu0 0
        %5603 = vmatpush1.bf16.msra.mxu0 0
        %5604 = vmatprep.subr.bf16.mxu0 0
        %5605 = vmatpush1.bf16.msra.mxu0 0
        %5606 = vmatprep.subr.bf16.mxu0 0
        %5607 = vmatpush1.bf16.msra.mxu0 0
        %5608 = vmatprep.subr.bf16.mxu0 0
        %5609 = vmatpush1.bf16.msra.mxu0 0
        %5610 = vmatprep.subr.bf16.mxu0 0
        %5611 = vmatpush1.bf16.msra.mxu0 0
        %5612 = vmatprep.subr.bf16.mxu0 0
        %5613 = vmatpush1.bf16.msra.mxu0 0
        %5614 = vmatprep.subr.bf16.mxu0 0
        %5615 = vmatpush1.bf16.msra.mxu0 0
        %5616 = vmatprep.mubr.bf16.mxu0 0
        %5617 = vmatmul.mubr.bf16.gmra.mrb[0].mxu0 %v5531
        %v5618 = vpop.f32.mrb[0].mxu0
        %v5619 = vadd.f32 0.0, %v5618
        %v5620 = vpop.f32.mrb[0].mxu0
        %v5621 = vadd.f32 0.0, %v5620
        %v5622 = vpop.f32.mrb[0].mxu0
        %v5623 = vadd.f32 0.0, %v5622
        %v5624 = vpop.f32.mrb[0].mxu0
        %v5625 = vadd.f32 0.0, %v5624
        %5626 = vmatprep.mubr.bf16.mxu0 0
        %5627 = vmatmul.mubr.bf16.gmra.mrb[0].mxu0 %v5534
        %v5628 = vpop.f32.mrb[0].mxu0
        %v5629 = vadd.f32 0.0, %v5628
        %v5630 = vpop.f32.mrb[0].mxu0
        %v5631 = vadd.f32 0.0, %v5630
        %v5632 = vpop.f32.mrb[0].mxu0
        %v5633 = vadd.f32 0.0, %v5632
        %v5634 = vpop.f32.mrb[0].mxu0
        %v5635 = vadd.f32 0.0, %v5634
        %5636 = vmatprep.mubr.bf16.mxu0 0
        %5637 = vmatmul.mubr.bf16.gmra.mrb[0].mxu0 %v5537
        %v5638 = vpop.f32.mrb[0].mxu0
        %v5639 = vadd.f32 0.0, %v5638
        %v5640 = vpop.f32.mrb[0].mxu0
        %v5641 = vadd.f32 0.0, %v5640
        %v5642 = vpop.f32.mrb[0].mxu0
        %v5643 = vadd.f32 0.0, %v5642
        %v5644 = vpop.f32.mrb[0].mxu0
        %v5645 = vadd.f32 0.0, %v5644
        %5646 = vmatprep.mubr.bf16.mxu0 0
        %5647 = vmatmul.mubr.bf16.gmra.mrb[0].mxu0 %v5540
        %v5648 = vpop.f32.mrb[0].mxu0
        %v5649 = vadd.f32 0.0, %v5648
        %v5650 = vpop.f32.mrb[0].mxu0
        %v5651 = vadd.f32 0.0, %v5650
        %v5652 = vpop.f32.mrb[0].mxu0
        %v5653 = vadd.f32 0.0, %v5652
        %v5654 = vpop.f32.mrb[0].mxu0
        %v5655 = vadd.f32 0.0, %v5654
        %5656 = vmatprep.mubr.bf16.mxu0 0
        %5657 = vmatmul.mubr.bf16.gmra.mrb[0].mxu0 %v5543
        %v5658 = vpop.f32.mrb[0].mxu0
        %v5659 = vadd.f32 0.0, %v5658
        %v5660 = vpop.f32.mrb[0].mxu0
        %v5661 = vadd.f32 0.0, %v5660
        %v5662 = vpop.f32.mrb[0].mxu0
        %v5663 = vadd.f32 0.0, %v5662
        %v5664 = vpop.f32.mrb[0].mxu0
        %v5665 = vadd.f32 0.0, %v5664
        %5666 = vmatprep.mubr.bf16.mxu0 0
        %5667 = vmatmul.mubr.bf16.gmra.mrb[0].mxu0 %v5546
        %v5668 = vpop.f32.mrb[0].mxu0
        %v5669 = vadd.f32 0.0, %v5668
        %v5670 = vpop.f32.mrb[0].mxu0
        %v5671 = vadd.f32 0.0, %v5670
        %v5672 = vpop.f32.mrb[0].mxu0
        %v5673 = vadd.f32 0.0, %v5672
        %v5674 = vpop.f32.mrb[0].mxu0
        %v5675 = vadd.f32 0.0, %v5674
        %5676 = vmatprep.mubr.bf16.mxu0 0
        %5677 = vmatmul.mubr.bf16.gmra.mrb[0].mxu0 %v5549
        %v5678 = vpop.f32.mrb[0].mxu0
        %v5679 = vadd.f32 0.0, %v5678
        %v5680 = vpop.f32.mrb[0].mxu0
        %v5681 = vadd.f32 0.0, %v5680
        %v5682 = vpop.f32.mrb[0].mxu0
        %v5683 = vadd.f32 0.0, %v5682
        %v5684 = vpop.f32.mrb[0].mxu0
        %v5685 = vadd.f32 0.0, %v5684
        %5686 = vmatprep.mubr.bf16.mxu0 0
        %5687 = vmatmul.mubr.bf16.gmra.mrb[0].mxu0 %v5552
        %v5688 = vpop.f32.mrb[0].mxu0
        %v5689 = vadd.f32 0.0, %v5688
        %v5690 = vpop.f32.mrb[0].mxu0
        %v5691 = vadd.f32 0.0, %v5690
        %v5692 = vpop.f32.mrb[0].mxu0
        %v5693 = vadd.f32 0.0, %v5692
        %v5694 = vpop.f32.mrb[0].mxu0
        %v5695 = vadd.f32 0.0, %v5694
        %5696 = vmatprep.mubr.bf16.mxu0 0
        %5697 = vmatmul.mubr.bf16.gmra.mrb[0].mxu0 %v5555
        %v5698 = vpop.f32.mrb[0].mxu0
        %v5699 = vadd.f32 0.0, %v5698
        %v5700 = vpop.f32.mrb[0].mxu0
        %v5701 = vadd.f32 0.0, %v5700
        %v5702 = vpop.f32.mrb[0].mxu0
        %v5703 = vadd.f32 0.0, %v5702
        %v5704 = vpop.f32.mrb[0].mxu0
        %v5705 = vadd.f32 0.0, %v5704
        %5706 = vmatprep.mubr.bf16.mxu0 0
        %5707 = vmatmul.mubr.bf16.gmra.mrb[0].mxu0 %v5558
        %v5708 = vpop.f32.mrb[0].mxu0
        %v5709 = vadd.f32 0.0, %v5708
        %v5710 = vpop.f32.mrb[0].mxu0
        %v5711 = vadd.f32 0.0, %v5710
        %v5712 = vpop.f32.mrb[0].mxu0
        %v5713 = vadd.f32 0.0, %v5712
        %v5714 = vpop.f32.mrb[0].mxu0
        %v5715 = vadd.f32 0.0, %v5714
        %5716 = vmatprep.mubr.bf16.mxu0 0
        %5717 = vmatmul.mubr.bf16.gmra.mrb[0].mxu0 %v5561
        %v5718 = vpop.f32.mrb[0].mxu0
        %v5719 = vadd.f32 0.0, %v5718
        %v5720 = vpop.f32.mrb[0].mxu0
        %v5721 = vadd.f32 0.0, %v5720
        %v5722 = vpop.f32.mrb[0].mxu0
        %v5723 = vadd.f32 0.0, %v5722
        %v5724 = vpop.f32.mrb[0].mxu0
        %v5725 = vadd.f32 0.0, %v5724
        %5726 = vmatprep.mubr.bf16.mxu0 0
        %5727 = vmatmul.mubr.bf16.gmra.mrb[0].mxu0 %v5564
        %v5728 = vpop.f32.mrb[0].mxu0
        %v5729 = vadd.f32 0.0, %v5728
        %v5730 = vpop.f32.mrb[0].mxu0
        %v5731 = vadd.f32 0.0, %v5730
        %v5732 = vpop.f32.mrb[0].mxu0
        %v5733 = vadd.f32 0.0, %v5732
        %v5734 = vpop.f32.mrb[0].mxu0
        %v5735 = vadd.f32 0.0, %v5734
        %5736 = vmatprep.mubr.bf16.mxu0 0
        %5737 = vmatmul.mubr.bf16.gmra.mrb[0].mxu0 %v5567
        %v5738 = vpop.f32.mrb[0].mxu0
        %v5739 = vadd.f32 0.0, %v5738
        %v5740 = vpop.f32.mrb[0].mxu0
        %v5741 = vadd.f32 0.0, %v5740
        %v5742 = vpop.f32.mrb[0].mxu0
        %v5743 = vadd.f32 0.0, %v5742
        %v5744 = vpop.f32.mrb[0].mxu0
        %v5745 = vadd.f32 0.0, %v5744
        %5746 = vmatprep.mubr.bf16.mxu0 0
        %5747 = vmatmul.mubr.bf16.gmra.mrb[0].mxu0 %v5570
        %v5748 = vpop.f32.mrb[0].mxu0
        %v5749 = vadd.f32 0.0, %v5748
        %v5750 = vpop.f32.mrb[0].mxu0
        %v5751 = vadd.f32 0.0, %v5750
        %v5752 = vpop.f32.mrb[0].mxu0
        %v5753 = vadd.f32 0.0, %v5752
        %v5754 = vpop.f32.mrb[0].mxu0
        %v5755 = vadd.f32 0.0, %v5754
        %5756 = vmatprep.mubr.bf16.mxu0 0
        %5757 = vmatmul.mubr.bf16.gmra.mrb[0].mxu0 %v5573
        %v5758 = vpop.f32.mrb[0].mxu0
        %v5759 = vadd.f32 0.0, %v5758
        %v5760 = vpop.f32.mrb[0].mxu0
        %v5761 = vadd.f32 0.0, %v5760
        %v5762 = vpop.f32.mrb[0].mxu0
        %v5763 = vadd.f32 0.0, %v5762
        %v5764 = vpop.f32.mrb[0].mxu0
        %v5765 = vadd.f32 0.0, %v5764
        %5766 = vmatprep.mubr.bf16.mxu0 0
        %5767 = vmatmul.mubr.bf16.gmra.mrb[0].mxu0 %v5576
        %v5768 = vpop.f32.mrb[0].mxu0
        %v5769 = vadd.f32 0.0, %v5768
        %v5770 = vpop.f32.mrb[0].mxu0
        %v5771 = vadd.f32 0.0, %v5770
        %v5772 = vpop.f32.mrb[0].mxu0
        %v5773 = vadd.f32 0.0, %v5772
        %v5774 = vpop.f32.mrb[0].mxu0
        %v5775 = vadd.f32 0.0, %v5774
        %5776 = vdwg.mxu0
        %v5777 = vmax.f32 %v5619, %v5629
        %v5778 = vmax.f32 %v5623, %v5633
        %v5779 = vmax.f32 %v5777, %v5639
        %v5780 = vmax.f32 %v5778, %v5643
        %v5781 = vmax.f32 %v5779, %v5649
        %v5782 = vmax.f32 %v5780, %v5653
        %v5783 = vmax.f32 %v5781, %v5659
        %v5784 = vmax.f32 %v5782, %v5663
        %v5785 = vmax.f32 %v5783, %v5669
        %v5786 = vmax.f32 %v5784, %v5673
        %v5787 = vmax.f32 %v5785, %v5679
        %v5788 = vmax.f32 %v5786, %v5683
        %v5789 = vmax.f32 %v5787, %v5689
        %v5790 = vmax.f32 %v5788, %v5693
        %v5791 = vmax.f32 %v5789, %v5699
        %v5792 = vmax.f32 %v5790, %v5703
        %v5793 = vmax.f32 %v5791, %v5709
        %v5794 = vmax.f32 %v5792, %v5713
        %v5795 = vmax.f32 %v5793, %v5719
        %v5796 = vmax.f32 %v5794, %v5723
        %v5797 = vmax.f32 %v5795, %v5729
        %v5798 = vmax.f32 %v5796, %v5733
        %v5799 = vmax.f32 %v5797, %v5739
        %v5800 = vmax.f32 %v5798, %v5743
        %v5801 = vmax.f32 %v5799, %v5749
        %v5802 = vmax.f32 %v5800, %v5753
        %v5803 = vmax.f32 %v5801, %v5759
        %v5804 = vmax.f32 %v5802, %v5763
        %v5805 = vmax.f32 %v5803, %v5769
        %v5806 = vmax.f32 %v5804, %v5773
        %v5807 = vmax.f32 %v5805, %v5806
        %v5808 = vrot.slane %v5807, 4
        %v5809 = vmax.f32 %v5807, %v5808
        %v5810 = vrot.slane %v5809, 2
        %v5811 = vmax.f32 %v5809, %v5810
        %v5812 = vrot.slane %v5811, 1
        %v5813 = vmax.f32 %v5811, %v5812
        %v5814 = vmax.f32 %v5621, %v5631
        %v5815 = vmax.f32 %v5625, %v5635
        %v5816 = vmax.f32 %v5814, %v5641
        %v5817 = vmax.f32 %v5815, %v5645
        %v5818 = vmax.f32 %v5816, %v5651
        %v5819 = vmax.f32 %v5817, %v5655
        %v5820 = vmax.f32 %v5818, %v5661
        %v5821 = vmax.f32 %v5819, %v5665
        %v5822 = vmax.f32 %v5820, %v5671
        %v5823 = vmax.f32 %v5821, %v5675
        %v5824 = vmax.f32 %v5822, %v5681
        %v5825 = vmax.f32 %v5823, %v5685
        %v5826 = vmax.f32 %v5824, %v5691
        %v5827 = vmax.f32 %v5825, %v5695
        %v5828 = vmax.f32 %v5826, %v5701
        %v5829 = vmax.f32 %v5827, %v5705
        %v5830 = vmax.f32 %v5828, %v5711
        %v5831 = vmax.f32 %v5829, %v5715
        %v5832 = vmax.f32 %v5830, %v5721
        %v5833 = vmax.f32 %v5831, %v5725
        %v5834 = vmax.f32 %v5832, %v5731
        %v5835 = vmax.f32 %v5833, %v5735
        %v5836 = vmax.f32 %v5834, %v5741
        %v5837 = vmax.f32 %v5835, %v5745
        %v5838 = vmax.f32 %v5836, %v5751
        %v5839 = vmax.f32 %v5837, %v5755
        %v5840 = vmax.f32 %v5838, %v5761
        %v5841 = vmax.f32 %v5839, %v5765
        %v5842 = vmax.f32 %v5840, %v5771
        %v5843 = vmax.f32 %v5841, %v5775
        %v5844 = vmax.f32 %v5842, %v5843
        %v5845 = vrot.slane %v5844, 4
        %v5846 = vmax.f32 %v5844, %v5845
        %v5847 = vrot.slane %v5846, 2
        %v5848 = vmax.f32 %v5846, %v5847
        %v5849 = vrot.slane %v5848, 1
        %v5850 = vmax.f32 %v5848, %v5849
        %v5851 = vsub.f32 %v5619, %v5813
        %v5852 = vsub.f32 %v5621, %v5850
        %v5853 = vsub.f32 %v5623, %v5813
        %v5854 = vsub.f32 %v5625, %v5850
        %v5855 = vsub.f32 %v5629, %v5813
        %v5856 = vsub.f32 %v5631, %v5850
        %v5857 = vsub.f32 %v5633, %v5813
        %v5858 = vsub.f32 %v5635, %v5850
        %v5859 = vsub.f32 %v5639, %v5813
        %v5860 = vsub.f32 %v5641, %v5850
        %v5861 = vsub.f32 %v5643, %v5813
        %v5862 = vsub.f32 %v5645, %v5850
        %v5863 = vsub.f32 %v5649, %v5813
        %v5864 = vsub.f32 %v5651, %v5850
        %v5865 = vsub.f32 %v5653, %v5813
        %v5866 = vsub.f32 %v5655, %v5850
        %v5867 = vsub.f32 %v5659, %v5813
        %v5868 = vsub.f32 %v5661, %v5850
        %v5869 = vsub.f32 %v5663, %v5813
        %v5870 = vsub.f32 %v5665, %v5850
        %v5871 = vsub.f32 %v5669, %v5813
        %v5872 = vsub.f32 %v5671, %v5850
        %v5873 = vsub.f32 %v5673, %v5813
        %v5874 = vsub.f32 %v5675, %v5850
        %v5875 = vsub.f32 %v5679, %v5813
        %v5876 = vsub.f32 %v5681, %v5850
        %v5877 = vsub.f32 %v5683, %v5813
        %v5878 = vsub.f32 %v5685, %v5850
        %v5879 = vsub.f32 %v5689, %v5813
        %v5880 = vsub.f32 %v5691, %v5850
        %v5881 = vsub.f32 %v5693, %v5813
        %v5882 = vsub.f32 %v5695, %v5850
        %v5883 = vsub.f32 %v5699, %v5813
        %v5884 = vsub.f32 %v5701, %v5850
        %v5885 = vsub.f32 %v5703, %v5813
        %v5886 = vsub.f32 %v5705, %v5850
        %v5887 = vsub.f32 %v5709, %v5813
        %v5888 = vsub.f32 %v5711, %v5850
        %v5889 = vsub.f32 %v5713, %v5813
        %v5890 = vsub.f32 %v5715, %v5850
        %v5891 = vsub.f32 %v5719, %v5813
        %v5892 = vsub.f32 %v5721, %v5850
        %v5893 = vsub.f32 %v5723, %v5813
        %v5894 = vsub.f32 %v5725, %v5850
        %v5895 = vsub.f32 %v5729, %v5813
        %v5896 = vsub.f32 %v5731, %v5850
        %v5897 = vsub.f32 %v5733, %v5813
        %v5898 = vsub.f32 %v5735, %v5850
        %v5899 = vsub.f32 %v5739, %v5813
        %v5900 = vsub.f32 %v5741, %v5850
        %v5901 = vsub.f32 %v5743, %v5813
        %v5902 = vsub.f32 %v5745, %v5850
        %v5903 = vsub.f32 %v5749, %v5813
        %v5904 = vsub.f32 %v5751, %v5850
        %v5905 = vsub.f32 %v5753, %v5813
        %v5906 = vsub.f32 %v5755, %v5850
        %v5907 = vsub.f32 %v5759, %v5813
        %v5908 = vsub.f32 %v5761, %v5850
        %v5909 = vsub.f32 %v5763, %v5813
        %v5910 = vsub.f32 %v5765, %v5850
        %v5911 = vsub.f32 %v5769, %v5813
        %v5912 = vsub.f32 %v5771, %v5850
        %v5913 = vsub.f32 %v5773, %v5813
        %v5914 = vsub.f32 %v5775, %v5850
        %v5915 = vmul.f32 %v5851, 1.442695
        %v5916 = vpow.pop %v5915
        %v5917 = vmul.f32 %v5852, 1.442695
        %v5918 = vpow.pop %v5917
        %v5919 = vmul.f32 %v5853, 1.442695
        %v5920 = vpow.pop %v5919
        %v5921 = vmul.f32 %v5854, 1.442695
        %v5922 = vpow.pop %v5921
        %v5923 = vmul.f32 %v5855, 1.442695
        %v5924 = vpow.pop %v5923
        %v5925 = vmul.f32 %v5856, 1.442695
        %v5926 = vpow.pop %v5925
        %v5927 = vmul.f32 %v5857, 1.442695
        %v5928 = vpow.pop %v5927
        %v5929 = vmul.f32 %v5858, 1.442695
        %v5930 = vpow.pop %v5929
        %v5931 = vmul.f32 %v5859, 1.442695
        %v5932 = vpow.pop %v5931
        %v5933 = vmul.f32 %v5860, 1.442695
        %v5934 = vpow.pop %v5933
        %v5935 = vmul.f32 %v5861, 1.442695
        %v5936 = vpow.pop %v5935
        %v5937 = vmul.f32 %v5862, 1.442695
        %v5938 = vpow.pop %v5937
        %v5939 = vmul.f32 %v5863, 1.442695
        %v5940 = vpow.pop %v5939
        %v5941 = vmul.f32 %v5864, 1.442695
        %v5942 = vpow.pop %v5941
        %v5943 = vmul.f32 %v5865, 1.442695
        %v5944 = vpow.pop %v5943
        %v5945 = vmul.f32 %v5866, 1.442695
        %v5946 = vpow.pop %v5945
        %v5947 = vmul.f32 %v5867, 1.442695
        %v5948 = vpow.pop %v5947
        %v5949 = vmul.f32 %v5868, 1.442695
        %v5950 = vpow.pop %v5949
        %v5951 = vmul.f32 %v5869, 1.442695
        %v5952 = vpow.pop %v5951
        %v5953 = vmul.f32 %v5870, 1.442695
        %v5954 = vpow.pop %v5953
        %v5955 = vmul.f32 %v5871, 1.442695
        %v5956 = vpow.pop %v5955
        %v5957 = vmul.f32 %v5872, 1.442695
        %v5958 = vpow.pop %v5957
        %v5959 = vmul.f32 %v5873, 1.442695
        %v5960 = vpow.pop %v5959
        %v5961 = vmul.f32 %v5874, 1.442695
        %v5962 = vpow.pop %v5961
        %v5963 = vmul.f32 %v5875, 1.442695
        %v5964 = vpow.pop %v5963
        %v5965 = vmul.f32 %v5876, 1.442695
        %v5966 = vpow.pop %v5965
        %v5967 = vmul.f32 %v5877, 1.442695
        %v5968 = vpow.pop %v5967
        %v5969 = vmul.f32 %v5878, 1.442695
        %v5970 = vpow.pop %v5969
        %v5971 = vmul.f32 %v5879, 1.442695
        %v5972 = vpow.pop %v5971
        %v5973 = vmul.f32 %v5880, 1.442695
        %v5974 = vpow.pop %v5973
        %v5975 = vmul.f32 %v5881, 1.442695
        %v5976 = vpow.pop %v5975
        %v5977 = vmul.f32 %v5882, 1.442695
        %v5978 = vpow.pop %v5977
        %v5979 = vmul.f32 %v5883, 1.442695
        %v5980 = vpow.pop %v5979
        %v5981 = vmul.f32 %v5884, 1.442695
        %v5982 = vpow.pop %v5981
        %v5983 = vmul.f32 %v5885, 1.442695
        %v5984 = vpow.pop %v5983
        %v5985 = vmul.f32 %v5886, 1.442695
        %v5986 = vpow.pop %v5985
        %v5987 = vmul.f32 %v5887, 1.442695
        %v5988 = vpow.pop %v5987
        %v5989 = vmul.f32 %v5888, 1.442695
        %v5990 = vpow.pop %v5989
        %v5991 = vmul.f32 %v5889, 1.442695
        %v5992 = vpow.pop %v5991
        %v5993 = vmul.f32 %v5890, 1.442695
        %v5994 = vpow.pop %v5993
        %v5995 = vmul.f32 %v5891, 1.442695
        %v5996 = vpow.pop %v5995
        %v5997 = vmul.f32 %v5892, 1.442695
        %v5998 = vpow.pop %v5997
        %v5999 = vmul.f32 %v5893, 1.442695
        %v6000 = vpow.pop %v5999
        %v6001 = vmul.f32 %v5894, 1.442695
        %v6002 = vpow.pop %v6001
        %v6003 = vmul.f32 %v5895, 1.442695
        %v6004 = vpow.pop %v6003
        %v6005 = vmul.f32 %v5896, 1.442695
        %v6006 = vpow.pop %v6005
        %v6007 = vmul.f32 %v5897, 1.442695
        %v6008 = vpow.pop %v6007
        %v6009 = vmul.f32 %v5898, 1.442695
        %v6010 = vpow.pop %v6009
        %v6011 = vmul.f32 %v5899, 1.442695
        %v6012 = vpow.pop %v6011
        %v6013 = vmul.f32 %v5900, 1.442695
        %v6014 = vpow.pop %v6013
        %v6015 = vmul.f32 %v5901, 1.442695
        %v6016 = vpow.pop %v6015
        %v6017 = vmul.f32 %v5902, 1.442695
        %v6018 = vpow.pop %v6017
        %v6019 = vmul.f32 %v5903, 1.442695
        %v6020 = vpow.pop %v6019
        %v6021 = vmul.f32 %v5904, 1.442695
        %v6022 = vpow.pop %v6021
        %v6023 = vmul.f32 %v5905, 1.442695
        %v6024 = vpow.pop %v6023
        %v6025 = vmul.f32 %v5906, 1.442695
        %v6026 = vpow.pop %v6025
        %v6027 = vmul.f32 %v5907, 1.442695
        %v6028 = vpow.pop %v6027
        %v6029 = vmul.f32 %v5908, 1.442695
        %v6030 = vpow.pop %v6029
        %v6031 = vmul.f32 %v5909, 1.442695
        %v6032 = vpow.pop %v6031
        %v6033 = vmul.f32 %v5910, 1.442695
        %v6034 = vpow.pop %v6033
        %v6035 = vmul.f32 %v5911, 1.442695
        %v6036 = vpow.pop %v6035
        %v6037 = vmul.f32 %v5912, 1.442695
        %v6038 = vpow.pop %v6037
        %v6039 = vmul.f32 %v5913, 1.442695
        %v6040 = vpow.pop %v6039
        %v6041 = vmul.f32 %v5914, 1.442695
        %v6042 = vpow.pop %v6041
        %v6043 = vadd.f32 %v5916, %v5920
        %v6044 = vadd.f32 %v6043, %v5924
        %v6045 = vadd.f32 %v6044, %v5928
        %v6046 = vadd.f32 %v6045, %v5932
        %v6047 = vadd.f32 %v6046, %v5936
        %v6048 = vadd.f32 %v6047, %v5940
        %v6049 = vadd.f32 %v6048, %v5944
        %v6050 = vadd.f32 %v6049, %v5948
        %v6051 = vadd.f32 %v6050, %v5952
        %v6052 = vadd.f32 %v6051, %v5956
        %v6053 = vadd.f32 %v6052, %v5960
        %v6054 = vadd.f32 %v6053, %v5964
        %v6055 = vadd.f32 %v6054, %v5968
        %v6056 = vadd.f32 %v6055, %v5972
        %v6057 = vadd.f32 %v6056, %v5976
        %v6058 = vadd.f32 %v6057, %v5980
        %v6059 = vadd.f32 %v6058, %v5984
        %v6060 = vadd.f32 %v6059, %v5988
        %v6061 = vadd.f32 %v6060, %v5992
        %v6062 = vadd.f32 %v6061, %v5996
        %v6063 = vadd.f32 %v6062, %v6000
        %v6064 = vadd.f32 %v6063, %v6004
        %v6065 = vadd.f32 %v6064, %v6008
        %v6066 = vadd.f32 %v6065, %v6012
        %v6067 = vadd.f32 %v6066, %v6016
        %v6068 = vadd.f32 %v6067, %v6020
        %v6069 = vadd.f32 %v6068, %v6024
        %v6070 = vadd.f32 %v6069, %v6028
        %v6071 = vadd.f32 %v6070, %v6032
        %v6072 = vadd.f32 %v6071, %v6036
        %v6073 = vadd.f32 %v6072, %v6040
        %v6074 = vrot.slane %v6073, 4
        %v6075 = vadd.f32 %v6073, %v6074
        %v6076 = vrot.slane %v6075, 2
        %v6077 = vadd.f32 %v6075, %v6076
        %v6078 = vrot.slane %v6077, 1
        %v6079 = vadd.f32 %v6077, %v6078
        %v6080 = vadd.f32 %v5918, %v5922
        %v6081 = vadd.f32 %v6080, %v5926
        %v6082 = vadd.f32 %v6081, %v5930
        %v6083 = vadd.f32 %v6082, %v5934
        %v6084 = vadd.f32 %v6083, %v5938
        %v6085 = vadd.f32 %v6084, %v5942
        %v6086 = vadd.f32 %v6085, %v5946
        %v6087 = vadd.f32 %v6086, %v5950
        %v6088 = vadd.f32 %v6087, %v5954
        %v6089 = vadd.f32 %v6088, %v5958
        %v6090 = vadd.f32 %v6089, %v5962
        %v6091 = vadd.f32 %v6090, %v5966
        %v6092 = vadd.f32 %v6091, %v5970
        %v6093 = vadd.f32 %v6092, %v5974
        %v6094 = vadd.f32 %v6093, %v5978
        %v6095 = vadd.f32 %v6094, %v5982
        %v6096 = vadd.f32 %v6095, %v5986
        %v6097 = vadd.f32 %v6096, %v5990
        %v6098 = vadd.f32 %v6097, %v5994
        %v6099 = vadd.f32 %v6098, %v5998
        %v6100 = vadd.f32 %v6099, %v6002
        %v6101 = vadd.f32 %v6100, %v6006
        %v6102 = vadd.f32 %v6101, %v6010
        %v6103 = vadd.f32 %v6102, %v6014
        %v6104 = vadd.f32 %v6103, %v6018
        %v6105 = vadd.f32 %v6104, %v6022
        %v6106 = vadd.f32 %v6105, %v6026
        %v6107 = vadd.f32 %v6106, %v6030
        %v6108 = vadd.f32 %v6107, %v6034
        %v6109 = vadd.f32 %v6108, %v6038
        %v6110 = vadd.f32 %v6109, %v6042
        %v6111 = vrot.slane %v6110, 4
        %v6112 = vadd.f32 %v6110, %v6111
        %v6113 = vrot.slane %v6112, 2
        %v6114 = vadd.f32 %v6112, %v6113
        %v6115 = vrot.slane %v6114, 1
        %v6116 = vadd.f32 %v6114, %v6115
        %v6117 = vrcp.pop %v6079
        %v6118 = vrcp.pop %v6116
        %v6119 = vmul.f32 %v5916, %v6117
        %v6120 = vmul.f32 %v5918, %v6118
        %v6121 = vmul.f32 %v5920, %v6117
        %v6122 = vmul.f32 %v5922, %v6118
        %v6123 = vmul.f32 %v5924, %v6117
        %v6124 = vmul.f32 %v5926, %v6118
        %v6125 = vmul.f32 %v5928, %v6117
        %v6126 = vmul.f32 %v5930, %v6118
        %v6127 = vmul.f32 %v5932, %v6117
        %v6128 = vmul.f32 %v5934, %v6118
        %v6129 = vmul.f32 %v5936, %v6117
        %v6130 = vmul.f32 %v5938, %v6118
        %v6131 = vmul.f32 %v5940, %v6117
        %v6132 = vmul.f32 %v5942, %v6118
        %v6133 = vmul.f32 %v5944, %v6117
        %v6134 = vmul.f32 %v5946, %v6118
        %v6135 = vmul.f32 %v5948, %v6117
        %v6136 = vmul.f32 %v5950, %v6118
        %v6137 = vmul.f32 %v5952, %v6117
        %v6138 = vmul.f32 %v5954, %v6118
        %v6139 = vmul.f32 %v5956, %v6117
        %v6140 = vmul.f32 %v5958, %v6118
        %v6141 = vmul.f32 %v5960, %v6117
        %v6142 = vmul.f32 %v5962, %v6118
        %v6143 = vmul.f32 %v5964, %v6117
        %v6144 = vmul.f32 %v5966, %v6118
        %v6145 = vmul.f32 %v5968, %v6117
        %v6146 = vmul.f32 %v5970, %v6118
        %v6147 = vmul.f32 %v5972, %v6117
        %v6148 = vmul.f32 %v5974, %v6118
        %v6149 = vmul.f32 %v5976, %v6117
        %v6150 = vmul.f32 %v5978, %v6118
        %v6151 = vmul.f32 %v5980, %v6117
        %v6152 = vmul.f32 %v5982, %v6118
        %v6153 = vmul.f32 %v5984, %v6117
        %v6154 = vmul.f32 %v5986, %v6118
        %v6155 = vmul.f32 %v5988, %v6117
        %v6156 = vmul.f32 %v5990, %v6118
        %v6157 = vmul.f32 %v5992, %v6117
        %v6158 = vmul.f32 %v5994, %v6118
        %v6159 = vmul.f32 %v5996, %v6117
        %v6160 = vmul.f32 %v5998, %v6118
        %v6161 = vmul.f32 %v6000, %v6117
        %v6162 = vmul.f32 %v6002, %v6118
        %v6163 = vmul.f32 %v6004, %v6117
        %v6164 = vmul.f32 %v6006, %v6118
        %v6165 = vmul.f32 %v6008, %v6117
        %v6166 = vmul.f32 %v6010, %v6118
        %v6167 = vmul.f32 %v6012, %v6117
        %v6168 = vmul.f32 %v6014, %v6118
        %v6169 = vmul.f32 %v6016, %v6117
        %v6170 = vmul.f32 %v6018, %v6118
        %v6171 = vmul.f32 %v6020, %v6117
        %v6172 = vmul.f32 %v6022, %v6118
        %v6173 = vmul.f32 %v6024, %v6117
        %v6174 = vmul.f32 %v6026, %v6118
        %v6175 = vmul.f32 %v6028, %v6117
        %v6176 = vmul.f32 %v6030, %v6118
        %v6177 = vmul.f32 %v6032, %v6117
        %v6178 = vmul.f32 %v6034, %v6118
        %v6179 = vmul.f32 %v6036, %v6117
        %v6180 = vmul.f32 %v6038, %v6118
        %v6181 = vmul.f32 %v6040, %v6117
        %v6182 = vmul.f32 %v6042, %v6118
        %v6183 = vpack.c.bf16 %v6121, %v6119
        %v6184 = vpack.c.bf16 %v6122, %v6120
        %v6185 = vpack.c.bf16 %v6125, %v6123
        %v6186 = vpack.c.bf16 %v6126, %v6124
        %v6187 = vpack.c.bf16 %v6129, %v6127
        %v6188 = vpack.c.bf16 %v6130, %v6128
        %v6189 = vpack.c.bf16 %v6133, %v6131
        %v6190 = vpack.c.bf16 %v6134, %v6132
        %v6191 = vpack.c.bf16 %v6137, %v6135
        %v6192 = vpack.c.bf16 %v6138, %v6136
        %v6193 = vpack.c.bf16 %v6141, %v6139
        %v6194 = vpack.c.bf16 %v6142, %v6140
        %v6195 = vpack.c.bf16 %v6145, %v6143
        %v6196 = vpack.c.bf16 %v6146, %v6144
        %v6197 = vpack.c.bf16 %v6149, %v6147
        %v6198 = vpack.c.bf16 %v6150, %v6148
        %v6199 = vpack.c.bf16 %v6153, %v6151
        %v6200 = vpack.c.bf16 %v6154, %v6152
        %v6201 = vpack.c.bf16 %v6157, %v6155
        %v6202 = vpack.c.bf16 %v6158, %v6156
        %v6203 = vpack.c.bf16 %v6161, %v6159
        %v6204 = vpack.c.bf16 %v6162, %v6160
        %v6205 = vpack.c.bf16 %v6165, %v6163
        %v6206 = vpack.c.bf16 %v6166, %v6164
        %v6207 = vpack.c.bf16 %v6169, %v6167
        %v6208 = vpack.c.bf16 %v6170, %v6168
        %v6209 = vpack.c.bf16 %v6173, %v6171
        %v6210 = vpack.c.bf16 %v6174, %v6172
        %v6211 = vpack.c.bf16 %v6177, %v6175
        %v6212 = vpack.c.bf16 %v6178, %v6176
        %v6213 = vpack.c.bf16 %v6181, %v6179
        %v6214 = vpack.c.bf16 %v6182, %v6180
        %v6217 = vrot.slane %v5478, 4
        %v6218 = vrot.slane %v5479, 4
        %6221 = vmatprep.subr.bf16.mxu0 %v6184
        %6222 = vmatpush1.bf16.msra.mxu0 %v6183
        %6223 = vmatprep.subr.bf16.mxu0 %v6186
        %6224 = vmatpush1.bf16.msra.mxu0 %v6185
        %6225 = vmatprep.subr.bf16.mxu0 %v6188
        %6226 = vmatpush1.bf16.msra.mxu0 %v6187
        %6227 = vmatprep.subr.bf16.mxu0 %v6190
        %6228 = vmatpush1.bf16.msra.mxu0 %v6189
        %6229 = vmatprep.subr.bf16.mxu0 %v6192
        %6230 = vmatpush1.bf16.msra.mxu0 %v6191
        %6231 = vmatprep.subr.bf16.mxu0 %v6194
        %6232 = vmatpush1.bf16.msra.mxu0 %v6193
        %6233 = vmatprep.subr.bf16.mxu0 %v6196
        %6234 = vmatpush1.bf16.msra.mxu0 %v6195
        %6235 = vmatprep.subr.bf16.mxu0 %v6198
        %6236 = vmatpush1.bf16.msra.mxu0 %v6197
        %6237 = vmatprep.subr.bf16.mxu0 %v6200
        %6238 = vmatpush1.bf16.msra.mxu0 %v6199
        %6239 = vmatprep.subr.bf16.mxu0 %v6202
        %6240 = vmatpush1.bf16.msra.mxu0 %v6201
        %6241 = vmatprep.subr.bf16.mxu0 %v6204
        %6242 = vmatpush1.bf16.msra.mxu0 %v6203
        %6243 = vmatprep.subr.bf16.mxu0 %v6206
        %6244 = vmatpush1.bf16.msra.mxu0 %v6205
        %6245 = vmatprep.subr.bf16.mxu0 %v6208
        %6246 = vmatpush1.bf16.msra.mxu0 %v6207
        %6247 = vmatprep.subr.bf16.mxu0 %v6210
        %6248 = vmatpush1.bf16.msra.mxu0 %v6209
        %6249 = vmatprep.subr.bf16.mxu0 %v6212
        %6250 = vmatpush1.bf16.msra.mxu0 %v6211
        %6251 = vmatprep.subr.bf16.mxu0 %v6214
        %6252 = vmatpush1.bf16.msra.mxu0 %v6213
        %6253 = vmatprep.mubr.bf16.mxu0 %v6218
        %6254 = vmatmul.mubr.bf16.gmra.mrb[0].mxu0 %v6217
        %v6255 = vpop.f32.mrb[0].mxu0
        %v6256 = vadd.f32 0.0, %v6255
        %v6257 = vpop.f32.mrb[0].mxu0
        %v6258 = vadd.f32 0.0, %v6257
        %v6259 = vpop.f32.mrb[0].mxu0
        %v6260 = vpop.f32.mrb[0].mxu0
        %6261 = vdwg.mxu0
        %6262 = vst [vmem:[#allocation4 + $0x30] sm:$0xf] %v6256
        %6263 = vst [vmem:[#allocation4 + $0x38] sm:$0xf] %v6258
        %v6264 = vld [vmem:[#allocation2] sm:$0xff]
        %v6265 = vld [vmem:[#allocation2 + $0x8] sm:$0xff]
        %v6266 = vld [vmem:[#allocation2 + $0x10] sm:$0xff]
        %v6267 = vld [vmem:[#allocation2 + $0x18] sm:$0xff]
        %v6268 = vld [vmem:[#allocation2 + $0x20] sm:$0xff]
        %v6269 = vld [vmem:[#allocation2 + $0x28] sm:$0xff]
        %v6270 = vld [vmem:[#allocation2 + $0x30] sm:$0xff]
        %v6271 = vld [vmem:[#allocation2 + $0x38] sm:$0xff]
        %v6272 = vld [vmem:[#allocation2 + $0x40] sm:$0xff]
        %v6273 = vld [vmem:[#allocation2 + $0x48] sm:$0xff]
        %v6274 = vld [vmem:[#allocation2 + $0x50] sm:$0xff]
        %v6275 = vld [vmem:[#allocation2 + $0x58] sm:$0xff]
        %v6276 = vld [vmem:[#allocation2 + $0x60] sm:$0xff]
        %v6277 = vld [vmem:[#allocation2 + $0x68] sm:$0xff]
        %v6278 = vld [vmem:[#allocation2 + $0x70] sm:$0xff]
        %v6279 = vld [vmem:[#allocation2 + $0x78] sm:$0xff]
        %v6280 = vld [vmem:[#allocation3 + $0x10] sm:$0xc0]
        %v6281 = vld [vmem:[#allocation3 + $0x18] sm:$0xc0]
        %6298 = vrot.lane.b32.xlu0 %v6264, 100
        %v6299 = vpop.permute.xlu0 %6298
        %6300 = vrot.lane.b32.xlu0 %v6265, 100
        %v6301 = vpop.permute.xlu0 %6300
        %6302 = vrot.lane.b32.xlu0 %v6266, 100
        %v6303 = vpop.permute.xlu0 %6302
        %6304 = vrot.lane.b32.xlu0 %v6267, 100
        %v6305 = vpop.permute.xlu0 %6304
        %6306 = vrot.lane.b32.xlu0 %v6268, 100
        %v6307 = vpop.permute.xlu0 %6306
        %6308 = vrot.lane.b32.xlu0 %v6269, 100
        %v6309 = vpop.permute.xlu0 %6308
        %6310 = vrot.lane.b32.xlu0 %v6270, 100
        %v6311 = vpop.permute.xlu0 %6310
        %6312 = vrot.lane.b32.xlu0 %v6271, 100
        %v6313 = vpop.permute.xlu0 %6312
        %6314 = vrot.lane.b32.xlu0 %v6272, 100
        %v6315 = vpop.permute.xlu0 %6314
        %6316 = vrot.lane.b32.xlu0 %v6273, 100
        %v6317 = vpop.permute.xlu0 %6316
        %6318 = vrot.lane.b32.xlu0 %v6274, 100
        %v6319 = vpop.permute.xlu0 %6318
        %6320 = vrot.lane.b32.xlu0 %v6275, 100
        %v6321 = vpop.permute.xlu0 %6320
        %6322 = vrot.lane.b32.xlu0 %v6276, 100
        %v6323 = vpop.permute.xlu0 %6322
        %6324 = vrot.lane.b32.xlu0 %v6277, 100
        %v6325 = vpop.permute.xlu0 %6324
        %6326 = vrot.lane.b32.xlu0 %v6278, 100
        %v6327 = vpop.permute.xlu0 %6326
        %6328 = vrot.lane.b32.xlu0 %v6279, 100
        %v6329 = vpop.permute.xlu0 %6328
        %v6330 = vrot.slane %v690, 6
        %v6331 = vrot.slane %v691, 6
        %v6333 = vsel %vm621, %v6299, 0
        %v6336 = vsel %vm621, %v6301, 0
        %v6339 = vsel %vm621, %v6303, 0
        %v6342 = vsel %vm621, %v6305, 0
        %v6345 = vsel %vm621, %v6307, 0
        %v6348 = vsel %vm621, %v6309, 0
        %v6351 = vsel %vm621, %v6311, 0
        %v6354 = vsel %vm621, %v6313, 0
        %v6357 = vsel %vm621, %v6315, 0
        %v6360 = vsel %vm621, %v6317, 0
        %v6363 = vsel %vm621, %v6319, 0
        %v6366 = vsel %vm621, %v6321, 0
        %v6369 = vsel %vm621, %v6323, 0
        %v6372 = vsel %vm621, %v6325, 0
        %v6375 = vsel %vm621, %v6327, 0
        %v6378 = vsel %vm621, %v6329, 0
        %v6381 = vsel %vm628, %v6330, 0
        %v6384 = vsel %vm628, %v6331, 0
        %6386 = vmatprep.subr.bf16.mxu0 %v6384
        %6387 = vmatpush1.bf16.msra.mxu0 %v6381
        %6388 = vmatprep.subr.bf16.mxu0 0
        %6389 = vmatpush1.bf16.msra.mxu0 0
        %6390 = vmatprep.subr.bf16.mxu0 0
        %6391 = vmatpush1.bf16.msra.mxu0 0
        %6392 = vmatprep.subr.bf16.mxu0 0
        %6393 = vmatpush1.bf16.msra.mxu0 0
        %6394 = vmatprep.subr.bf16.mxu0 0
        %6395 = vmatpush1.bf16.msra.mxu0 0
        %6396 = vmatprep.subr.bf16.mxu0 0
        %6397 = vmatpush1.bf16.msra.mxu0 0
        %6398 = vmatprep.subr.bf16.mxu0 0
        %6399 = vmatpush1.bf16.msra.mxu0 0
        %6400 = vmatprep.subr.bf16.mxu0 0
        %6401 = vmatpush1.bf16.msra.mxu0 0
        %6402 = vmatprep.subr.bf16.mxu0 0
        %6403 = vmatpush1.bf16.msra.mxu0 0
        %6404 = vmatprep.subr.bf16.mxu0 0
        %6405 = vmatpush1.bf16.msra.mxu0 0
        %6406 = vmatprep.subr.bf16.mxu0 0
        %6407 = vmatpush1.bf16.msra.mxu0 0
        %6408 = vmatprep.subr.bf16.mxu0 0
        %6409 = vmatpush1.bf16.msra.mxu0 0
        %6410 = vmatprep.subr.bf16.mxu0 0
        %6411 = vmatpush1.bf16.msra.mxu0 0
        %6412 = vmatprep.subr.bf16.mxu0 0
        %6413 = vmatpush1.bf16.msra.mxu0 0
        %6414 = vmatprep.subr.bf16.mxu0 0
        %6415 = vmatpush1.bf16.msra.mxu0 0
        %6416 = vmatprep.subr.bf16.mxu0 0
        %6417 = vmatpush1.bf16.msra.mxu0 0
        %6418 = vmatprep.mubr.bf16.mxu0 0
        %6419 = vmatmul.mubr.bf16.gmra.mrb[0].mxu0 %v6333
        %v6420 = vpop.f32.mrb[0].mxu0
        %v6421 = vadd.f32 0.0, %v6420
        %v6422 = vpop.f32.mrb[0].mxu0
        %v6423 = vadd.f32 0.0, %v6422
        %v6424 = vpop.f32.mrb[0].mxu0
        %v6425 = vadd.f32 0.0, %v6424
        %v6426 = vpop.f32.mrb[0].mxu0
        %v6427 = vadd.f32 0.0, %v6426
        %6428 = vmatprep.mubr.bf16.mxu0 0
        %6429 = vmatmul.mubr.bf16.gmra.mrb[0].mxu0 %v6336
        %v6430 = vpop.f32.mrb[0].mxu0
        %v6431 = vadd.f32 0.0, %v6430
        %v6432 = vpop.f32.mrb[0].mxu0
        %v6433 = vadd.f32 0.0, %v6432
        %v6434 = vpop.f32.mrb[0].mxu0
        %v6435 = vadd.f32 0.0, %v6434
        %v6436 = vpop.f32.mrb[0].mxu0
        %v6437 = vadd.f32 0.0, %v6436
        %6438 = vmatprep.mubr.bf16.mxu0 0
        %6439 = vmatmul.mubr.bf16.gmra.mrb[0].mxu0 %v6339
        %v6440 = vpop.f32.mrb[0].mxu0
        %v6441 = vadd.f32 0.0, %v6440
        %v6442 = vpop.f32.mrb[0].mxu0
        %v6443 = vadd.f32 0.0, %v6442
        %v6444 = vpop.f32.mrb[0].mxu0
        %v6445 = vadd.f32 0.0, %v6444
        %v6446 = vpop.f32.mrb[0].mxu0
        %v6447 = vadd.f32 0.0, %v6446
        %6448 = vmatprep.mubr.bf16.mxu0 0
        %6449 = vmatmul.mubr.bf16.gmra.mrb[0].mxu0 %v6342
        %v6450 = vpop.f32.mrb[0].mxu0
        %v6451 = vadd.f32 0.0, %v6450
        %v6452 = vpop.f32.mrb[0].mxu0
        %v6453 = vadd.f32 0.0, %v6452
        %v6454 = vpop.f32.mrb[0].mxu0
        %v6455 = vadd.f32 0.0, %v6454
        %v6456 = vpop.f32.mrb[0].mxu0
        %v6457 = vadd.f32 0.0, %v6456
        %6458 = vmatprep.mubr.bf16.mxu0 0
        %6459 = vmatmul.mubr.bf16.gmra.mrb[0].mxu0 %v6345
        %v6460 = vpop.f32.mrb[0].mxu0
        %v6461 = vadd.f32 0.0, %v6460
        %v6462 = vpop.f32.mrb[0].mxu0
        %v6463 = vadd.f32 0.0, %v6462
        %v6464 = vpop.f32.mrb[0].mxu0
        %v6465 = vadd.f32 0.0, %v6464
        %v6466 = vpop.f32.mrb[0].mxu0
        %v6467 = vadd.f32 0.0, %v6466
        %6468 = vmatprep.mubr.bf16.mxu0 0
        %6469 = vmatmul.mubr.bf16.gmra.mrb[0].mxu0 %v6348
        %v6470 = vpop.f32.mrb[0].mxu0
        %v6471 = vadd.f32 0.0, %v6470
        %v6472 = vpop.f32.mrb[0].mxu0
        %v6473 = vadd.f32 0.0, %v6472
        %v6474 = vpop.f32.mrb[0].mxu0
        %v6475 = vadd.f32 0.0, %v6474
        %v6476 = vpop.f32.mrb[0].mxu0
        %v6477 = vadd.f32 0.0, %v6476
        %6478 = vmatprep.mubr.bf16.mxu0 0
        %6479 = vmatmul.mubr.bf16.gmra.mrb[0].mxu0 %v6351
        %v6480 = vpop.f32.mrb[0].mxu0
        %v6481 = vadd.f32 0.0, %v6480
        %v6482 = vpop.f32.mrb[0].mxu0
        %v6483 = vadd.f32 0.0, %v6482
        %v6484 = vpop.f32.mrb[0].mxu0
        %v6485 = vadd.f32 0.0, %v6484
        %v6486 = vpop.f32.mrb[0].mxu0
        %v6487 = vadd.f32 0.0, %v6486
        %6488 = vmatprep.mubr.bf16.mxu0 0
        %6489 = vmatmul.mubr.bf16.gmra.mrb[0].mxu0 %v6354
        %v6490 = vpop.f32.mrb[0].mxu0
        %v6491 = vadd.f32 0.0, %v6490
        %v6492 = vpop.f32.mrb[0].mxu0
        %v6493 = vadd.f32 0.0, %v6492
        %v6494 = vpop.f32.mrb[0].mxu0
        %v6495 = vadd.f32 0.0, %v6494
        %v6496 = vpop.f32.mrb[0].mxu0
        %v6497 = vadd.f32 0.0, %v6496
        %6498 = vmatprep.mubr.bf16.mxu0 0
        %6499 = vmatmul.mubr.bf16.gmra.mrb[0].mxu0 %v6357
        %v6500 = vpop.f32.mrb[0].mxu0
        %v6501 = vadd.f32 0.0, %v6500
        %v6502 = vpop.f32.mrb[0].mxu0
        %v6503 = vadd.f32 0.0, %v6502
        %v6504 = vpop.f32.mrb[0].mxu0
        %v6505 = vadd.f32 0.0, %v6504
        %v6506 = vpop.f32.mrb[0].mxu0
        %v6507 = vadd.f32 0.0, %v6506
        %6508 = vmatprep.mubr.bf16.mxu0 0
        %6509 = vmatmul.mubr.bf16.gmra.mrb[0].mxu0 %v6360
        %v6510 = vpop.f32.mrb[0].mxu0
        %v6511 = vadd.f32 0.0, %v6510
        %v6512 = vpop.f32.mrb[0].mxu0
        %v6513 = vadd.f32 0.0, %v6512
        %v6514 = vpop.f32.mrb[0].mxu0
        %v6515 = vadd.f32 0.0, %v6514
        %v6516 = vpop.f32.mrb[0].mxu0
        %v6517 = vadd.f32 0.0, %v6516
        %6518 = vmatprep.mubr.bf16.mxu0 0
        %6519 = vmatmul.mubr.bf16.gmra.mrb[0].mxu0 %v6363
        %v6520 = vpop.f32.mrb[0].mxu0
        %v6521 = vadd.f32 0.0, %v6520
        %v6522 = vpop.f32.mrb[0].mxu0
        %v6523 = vadd.f32 0.0, %v6522
        %v6524 = vpop.f32.mrb[0].mxu0
        %v6525 = vadd.f32 0.0, %v6524
        %v6526 = vpop.f32.mrb[0].mxu0
        %v6527 = vadd.f32 0.0, %v6526
        %6528 = vmatprep.mubr.bf16.mxu0 0
        %6529 = vmatmul.mubr.bf16.gmra.mrb[0].mxu0 %v6366
        %v6530 = vpop.f32.mrb[0].mxu0
        %v6531 = vadd.f32 0.0, %v6530
        %v6532 = vpop.f32.mrb[0].mxu0
        %v6533 = vadd.f32 0.0, %v6532
        %v6534 = vpop.f32.mrb[0].mxu0
        %v6535 = vadd.f32 0.0, %v6534
        %v6536 = vpop.f32.mrb[0].mxu0
        %v6537 = vadd.f32 0.0, %v6536
        %6538 = vmatprep.mubr.bf16.mxu0 0
        %6539 = vmatmul.mubr.bf16.gmra.mrb[0].mxu0 %v6369
        %v6540 = vpop.f32.mrb[0].mxu0
        %v6541 = vadd.f32 0.0, %v6540
        %v6542 = vpop.f32.mrb[0].mxu0
        %v6543 = vadd.f32 0.0, %v6542
        %v6544 = vpop.f32.mrb[0].mxu0
        %v6545 = vadd.f32 0.0, %v6544
        %v6546 = vpop.f32.mrb[0].mxu0
        %v6547 = vadd.f32 0.0, %v6546
        %6548 = vmatprep.mubr.bf16.mxu0 0
        %6549 = vmatmul.mubr.bf16.gmra.mrb[0].mxu0 %v6372
        %v6550 = vpop.f32.mrb[0].mxu0
        %v6551 = vadd.f32 0.0, %v6550
        %v6552 = vpop.f32.mrb[0].mxu0
        %v6553 = vadd.f32 0.0, %v6552
        %v6554 = vpop.f32.mrb[0].mxu0
        %v6555 = vadd.f32 0.0, %v6554
        %v6556 = vpop.f32.mrb[0].mxu0
        %v6557 = vadd.f32 0.0, %v6556
        %6558 = vmatprep.mubr.bf16.mxu0 0
        %6559 = vmatmul.mubr.bf16.gmra.mrb[0].mxu0 %v6375
        %v6560 = vpop.f32.mrb[0].mxu0
        %v6561 = vadd.f32 0.0, %v6560
        %v6562 = vpop.f32.mrb[0].mxu0
        %v6563 = vadd.f32 0.0, %v6562
        %v6564 = vpop.f32.mrb[0].mxu0
        %v6565 = vadd.f32 0.0, %v6564
        %v6566 = vpop.f32.mrb[0].mxu0
        %v6567 = vadd.f32 0.0, %v6566
        %6568 = vmatprep.mubr.bf16.mxu0 0
        %6569 = vmatmul.mubr.bf16.gmra.mrb[0].mxu0 %v6378
        %v6570 = vpop.f32.mrb[0].mxu0
        %v6571 = vadd.f32 0.0, %v6570
        %v6572 = vpop.f32.mrb[0].mxu0
        %v6573 = vadd.f32 0.0, %v6572
        %v6574 = vpop.f32.mrb[0].mxu0
        %v6575 = vadd.f32 0.0, %v6574
        %v6576 = vpop.f32.mrb[0].mxu0
        %v6577 = vadd.f32 0.0, %v6576
        %6578 = vdwg.mxu0
        %v6579 = vmax.f32 %v6421, %v6431
        %v6580 = vmax.f32 %v6425, %v6435
        %v6581 = vmax.f32 %v6579, %v6441
        %v6582 = vmax.f32 %v6580, %v6445
        %v6583 = vmax.f32 %v6581, %v6451
        %v6584 = vmax.f32 %v6582, %v6455
        %v6585 = vmax.f32 %v6583, %v6461
        %v6586 = vmax.f32 %v6584, %v6465
        %v6587 = vmax.f32 %v6585, %v6471
        %v6588 = vmax.f32 %v6586, %v6475
        %v6589 = vmax.f32 %v6587, %v6481
        %v6590 = vmax.f32 %v6588, %v6485
        %v6591 = vmax.f32 %v6589, %v6491
        %v6592 = vmax.f32 %v6590, %v6495
        %v6593 = vmax.f32 %v6591, %v6501
        %v6594 = vmax.f32 %v6592, %v6505
        %v6595 = vmax.f32 %v6593, %v6511
        %v6596 = vmax.f32 %v6594, %v6515
        %v6597 = vmax.f32 %v6595, %v6521
        %v6598 = vmax.f32 %v6596, %v6525
        %v6599 = vmax.f32 %v6597, %v6531
        %v6600 = vmax.f32 %v6598, %v6535
        %v6601 = vmax.f32 %v6599, %v6541
        %v6602 = vmax.f32 %v6600, %v6545
        %v6603 = vmax.f32 %v6601, %v6551
        %v6604 = vmax.f32 %v6602, %v6555
        %v6605 = vmax.f32 %v6603, %v6561
        %v6606 = vmax.f32 %v6604, %v6565
        %v6607 = vmax.f32 %v6605, %v6571
        %v6608 = vmax.f32 %v6606, %v6575
        %v6609 = vmax.f32 %v6607, %v6608
        %v6610 = vrot.slane %v6609, 4
        %v6611 = vmax.f32 %v6609, %v6610
        %v6612 = vrot.slane %v6611, 2
        %v6613 = vmax.f32 %v6611, %v6612
        %v6614 = vrot.slane %v6613, 1
        %v6615 = vmax.f32 %v6613, %v6614
        %v6616 = vmax.f32 %v6423, %v6433
        %v6617 = vmax.f32 %v6427, %v6437
        %v6618 = vmax.f32 %v6616, %v6443
        %v6619 = vmax.f32 %v6617, %v6447
        %v6620 = vmax.f32 %v6618, %v6453
        %v6621 = vmax.f32 %v6619, %v6457
        %v6622 = vmax.f32 %v6620, %v6463
        %v6623 = vmax.f32 %v6621, %v6467
        %v6624 = vmax.f32 %v6622, %v6473
        %v6625 = vmax.f32 %v6623, %v6477
        %v6626 = vmax.f32 %v6624, %v6483
        %v6627 = vmax.f32 %v6625, %v6487
        %v6628 = vmax.f32 %v6626, %v6493
        %v6629 = vmax.f32 %v6627, %v6497
        %v6630 = vmax.f32 %v6628, %v6503
        %v6631 = vmax.f32 %v6629, %v6507
        %v6632 = vmax.f32 %v6630, %v6513
        %v6633 = vmax.f32 %v6631, %v6517
        %v6634 = vmax.f32 %v6632, %v6523
        %v6635 = vmax.f32 %v6633, %v6527
        %v6636 = vmax.f32 %v6634, %v6533
        %v6637 = vmax.f32 %v6635, %v6537
        %v6638 = vmax.f32 %v6636, %v6543
        %v6639 = vmax.f32 %v6637, %v6547
        %v6640 = vmax.f32 %v6638, %v6553
        %v6641 = vmax.f32 %v6639, %v6557
        %v6642 = vmax.f32 %v6640, %v6563
        %v6643 = vmax.f32 %v6641, %v6567
        %v6644 = vmax.f32 %v6642, %v6573
        %v6645 = vmax.f32 %v6643, %v6577
        %v6646 = vmax.f32 %v6644, %v6645
        %v6647 = vrot.slane %v6646, 4
        %v6648 = vmax.f32 %v6646, %v6647
        %v6649 = vrot.slane %v6648, 2
        %v6650 = vmax.f32 %v6648, %v6649
        %v6651 = vrot.slane %v6650, 1
        %v6652 = vmax.f32 %v6650, %v6651
        %v6653 = vsub.f32 %v6421, %v6615
        %v6654 = vsub.f32 %v6423, %v6652
        %v6655 = vsub.f32 %v6425, %v6615
        %v6656 = vsub.f32 %v6427, %v6652
        %v6657 = vsub.f32 %v6431, %v6615
        %v6658 = vsub.f32 %v6433, %v6652
        %v6659 = vsub.f32 %v6435, %v6615
        %v6660 = vsub.f32 %v6437, %v6652
        %v6661 = vsub.f32 %v6441, %v6615
        %v6662 = vsub.f32 %v6443, %v6652
        %v6663 = vsub.f32 %v6445, %v6615
        %v6664 = vsub.f32 %v6447, %v6652
        %v6665 = vsub.f32 %v6451, %v6615
        %v6666 = vsub.f32 %v6453, %v6652
        %v6667 = vsub.f32 %v6455, %v6615
        %v6668 = vsub.f32 %v6457, %v6652
        %v6669 = vsub.f32 %v6461, %v6615
        %v6670 = vsub.f32 %v6463, %v6652
        %v6671 = vsub.f32 %v6465, %v6615
        %v6672 = vsub.f32 %v6467, %v6652
        %v6673 = vsub.f32 %v6471, %v6615
        %v6674 = vsub.f32 %v6473, %v6652
        %v6675 = vsub.f32 %v6475, %v6615
        %v6676 = vsub.f32 %v6477, %v6652
        %v6677 = vsub.f32 %v6481, %v6615
        %v6678 = vsub.f32 %v6483, %v6652
        %v6679 = vsub.f32 %v6485, %v6615
        %v6680 = vsub.f32 %v6487, %v6652
        %v6681 = vsub.f32 %v6491, %v6615
        %v6682 = vsub.f32 %v6493, %v6652
        %v6683 = vsub.f32 %v6495, %v6615
        %v6684 = vsub.f32 %v6497, %v6652
        %v6685 = vsub.f32 %v6501, %v6615
        %v6686 = vsub.f32 %v6503, %v6652
        %v6687 = vsub.f32 %v6505, %v6615
        %v6688 = vsub.f32 %v6507, %v6652
        %v6689 = vsub.f32 %v6511, %v6615
        %v6690 = vsub.f32 %v6513, %v6652
        %v6691 = vsub.f32 %v6515, %v6615
        %v6692 = vsub.f32 %v6517, %v6652
        %v6693 = vsub.f32 %v6521, %v6615
        %v6694 = vsub.f32 %v6523, %v6652
        %v6695 = vsub.f32 %v6525, %v6615
        %v6696 = vsub.f32 %v6527, %v6652
        %v6697 = vsub.f32 %v6531, %v6615
        %v6698 = vsub.f32 %v6533, %v6652
        %v6699 = vsub.f32 %v6535, %v6615
        %v6700 = vsub.f32 %v6537, %v6652
        %v6701 = vsub.f32 %v6541, %v6615
        %v6702 = vsub.f32 %v6543, %v6652
        %v6703 = vsub.f32 %v6545, %v6615
        %v6704 = vsub.f32 %v6547, %v6652
        %v6705 = vsub.f32 %v6551, %v6615
        %v6706 = vsub.f32 %v6553, %v6652
        %v6707 = vsub.f32 %v6555, %v6615
        %v6708 = vsub.f32 %v6557, %v6652
        %v6709 = vsub.f32 %v6561, %v6615
        %v6710 = vsub.f32 %v6563, %v6652
        %v6711 = vsub.f32 %v6565, %v6615
        %v6712 = vsub.f32 %v6567, %v6652
        %v6713 = vsub.f32 %v6571, %v6615
        %v6714 = vsub.f32 %v6573, %v6652
        %v6715 = vsub.f32 %v6575, %v6615
        %v6716 = vsub.f32 %v6577, %v6652
        %v6717 = vmul.f32 %v6653, 1.442695
        %v6718 = vpow.pop %v6717
        %v6719 = vmul.f32 %v6654, 1.442695
        %v6720 = vpow.pop %v6719
        %v6721 = vmul.f32 %v6655, 1.442695
        %v6722 = vpow.pop %v6721
        %v6723 = vmul.f32 %v6656, 1.442695
        %v6724 = vpow.pop %v6723
        %v6725 = vmul.f32 %v6657, 1.442695
        %v6726 = vpow.pop %v6725
        %v6727 = vmul.f32 %v6658, 1.442695
        %v6728 = vpow.pop %v6727
        %v6729 = vmul.f32 %v6659, 1.442695
        %v6730 = vpow.pop %v6729
        %v6731 = vmul.f32 %v6660, 1.442695
        %v6732 = vpow.pop %v6731
        %v6733 = vmul.f32 %v6661, 1.442695
        %v6734 = vpow.pop %v6733
        %v6735 = vmul.f32 %v6662, 1.442695
        %v6736 = vpow.pop %v6735
        %v6737 = vmul.f32 %v6663, 1.442695
        %v6738 = vpow.pop %v6737
        %v6739 = vmul.f32 %v6664, 1.442695
        %v6740 = vpow.pop %v6739
        %v6741 = vmul.f32 %v6665, 1.442695
        %v6742 = vpow.pop %v6741
        %v6743 = vmul.f32 %v6666, 1.442695
        %v6744 = vpow.pop %v6743
        %v6745 = vmul.f32 %v6667, 1.442695
        %v6746 = vpow.pop %v6745
        %v6747 = vmul.f32 %v6668, 1.442695
        %v6748 = vpow.pop %v6747
        %v6749 = vmul.f32 %v6669, 1.442695
        %v6750 = vpow.pop %v6749
        %v6751 = vmul.f32 %v6670, 1.442695
        %v6752 = vpow.pop %v6751
        %v6753 = vmul.f32 %v6671, 1.442695
        %v6754 = vpow.pop %v6753
        %v6755 = vmul.f32 %v6672, 1.442695
        %v6756 = vpow.pop %v6755
        %v6757 = vmul.f32 %v6673, 1.442695
        %v6758 = vpow.pop %v6757
        %v6759 = vmul.f32 %v6674, 1.442695
        %v6760 = vpow.pop %v6759
        %v6761 = vmul.f32 %v6675, 1.442695
        %v6762 = vpow.pop %v6761
        %v6763 = vmul.f32 %v6676, 1.442695
        %v6764 = vpow.pop %v6763
        %v6765 = vmul.f32 %v6677, 1.442695
        %v6766 = vpow.pop %v6765
        %v6767 = vmul.f32 %v6678, 1.442695
        %v6768 = vpow.pop %v6767
        %v6769 = vmul.f32 %v6679, 1.442695
        %v6770 = vpow.pop %v6769
        %v6771 = vmul.f32 %v6680, 1.442695
        %v6772 = vpow.pop %v6771
        %v6773 = vmul.f32 %v6681, 1.442695
        %v6774 = vpow.pop %v6773
        %v6775 = vmul.f32 %v6682, 1.442695
        %v6776 = vpow.pop %v6775
        %v6777 = vmul.f32 %v6683, 1.442695
        %v6778 = vpow.pop %v6777
        %v6779 = vmul.f32 %v6684, 1.442695
        %v6780 = vpow.pop %v6779
        %v6781 = vmul.f32 %v6685, 1.442695
        %v6782 = vpow.pop %v6781
        %v6783 = vmul.f32 %v6686, 1.442695
        %v6784 = vpow.pop %v6783
        %v6785 = vmul.f32 %v6687, 1.442695
        %v6786 = vpow.pop %v6785
        %v6787 = vmul.f32 %v6688, 1.442695
        %v6788 = vpow.pop %v6787
        %v6789 = vmul.f32 %v6689, 1.442695
        %v6790 = vpow.pop %v6789
        %v6791 = vmul.f32 %v6690, 1.442695
        %v6792 = vpow.pop %v6791
        %v6793 = vmul.f32 %v6691, 1.442695
        %v6794 = vpow.pop %v6793
        %v6795 = vmul.f32 %v6692, 1.442695
        %v6796 = vpow.pop %v6795
        %v6797 = vmul.f32 %v6693, 1.442695
        %v6798 = vpow.pop %v6797
        %v6799 = vmul.f32 %v6694, 1.442695
        %v6800 = vpow.pop %v6799
        %v6801 = vmul.f32 %v6695, 1.442695
        %v6802 = vpow.pop %v6801
        %v6803 = vmul.f32 %v6696, 1.442695
        %v6804 = vpow.pop %v6803
        %v6805 = vmul.f32 %v6697, 1.442695
        %v6806 = vpow.pop %v6805
        %v6807 = vmul.f32 %v6698, 1.442695
        %v6808 = vpow.pop %v6807
        %v6809 = vmul.f32 %v6699, 1.442695
        %v6810 = vpow.pop %v6809
        %v6811 = vmul.f32 %v6700, 1.442695
        %v6812 = vpow.pop %v6811
        %v6813 = vmul.f32 %v6701, 1.442695
        %v6814 = vpow.pop %v6813
        %v6815 = vmul.f32 %v6702, 1.442695
        %v6816 = vpow.pop %v6815
        %v6817 = vmul.f32 %v6703, 1.442695
        %v6818 = vpow.pop %v6817
        %v6819 = vmul.f32 %v6704, 1.442695
        %v6820 = vpow.pop %v6819
        %v6821 = vmul.f32 %v6705, 1.442695
        %v6822 = vpow.pop %v6821
        %v6823 = vmul.f32 %v6706, 1.442695
        %v6824 = vpow.pop %v6823
        %v6825 = vmul.f32 %v6707, 1.442695
        %v6826 = vpow.pop %v6825
        %v6827 = vmul.f32 %v6708, 1.442695
        %v6828 = vpow.pop %v6827
        %v6829 = vmul.f32 %v6709, 1.442695
        %v6830 = vpow.pop %v6829
        %v6831 = vmul.f32 %v6710, 1.442695
        %v6832 = vpow.pop %v6831
        %v6833 = vmul.f32 %v6711, 1.442695
        %v6834 = vpow.pop %v6833
        %v6835 = vmul.f32 %v6712, 1.442695
        %v6836 = vpow.pop %v6835
        %v6837 = vmul.f32 %v6713, 1.442695
        %v6838 = vpow.pop %v6837
        %v6839 = vmul.f32 %v6714, 1.442695
        %v6840 = vpow.pop %v6839
        %v6841 = vmul.f32 %v6715, 1.442695
        %v6842 = vpow.pop %v6841
        %v6843 = vmul.f32 %v6716, 1.442695
        %v6844 = vpow.pop %v6843
        %v6845 = vadd.f32 %v6718, %v6722
        %v6846 = vadd.f32 %v6845, %v6726
        %v6847 = vadd.f32 %v6846, %v6730
        %v6848 = vadd.f32 %v6847, %v6734
        %v6849 = vadd.f32 %v6848, %v6738
        %v6850 = vadd.f32 %v6849, %v6742
        %v6851 = vadd.f32 %v6850, %v6746
        %v6852 = vadd.f32 %v6851, %v6750
        %v6853 = vadd.f32 %v6852, %v6754
        %v6854 = vadd.f32 %v6853, %v6758
        %v6855 = vadd.f32 %v6854, %v6762
        %v6856 = vadd.f32 %v6855, %v6766
        %v6857 = vadd.f32 %v6856, %v6770
        %v6858 = vadd.f32 %v6857, %v6774
        %v6859 = vadd.f32 %v6858, %v6778
        %v6860 = vadd.f32 %v6859, %v6782
        %v6861 = vadd.f32 %v6860, %v6786
        %v6862 = vadd.f32 %v6861, %v6790
        %v6863 = vadd.f32 %v6862, %v6794
        %v6864 = vadd.f32 %v6863, %v6798
        %v6865 = vadd.f32 %v6864, %v6802
        %v6866 = vadd.f32 %v6865, %v6806
        %v6867 = vadd.f32 %v6866, %v6810
        %v6868 = vadd.f32 %v6867, %v6814
        %v6869 = vadd.f32 %v6868, %v6818
        %v6870 = vadd.f32 %v6869, %v6822
        %v6871 = vadd.f32 %v6870, %v6826
        %v6872 = vadd.f32 %v6871, %v6830
        %v6873 = vadd.f32 %v6872, %v6834
        %v6874 = vadd.f32 %v6873, %v6838
        %v6875 = vadd.f32 %v6874, %v6842
        %v6876 = vrot.slane %v6875, 4
        %v6877 = vadd.f32 %v6875, %v6876
        %v6878 = vrot.slane %v6877, 2
        %v6879 = vadd.f32 %v6877, %v6878
        %v6880 = vrot.slane %v6879, 1
        %v6881 = vadd.f32 %v6879, %v6880
        %v6882 = vadd.f32 %v6720, %v6724
        %v6883 = vadd.f32 %v6882, %v6728
        %v6884 = vadd.f32 %v6883, %v6732
        %v6885 = vadd.f32 %v6884, %v6736
        %v6886 = vadd.f32 %v6885, %v6740
        %v6887 = vadd.f32 %v6886, %v6744
        %v6888 = vadd.f32 %v6887, %v6748
        %v6889 = vadd.f32 %v6888, %v6752
        %v6890 = vadd.f32 %v6889, %v6756
        %v6891 = vadd.f32 %v6890, %v6760
        %v6892 = vadd.f32 %v6891, %v6764
        %v6893 = vadd.f32 %v6892, %v6768
        %v6894 = vadd.f32 %v6893, %v6772
        %v6895 = vadd.f32 %v6894, %v6776
        %v6896 = vadd.f32 %v6895, %v6780
        %v6897 = vadd.f32 %v6896, %v6784
        %v6898 = vadd.f32 %v6897, %v6788
        %v6899 = vadd.f32 %v6898, %v6792
        %v6900 = vadd.f32 %v6899, %v6796
        %v6901 = vadd.f32 %v6900, %v6800
        %v6902 = vadd.f32 %v6901, %v6804
        %v6903 = vadd.f32 %v6902, %v6808
        %v6904 = vadd.f32 %v6903, %v6812
        %v6905 = vadd.f32 %v6904, %v6816
        %v6906 = vadd.f32 %v6905, %v6820
        %v6907 = vadd.f32 %v6906, %v6824
        %v6908 = vadd.f32 %v6907, %v6828
        %v6909 = vadd.f32 %v6908, %v6832
        %v6910 = vadd.f32 %v6909, %v6836
        %v6911 = vadd.f32 %v6910, %v6840
        %v6912 = vadd.f32 %v6911, %v6844
        %v6913 = vrot.slane %v6912, 4
        %v6914 = vadd.f32 %v6912, %v6913
        %v6915 = vrot.slane %v6914, 2
        %v6916 = vadd.f32 %v6914, %v6915
        %v6917 = vrot.slane %v6916, 1
        %v6918 = vadd.f32 %v6916, %v6917
        %v6919 = vrcp.pop %v6881
        %v6920 = vrcp.pop %v6918
        %v6921 = vmul.f32 %v6718, %v6919
        %v6922 = vmul.f32 %v6720, %v6920
        %v6923 = vmul.f32 %v6722, %v6919
        %v6924 = vmul.f32 %v6724, %v6920
        %v6925 = vmul.f32 %v6726, %v6919
        %v6926 = vmul.f32 %v6728, %v6920
        %v6927 = vmul.f32 %v6730, %v6919
        %v6928 = vmul.f32 %v6732, %v6920
        %v6929 = vmul.f32 %v6734, %v6919
        %v6930 = vmul.f32 %v6736, %v6920
        %v6931 = vmul.f32 %v6738, %v6919
        %v6932 = vmul.f32 %v6740, %v6920
        %v6933 = vmul.f32 %v6742, %v6919
        %v6934 = vmul.f32 %v6744, %v6920
        %v6935 = vmul.f32 %v6746, %v6919
        %v6936 = vmul.f32 %v6748, %v6920
        %v6937 = vmul.f32 %v6750, %v6919
        %v6938 = vmul.f32 %v6752, %v6920
        %v6939 = vmul.f32 %v6754, %v6919
        %v6940 = vmul.f32 %v6756, %v6920
        %v6941 = vmul.f32 %v6758, %v6919
        %v6942 = vmul.f32 %v6760, %v6920
        %v6943 = vmul.f32 %v6762, %v6919
        %v6944 = vmul.f32 %v6764, %v6920
        %v6945 = vmul.f32 %v6766, %v6919
        %v6946 = vmul.f32 %v6768, %v6920
        %v6947 = vmul.f32 %v6770, %v6919
        %v6948 = vmul.f32 %v6772, %v6920
        %v6949 = vmul.f32 %v6774, %v6919
        %v6950 = vmul.f32 %v6776, %v6920
        %v6951 = vmul.f32 %v6778, %v6919
        %v6952 = vmul.f32 %v6780, %v6920
        %v6953 = vmul.f32 %v6782, %v6919
        %v6954 = vmul.f32 %v6784, %v6920
        %v6955 = vmul.f32 %v6786, %v6919
        %v6956 = vmul.f32 %v6788, %v6920
        %v6957 = vmul.f32 %v6790, %v6919
        %v6958 = vmul.f32 %v6792, %v6920
        %v6959 = vmul.f32 %v6794, %v6919
        %v6960 = vmul.f32 %v6796, %v6920
        %v6961 = vmul.f32 %v6798, %v6919
        %v6962 = vmul.f32 %v6800, %v6920
        %v6963 = vmul.f32 %v6802, %v6919
        %v6964 = vmul.f32 %v6804, %v6920
        %v6965 = vmul.f32 %v6806, %v6919
        %v6966 = vmul.f32 %v6808, %v6920
        %v6967 = vmul.f32 %v6810, %v6919
        %v6968 = vmul.f32 %v6812, %v6920
        %v6969 = vmul.f32 %v6814, %v6919
        %v6970 = vmul.f32 %v6816, %v6920
        %v6971 = vmul.f32 %v6818, %v6919
        %v6972 = vmul.f32 %v6820, %v6920
        %v6973 = vmul.f32 %v6822, %v6919
        %v6974 = vmul.f32 %v6824, %v6920
        %v6975 = vmul.f32 %v6826, %v6919
        %v6976 = vmul.f32 %v6828, %v6920
        %v6977 = vmul.f32 %v6830, %v6919
        %v6978 = vmul.f32 %v6832, %v6920
        %v6979 = vmul.f32 %v6834, %v6919
        %v6980 = vmul.f32 %v6836, %v6920
        %v6981 = vmul.f32 %v6838, %v6919
        %v6982 = vmul.f32 %v6840, %v6920
        %v6983 = vmul.f32 %v6842, %v6919
        %v6984 = vmul.f32 %v6844, %v6920
        %v6985 = vpack.c.bf16 %v6923, %v6921
        %v6986 = vpack.c.bf16 %v6924, %v6922
        %v6987 = vpack.c.bf16 %v6927, %v6925
        %v6988 = vpack.c.bf16 %v6928, %v6926
        %v6989 = vpack.c.bf16 %v6931, %v6929
        %v6990 = vpack.c.bf16 %v6932, %v6930
        %v6991 = vpack.c.bf16 %v6935, %v6933
        %v6992 = vpack.c.bf16 %v6936, %v6934
        %v6993 = vpack.c.bf16 %v6939, %v6937
        %v6994 = vpack.c.bf16 %v6940, %v6938
        %v6995 = vpack.c.bf16 %v6943, %v6941
        %v6996 = vpack.c.bf16 %v6944, %v6942
        %v6997 = vpack.c.bf16 %v6947, %v6945
        %v6998 = vpack.c.bf16 %v6948, %v6946
        %v6999 = vpack.c.bf16 %v6951, %v6949
        %v7000 = vpack.c.bf16 %v6952, %v6950
        %v7001 = vpack.c.bf16 %v6955, %v6953
        %v7002 = vpack.c.bf16 %v6956, %v6954
        %v7003 = vpack.c.bf16 %v6959, %v6957
        %v7004 = vpack.c.bf16 %v6960, %v6958
        %v7005 = vpack.c.bf16 %v6963, %v6961
        %v7006 = vpack.c.bf16 %v6964, %v6962
        %v7007 = vpack.c.bf16 %v6967, %v6965
        %v7008 = vpack.c.bf16 %v6968, %v6966
        %v7009 = vpack.c.bf16 %v6971, %v6969
        %v7010 = vpack.c.bf16 %v6972, %v6970
        %v7011 = vpack.c.bf16 %v6975, %v6973
        %v7012 = vpack.c.bf16 %v6976, %v6974
        %v7013 = vpack.c.bf16 %v6979, %v6977
        %v7014 = vpack.c.bf16 %v6980, %v6978
        %v7015 = vpack.c.bf16 %v6983, %v6981
        %v7016 = vpack.c.bf16 %v6984, %v6982
        %v7019 = vrot.slane %v6280, 6
        %v7020 = vrot.slane %v6281, 6
        %7023 = vmatprep.subr.bf16.mxu0 %v6986
        %7024 = vmatpush1.bf16.msra.mxu0 %v6985
        %7025 = vmatprep.subr.bf16.mxu0 %v6988
        %7026 = vmatpush1.bf16.msra.mxu0 %v6987
        %7027 = vmatprep.subr.bf16.mxu0 %v6990
        %7028 = vmatpush1.bf16.msra.mxu0 %v6989
        %7029 = vmatprep.subr.bf16.mxu0 %v6992
        %7030 = vmatpush1.bf16.msra.mxu0 %v6991
        %7031 = vmatprep.subr.bf16.mxu0 %v6994
        %7032 = vmatpush1.bf16.msra.mxu0 %v6993
        %7033 = vmatprep.subr.bf16.mxu0 %v6996
        %7034 = vmatpush1.bf16.msra.mxu0 %v6995
        %7035 = vmatprep.subr.bf16.mxu0 %v6998
        %7036 = vmatpush1.bf16.msra.mxu0 %v6997
        %7037 = vmatprep.subr.bf16.mxu0 %v7000
        %7038 = vmatpush1.bf16.msra.mxu0 %v6999
        %7039 = vmatprep.subr.bf16.mxu0 %v7002
        %7040 = vmatpush1.bf16.msra.mxu0 %v7001
        %7041 = vmatprep.subr.bf16.mxu0 %v7004
        %7042 = vmatpush1.bf16.msra.mxu0 %v7003
        %7043 = vmatprep.subr.bf16.mxu0 %v7006
        %7044 = vmatpush1.bf16.msra.mxu0 %v7005
        %7045 = vmatprep.subr.bf16.mxu0 %v7008
        %7046 = vmatpush1.bf16.msra.mxu0 %v7007
        %7047 = vmatprep.subr.bf16.mxu0 %v7010
        %7048 = vmatpush1.bf16.msra.mxu0 %v7009
        %7049 = vmatprep.subr.bf16.mxu0 %v7012
        %7050 = vmatpush1.bf16.msra.mxu0 %v7011
        %7051 = vmatprep.subr.bf16.mxu0 %v7014
        %7052 = vmatpush1.bf16.msra.mxu0 %v7013
        %7053 = vmatprep.subr.bf16.mxu0 %v7016
        %7054 = vmatpush1.bf16.msra.mxu0 %v7015
        %7055 = vmatprep.mubr.bf16.mxu0 %v7020
        %7056 = vmatmul.mubr.bf16.gmra.mrb[0].mxu0 %v7019
        %v7057 = vpop.f32.mrb[0].mxu0
        %v7058 = vadd.f32 0.0, %v7057
        %v7059 = vpop.f32.mrb[0].mxu0
        %v7060 = vadd.f32 0.0, %v7059
        %v7061 = vpop.f32.mrb[0].mxu0
        %v7062 = vpop.f32.mrb[0].mxu0
        %7063 = vdwg.mxu0
        %v7066 = vrot.slane %v7058, 4
        %v7067 = vrot.slane %v7060, 4
        %7070 = vst [vmem:[#allocation4 + $0x30] sm:$0xf0] %v7066
        %7071 = vst [vmem:[#allocation4 + $0x38] sm:$0xf0] %v7067
        %v7072 = vld [vmem:[%s5] sm:$0xf]
        %v7073 = vld [vmem:[%s5 + $0x4] sm:$0xf]
        %v7074 = vld [vmem:[%s5 + $0x8] sm:$0xf]
        %v7075 = vld [vmem:[%s5 + $0xc] sm:$0xf]
        %v7076 = vld [vmem:[#allocation4] sm:$0xff]
        %v7077 = vld [vmem:[#allocation4 + $0x8] sm:$0xff]
        %v7078 = vld [vmem:[#allocation4 + $0x10] sm:$0xff]
        %v7079 = vld [vmem:[#allocation4 + $0x18] sm:$0xff]
        %v7080 = vld [vmem:[#allocation4 + $0x20] sm:$0xff]
        %v7081 = vld [vmem:[#allocation4 + $0x28] sm:$0xff]
        %v7082 = vld [vmem:[#allocation4 + $0x30] sm:$0xff]
        %v7083 = vld [vmem:[#allocation4 + $0x38] sm:$0xff]
        %v7084 = vpack.c.bf16 %v7078, %v7076
        %v7085 = vpack.c.bf16 %v7079, %v7077
        %v7086 = vpack.c.bf16 %v7082, %v7080
        %v7087 = vpack.c.bf16 %v7083, %v7081
        %v7088 = vld [vmem:[%s6] sm:$0xff]
        %v7089 = vld [vmem:[%s6 + $0x8] sm:$0xff]
        %v7090 = vld [vmem:[%s6 + $0x10] sm:$0xff]
        %v7091 = vld [vmem:[%s6 + $0x18] sm:$0xff]
        %7093 = vset.pattern.permute.xlu0 0
        %7094 = vperm.xlu0 %7093, %v7088
        %v7095 = vpop.permute.xlu0 %7094
        %7098 = vset.pattern.permute.xlu0 0
        %7099 = vperm.xlu0 %7098, %v7089
        %v7100 = vpop.permute.xlu0 %7099
        %7103 = vset.pattern.permute.xlu0 0
        %7104 = vperm.xlu0 %7103, %v7090
        %v7105 = vpop.permute.xlu0 %7104
        %7108 = vset.pattern.permute.xlu0 0
        %7109 = vperm.xlu0 %7108, %v7091
        %v7110 = vpop.permute.xlu0 %7109
        %v7116 = vunpack.c.l.b16 %v7072
        %v7117 = vunpack.c.l.b16 %v7073
        %v7118 = vunpack.c.l.b16 %v7074
        %v7119 = vunpack.c.l.b16 %v7075
        %v7120 = vpack.c.b16 %v7117, %v7116
        %v7121 = vpack.c.b16 %v7119, %v7118
        %vm7122 = vcmask 261120
        %v7124 = vsel %vm7122, %v7120, 0
        %v7127 = vsel %vm7122, %v7121, 0
        %7129 = vmatprep.subr.bf16.mxu0 %v7085
        %7130 = vmatpush1.bf16.msra.mxu0 %v7084
        %7131 = vmatprep.subr.bf16.mxu0 %v7087
        %7132 = vmatpush1.bf16.msra.mxu0 %v7086
        %7133 = vmatprep.subr.bf16.mxu0 0
        %7134 = vmatpush1.bf16.msra.mxu0 0
        %7135 = vmatprep.subr.bf16.mxu0 0
        %7136 = vmatpush1.bf16.msra.mxu0 0
        %7137 = vmatprep.subr.bf16.mxu0 0
        %7138 = vmatpush1.bf16.msra.mxu0 0
        %7139 = vmatprep.subr.bf16.mxu0 0
        %7140 = vmatpush1.bf16.msra.mxu0 0
        %7141 = vmatprep.subr.bf16.mxu0 0
        %7142 = vmatpush1.bf16.msra.mxu0 0
        %7143 = vmatprep.subr.bf16.mxu0 0
        %7144 = vmatpush1.bf16.msra.mxu0 0
        %7145 = vmatprep.subr.bf16.mxu0 0
        %7146 = vmatpush1.bf16.msra.mxu0 0
        %7147 = vmatprep.subr.bf16.mxu0 0
        %7148 = vmatpush1.bf16.msra.mxu0 0
        %7149 = vmatprep.subr.bf16.mxu0 0
        %7150 = vmatpush1.bf16.msra.mxu0 0
        %7151 = vmatprep.subr.bf16.mxu0 0
        %7152 = vmatpush1.bf16.msra.mxu0 0
        %7153 = vmatprep.subr.bf16.mxu0 0
        %7154 = vmatpush1.bf16.msra.mxu0 0
        %7155 = vmatprep.subr.bf16.mxu0 0
        %7156 = vmatpush1.bf16.msra.mxu0 0
        %7157 = vmatprep.subr.bf16.mxu0 0
        %7158 = vmatpush1.bf16.msra.mxu0 0
        %7159 = vmatprep.subr.bf16.mxu0 0
        %7160 = vmatpush1.bf16.msra.mxu0 0
        %7161 = vmatprep.mubr.bf16.mxu0 0
        %7162 = vmatmul.mubr.bf16.gmra.mrb[0].mxu0 %v7124
        %v7163 = vpop.f32.mrb[0].mxu0
        %v7164 = vadd.f32 %v7095, %v7163
        %v7165 = vpop.f32.mrb[0].mxu0
        %v7166 = vadd.f32 %v7095, %v7165
        %v7167 = vpop.f32.mrb[0].mxu0
        %v7168 = vadd.f32 %v7100, %v7167
        %v7169 = vpop.f32.mrb[0].mxu0
        %v7170 = vadd.f32 %v7100, %v7169
        %7171 = vmatprep.mubr.bf16.mxu0 0
        %7172 = vmatmul.mubr.bf16.gmra.mrb[0].mxu0 %v7127
        %v7173 = vpop.f32.mrb[0].mxu0
        %v7174 = vadd.f32 %v7105, %v7173
        %v7175 = vpop.f32.mrb[0].mxu0
        %v7176 = vadd.f32 %v7105, %v7175
        %v7177 = vpop.f32.mrb[0].mxu0
        %v7178 = vadd.f32 %v7110, %v7177
        %v7179 = vpop.f32.mrb[0].mxu0
        %v7180 = vadd.f32 %v7110, %v7179
        %7181 = vdwg.mxu0
        %7182 = vst [vmem:[%s285] sm:$0xff] %v7164
        %7183 = vst [vmem:[%s285 + $0x8] sm:$0xff] %v7166
        %7184 = vst [vmem:[%s285 + $0x10] sm:$0xff] %v7168
        %7185 = vst [vmem:[%s285 + $0x18] sm:$0xff] %v7170
        %7186 = vst [vmem:[%s285 + $0x20] sm:$0xff] %v7174
        %7187 = vst [vmem:[%s285 + $0x28] sm:$0xff] %v7176
        %7188 = vst [vmem:[%s285 + $0x30] sm:$0xff] %v7178
        %7189 = vst [vmem:[%s285 + $0x38] sm:$0xff] %v7180
        %s7190 = sand.u32 %s195, 1
        %s7191 = scalar_lea.sflag [#allocation6], %s7190
        %s7192 = sand.u32 %s195, 1
        %s7193 = smul.addr %s7192, 64
        %s7194 = scalar_lea.vmem [#allocation5], %s7193
        // Predicated region
        $region53: #{tpu_custom_call.1} parent=47 // pred_check
          %p7195 = pneg %p205
        $region54: #{tpu_custom_call.1} parent=47 // pred_check_branch
          %7197 = sbr.rel (%p7195) target = $region56
        $region55: #{tpu_custom_call.1} parent=47 // pred_region
          %s7198 = smul.u32 2, %s26
          %s7200 = ssub.s32 1024, 1024
          %7201 = vsyncadd %s7191, %s7200
          %s7202 = smul.addr %s25, 8
          %s7203 = sadd.s32 %s7198, %s7202
          %s7204 = smul.addr %s7203, 128
          %s7205 = scalar_lea.hbm %s7, %s7204
          %s7206 = sshll.u32 %s7194, 4
          %s7207 = int_to_ptr.vmem [resolvable:$true] %s7206
          %7212 = dma.vmem_to_hbm [thread:$0]  %s7207, 1024, %s7205, %s7191, 256, 256, 16
        $region56: #{tpu_custom_call.1} parent=47 // pred_fallthru
          _
      $region48: #{tpu_custom_call.1} parent=5 // pred_fallthru
        _
      %p7213 = scmp.le.s32.totalorder 2, %s16
      // Predicated region
      $region57: #{tpu_custom_call.1} parent=5 // pred_check
        %p7214 = pneg %p7213
      $region58: #{tpu_custom_call.1} parent=5 // pred_check_branch
        %7216 = sbr.rel (%p7214) target = $region60
      $region59: #{tpu_custom_call.1} parent=5 // pred_region
        %s7217 = ssub.s32 %s16, 2
        // Predicated region
        $region61: #{tpu_custom_call.1} parent=59 // pred_check
          %p7218 = pneg %p211
        $region62: #{tpu_custom_call.1} parent=59 // pred_check_branch
          %7220 = sbr.rel (%p7218) target = $region64
        $region63: #{tpu_custom_call.1} parent=59 // pred_region
          %s7221 = sand.u32 %s196, 1
          %s7222 = scalar_lea.sflag [#allocation6], %s7221
          %s7223 = sand.u32 %s196, 1
          %s7224 = smul.addr %s7223, 64
          %s7225 = scalar_lea.vmem [#allocation5], %s7224
          %7226 = dma.done %s7222, 1024
        $region64: #{tpu_custom_call.1} parent=59 // pred_fallthru
          _
      $region60: #{tpu_custom_call.1} parent=5 // pred_fallthru
        _
    $region6: #{tpu_custom_call.1} parent=1 // loop_footer
      %s20 = sadd.s32 1, %s16
    $region7: #{tpu_custom_call.1} parent=1 // loop_footer_branch
      %15 = sbr.rel target = $region3
    $region8: #{tpu_custom_call.1} parent=1 // loop_exit
      _
    %7227 = vsyncpa [#allocation6], 1
    %s7228 = scalar_lea.sflag [#allocation6], 1
    %7229 = vsyncpa %s7228, 1

</llo_original>
